<compile_context>
chip_gen: v6e
topology: v6e:2x2x1
jax: 0.10.0
libtpu: 0.0.40
codegen_flags: <defaults>
</compile_context>

<pallas_src>
import jax
import jax.numpy as jnp
from jax.experimental import pallas as pl
from jax.experimental.pallas import tpu as pltpu


def _group_kernel(x_ref, convw_ref, pwin_ref, pwout_ref, biasc_ref, biascr_ref,
                  out_ref, pad_ref):
    """Full residual group for one batch element.

    x_ref     : (H, W, C)      f32   input activation (NHWC slice)
    convw_ref : (2B, 9C, C)    bf16  im2col 3x3 weights [blk0 c1, blk0 c2, blk1 c1, ...]
    pwin_ref  : (2B, C, Cr)    bf16  1x1 in-proj  [blk0 local, blk0 global, ...] (BN1 scale folded)
    pwout_ref : (2B, Cr, C)    bf16  1x1 out-proj [blk0 local, blk0 global, ...] (BN2 scale folded)
    biasc_ref : (B, 4, C)      f32   rows: conv1 bias, conv2 bias, local BN2 shift, global BN2 shift
    biascr_ref: (B, 2, Cr)     f32   rows: local BN1 shift, global BN1 shift
    out_ref   : (H*W, C)       f32
    pad_ref   : (H+2, W+2, C)  f32   VMEM scratch holding the zero-padded conv input
    """
    Hp, Wp, C = pad_ref.shape
    H, W = Hp - 2, Wp - 2
    HW = H * W
    n_blocks = biasc_ref.shape[0]

    # Zero the padded scratch once per grid step.  The interior is fully
    # overwritten before every conv and the 1-wide border is never written,
    # so a single tiny zero-fill per batch element suffices (megacore-safe).
    pad_ref[...] = jnp.zeros(pad_ref.shape, jnp.float32)

    def conv3x3(w2d, bias):
        # im2col: build (HW, 9C) once, then ONE MXU matmul with K = 9C.
        pad = pad_ref[...]
        cols = [pad[dy:dy + H, dx:dx + W, :].reshape(HW, C)
                for dy in range(3) for dx in range(3)]
        patches = jnp.concatenate(cols, axis=1).astype(jnp.bfloat16)   # (HW, 9C)
        return jnp.dot(patches, w2d, preferred_element_type=jnp.float32) + bias

    act = x_ref[...].reshape(HW, C)                     # resident across all blocks

    for blk in range(n_blocks):
        bc = biasc_ref[blk]                             # (4, C)
        bcr = biascr_ref[blk]                           # (2, Cr)

        # ---- conv3x3 -> ReLU ----
        pad_ref[1:H + 1, 1:W + 1, :] = act.reshape(H, W, C)
        h1 = jnp.maximum(conv3x3(convw_ref[2 * blk], bc[0:1, :]), 0.0)

        # ---- conv3x3 ----
        pad_ref[1:H + 1, 1:W + 1, :] = h1.reshape(H, W, C)
        res = conv3x3(convw_ref[2 * blk + 1], bc[1:2, :])          # (HW, C) f32

        res_b = res.astype(jnp.bfloat16)

        # ---- MS-CAM local branch (BN scale folded into weights, bias into shift) ----
        yl = jnp.dot(res_b, pwin_ref[2 * blk], preferred_element_type=jnp.float32)
        yl = jnp.maximum(yl + bcr[0:1, :], 0.0)
        xl = jnp.dot(yl.astype(jnp.bfloat16), pwout_ref[2 * blk],
                     preferred_element_type=jnp.float32) + bc[2:3, :]

        # ---- MS-CAM global branch (GAP over H*W) ----
        g = jnp.mean(res, axis=0, keepdims=True).astype(jnp.bfloat16)   # (1, C)
        yg = jnp.dot(g, pwin_ref[2 * blk + 1], preferred_element_type=jnp.float32)
        yg = jnp.maximum(yg + bcr[1:2, :], 0.0)
        xg = jnp.dot(yg.astype(jnp.bfloat16), pwout_ref[2 * blk + 1],
                     preferred_element_type=jnp.float32) + bc[3:4, :]

        wei = jax.nn.sigmoid(xl + xg)                   # channel attention weights
        act = act + res * wei                           # residual connection

    out_ref[...] = act


def _pack_group_params(block_params_list, C):
    """Fold eval-mode BN + 1x1 biases and stack all per-block params."""
    conv_w, pw_in, pw_out, bias_c, bias_cr = [], [], [], [], []
    for p in block_params_list:
        # 3x3 HWIO -> im2col (9C, C); row order matches the kernel's (dy, dx, ci) taps
        conv_w += [p["w1"].reshape(9 * C, C), p["w2"].reshape(9 * C, C)]
        # fold: (y @ w + b) * s + t == y @ (w * s) + (b * s + t)
        lw1 = p["lw1"] * p["ls1"]; lsh1 = p["lb1"] * p["ls1"] + p["lt1"]
        lw2 = p["lw2"] * p["ls2"]; lsh2 = p["lb2"] * p["ls2"] + p["lt2"]
        gw1 = p["gw1"] * p["gs1"]; gsh1 = p["gb1"] * p["gs1"] + p["gt1"]
        gw2 = p["gw2"] * p["gs2"]; gsh2 = p["gb2"] * p["gs2"] + p["gt2"]
        pw_in += [lw1, gw1]
        pw_out += [lw2, gw2]
        bias_c.append(jnp.concatenate([p["b1"], p["b2"], lsh2, gsh2], axis=0))   # (4, C)
        bias_cr.append(jnp.concatenate([lsh1, gsh1], axis=0))                    # (2, Cr)
    return (jnp.stack(conv_w).astype(jnp.bfloat16),     # (2B, 9C, C)
            jnp.stack(pw_in).astype(jnp.bfloat16),      # (2B, C, Cr)
            jnp.stack(pw_out).astype(jnp.bfloat16),     # (2B, Cr, C)
            jnp.stack(bias_c),                          # (B, 4, C)  f32
            jnp.stack(bias_cr))                         # (B, 2, Cr) f32


def residual_group_rcab_mscam(x, block_params_list):
    """x: (N, H, W, C) float32 NHWC. Whole residual group in one pallas_call."""
    N, H, W, C = x.shape
    conv_w, pw_in, pw_out, bias_c, bias_cr = _pack_group_params(block_params_list, C)

    out = pl.pallas_call(
        _group_kernel,
        out_shape=jax.ShapeDtypeStruct((N, H * W, C), jnp.float32),
        grid_spec=pltpu.PrefetchScalarGridSpec(
            num_scalar_prefetch=0,
            grid=(N,),
            in_specs=[
                pl.BlockSpec((None, H, W, C), lambda n: (n, 0, 0, 0)),
                pl.BlockSpec(conv_w.shape, lambda n: (0, 0, 0)),
                pl.BlockSpec(pw_in.shape, lambda n: (0, 0, 0)),
                pl.BlockSpec(pw_out.shape, lambda n: (0, 0, 0)),
                pl.BlockSpec(bias_c.shape, lambda n: (0, 0, 0)),
                pl.BlockSpec(bias_cr.shape, lambda n: (0, 0, 0)),
            ],
            out_specs=pl.BlockSpec((None, H * W, C), lambda n: (n, 0, 0)),
            scratch_shapes=[pltpu.VMEM((H + 2, W + 2, C), jnp.float32)],
        ),
        compiler_params=pltpu.CompilerParams(
            dimension_semantics=("parallel",)),   # batch across TCs on v7x
    )(x, conv_w, pw_in, pw_out, bias_c, bias_cr)
    return out.reshape(N, H, W, C)


# ---------------- deterministic parameter construction ----------------
def init_block_params(key, C, r=4):
    Cr = max(C // r, 1)
    eps = 1e-5
    ks = jax.random.split(key, 12)

    def rnd(k, shape, scale):
        return scale * jax.random.normal(k, shape, jnp.float32)

    def bn_affine(k, ch):
        k1, k2, k3, k4 = jax.random.split(k, 4)
        gamma = 1.0 + 0.1 * jax.random.normal(k1, (1, ch), jnp.float32)
        beta = 0.1 * jax.random.normal(k2, (1, ch), jnp.float32)
        mean = 0.1 * jax.random.normal(k3, (1, ch), jnp.float32)
        var = 1.0 + 0.1 * jnp.abs(jax.random.normal(k4, (1, ch), jnp.float32))
        scale = gamma / jnp.sqrt(var + eps)   # eval-mode BN folded to scale/shift
        shift = beta - mean * scale
        return scale, shift

    p = dict(
        # 3x3 conv weights stored HWIO: (3, 3, C_in, C_out)
        w1=rnd(ks[0], (3, 3, C, C), 0.05), b1=rnd(ks[1], (1, C), 0.01),
        w2=rnd(ks[2], (3, 3, C, C), 0.05), b2=rnd(ks[3], (1, C), 0.01),
        # 1x1 conv weights stored as (C_in, C_out)
        lw1=rnd(ks[4], (C, Cr), 0.1), lb1=rnd(ks[5], (1, Cr), 0.01),
        lw2=rnd(ks[6], (Cr, C), 0.1), lb2=rnd(ks[7], (1, C), 0.01),
        gw1=rnd(ks[8], (C, Cr), 0.1), gb1=rnd(ks[9], (1, Cr), 0.01),
        gw2=rnd(ks[10], (Cr, C), 0.1), gb2=rnd(ks[11], (1, C), 0.01),
    )
    kbn = jax.random.split(jax.random.fold_in(key, 99), 4)
    p["ls1"], p["lt1"] = bn_affine(kbn[0], Cr)
    p["ls2"], p["lt2"] = bn_affine(kbn[1], C)
    p["gs1"], p["gt1"] = bn_affine(kbn[2], Cr)
    p["gs2"], p["gt2"] = bn_affine(kbn[3], C)
    return p


# ---------------- pure-JAX f32 reference (for sanity check) ----------------
def rcab_mscam_block_ref(x, p):
    def conv3x3(inp, w, b):
        y = jax.lax.conv_general_dilated(
            inp, w, window_strides=(1, 1), padding="SAME",
            dimension_numbers=("NHWC", "HWIO", "NHWC"))
        return y + b.reshape(1, 1, 1, -1)

    h1 = jax.nn.relu(conv3x3(x, p["w1"], p["b1"]))
    res = conv3x3(h1, p["w2"], p["b2"])
    N, H, W, C = res.shape
    r2 = res.reshape(N, H * W, C)

    yl = r2 @ p["lw1"] + p["lb1"]
    yl = jax.nn.relu(yl * p["ls1"] + p["lt1"])
    yl = yl @ p["lw2"] + p["lb2"]
    xl = yl * p["ls2"] + p["lt2"]

    g = jnp.mean(r2, axis=1, keepdims=True)
    yg = g @ p["gw1"] + p["gb1"]
    yg = jax.nn.relu(yg * p["gs1"] + p["gt1"])
    yg = yg @ p["gw2"] + p["gb2"]
    xg = yg * p["gs2"] + p["gt2"]

    wei = jax.nn.sigmoid(xl + xg)
    out = x.reshape(N, H * W, C) + r2 * wei
    return out.reshape(N, H, W, C)


if __name__ == "__main__":
    key = jax.random.PRNGKey(0)
    N, C, H, W = 2, 16, 16, 16
    n_resblocks = 3

    kx, kp = jax.random.split(key)
    x_nchw = jax.random.normal(kx, (N, C, H, W), jnp.float32)   # PyTorch-convention input
    x = jnp.transpose(x_nchw, (0, 2, 3, 1))                      # -> NHWC for the kernel

    block_params = [init_block_params(jax.random.fold_in(kp, i), C, r=4)
                    for i in range(n_resblocks)]

    y = residual_group_rcab_mscam(x, block_params)
    y = jax.block_until_ready(y)

    # sanity check against a plain-JAX f32 reference (kernel matmuls use bf16
    # inputs with f32 accumulation, so the bound is correspondingly loose)
    yr = x
    for p in block_params:
        yr = rcab_mscam_block_ref(yr, p)
    err = float(jnp.max(jnp.abs(y - yr)))
    if err > 1e-1:
        raise AssertionError(f"kernel/reference mismatch, max abs err = {err}")

    print("KERNEL_OK")
</pallas_src>

<mosaic_0001>
module attributes {stable_mosaic.version = 11 : i64} {
  func.func @_group_kernel(%arg0: i32, %arg1: memref<1x16x16x16xf32, #tpu.memory_space<vmem>>, %arg2: memref<6x144x16xbf16, #tpu.memory_space<vmem>>, %arg3: memref<6x16x4xbf16, #tpu.memory_space<vmem>>, %arg4: memref<6x4x16xbf16, #tpu.memory_space<vmem>>, %arg5: memref<3x4x16xf32, #tpu.memory_space<vmem>>, %arg6: memref<3x2x4xf32, #tpu.memory_space<vmem>>, %arg7: memref<1x256x16xf32, #tpu.memory_space<vmem>>, %arg8: memref<18x18x16xf32, #tpu.memory_space<vmem>>) attributes {dimension_semantics = [#tpu.dimension_semantics<parallel>], iteration_bounds = array<i64: 2>, scalar_prefetch = 0 : i64, scratch_operands = 1 : i64, tpu.core_type = #tpu.core_type<tc>, window_params = [{transform_indices = @transform_0, window_bounds = array<i64: 1, 16, 16, 16>}, {pipeline_mode = #tpu.pipeline_mode<synchronous>, transform_indices = @transform_1, window_bounds = array<i64: 6, 144, 16>}, {pipeline_mode = #tpu.pipeline_mode<synchronous>, transform_indices = @transform_2, window_bounds = array<i64: 6, 16, 4>}, {pipeline_mode = #tpu.pipeline_mode<synchronous>, transform_indices = @transform_3, window_bounds = array<i64: 6, 4, 16>}, {pipeline_mode = #tpu.pipeline_mode<synchronous>, transform_indices = @transform_4, window_bounds = array<i64: 3, 4, 16>}, {pipeline_mode = #tpu.pipeline_mode<synchronous>, transform_indices = @transform_5, window_bounds = array<i64: 3, 2, 4>}, {transform_indices = @transform_6, window_bounds = array<i64: 1, 256, 16>}]} {
    %cst = arith.constant 0.000000e+00 : f32
    %0 = vector.broadcast %cst : f32 to vector<18x18x16xf32>
    %c0 = arith.constant 0 : index
    %c0_0 = arith.constant 0 : index
    %c0_1 = arith.constant 0 : index
    %1 = vector.load %arg8[%c0, %c0_0, %c0_1] : memref<18x18x16xf32, #tpu.memory_space<vmem>>, vector<18x18x16xf32>
    tpu.vector_store %arg8[%c0, %c0_0, %c0_1], %0 {strides = array<i32>} : memref<18x18x16xf32, #tpu.memory_space<vmem>>, vector<18x18x16xf32>,
    %c0_2 = arith.constant 0 : index
    %c0_3 = arith.constant 0 : index
    %c0_4 = arith.constant 0 : index
    %c0_5 = arith.constant 0 : index
    %2 = vector.load %arg1[%c0_2, %c0_3, %c0_4, %c0_5] : memref<1x16x16x16xf32, #tpu.memory_space<vmem>>, vector<1x16x16x16xf32>
    %3 = vector.shape_cast %2 : vector<1x16x16x16xf32> to vector<16x16x16xf32>
    %4 = vector.shape_cast %3 : vector<16x16x16xf32> to vector<256x16xf32>
    %c0_6 = arith.constant 0 : index
    %c0_7 = arith.constant 0 : index
    %c0_8 = arith.constant 0 : index
    %5 = vector.load %arg5[%c0_6, %c0_7, %c0_8] : memref<3x4x16xf32, #tpu.memory_space<vmem>>, vector<1x4x16xf32>
    %6 = vector.shape_cast %5 : vector<1x4x16xf32> to vector<4x16xf32>
    %c0_9 = arith.constant 0 : index
    %c0_10 = arith.constant 0 : index
    %c0_11 = arith.constant 0 : index
    %7 = vector.load %arg6[%c0_9, %c0_10, %c0_11] : memref<3x2x4xf32, #tpu.memory_space<vmem>>, vector<1x2x4xf32>
    %8 = vector.shape_cast %7 : vector<1x2x4xf32> to vector<2x4xf32>
    %9 = vector.shape_cast %4 : vector<256x16xf32> to vector<16x16x16xf32>
    %c1 = arith.constant 1 : index
    %c1_12 = arith.constant 1 : index
    %c0_13 = arith.constant 0 : index
    %10 = vector.load %arg8[%c1, %c1_12, %c0_13] : memref<18x18x16xf32, #tpu.memory_space<vmem>>, vector<16x16x16xf32>
    tpu.vector_store %arg8[%c1, %c1_12, %c0_13], %9 {strides = array<i32>} : memref<18x18x16xf32, #tpu.memory_space<vmem>>, vector<16x16x16xf32>,
    %c0_14 = arith.constant 0 : index
    %c0_15 = arith.constant 0 : index
    %c0_16 = arith.constant 0 : index
    %11 = vector.load %arg2[%c0_14, %c0_15, %c0_16] : memref<6x144x16xbf16, #tpu.memory_space<vmem>>, vector<1x144x16xbf16>
    %12 = vector.shape_cast %11 : vector<1x144x16xbf16> to vector<144x16xbf16>
    %13 = vector.extract_strided_slice %6 {offsets = [0, 0], sizes = [1, 16], strides = [1, 1]} : vector<4x16xf32> to vector<1x16xf32>
    %c0_17 = arith.constant 0 : index
    %c0_18 = arith.constant 0 : index
    %c0_19 = arith.constant 0 : index
    %14 = vector.load %arg8[%c0_17, %c0_18, %c0_19] : memref<18x18x16xf32, #tpu.memory_space<vmem>>, vector<18x18x16xf32>
    %15 = vector.extract_strided_slice %14 {offsets = [0, 0, 0], sizes = [16, 16, 16], strides = [1, 1, 1]} : vector<18x18x16xf32> to vector<16x16x16xf32>
    %16 = vector.shape_cast %15 : vector<16x16x16xf32> to vector<256x16xf32>
    %17 = vector.extract_strided_slice %14 {offsets = [0, 1, 0], sizes = [16, 16, 16], strides = [1, 1, 1]} : vector<18x18x16xf32> to vector<16x16x16xf32>
    %18 = vector.shape_cast %17 : vector<16x16x16xf32> to vector<256x16xf32>
    %19 = vector.extract_strided_slice %14 {offsets = [0, 2, 0], sizes = [16, 16, 16], strides = [1, 1, 1]} : vector<18x18x16xf32> to vector<16x16x16xf32>
    %20 = vector.shape_cast %19 : vector<16x16x16xf32> to vector<256x16xf32>
    %21 = vector.extract_strided_slice %14 {offsets = [1, 0, 0], sizes = [16, 16, 16], strides = [1, 1, 1]} : vector<18x18x16xf32> to vector<16x16x16xf32>
    %22 = vector.shape_cast %21 : vector<16x16x16xf32> to vector<256x16xf32>
    %23 = vector.extract_strided_slice %14 {offsets = [1, 1, 0], sizes = [16, 16, 16], strides = [1, 1, 1]} : vector<18x18x16xf32> to vector<16x16x16xf32>
    %24 = vector.shape_cast %23 : vector<16x16x16xf32> to vector<256x16xf32>
    %25 = vector.extract_strided_slice %14 {offsets = [1, 2, 0], sizes = [16, 16, 16], strides = [1, 1, 1]} : vector<18x18x16xf32> to vector<16x16x16xf32>
    %26 = vector.shape_cast %25 : vector<16x16x16xf32> to vector<256x16xf32>
    %27 = vector.extract_strided_slice %14 {offsets = [2, 0, 0], sizes = [16, 16, 16], strides = [1, 1, 1]} : vector<18x18x16xf32> to vector<16x16x16xf32>
    %28 = vector.shape_cast %27 : vector<16x16x16xf32> to vector<256x16xf32>
    %29 = vector.extract_strided_slice %14 {offsets = [2, 1, 0], sizes = [16, 16, 16], strides = [1, 1, 1]} : vector<18x18x16xf32> to vector<16x16x16xf32>
    %30 = vector.shape_cast %29 : vector<16x16x16xf32> to vector<256x16xf32>
    %31 = vector.extract_strided_slice %14 {offsets = [2, 2, 0], sizes = [16, 16, 16], strides = [1, 1, 1]} : vector<18x18x16xf32> to vector<16x16x16xf32>
    %32 = vector.shape_cast %31 : vector<16x16x16xf32> to vector<256x16xf32>
    %33 = tpu.concatenate %16, %18, %20, %22, %24, %26, %28, %30, %32 in 1 : vector<256x16xf32>, vector<256x16xf32>, vector<256x16xf32>, vector<256x16xf32>, vector<256x16xf32>, vector<256x16xf32>, vector<256x16xf32>, vector<256x16xf32>, vector<256x16xf32> -> vector<256x144xf32>
    %34 = arith.truncf %33 : vector<256x144xf32> to vector<256x144xbf16>
    %cst_20 = arith.constant dense<0.000000e+00> : vector<256x16xf32>
    %35 = tpu.matmul %34, %12, %cst_20 {dimension_numbers = #tpu.dot_dimension_numbers<[1], [0], [0], [1], [0, 0, 1, 1], [], []>} : vector<256x144xbf16>, vector<144x16xbf16>, vector<256x16xf32> -> vector<256x16xf32>
    %36 = vector.broadcast %13 : vector<1x16xf32> to vector<256x16xf32>
    %37 = arith.addf %35, %36 : vector<256x16xf32>
    %cst_21 = arith.constant 0.000000e+00 : f32
    %38 = vector.broadcast %cst_21 : f32 to vector<256x16xf32>
    %39 = arith.maximumf %37, %38 : vector<256x16xf32>
    %40 = vector.shape_cast %39 : vector<256x16xf32> to vector<16x16x16xf32>
    %c1_22 = arith.constant 1 : index
    %c1_23 = arith.constant 1 : index
    %c0_24 = arith.constant 0 : index
    %41 = vector.load %arg8[%c1_22, %c1_23, %c0_24] : memref<18x18x16xf32, #tpu.memory_space<vmem>>, vector<16x16x16xf32>
    tpu.vector_store %arg8[%c1_22, %c1_23, %c0_24], %40 {strides = array<i32>} : memref<18x18x16xf32, #tpu.memory_space<vmem>>, vector<16x16x16xf32>,
    %c1_25 = arith.constant 1 : index
    %c0_26 = arith.constant 0 : index
    %c0_27 = arith.constant 0 : index
    %42 = vector.load %arg2[%c1_25, %c0_26, %c0_27] : memref<6x144x16xbf16, #tpu.memory_space<vmem>>, vector<1x144x16xbf16>
    %43 = vector.shape_cast %42 : vector<1x144x16xbf16> to vector<144x16xbf16>
    %44 = vector.extract_strided_slice %6 {offsets = [1, 0], sizes = [1, 16], strides = [1, 1]} : vector<4x16xf32> to vector<1x16xf32>
    %c0_28 = arith.constant 0 : index
    %c0_29 = arith.constant 0 : index
    %c0_30 = arith.constant 0 : index
    %45 = vector.load %arg8[%c0_28, %c0_29, %c0_30] : memref<18x18x16xf32, #tpu.memory_space<vmem>>, vector<18x18x16xf32>
    %46 = vector.extract_strided_slice %45 {offsets = [0, 0, 0], sizes = [16, 16, 16], strides = [1, 1, 1]} : vector<18x18x16xf32> to vector<16x16x16xf32>
    %47 = vector.shape_cast %46 : vector<16x16x16xf32> to vector<256x16xf32>
    %48 = vector.extract_strided_slice %45 {offsets = [0, 1, 0], sizes = [16, 16, 16], strides = [1, 1, 1]} : vector<18x18x16xf32> to vector<16x16x16xf32>
    %49 = vector.shape_cast %48 : vector<16x16x16xf32> to vector<256x16xf32>
    %50 = vector.extract_strided_slice %45 {offsets = [0, 2, 0], sizes = [16, 16, 16], strides = [1, 1, 1]} : vector<18x18x16xf32> to vector<16x16x16xf32>
    %51 = vector.shape_cast %50 : vector<16x16x16xf32> to vector<256x16xf32>
    %52 = vector.extract_strided_slice %45 {offsets = [1, 0, 0], sizes = [16, 16, 16], strides = [1, 1, 1]} : vector<18x18x16xf32> to vector<16x16x16xf32>
    %53 = vector.shape_cast %52 : vector<16x16x16xf32> to vector<256x16xf32>
    %54 = vector.extract_strided_slice %45 {offsets = [1, 1, 0], sizes = [16, 16, 16], strides = [1, 1, 1]} : vector<18x18x16xf32> to vector<16x16x16xf32>
    %55 = vector.shape_cast %54 : vector<16x16x16xf32> to vector<256x16xf32>
    %56 = vector.extract_strided_slice %45 {offsets = [1, 2, 0], sizes = [16, 16, 16], strides = [1, 1, 1]} : vector<18x18x16xf32> to vector<16x16x16xf32>
    %57 = vector.shape_cast %56 : vector<16x16x16xf32> to vector<256x16xf32>
    %58 = vector.extract_strided_slice %45 {offsets = [2, 0, 0], sizes = [16, 16, 16], strides = [1, 1, 1]} : vector<18x18x16xf32> to vector<16x16x16xf32>
    %59 = vector.shape_cast %58 : vector<16x16x16xf32> to vector<256x16xf32>
    %60 = vector.extract_strided_slice %45 {offsets = [2, 1, 0], sizes = [16, 16, 16], strides = [1, 1, 1]} : vector<18x18x16xf32> to vector<16x16x16xf32>
    %61 = vector.shape_cast %60 : vector<16x16x16xf32> to vector<256x16xf32>
    %62 = vector.extract_strided_slice %45 {offsets = [2, 2, 0], sizes = [16, 16, 16], strides = [1, 1, 1]} : vector<18x18x16xf32> to vector<16x16x16xf32>
    %63 = vector.shape_cast %62 : vector<16x16x16xf32> to vector<256x16xf32>
    %64 = tpu.concatenate %47, %49, %51, %53, %55, %57, %59, %61, %63 in 1 : vector<256x16xf32>, vector<256x16xf32>, vector<256x16xf32>, vector<256x16xf32>, vector<256x16xf32>, vector<256x16xf32>, vector<256x16xf32>, vector<256x16xf32>, vector<256x16xf32> -> vector<256x144xf32>
    %65 = arith.truncf %64 : vector<256x144xf32> to vector<256x144xbf16>
    %cst_31 = arith.constant dense<0.000000e+00> : vector<256x16xf32>
    %66 = tpu.matmul %65, %43, %cst_31 {dimension_numbers = #tpu.dot_dimension_numbers<[1], [0], [0], [1], [0, 0, 1, 1], [], []>} : vector<256x144xbf16>, vector<144x16xbf16>, vector<256x16xf32> -> vector<256x16xf32>
    %67 = vector.broadcast %44 : vector<1x16xf32> to vector<256x16xf32>
    %68 = arith.addf %66, %67 : vector<256x16xf32>
    %69 = arith.truncf %68 : vector<256x16xf32> to vector<256x16xbf16>
    %c0_32 = arith.constant 0 : index
    %c0_33 = arith.constant 0 : index
    %c0_34 = arith.constant 0 : index
    %70 = vector.load %arg3[%c0_32, %c0_33, %c0_34] : memref<6x16x4xbf16, #tpu.memory_space<vmem>>, vector<1x16x4xbf16>
    %71 = vector.shape_cast %70 : vector<1x16x4xbf16> to vector<16x4xbf16>
    %cst_35 = arith.constant dense<0.000000e+00> : vector<256x4xf32>
    %72 = tpu.matmul %69, %71, %cst_35 {dimension_numbers = #tpu.dot_dimension_numbers<[1], [0], [0], [1], [0, 0, 1, 1], [], []>} : vector<256x16xbf16>, vector<16x4xbf16>, vector<256x4xf32> -> vector<256x4xf32>
    %73 = vector.extract_strided_slice %8 {offsets = [0, 0], sizes = [1, 4], strides = [1, 1]} : vector<2x4xf32> to vector<1x4xf32>
    %74 = vector.broadcast %73 : vector<1x4xf32> to vector<256x4xf32>
    %75 = arith.addf %72, %74 : vector<256x4xf32>
    %cst_36 = arith.constant 0.000000e+00 : f32
    %76 = vector.broadcast %cst_36 : f32 to vector<256x4xf32>
    %77 = arith.maximumf %75, %76 : vector<256x4xf32>
    %78 = arith.truncf %77 : vector<256x4xf32> to vector<256x4xbf16>
    %c0_37 = arith.constant 0 : index
    %c0_38 = arith.constant 0 : index
    %c0_39 = arith.constant 0 : index
    %79 = vector.load %arg4[%c0_37, %c0_38, %c0_39] : memref<6x4x16xbf16, #tpu.memory_space<vmem>>, vector<1x4x16xbf16>
    %80 = vector.shape_cast %79 : vector<1x4x16xbf16> to vector<4x16xbf16>
    %cst_40 = arith.constant dense<0.000000e+00> : vector<256x16xf32>
    %81 = tpu.matmul %78, %80, %cst_40 {dimension_numbers = #tpu.dot_dimension_numbers<[1], [0], [0], [1], [0, 0, 1, 1], [], []>} : vector<256x4xbf16>, vector<4x16xbf16>, vector<256x16xf32> -> vector<256x16xf32>
    %82 = vector.extract_strided_slice %6 {offsets = [2, 0], sizes = [1, 16], strides = [1, 1]} : vector<4x16xf32> to vector<1x16xf32>
    %83 = vector.broadcast %82 : vector<1x16xf32> to vector<256x16xf32>
    %84 = arith.addf %81, %83 : vector<256x16xf32>
    %cst_41 = arith.constant dense<0.000000e+00> : vector<16xf32>
    %85 = vector.multi_reduction <add>, %68, %cst_41 [0] : vector<256x16xf32> to vector<16xf32>
    %86 = vector.shape_cast %85 : vector<16xf32> to vector<1x16xf32>
    %cst_42 = arith.constant 2.560000e+02 : f32
    %87 = vector.broadcast %cst_42 : f32 to vector<1x16xf32>
    %88 = arith.divf %86, %87 : vector<1x16xf32>
    %89 = arith.truncf %88 : vector<1x16xf32> to vector<1x16xbf16>
    %c1_43 = arith.constant 1 : index
    %c0_44 = arith.constant 0 : index
    %c0_45 = arith.constant 0 : index
    %90 = vector.load %arg3[%c1_43, %c0_44, %c0_45] : memref<6x16x4xbf16, #tpu.memory_space<vmem>>, vector<1x16x4xbf16>
    %91 = vector.shape_cast %90 : vector<1x16x4xbf16> to vector<16x4xbf16>
    %cst_46 = arith.constant dense<0.000000e+00> : vector<1x4xf32>
    %92 = tpu.matmul %89, %91, %cst_46 {dimension_numbers = #tpu.dot_dimension_numbers<[1], [0], [0], [1], [0, 0, 1, 1], [], []>} : vector<1x16xbf16>, vector<16x4xbf16>, vector<1x4xf32> -> vector<1x4xf32>
    %93 = vector.extract_strided_slice %8 {offsets = [1, 0], sizes = [1, 4], strides = [1, 1]} : vector<2x4xf32> to vector<1x4xf32>
    %94 = arith.addf %92, %93 : vector<1x4xf32>
    %cst_47 = arith.constant 0.000000e+00 : f32
    %95 = vector.broadcast %cst_47 : f32 to vector<1x4xf32>
    %96 = arith.maximumf %94, %95 : vector<1x4xf32>
    %97 = arith.truncf %96 : vector<1x4xf32> to vector<1x4xbf16>
    %c1_48 = arith.constant 1 : index
    %c0_49 = arith.constant 0 : index
    %c0_50 = arith.constant 0 : index
    %98 = vector.load %arg4[%c1_48, %c0_49, %c0_50] : memref<6x4x16xbf16, #tpu.memory_space<vmem>>, vector<1x4x16xbf16>
    %99 = vector.shape_cast %98 : vector<1x4x16xbf16> to vector<4x16xbf16>
    %cst_51 = arith.constant dense<0.000000e+00> : vector<1x16xf32>
    %100 = tpu.matmul %97, %99, %cst_51 {dimension_numbers = #tpu.dot_dimension_numbers<[1], [0], [0], [1], [0, 0, 1, 1], [], []>} : vector<1x4xbf16>, vector<4x16xbf16>, vector<1x16xf32> -> vector<1x16xf32>
    %101 = vector.extract_strided_slice %6 {offsets = [3, 0], sizes = [1, 16], strides = [1, 1]} : vector<4x16xf32> to vector<1x16xf32>
    %102 = arith.addf %100, %101 : vector<1x16xf32>
    %103 = vector.broadcast %102 : vector<1x16xf32> to vector<256x16xf32>
    %104 = arith.addf %84, %103 : vector<256x16xf32>
    %105 = arith.negf %104 : vector<256x16xf32>
    %106 = math.exp %105 : vector<256x16xf32>
    %cst_52 = arith.constant 1.000000e+00 : f32
    %107 = vector.broadcast %cst_52 : f32 to vector<256x16xf32>
    %108 = arith.addf %107, %106 : vector<256x16xf32>
    %109 = arith.divf %107, %108 : vector<256x16xf32>
    %110 = arith.mulf %68, %109 : vector<256x16xf32>
    %111 = arith.addf %4, %110 : vector<256x16xf32>
    %c1_53 = arith.constant 1 : index
    %c0_54 = arith.constant 0 : index
    %c0_55 = arith.constant 0 : index
    %112 = vector.load %arg5[%c1_53, %c0_54, %c0_55] : memref<3x4x16xf32, #tpu.memory_space<vmem>>, vector<1x4x16xf32>
    %113 = vector.shape_cast %112 : vector<1x4x16xf32> to vector<4x16xf32>
    %c1_56 = arith.constant 1 : index
    %c0_57 = arith.constant 0 : index
    %c0_58 = arith.constant 0 : index
    %114 = vector.load %arg6[%c1_56, %c0_57, %c0_58] : memref<3x2x4xf32, #tpu.memory_space<vmem>>, vector<1x2x4xf32>
    %115 = vector.shape_cast %114 : vector<1x2x4xf32> to vector<2x4xf32>
    %116 = vector.shape_cast %111 : vector<256x16xf32> to vector<16x16x16xf32>
    %c1_59 = arith.constant 1 : index
    %c1_60 = arith.constant 1 : index
    %c0_61 = arith.constant 0 : index
    %117 = vector.load %arg8[%c1_59, %c1_60, %c0_61] : memref<18x18x16xf32, #tpu.memory_space<vmem>>, vector<16x16x16xf32>
    tpu.vector_store %arg8[%c1_59, %c1_60, %c0_61], %116 {strides = array<i32>} : memref<18x18x16xf32, #tpu.memory_space<vmem>>, vector<16x16x16xf32>,
    %c2 = arith.constant 2 : index
    %c0_62 = arith.constant 0 : index
    %c0_63 = arith.constant 0 : index
    %118 = vector.load %arg2[%c2, %c0_62, %c0_63] : memref<6x144x16xbf16, #tpu.memory_space<vmem>>, vector<1x144x16xbf16>
    %119 = vector.shape_cast %118 : vector<1x144x16xbf16> to vector<144x16xbf16>
    %120 = vector.extract_strided_slice %113 {offsets = [0, 0], sizes = [1, 16], strides = [1, 1]} : vector<4x16xf32> to vector<1x16xf32>
    %c0_64 = arith.constant 0 : index
    %c0_65 = arith.constant 0 : index
    %c0_66 = arith.constant 0 : index
    %121 = vector.load %arg8[%c0_64, %c0_65, %c0_66] : memref<18x18x16xf32, #tpu.memory_space<vmem>>, vector<18x18x16xf32>
    %122 = vector.extract_strided_slice %121 {offsets = [0, 0, 0], sizes = [16, 16, 16], strides = [1, 1, 1]} : vector<18x18x16xf32> to vector<16x16x16xf32>
    %123 = vector.shape_cast %122 : vector<16x16x16xf32> to vector<256x16xf32>
    %124 = vector.extract_strided_slice %121 {offsets = [0, 1, 0], sizes = [16, 16, 16], strides = [1, 1, 1]} : vector<18x18x16xf32> to vector<16x16x16xf32>
    %125 = vector.shape_cast %124 : vector<16x16x16xf32> to vector<256x16xf32>
    %126 = vector.extract_strided_slice %121 {offsets = [0, 2, 0], sizes = [16, 16, 16], strides = [1, 1, 1]} : vector<18x18x16xf32> to vector<16x16x16xf32>
    %127 = vector.shape_cast %126 : vector<16x16x16xf32> to vector<256x16xf32>
    %128 = vector.extract_strided_slice %121 {offsets = [1, 0, 0], sizes = [16, 16, 16], strides = [1, 1, 1]} : vector<18x18x16xf32> to vector<16x16x16xf32>
    %129 = vector.shape_cast %128 : vector<16x16x16xf32> to vector<256x16xf32>
    %130 = vector.extract_strided_slice %121 {offsets = [1, 1, 0], sizes = [16, 16, 16], strides = [1, 1, 1]} : vector<18x18x16xf32> to vector<16x16x16xf32>
    %131 = vector.shape_cast %130 : vector<16x16x16xf32> to vector<256x16xf32>
    %132 = vector.extract_strided_slice %121 {offsets = [1, 2, 0], sizes = [16, 16, 16], strides = [1, 1, 1]} : vector<18x18x16xf32> to vector<16x16x16xf32>
    %133 = vector.shape_cast %132 : vector<16x16x16xf32> to vector<256x16xf32>
    %134 = vector.extract_strided_slice %121 {offsets = [2, 0, 0], sizes = [16, 16, 16], strides = [1, 1, 1]} : vector<18x18x16xf32> to vector<16x16x16xf32>
    %135 = vector.shape_cast %134 : vector<16x16x16xf32> to vector<256x16xf32>
    %136 = vector.extract_strided_slice %121 {offsets = [2, 1, 0], sizes = [16, 16, 16], strides = [1, 1, 1]} : vector<18x18x16xf32> to vector<16x16x16xf32>
    %137 = vector.shape_cast %136 : vector<16x16x16xf32> to vector<256x16xf32>
    %138 = vector.extract_strided_slice %121 {offsets = [2, 2, 0], sizes = [16, 16, 16], strides = [1, 1, 1]} : vector<18x18x16xf32> to vector<16x16x16xf32>
    %139 = vector.shape_cast %138 : vector<16x16x16xf32> to vector<256x16xf32>
    %140 = tpu.concatenate %123, %125, %127, %129, %131, %133, %135, %137, %139 in 1 : vector<256x16xf32>, vector<256x16xf32>, vector<256x16xf32>, vector<256x16xf32>, vector<256x16xf32>, vector<256x16xf32>, vector<256x16xf32>, vector<256x16xf32>, vector<256x16xf32> -> vector<256x144xf32>
    %141 = arith.truncf %140 : vector<256x144xf32> to vector<256x144xbf16>
    %cst_67 = arith.constant dense<0.000000e+00> : vector<256x16xf32>
    %142 = tpu.matmul %141, %119, %cst_67 {dimension_numbers = #tpu.dot_dimension_numbers<[1], [0], [0], [1], [0, 0, 1, 1], [], []>} : vector<256x144xbf16>, vector<144x16xbf16>, vector<256x16xf32> -> vector<256x16xf32>
    %143 = vector.broadcast %120 : vector<1x16xf32> to vector<256x16xf32>
    %144 = arith.addf %142, %143 : vector<256x16xf32>
    %cst_68 = arith.constant 0.000000e+00 : f32
    %145 = vector.broadcast %cst_68 : f32 to vector<256x16xf32>
    %146 = arith.maximumf %144, %145 : vector<256x16xf32>
    %147 = vector.shape_cast %146 : vector<256x16xf32> to vector<16x16x16xf32>
    %c1_69 = arith.constant 1 : index
    %c1_70 = arith.constant 1 : index
    %c0_71 = arith.constant 0 : index
    %148 = vector.load %arg8[%c1_69, %c1_70, %c0_71] : memref<18x18x16xf32, #tpu.memory_space<vmem>>, vector<16x16x16xf32>
    tpu.vector_store %arg8[%c1_69, %c1_70, %c0_71], %147 {strides = array<i32>} : memref<18x18x16xf32, #tpu.memory_space<vmem>>, vector<16x16x16xf32>,
    %c3 = arith.constant 3 : index
    %c0_72 = arith.constant 0 : index
    %c0_73 = arith.constant 0 : index
    %149 = vector.load %arg2[%c3, %c0_72, %c0_73] : memref<6x144x16xbf16, #tpu.memory_space<vmem>>, vector<1x144x16xbf16>
    %150 = vector.shape_cast %149 : vector<1x144x16xbf16> to vector<144x16xbf16>
    %151 = vector.extract_strided_slice %113 {offsets = [1, 0], sizes = [1, 16], strides = [1, 1]} : vector<4x16xf32> to vector<1x16xf32>
    %c0_74 = arith.constant 0 : index
    %c0_75 = arith.constant 0 : index
    %c0_76 = arith.constant 0 : index
    %152 = vector.load %arg8[%c0_74, %c0_75, %c0_76] : memref<18x18x16xf32, #tpu.memory_space<vmem>>, vector<18x18x16xf32>
    %153 = vector.extract_strided_slice %152 {offsets = [0, 0, 0], sizes = [16, 16, 16], strides = [1, 1, 1]} : vector<18x18x16xf32> to vector<16x16x16xf32>
    %154 = vector.shape_cast %153 : vector<16x16x16xf32> to vector<256x16xf32>
    %155 = vector.extract_strided_slice %152 {offsets = [0, 1, 0], sizes = [16, 16, 16], strides = [1, 1, 1]} : vector<18x18x16xf32> to vector<16x16x16xf32>
    %156 = vector.shape_cast %155 : vector<16x16x16xf32> to vector<256x16xf32>
    %157 = vector.extract_strided_slice %152 {offsets = [0, 2, 0], sizes = [16, 16, 16], strides = [1, 1, 1]} : vector<18x18x16xf32> to vector<16x16x16xf32>
    %158 = vector.shape_cast %157 : vector<16x16x16xf32> to vector<256x16xf32>
    %159 = vector.extract_strided_slice %152 {offsets = [1, 0, 0], sizes = [16, 16, 16], strides = [1, 1, 1]} : vector<18x18x16xf32> to vector<16x16x16xf32>
    %160 = vector.shape_cast %159 : vector<16x16x16xf32> to vector<256x16xf32>
    %161 = vector.extract_strided_slice %152 {offsets = [1, 1, 0], sizes = [16, 16, 16], strides = [1, 1, 1]} : vector<18x18x16xf32> to vector<16x16x16xf32>
    %162 = vector.shape_cast %161 : vector<16x16x16xf32> to vector<256x16xf32>
    %163 = vector.extract_strided_slice %152 {offsets = [1, 2, 0], sizes = [16, 16, 16], strides = [1, 1, 1]} : vector<18x18x16xf32> to vector<16x16x16xf32>
    %164 = vector.shape_cast %163 : vector<16x16x16xf32> to vector<256x16xf32>
    %165 = vector.extract_strided_slice %152 {offsets = [2, 0, 0], sizes = [16, 16, 16], strides = [1, 1, 1]} : vector<18x18x16xf32> to vector<16x16x16xf32>
    %166 = vector.shape_cast %165 : vector<16x16x16xf32> to vector<256x16xf32>
    %167 = vector.extract_strided_slice %152 {offsets = [2, 1, 0], sizes = [16, 16, 16], strides = [1, 1, 1]} : vector<18x18x16xf32> to vector<16x16x16xf32>
    %168 = vector.shape_cast %167 : vector<16x16x16xf32> to vector<256x16xf32>
    %169 = vector.extract_strided_slice %152 {offsets = [2, 2, 0], sizes = [16, 16, 16], strides = [1, 1, 1]} : vector<18x18x16xf32> to vector<16x16x16xf32>
    %170 = vector.shape_cast %169 : vector<16x16x16xf32> to vector<256x16xf32>
    %171 = tpu.concatenate %154, %156, %158, %160, %162, %164, %166, %168, %170 in 1 : vector<256x16xf32>, vector<256x16xf32>, vector<256x16xf32>, vector<256x16xf32>, vector<256x16xf32>, vector<256x16xf32>, vector<256x16xf32>, vector<256x16xf32>, vector<256x16xf32> -> vector<256x144xf32>
    %172 = arith.truncf %171 : vector<256x144xf32> to vector<256x144xbf16>
    %cst_77 = arith.constant dense<0.000000e+00> : vector<256x16xf32>
    %173 = tpu.matmul %172, %150, %cst_77 {dimension_numbers = #tpu.dot_dimension_numbers<[1], [0], [0], [1], [0, 0, 1, 1], [], []>} : vector<256x144xbf16>, vector<144x16xbf16>, vector<256x16xf32> -> vector<256x16xf32>
    %174 = vector.broadcast %151 : vector<1x16xf32> to vector<256x16xf32>
    %175 = arith.addf %173, %174 : vector<256x16xf32>
    %176 = arith.truncf %175 : vector<256x16xf32> to vector<256x16xbf16>
    %c2_78 = arith.constant 2 : index
    %c0_79 = arith.constant 0 : index
    %c0_80 = arith.constant 0 : index
    %177 = vector.load %arg3[%c2_78, %c0_79, %c0_80] : memref<6x16x4xbf16, #tpu.memory_space<vmem>>, vector<1x16x4xbf16>
    %178 = vector.shape_cast %177 : vector<1x16x4xbf16> to vector<16x4xbf16>
    %cst_81 = arith.constant dense<0.000000e+00> : vector<256x4xf32>
    %179 = tpu.matmul %176, %178, %cst_81 {dimension_numbers = #tpu.dot_dimension_numbers<[1], [0], [0], [1], [0, 0, 1, 1], [], []>} : vector<256x16xbf16>, vector<16x4xbf16>, vector<256x4xf32> -> vector<256x4xf32>
    %180 = vector.extract_strided_slice %115 {offsets = [0, 0], sizes = [1, 4], strides = [1, 1]} : vector<2x4xf32> to vector<1x4xf32>
    %181 = vector.broadcast %180 : vector<1x4xf32> to vector<256x4xf32>
    %182 = arith.addf %179, %181 : vector<256x4xf32>
    %cst_82 = arith.constant 0.000000e+00 : f32
    %183 = vector.broadcast %cst_82 : f32 to vector<256x4xf32>
    %184 = arith.maximumf %182, %183 : vector<256x4xf32>
    %185 = arith.truncf %184 : vector<256x4xf32> to vector<256x4xbf16>
    %c2_83 = arith.constant 2 : index
    %c0_84 = arith.constant 0 : index
    %c0_85 = arith.constant 0 : index
    %186 = vector.load %arg4[%c2_83, %c0_84, %c0_85] : memref<6x4x16xbf16, #tpu.memory_space<vmem>>, vector<1x4x16xbf16>
    %187 = vector.shape_cast %186 : vector<1x4x16xbf16> to vector<4x16xbf16>
    %cst_86 = arith.constant dense<0.000000e+00> : vector<256x16xf32>
    %188 = tpu.matmul %185, %187, %cst_86 {dimension_numbers = #tpu.dot_dimension_numbers<[1], [0], [0], [1], [0, 0, 1, 1], [], []>} : vector<256x4xbf16>, vector<4x16xbf16>, vector<256x16xf32> -> vector<256x16xf32>
    %189 = vector.extract_strided_slice %113 {offsets = [2, 0], sizes = [1, 16], strides = [1, 1]} : vector<4x16xf32> to vector<1x16xf32>
    %190 = vector.broadcast %189 : vector<1x16xf32> to vector<256x16xf32>
    %191 = arith.addf %188, %190 : vector<256x16xf32>
    %cst_87 = arith.constant dense<0.000000e+00> : vector<16xf32>
    %192 = vector.multi_reduction <add>, %175, %cst_87 [0] : vector<256x16xf32> to vector<16xf32>
    %193 = vector.shape_cast %192 : vector<16xf32> to vector<1x16xf32>
    %cst_88 = arith.constant 2.560000e+02 : f32
    %194 = vector.broadcast %cst_88 : f32 to vector<1x16xf32>
    %195 = arith.divf %193, %194 : vector<1x16xf32>
    %196 = arith.truncf %195 : vector<1x16xf32> to vector<1x16xbf16>
    %c3_89 = arith.constant 3 : index
    %c0_90 = arith.constant 0 : index
    %c0_91 = arith.constant 0 : index
    %197 = vector.load %arg3[%c3_89, %c0_90, %c0_91] : memref<6x16x4xbf16, #tpu.memory_space<vmem>>, vector<1x16x4xbf16>
    %198 = vector.shape_cast %197 : vector<1x16x4xbf16> to vector<16x4xbf16>
    %cst_92 = arith.constant dense<0.000000e+00> : vector<1x4xf32>
    %199 = tpu.matmul %196, %198, %cst_92 {dimension_numbers = #tpu.dot_dimension_numbers<[1], [0], [0], [1], [0, 0, 1, 1], [], []>} : vector<1x16xbf16>, vector<16x4xbf16>, vector<1x4xf32> -> vector<1x4xf32>
    %200 = vector.extract_strided_slice %115 {offsets = [1, 0], sizes = [1, 4], strides = [1, 1]} : vector<2x4xf32> to vector<1x4xf32>
    %201 = arith.addf %199, %200 : vector<1x4xf32>
    %cst_93 = arith.constant 0.000000e+00 : f32
    %202 = vector.broadcast %cst_93 : f32 to vector<1x4xf32>
    %203 = arith.maximumf %201, %202 : vector<1x4xf32>
    %204 = arith.truncf %203 : vector<1x4xf32> to vector<1x4xbf16>
    %c3_94 = arith.constant 3 : index
    %c0_95 = arith.constant 0 : index
    %c0_96 = arith.constant 0 : index
    %205 = vector.load %arg4[%c3_94, %c0_95, %c0_96] : memref<6x4x16xbf16, #tpu.memory_space<vmem>>, vector<1x4x16xbf16>
    %206 = vector.shape_cast %205 : vector<1x4x16xbf16> to vector<4x16xbf16>
    %cst_97 = arith.constant dense<0.000000e+00> : vector<1x16xf32>
    %207 = tpu.matmul %204, %206, %cst_97 {dimension_numbers = #tpu.dot_dimension_numbers<[1], [0], [0], [1], [0, 0, 1, 1], [], []>} : vector<1x4xbf16>, vector<4x16xbf16>, vector<1x16xf32> -> vector<1x16xf32>
    %208 = vector.extract_strided_slice %113 {offsets = [3, 0], sizes = [1, 16], strides = [1, 1]} : vector<4x16xf32> to vector<1x16xf32>
    %209 = arith.addf %207, %208 : vector<1x16xf32>
    %210 = vector.broadcast %209 : vector<1x16xf32> to vector<256x16xf32>
    %211 = arith.addf %191, %210 : vector<256x16xf32>
    %212 = arith.negf %211 : vector<256x16xf32>
    %213 = math.exp %212 : vector<256x16xf32>
    %cst_98 = arith.constant 1.000000e+00 : f32
    %214 = vector.broadcast %cst_98 : f32 to vector<256x16xf32>
    %215 = arith.addf %214, %213 : vector<256x16xf32>
    %216 = arith.divf %214, %215 : vector<256x16xf32>
    %217 = arith.mulf %175, %216 : vector<256x16xf32>
    %218 = arith.addf %111, %217 : vector<256x16xf32>
    %c2_99 = arith.constant 2 : index
    %c0_100 = arith.constant 0 : index
    %c0_101 = arith.constant 0 : index
    %219 = vector.load %arg5[%c2_99, %c0_100, %c0_101] : memref<3x4x16xf32, #tpu.memory_space<vmem>>, vector<1x4x16xf32>
    %220 = vector.shape_cast %219 : vector<1x4x16xf32> to vector<4x16xf32>
    %c2_102 = arith.constant 2 : index
    %c0_103 = arith.constant 0 : index
    %c0_104 = arith.constant 0 : index
    %221 = vector.load %arg6[%c2_102, %c0_103, %c0_104] : memref<3x2x4xf32, #tpu.memory_space<vmem>>, vector<1x2x4xf32>
    %222 = vector.shape_cast %221 : vector<1x2x4xf32> to vector<2x4xf32>
    %223 = vector.shape_cast %218 : vector<256x16xf32> to vector<16x16x16xf32>
    %c1_105 = arith.constant 1 : index
    %c1_106 = arith.constant 1 : index
    %c0_107 = arith.constant 0 : index
    %224 = vector.load %arg8[%c1_105, %c1_106, %c0_107] : memref<18x18x16xf32, #tpu.memory_space<vmem>>, vector<16x16x16xf32>
    tpu.vector_store %arg8[%c1_105, %c1_106, %c0_107], %223 {strides = array<i32>} : memref<18x18x16xf32, #tpu.memory_space<vmem>>, vector<16x16x16xf32>,
    %c4 = arith.constant 4 : index
    %c0_108 = arith.constant 0 : index
    %c0_109 = arith.constant 0 : index
    %225 = vector.load %arg2[%c4, %c0_108, %c0_109] : memref<6x144x16xbf16, #tpu.memory_space<vmem>>, vector<1x144x16xbf16>
    %226 = vector.shape_cast %225 : vector<1x144x16xbf16> to vector<144x16xbf16>
    %227 = vector.extract_strided_slice %220 {offsets = [0, 0], sizes = [1, 16], strides = [1, 1]} : vector<4x16xf32> to vector<1x16xf32>
    %c0_110 = arith.constant 0 : index
    %c0_111 = arith.constant 0 : index
    %c0_112 = arith.constant 0 : index
    %228 = vector.load %arg8[%c0_110, %c0_111, %c0_112] : memref<18x18x16xf32, #tpu.memory_space<vmem>>, vector<18x18x16xf32>
    %229 = vector.extract_strided_slice %228 {offsets = [0, 0, 0], sizes = [16, 16, 16], strides = [1, 1, 1]} : vector<18x18x16xf32> to vector<16x16x16xf32>
    %230 = vector.shape_cast %229 : vector<16x16x16xf32> to vector<256x16xf32>
    %231 = vector.extract_strided_slice %228 {offsets = [0, 1, 0], sizes = [16, 16, 16], strides = [1, 1, 1]} : vector<18x18x16xf32> to vector<16x16x16xf32>
    %232 = vector.shape_cast %231 : vector<16x16x16xf32> to vector<256x16xf32>
    %233 = vector.extract_strided_slice %228 {offsets = [0, 2, 0], sizes = [16, 16, 16], strides = [1, 1, 1]} : vector<18x18x16xf32> to vector<16x16x16xf32>
    %234 = vector.shape_cast %233 : vector<16x16x16xf32> to vector<256x16xf32>
    %235 = vector.extract_strided_slice %228 {offsets = [1, 0, 0], sizes = [16, 16, 16], strides = [1, 1, 1]} : vector<18x18x16xf32> to vector<16x16x16xf32>
    %236 = vector.shape_cast %235 : vector<16x16x16xf32> to vector<256x16xf32>
    %237 = vector.extract_strided_slice %228 {offsets = [1, 1, 0], sizes = [16, 16, 16], strides = [1, 1, 1]} : vector<18x18x16xf32> to vector<16x16x16xf32>
    %238 = vector.shape_cast %237 : vector<16x16x16xf32> to vector<256x16xf32>
    %239 = vector.extract_strided_slice %228 {offsets = [1, 2, 0], sizes = [16, 16, 16], strides = [1, 1, 1]} : vector<18x18x16xf32> to vector<16x16x16xf32>
    %240 = vector.shape_cast %239 : vector<16x16x16xf32> to vector<256x16xf32>
    %241 = vector.extract_strided_slice %228 {offsets = [2, 0, 0], sizes = [16, 16, 16], strides = [1, 1, 1]} : vector<18x18x16xf32> to vector<16x16x16xf32>
    %242 = vector.shape_cast %241 : vector<16x16x16xf32> to vector<256x16xf32>
    %243 = vector.extract_strided_slice %228 {offsets = [2, 1, 0], sizes = [16, 16, 16], strides = [1, 1, 1]} : vector<18x18x16xf32> to vector<16x16x16xf32>
    %244 = vector.shape_cast %243 : vector<16x16x16xf32> to vector<256x16xf32>
    %245 = vector.extract_strided_slice %228 {offsets = [2, 2, 0], sizes = [16, 16, 16], strides = [1, 1, 1]} : vector<18x18x16xf32> to vector<16x16x16xf32>
    %246 = vector.shape_cast %245 : vector<16x16x16xf32> to vector<256x16xf32>
    %247 = tpu.concatenate %230, %232, %234, %236, %238, %240, %242, %244, %246 in 1 : vector<256x16xf32>, vector<256x16xf32>, vector<256x16xf32>, vector<256x16xf32>, vector<256x16xf32>, vector<256x16xf32>, vector<256x16xf32>, vector<256x16xf32>, vector<256x16xf32> -> vector<256x144xf32>
    %248 = arith.truncf %247 : vector<256x144xf32> to vector<256x144xbf16>
    %cst_113 = arith.constant dense<0.000000e+00> : vector<256x16xf32>
    %249 = tpu.matmul %248, %226, %cst_113 {dimension_numbers = #tpu.dot_dimension_numbers<[1], [0], [0], [1], [0, 0, 1, 1], [], []>} : vector<256x144xbf16>, vector<144x16xbf16>, vector<256x16xf32> -> vector<256x16xf32>
    %250 = vector.broadcast %227 : vector<1x16xf32> to vector<256x16xf32>
    %251 = arith.addf %249, %250 : vector<256x16xf32>
    %cst_114 = arith.constant 0.000000e+00 : f32
    %252 = vector.broadcast %cst_114 : f32 to vector<256x16xf32>
    %253 = arith.maximumf %251, %252 : vector<256x16xf32>
    %254 = vector.shape_cast %253 : vector<256x16xf32> to vector<16x16x16xf32>
    %c1_115 = arith.constant 1 : index
    %c1_116 = arith.constant 1 : index
    %c0_117 = arith.constant 0 : index
    %255 = vector.load %arg8[%c1_115, %c1_116, %c0_117] : memref<18x18x16xf32, #tpu.memory_space<vmem>>, vector<16x16x16xf32>
    tpu.vector_store %arg8[%c1_115, %c1_116, %c0_117], %254 {strides = array<i32>} : memref<18x18x16xf32, #tpu.memory_space<vmem>>, vector<16x16x16xf32>,
    %c5 = arith.constant 5 : index
    %c0_118 = arith.constant 0 : index
    %c0_119 = arith.constant 0 : index
    %256 = vector.load %arg2[%c5, %c0_118, %c0_119] : memref<6x144x16xbf16, #tpu.memory_space<vmem>>, vector<1x144x16xbf16>
    %257 = vector.shape_cast %256 : vector<1x144x16xbf16> to vector<144x16xbf16>
    %258 = vector.extract_strided_slice %220 {offsets = [1, 0], sizes = [1, 16], strides = [1, 1]} : vector<4x16xf32> to vector<1x16xf32>
    %c0_120 = arith.constant 0 : index
    %c0_121 = arith.constant 0 : index
    %c0_122 = arith.constant 0 : index
    %259 = vector.load %arg8[%c0_120, %c0_121, %c0_122] : memref<18x18x16xf32, #tpu.memory_space<vmem>>, vector<18x18x16xf32>
    %260 = vector.extract_strided_slice %259 {offsets = [0, 0, 0], sizes = [16, 16, 16], strides = [1, 1, 1]} : vector<18x18x16xf32> to vector<16x16x16xf32>
    %261 = vector.shape_cast %260 : vector<16x16x16xf32> to vector<256x16xf32>
    %262 = vector.extract_strided_slice %259 {offsets = [0, 1, 0], sizes = [16, 16, 16], strides = [1, 1, 1]} : vector<18x18x16xf32> to vector<16x16x16xf32>
    %263 = vector.shape_cast %262 : vector<16x16x16xf32> to vector<256x16xf32>
    %264 = vector.extract_strided_slice %259 {offsets = [0, 2, 0], sizes = [16, 16, 16], strides = [1, 1, 1]} : vector<18x18x16xf32> to vector<16x16x16xf32>
    %265 = vector.shape_cast %264 : vector<16x16x16xf32> to vector<256x16xf32>
    %266 = vector.extract_strided_slice %259 {offsets = [1, 0, 0], sizes = [16, 16, 16], strides = [1, 1, 1]} : vector<18x18x16xf32> to vector<16x16x16xf32>
    %267 = vector.shape_cast %266 : vector<16x16x16xf32> to vector<256x16xf32>
    %268 = vector.extract_strided_slice %259 {offsets = [1, 1, 0], sizes = [16, 16, 16], strides = [1, 1, 1]} : vector<18x18x16xf32> to vector<16x16x16xf32>
    %269 = vector.shape_cast %268 : vector<16x16x16xf32> to vector<256x16xf32>
    %270 = vector.extract_strided_slice %259 {offsets = [1, 2, 0], sizes = [16, 16, 16], strides = [1, 1, 1]} : vector<18x18x16xf32> to vector<16x16x16xf32>
    %271 = vector.shape_cast %270 : vector<16x16x16xf32> to vector<256x16xf32>
    %272 = vector.extract_strided_slice %259 {offsets = [2, 0, 0], sizes = [16, 16, 16], strides = [1, 1, 1]} : vector<18x18x16xf32> to vector<16x16x16xf32>
    %273 = vector.shape_cast %272 : vector<16x16x16xf32> to vector<256x16xf32>
    %274 = vector.extract_strided_slice %259 {offsets = [2, 1, 0], sizes = [16, 16, 16], strides = [1, 1, 1]} : vector<18x18x16xf32> to vector<16x16x16xf32>
    %275 = vector.shape_cast %274 : vector<16x16x16xf32> to vector<256x16xf32>
    %276 = vector.extract_strided_slice %259 {offsets = [2, 2, 0], sizes = [16, 16, 16], strides = [1, 1, 1]} : vector<18x18x16xf32> to vector<16x16x16xf32>
    %277 = vector.shape_cast %276 : vector<16x16x16xf32> to vector<256x16xf32>
    %278 = tpu.concatenate %261, %263, %265, %267, %269, %271, %273, %275, %277 in 1 : vector<256x16xf32>, vector<256x16xf32>, vector<256x16xf32>, vector<256x16xf32>, vector<256x16xf32>, vector<256x16xf32>, vector<256x16xf32>, vector<256x16xf32>, vector<256x16xf32> -> vector<256x144xf32>
    %279 = arith.truncf %278 : vector<256x144xf32> to vector<256x144xbf16>
    %cst_123 = arith.constant dense<0.000000e+00> : vector<256x16xf32>
    %280 = tpu.matmul %279, %257, %cst_123 {dimension_numbers = #tpu.dot_dimension_numbers<[1], [0], [0], [1], [0, 0, 1, 1], [], []>} : vector<256x144xbf16>, vector<144x16xbf16>, vector<256x16xf32> -> vector<256x16xf32>
    %281 = vector.broadcast %258 : vector<1x16xf32> to vector<256x16xf32>
    %282 = arith.addf %280, %281 : vector<256x16xf32>
    %283 = arith.truncf %282 : vector<256x16xf32> to vector<256x16xbf16>
    %c4_124 = arith.constant 4 : index
    %c0_125 = arith.constant 0 : index
    %c0_126 = arith.constant 0 : index
    %284 = vector.load %arg3[%c4_124, %c0_125, %c0_126] : memref<6x16x4xbf16, #tpu.memory_space<vmem>>, vector<1x16x4xbf16>
    %285 = vector.shape_cast %284 : vector<1x16x4xbf16> to vector<16x4xbf16>
    %cst_127 = arith.constant dense<0.000000e+00> : vector<256x4xf32>
    %286 = tpu.matmul %283, %285, %cst_127 {dimension_numbers = #tpu.dot_dimension_numbers<[1], [0], [0], [1], [0, 0, 1, 1], [], []>} : vector<256x16xbf16>, vector<16x4xbf16>, vector<256x4xf32> -> vector<256x4xf32>
    %287 = vector.extract_strided_slice %222 {offsets = [0, 0], sizes = [1, 4], strides = [1, 1]} : vector<2x4xf32> to vector<1x4xf32>
    %288 = vector.broadcast %287 : vector<1x4xf32> to vector<256x4xf32>
    %289 = arith.addf %286, %288 : vector<256x4xf32>
    %cst_128 = arith.constant 0.000000e+00 : f32
    %290 = vector.broadcast %cst_128 : f32 to vector<256x4xf32>
    %291 = arith.maximumf %289, %290 : vector<256x4xf32>
    %292 = arith.truncf %291 : vector<256x4xf32> to vector<256x4xbf16>
    %c4_129 = arith.constant 4 : index
    %c0_130 = arith.constant 0 : index
    %c0_131 = arith.constant 0 : index
    %293 = vector.load %arg4[%c4_129, %c0_130, %c0_131] : memref<6x4x16xbf16, #tpu.memory_space<vmem>>, vector<1x4x16xbf16>
    %294 = vector.shape_cast %293 : vector<1x4x16xbf16> to vector<4x16xbf16>
    %cst_132 = arith.constant dense<0.000000e+00> : vector<256x16xf32>
    %295 = tpu.matmul %292, %294, %cst_132 {dimension_numbers = #tpu.dot_dimension_numbers<[1], [0], [0], [1], [0, 0, 1, 1], [], []>} : vector<256x4xbf16>, vector<4x16xbf16>, vector<256x16xf32> -> vector<256x16xf32>
    %296 = vector.extract_strided_slice %220 {offsets = [2, 0], sizes = [1, 16], strides = [1, 1]} : vector<4x16xf32> to vector<1x16xf32>
    %297 = vector.broadcast %296 : vector<1x16xf32> to vector<256x16xf32>
    %298 = arith.addf %295, %297 : vector<256x16xf32>
    %cst_133 = arith.constant dense<0.000000e+00> : vector<16xf32>
    %299 = vector.multi_reduction <add>, %282, %cst_133 [0] : vector<256x16xf32> to vector<16xf32>
    %300 = vector.shape_cast %299 : vector<16xf32> to vector<1x16xf32>
    %cst_134 = arith.constant 2.560000e+02 : f32
    %301 = vector.broadcast %cst_134 : f32 to vector<1x16xf32>
    %302 = arith.divf %300, %301 : vector<1x16xf32>
    %303 = arith.truncf %302 : vector<1x16xf32> to vector<1x16xbf16>
    %c5_135 = arith.constant 5 : index
    %c0_136 = arith.constant 0 : index
    %c0_137 = arith.constant 0 : index
    %304 = vector.load %arg3[%c5_135, %c0_136, %c0_137] : memref<6x16x4xbf16, #tpu.memory_space<vmem>>, vector<1x16x4xbf16>
    %305 = vector.shape_cast %304 : vector<1x16x4xbf16> to vector<16x4xbf16>
    %cst_138 = arith.constant dense<0.000000e+00> : vector<1x4xf32>
    %306 = tpu.matmul %303, %305, %cst_138 {dimension_numbers = #tpu.dot_dimension_numbers<[1], [0], [0], [1], [0, 0, 1, 1], [], []>} : vector<1x16xbf16>, vector<16x4xbf16>, vector<1x4xf32> -> vector<1x4xf32>
    %307 = vector.extract_strided_slice %222 {offsets = [1, 0], sizes = [1, 4], strides = [1, 1]} : vector<2x4xf32> to vector<1x4xf32>
    %308 = arith.addf %306, %307 : vector<1x4xf32>
    %cst_139 = arith.constant 0.000000e+00 : f32
    %309 = vector.broadcast %cst_139 : f32 to vector<1x4xf32>
    %310 = arith.maximumf %308, %309 : vector<1x4xf32>
    %311 = arith.truncf %310 : vector<1x4xf32> to vector<1x4xbf16>
    %c5_140 = arith.constant 5 : index
    %c0_141 = arith.constant 0 : index
    %c0_142 = arith.constant 0 : index
    %312 = vector.load %arg4[%c5_140, %c0_141, %c0_142] : memref<6x4x16xbf16, #tpu.memory_space<vmem>>, vector<1x4x16xbf16>
    %313 = vector.shape_cast %312 : vector<1x4x16xbf16> to vector<4x16xbf16>
    %cst_143 = arith.constant dense<0.000000e+00> : vector<1x16xf32>
    %314 = tpu.matmul %311, %313, %cst_143 {dimension_numbers = #tpu.dot_dimension_numbers<[1], [0], [0], [1], [0, 0, 1, 1], [], []>} : vector<1x4xbf16>, vector<4x16xbf16>, vector<1x16xf32> -> vector<1x16xf32>
    %315 = vector.extract_strided_slice %220 {offsets = [3, 0], sizes = [1, 16], strides = [1, 1]} : vector<4x16xf32> to vector<1x16xf32>
    %316 = arith.addf %314, %315 : vector<1x16xf32>
    %317 = vector.broadcast %316 : vector<1x16xf32> to vector<256x16xf32>
    %318 = arith.addf %298, %317 : vector<256x16xf32>
    %319 = arith.negf %318 : vector<256x16xf32>
    %320 = math.exp %319 : vector<256x16xf32>
    %cst_144 = arith.constant 1.000000e+00 : f32
    %321 = vector.broadcast %cst_144 : f32 to vector<256x16xf32>
    %322 = arith.addf %321, %320 : vector<256x16xf32>
    %323 = arith.divf %321, %322 : vector<256x16xf32>
    %324 = arith.mulf %282, %323 : vector<256x16xf32>
    %325 = arith.addf %218, %324 : vector<256x16xf32>
    %c0_145 = arith.constant 0 : index
    %c0_146 = arith.constant 0 : index
    %c0_147 = arith.constant 0 : index
    %326 = vector.load %arg7[%c0_145, %c0_146, %c0_147] : memref<1x256x16xf32, #tpu.memory_space<vmem>>, vector<1x256x16xf32>
    %327 = vector.shape_cast %326 : vector<1x256x16xf32> to vector<256x16xf32>
    %328 = vector.shape_cast %325 : vector<256x16xf32> to vector<1x256x16xf32>
    tpu.vector_store %arg7[%c0_145, %c0_146, %c0_147], %328 {strides = array<i32>} : memref<1x256x16xf32, #tpu.memory_space<vmem>>, vector<1x256x16xf32>,
    return
  }
  func.func @transform_0(%arg0: i32) -> (i32, i32, i32, i32) {
    %c0_i32 = arith.constant 0 : i32
    %c0_i32_0 = arith.constant 0 : i32
    %c0_i32_1 = arith.constant 0 : i32
    %c0_i32_2 = arith.constant 0 : i32
    return %arg0, %c0_i32, %c0_i32_0, %c0_i32_1 : i32, i32, i32, i32
  }
  func.func @transform_1(%arg0: i32) -> (i32, i32, i32) {
    %c0_i32 = arith.constant 0 : i32
    %c0_i32_0 = arith.constant 0 : i32
    %c0_i32_1 = arith.constant 0 : i32
    %c0_i32_2 = arith.constant 0 : i32
    return %c0_i32, %c0_i32_0, %c0_i32_1 : i32, i32, i32
  }
  func.func @transform_2(%arg0: i32) -> (i32, i32, i32) {
    %c0_i32 = arith.constant 0 : i32
    %c0_i32_0 = arith.constant 0 : i32
    %c0_i32_1 = arith.constant 0 : i32
    %c0_i32_2 = arith.constant 0 : i32
    return %c0_i32, %c0_i32_0, %c0_i32_1 : i32, i32, i32
  }
  func.func @transform_3(%arg0: i32) -> (i32, i32, i32) {
    %c0_i32 = arith.constant 0 : i32
    %c0_i32_0 = arith.constant 0 : i32
    %c0_i32_1 = arith.constant 0 : i32
    %c0_i32_2 = arith.constant 0 : i32
    return %c0_i32, %c0_i32_0, %c0_i32_1 : i32, i32, i32
  }
  func.func @transform_4(%arg0: i32) -> (i32, i32, i32) {
    %c0_i32 = arith.constant 0 : i32
    %c0_i32_0 = arith.constant 0 : i32
    %c0_i32_1 = arith.constant 0 : i32
    %c0_i32_2 = arith.constant 0 : i32
    return %c0_i32, %c0_i32_0, %c0_i32_1 : i32, i32, i32
  }
  func.func @transform_5(%arg0: i32) -> (i32, i32, i32) {
    %c0_i32 = arith.constant 0 : i32
    %c0_i32_0 = arith.constant 0 : i32
    %c0_i32_1 = arith.constant 0 : i32
    %c0_i32_2 = arith.constant 0 : i32
    return %c0_i32, %c0_i32_0, %c0_i32_1 : i32, i32, i32
  }
  func.func @transform_6(%arg0: i32) -> (i32, i32, i32) {
    %c0_i32 = arith.constant 0 : i32
    %c0_i32_0 = arith.constant 0 : i32
    %c0_i32_1 = arith.constant 0 : i32
    return %arg0, %c0_i32, %c0_i32_0 : i32, i32, i32
  }
}

</mosaic_0001>

<llo_original>
// kernel: tpu_custom_call.1
$region0: #{tpu_custom_call.1}
  #allocation0 [shape = 'u32[]', space=smem, size = 0x4, offset = 0x4, fixed_abs, tag = 'smem constant byte address 0x4 - core index']
  #allocation1 [shape = 'u32[144,128]{1,0:T(1,128)}', space=vmem, size = 0x12000, scoped, tag = 'internal scratch']
  #allocation2 [shape = 'f32[18,18,16]{2,1,0:T(8,128)}', space=vmem, size = 0x36000, scoped, tag = 'scratch operand']
  %s0 = inlined_call_operand.vmem [shape: f32[2,16,16,16], index: 0, kind: input, shape index: {}]
  %s1 = inlined_call_operand.vmem [shape: bf16[6,144,16], index: 1, kind: input, shape index: {}]
  %s2 = inlined_call_operand.vmem [shape: bf16[6,16,4], index: 2, kind: input, shape index: {}]
  %s3 = inlined_call_operand.vmem [shape: bf16[6,4,16], index: 3, kind: input, shape index: {}]
  %s4 = inlined_call_operand.vmem [shape: f32[3,4,16], index: 4, kind: input, shape index: {}]
  %s5 = inlined_call_operand.vmem [shape: f32[3,2,4], index: 5, kind: input, shape index: {}]
  %s6 = inlined_call_operand.vmem [shape: f32[2,256,16], index: 6, kind: output, shape index: {}]
  %s7 = sld [smem:[#allocation0]]
  $region57: #{tpu_custom_call.1} parent=0
    _
  %s9 = ssub.s32 1, %s7
  %s10 = scalar_select 0, %s9, %s7
  loop: start=0, step=1, limit=4
  $region2: #{tpu_custom_call.1} parent=0 // loop_pre_header
    _
  $region3: #{tpu_custom_call.1} parent=0 // loop_header
    %s12 = sphi 0, %s16
    %p13 = scmp.ge.s32.totalorder %s12, 4
    %s22 = sphi 0, %s24
    %s25 = sphi 0, %s22
    %s26 = sphi 0, %s25
    %s42 = sphi 0, %s26
    %s46 = sphi 0, %s46
    %s48 = sphi 0, %s46
    %s49 = sphi 0, %s48
    %s63 = sphi 0, %s49
    %s67 = sphi 0, %s67
    %s69 = sphi 0, %s67
    %s70 = sphi 0, %s69
    %s84 = sphi 0, %s70
    %s88 = sphi 0, %s88
    %s90 = sphi 0, %s88
    %s91 = sphi 0, %s90
    %s105 = sphi 0, %s91
    %s109 = sphi 0, %s109
    %s111 = sphi 0, %s109
    %s112 = sphi 0, %s111
    %s126 = sphi 0, %s112
    %s130 = sphi 0, %s130
    %s132 = sphi 0, %s130
    %s133 = sphi 0, %s132
    %s147 = sphi 0, %s133
    %s153 = sphi 0, %s155
    %s156 = sphi 0, %s153
    %s157 = sphi 0, %s156
    %s173 = sphi 0, %s157
  $region4: #{tpu_custom_call.1} parent=0 // loop_header_branch
    %15 = sbr.rel (%p13) target = $region8
  $region5: #{tpu_custom_call.1} parent=0 // loop_body
    %s17 = ssub.s32 %s12, 1
    %s18 = ssub.s32 %s12, 2
    %s19 = sadd.s32 %s12, 1
    %s20 = ssub.s32 %s12, %s19
    %p21 = scmp.eq.s32.totalorder %s20, 0
    %s23 = sadd.s32 %s22, 1
    %s24 = scalar_select %p21, %s22, %s23
    %p27 = pneg %p21
    %p28 = scmp.eq.s32.totalorder %s12, 1
    %p29 = por %p27, %p28
    %p30 = scmp.ne.s32.totalorder %s22, %s25
    %p31 = scmp.eq.s32.totalorder %s12, 0
    %p32 = por %p30, %p31
    %p33 = scmp.ne.s32.totalorder %s22, %s25
    %p34 = scmp.eq.s32.totalorder %s17, 1
    %p35 = por %p33, %p34
    %p36 = scmp.ne.s32.totalorder %s25, %s26
    %p37 = scmp.eq.s32.totalorder %s17, 0
    %p38 = por %p36, %p37
    %p39 = scmp.ne.s32.totalorder %s25, %s26
    %p40 = scmp.eq.s32.totalorder %s18, 1
    %p41 = por %p39, %p40
    %p43 = scmp.ne.s32.totalorder %s26, %s42
    %p44 = scmp.eq.s32.totalorder %s18, 0
    %p45 = por %p43, %p44
    %s47 = sadd.s32 %s46, 1
    %p50 = scmp.eq.s32.totalorder %s12, 1
    %p51 = scmp.ne.s32.totalorder %s46, %s48
    %p52 = scmp.eq.s32.totalorder %s12, 0
    %p53 = por %p51, %p52
    %p54 = scmp.ne.s32.totalorder %s46, %s48
    %p55 = scmp.eq.s32.totalorder %s17, 1
    %p56 = por %p54, %p55
    %p57 = scmp.ne.s32.totalorder %s48, %s49
    %p58 = scmp.eq.s32.totalorder %s17, 0
    %p59 = por %p57, %p58
    %p60 = scmp.ne.s32.totalorder %s48, %s49
    %p61 = scmp.eq.s32.totalorder %s18, 1
    %p62 = por %p60, %p61
    %p64 = scmp.ne.s32.totalorder %s49, %s63
    %p65 = scmp.eq.s32.totalorder %s18, 0
    %p66 = por %p64, %p65
    %s68 = sadd.s32 %s67, 1
    %p71 = scmp.eq.s32.totalorder %s12, 1
    %p72 = scmp.ne.s32.totalorder %s67, %s69
    %p73 = scmp.eq.s32.totalorder %s12, 0
    %p74 = por %p72, %p73
    %p75 = scmp.ne.s32.totalorder %s67, %s69
    %p76 = scmp.eq.s32.totalorder %s17, 1
    %p77 = por %p75, %p76
    %p78 = scmp.ne.s32.totalorder %s69, %s70
    %p79 = scmp.eq.s32.totalorder %s17, 0
    %p80 = por %p78, %p79
    %p81 = scmp.ne.s32.totalorder %s69, %s70
    %p82 = scmp.eq.s32.totalorder %s18, 1
    %p83 = por %p81, %p82
    %p85 = scmp.ne.s32.totalorder %s70, %s84
    %p86 = scmp.eq.s32.totalorder %s18, 0
    %p87 = por %p85, %p86
    %s89 = sadd.s32 %s88, 1
    %p92 = scmp.eq.s32.totalorder %s12, 1
    %p93 = scmp.ne.s32.totalorder %s88, %s90
    %p94 = scmp.eq.s32.totalorder %s12, 0
    %p95 = por %p93, %p94
    %p96 = scmp.ne.s32.totalorder %s88, %s90
    %p97 = scmp.eq.s32.totalorder %s17, 1
    %p98 = por %p96, %p97
    %p99 = scmp.ne.s32.totalorder %s90, %s91
    %p100 = scmp.eq.s32.totalorder %s17, 0
    %p101 = por %p99, %p100
    %p102 = scmp.ne.s32.totalorder %s90, %s91
    %p103 = scmp.eq.s32.totalorder %s18, 1
    %p104 = por %p102, %p103
    %p106 = scmp.ne.s32.totalorder %s91, %s105
    %p107 = scmp.eq.s32.totalorder %s18, 0
    %p108 = por %p106, %p107
    %s110 = sadd.s32 %s109, 1
    %p113 = scmp.eq.s32.totalorder %s12, 1
    %p114 = scmp.ne.s32.totalorder %s109, %s111
    %p115 = scmp.eq.s32.totalorder %s12, 0
    %p116 = por %p114, %p115
    %p117 = scmp.ne.s32.totalorder %s109, %s111
    %p118 = scmp.eq.s32.totalorder %s17, 1
    %p119 = por %p117, %p118
    %p120 = scmp.ne.s32.totalorder %s111, %s112
    %p121 = scmp.eq.s32.totalorder %s17, 0
    %p122 = por %p120, %p121
    %p123 = scmp.ne.s32.totalorder %s111, %s112
    %p124 = scmp.eq.s32.totalorder %s18, 1
    %p125 = por %p123, %p124
    %p127 = scmp.ne.s32.totalorder %s112, %s126
    %p128 = scmp.eq.s32.totalorder %s18, 0
    %p129 = por %p127, %p128
    %s131 = sadd.s32 %s130, 1
    %p134 = scmp.eq.s32.totalorder %s12, 1
    %p135 = scmp.ne.s32.totalorder %s130, %s132
    %p136 = scmp.eq.s32.totalorder %s12, 0
    %p137 = por %p135, %p136
    %p138 = scmp.ne.s32.totalorder %s130, %s132
    %p139 = scmp.eq.s32.totalorder %s17, 1
    %p140 = por %p138, %p139
    %p141 = scmp.ne.s32.totalorder %s132, %s133
    %p142 = scmp.eq.s32.totalorder %s17, 0
    %p143 = por %p141, %p142
    %p144 = scmp.ne.s32.totalorder %s132, %s133
    %p145 = scmp.eq.s32.totalorder %s18, 1
    %p146 = por %p144, %p145
    %p148 = scmp.ne.s32.totalorder %s133, %s147
    %p149 = scmp.eq.s32.totalorder %s18, 0
    %p150 = por %p148, %p149
    %s151 = ssub.s32 %s12, %s19
    %p152 = scmp.eq.s32.totalorder %s151, 0
    %s154 = sadd.s32 %s153, 1
    %s155 = scalar_select %p152, %s153, %s154
    %p158 = pneg %p152
    %p159 = scmp.eq.s32.totalorder %s12, 1
    %p160 = por %p158, %p159
    %p161 = scmp.ne.s32.totalorder %s153, %s156
    %p162 = scmp.eq.s32.totalorder %s12, 0
    %p163 = por %p161, %p162
    %p164 = scmp.ne.s32.totalorder %s153, %s156
    %p165 = scmp.eq.s32.totalorder %s17, 1
    %p166 = por %p164, %p165
    %p167 = scmp.ne.s32.totalorder %s156, %s157
    %p168 = scmp.eq.s32.totalorder %s17, 0
    %p169 = por %p167, %p168
    %p170 = scmp.ne.s32.totalorder %s156, %s157
    %p171 = scmp.eq.s32.totalorder %s18, 1
    %p172 = por %p170, %p171
    %p174 = scmp.ne.s32.totalorder %s157, %s173
    %p175 = scmp.eq.s32.totalorder %s18, 0
    %p176 = por %p174, %p175
    %p177 = scmp.le.s32.totalorder 1, %s12
    %p178 = scmp.lt.s32.totalorder %s12, 3
    %p179 = pnand %p177, %p178
    %p180 = pneg %p179
    // Predicated region
    $region9: #{tpu_custom_call.1} parent=5 // pred_check
      _
    $region10: #{tpu_custom_call.1} parent=5 // pred_check_branch
      %182 = sbr.rel (%p179) target = $region12
    $region11: #{tpu_custom_call.1} parent=5 // pred_region
      %s183 = ssub.s32 %s12, 1
      // Predicated region
      $region13: #{tpu_custom_call.1} parent=11 // pred_check
        %p184 = pneg %p59
      $region14: #{tpu_custom_call.1} parent=11 // pred_check_branch
        %186 = sbr.rel (%p184) target = $region16
      $region15: #{tpu_custom_call.1} parent=11 // pred_region
        _
      $region16: #{tpu_custom_call.1} parent=11 // pred_fallthru
        _
      // Predicated region
      $region17: #{tpu_custom_call.1} parent=11 // pred_check
        %p187 = pneg %p80
      $region18: #{tpu_custom_call.1} parent=11 // pred_check_branch
        %189 = sbr.rel (%p187) target = $region20
      $region19: #{tpu_custom_call.1} parent=11 // pred_region
        _
      $region20: #{tpu_custom_call.1} parent=11 // pred_fallthru
        _
      // Predicated region
      $region21: #{tpu_custom_call.1} parent=11 // pred_check
        %p190 = pneg %p101
      $region22: #{tpu_custom_call.1} parent=11 // pred_check_branch
        %192 = sbr.rel (%p190) target = $region24
      $region23: #{tpu_custom_call.1} parent=11 // pred_region
        _
      $region24: #{tpu_custom_call.1} parent=11 // pred_fallthru
        _
      // Predicated region
      $region25: #{tpu_custom_call.1} parent=11 // pred_check
        %p193 = pneg %p122
      $region26: #{tpu_custom_call.1} parent=11 // pred_check_branch
        %195 = sbr.rel (%p193) target = $region28
      $region27: #{tpu_custom_call.1} parent=11 // pred_region
        _
      $region28: #{tpu_custom_call.1} parent=11 // pred_fallthru
        _
      // Predicated region
      $region29: #{tpu_custom_call.1} parent=11 // pred_check
        %p196 = pneg %p143
      $region30: #{tpu_custom_call.1} parent=11 // pred_check_branch
        %198 = sbr.rel (%p196) target = $region32
      $region31: #{tpu_custom_call.1} parent=11 // pred_region
        _
      $region32: #{tpu_custom_call.1} parent=11 // pred_fallthru
        _
    $region12: #{tpu_custom_call.1} parent=5 // pred_fallthru
      _
    %p199 = scmp.lt.s32.totalorder %s12, 2
    // Predicated region
    $region33: #{tpu_custom_call.1} parent=5 // pred_check
      %p200 = pneg %p199
    $region34: #{tpu_custom_call.1} parent=5 // pred_check_branch
      %202 = sbr.rel (%p200) target = $region36
    $region35: #{tpu_custom_call.1} parent=5 // pred_region
      // Predicated region
      $region37: #{tpu_custom_call.1} parent=35 // pred_check
        %p203 = pneg %p32
      $region38: #{tpu_custom_call.1} parent=35 // pred_check_branch
        %205 = sbr.rel (%p203) target = $region40
      $region39: #{tpu_custom_call.1} parent=35 // pred_region
        %p206 = scmp.lt.s32.totalorder %s12, 1
        %s207 = scalar_select %p206, %s12, 1
        %s208 = smul.addr %s207, 32
        %s209 = smul.addr %s208, 8
        %s210 = scalar_lea.vmem %s0, %s209
      $region40: #{tpu_custom_call.1} parent=35 // pred_fallthru
        _
    $region36: #{tpu_custom_call.1} parent=5 // pred_fallthru
      _
    %p211 = scmp.le.s32.totalorder 1, %s12
    %p212 = scmp.lt.s32.totalorder %s12, 3
    %p213 = pnand %p211, %p212
    %p214 = pneg %p213
    // Predicated region
    $region41: #{tpu_custom_call.1} parent=5 // pred_check
      _
    $region42: #{tpu_custom_call.1} parent=5 // pred_check_branch
      %216 = sbr.rel (%p213) target = $region44
    $region43: #{tpu_custom_call.1} parent=5 // pred_region
      %s217 = ssub.s32 %s12, 1
      %p218 = scmp.lt.s32.totalorder %s17, 1
      %s219 = scalar_select %p218, %s17, 1
      %s220 = smul.addr %s219, 32
      %s221 = smul.addr %s220, 8
      %s222 = scalar_lea.vmem %s0, %s221
      %p223 = pneg %p38
      %p224 = pneg %p35
      %p225 = pneg %p59
      %p226 = pneg %p56
      %p227 = pneg %p80
      %p228 = pneg %p77
      %p229 = pneg %p101
      %p230 = pneg %p98
      %p231 = pneg %p122
      %p232 = pneg %p119
      %p233 = pneg %p143
      %p234 = pneg %p140
      %p235 = pneg %p169
      %p236 = pneg %p166
      %p237 = scmp.lt.s32.totalorder %s17, 1
      %s238 = scalar_select %p237, %s17, 1
      %s239 = smul.addr %s238, 32
      %s240 = smul.addr %s239, 8
      %s241 = scalar_lea.vmem %s6, %s240
      %p242 = scmp.lt.s32.totalorder %s17, 1
      %s243 = scalar_select %p242, %s17, 1
      %s244 = smul.addr %s243, 32
      %s245 = smul.addr %s244, 8
      %s246 = scalar_lea.vmem %s0, %s245
      %p247 = scmp.lt.s32.totalorder %s17, 1
      %s248 = scalar_select %p247, %s17, 1
      %s249 = smul.addr %s248, 32
      %s250 = smul.addr %s249, 8
      %s251 = scalar_lea.vmem %s6, %s250
      %vm253 = vcmask 130048
      %254 = vst.msk [vmem:[#allocation2] sm:$0xff] %vm253, 0.0
      %255 = vst.msk [vmem:[#allocation2 + $0x8] sm:$0xff] %vm253, 0.0
      %vm256 = vcmask 123904
      %257 = vst.msk [vmem:[#allocation2 + $0x10] sm:$0x3] %vm256, 0.0
      %258 = vst.msk [vmem:[#allocation2 + $0x18] sm:$0xff] %vm253, 0.0
      %259 = vst.msk [vmem:[#allocation2 + $0x20] sm:$0xff] %vm253, 0.0
      %260 = vst.msk [vmem:[#allocation2 + $0x28] sm:$0x3] %vm256, 0.0
      %261 = vst.msk [vmem:[#allocation2 + $0x30] sm:$0xff] %vm253, 0.0
      %262 = vst.msk [vmem:[#allocation2 + $0x38] sm:$0xff] %vm253, 0.0
      %263 = vst.msk [vmem:[#allocation2 + $0x40] sm:$0x3] %vm256, 0.0
      %264 = vst.msk [vmem:[#allocation2 + $0x48] sm:$0xff] %vm253, 0.0
      %265 = vst.msk [vmem:[#allocation2 + $0x50] sm:$0xff] %vm253, 0.0
      %266 = vst.msk [vmem:[#allocation2 + $0x58] sm:$0x3] %vm256, 0.0
      %267 = vst.msk [vmem:[#allocation2 + $0x60] sm:$0xff] %vm253, 0.0
      %268 = vst.msk [vmem:[#allocation2 + $0x68] sm:$0xff] %vm253, 0.0
      %269 = vst.msk [vmem:[#allocation2 + $0x70] sm:$0x3] %vm256, 0.0
      %270 = vst.msk [vmem:[#allocation2 + $0x78] sm:$0xff] %vm253, 0.0
      %271 = vst.msk [vmem:[#allocation2 + $0x80] sm:$0xff] %vm253, 0.0
      %272 = vst.msk [vmem:[#allocation2 + $0x88] sm:$0x3] %vm256, 0.0
      %273 = vst.msk [vmem:[#allocation2 + $0x90] sm:$0xff] %vm253, 0.0
      %274 = vst.msk [vmem:[#allocation2 + $0x98] sm:$0xff] %vm253, 0.0
      %275 = vst.msk [vmem:[#allocation2 + $0xa0] sm:$0x3] %vm256, 0.0
      %276 = vst.msk [vmem:[#allocation2 + $0xa8] sm:$0xff] %vm253, 0.0
      %277 = vst.msk [vmem:[#allocation2 + $0xb0] sm:$0xff] %vm253, 0.0
      %278 = vst.msk [vmem:[#allocation2 + $0xb8] sm:$0x3] %vm256, 0.0
      %279 = vst.msk [vmem:[#allocation2 + $0xc0] sm:$0xff] %vm253, 0.0
      %280 = vst.msk [vmem:[#allocation2 + $0xc8] sm:$0xff] %vm253, 0.0
      %281 = vst.msk [vmem:[#allocation2 + $0xd0] sm:$0x3] %vm256, 0.0
      %282 = vst.msk [vmem:[#allocation2 + $0xd8] sm:$0xff] %vm253, 0.0
      %283 = vst.msk [vmem:[#allocation2 + $0xe0] sm:$0xff] %vm253, 0.0
      %284 = vst.msk [vmem:[#allocation2 + $0xe8] sm:$0x3] %vm256, 0.0
      %285 = vst.msk [vmem:[#allocation2 + $0xf0] sm:$0xff] %vm253, 0.0
      %286 = vst.msk [vmem:[#allocation2 + $0xf8] sm:$0xff] %vm253, 0.0
      %287 = vst.msk [vmem:[#allocation2 + $0x100] sm:$0x3] %vm256, 0.0
      %288 = vst.msk [vmem:[#allocation2 + $0x108] sm:$0xff] %vm253, 0.0
      %289 = vst.msk [vmem:[#allocation2 + $0x110] sm:$0xff] %vm253, 0.0
      %290 = vst.msk [vmem:[#allocation2 + $0x118] sm:$0x3] %vm256, 0.0
      %291 = vst.msk [vmem:[#allocation2 + $0x120] sm:$0xff] %vm253, 0.0
      %292 = vst.msk [vmem:[#allocation2 + $0x128] sm:$0xff] %vm253, 0.0
      %293 = vst.msk [vmem:[#allocation2 + $0x130] sm:$0x3] %vm256, 0.0
      %294 = vst.msk [vmem:[#allocation2 + $0x138] sm:$0xff] %vm253, 0.0
      %295 = vst.msk [vmem:[#allocation2 + $0x140] sm:$0xff] %vm253, 0.0
      %296 = vst.msk [vmem:[#allocation2 + $0x148] sm:$0x3] %vm256, 0.0
      %297 = vst.msk [vmem:[#allocation2 + $0x150] sm:$0xff] %vm253, 0.0
      %298 = vst.msk [vmem:[#allocation2 + $0x158] sm:$0xff] %vm253, 0.0
      %299 = vst.msk [vmem:[#allocation2 + $0x160] sm:$0x3] %vm256, 0.0
      %300 = vst.msk [vmem:[#allocation2 + $0x168] sm:$0xff] %vm253, 0.0
      %301 = vst.msk [vmem:[#allocation2 + $0x170] sm:$0xff] %vm253, 0.0
      %302 = vst.msk [vmem:[#allocation2 + $0x178] sm:$0x3] %vm256, 0.0
      %303 = vst.msk [vmem:[#allocation2 + $0x180] sm:$0xff] %vm253, 0.0
      %304 = vst.msk [vmem:[#allocation2 + $0x188] sm:$0xff] %vm253, 0.0
      %305 = vst.msk [vmem:[#allocation2 + $0x190] sm:$0x3] %vm256, 0.0
      %306 = vst.msk [vmem:[#allocation2 + $0x198] sm:$0xff] %vm253, 0.0
      %307 = vst.msk [vmem:[#allocation2 + $0x1a0] sm:$0xff] %vm253, 0.0
      %308 = vst.msk [vmem:[#allocation2 + $0x1a8] sm:$0x3] %vm256, 0.0
      %v309 = vld [vmem:[%s246] sm:$0xff]
      %v310 = vld [vmem:[%s246 + $0x8] sm:$0xff]
      %v311 = vld [vmem:[%s246 + $0x10] sm:$0xff]
      %v312 = vld [vmem:[%s246 + $0x18] sm:$0xff]
      %v313 = vld [vmem:[%s246 + $0x20] sm:$0xff]
      %v314 = vld [vmem:[%s246 + $0x28] sm:$0xff]
      %v315 = vld [vmem:[%s246 + $0x30] sm:$0xff]
      %v316 = vld [vmem:[%s246 + $0x38] sm:$0xff]
      %v317 = vld [vmem:[%s246 + $0x40] sm:$0xff]
      %v318 = vld [vmem:[%s246 + $0x48] sm:$0xff]
      %v319 = vld [vmem:[%s246 + $0x50] sm:$0xff]
      %v320 = vld [vmem:[%s246 + $0x58] sm:$0xff]
      %v321 = vld [vmem:[%s246 + $0x60] sm:$0xff]
      %v322 = vld [vmem:[%s246 + $0x68] sm:$0xff]
      %v323 = vld [vmem:[%s246 + $0x70] sm:$0xff]
      %v324 = vld [vmem:[%s246 + $0x78] sm:$0xff]
      %v325 = vld [vmem:[%s246 + $0x80] sm:$0xff]
      %v326 = vld [vmem:[%s246 + $0x88] sm:$0xff]
      %v327 = vld [vmem:[%s246 + $0x90] sm:$0xff]
      %v328 = vld [vmem:[%s246 + $0x98] sm:$0xff]
      %v329 = vld [vmem:[%s246 + $0xa0] sm:$0xff]
      %v330 = vld [vmem:[%s246 + $0xa8] sm:$0xff]
      %v331 = vld [vmem:[%s246 + $0xb0] sm:$0xff]
      %v332 = vld [vmem:[%s246 + $0xb8] sm:$0xff]
      %v333 = vld [vmem:[%s246 + $0xc0] sm:$0xff]
      %v334 = vld [vmem:[%s246 + $0xc8] sm:$0xff]
      %v335 = vld [vmem:[%s246 + $0xd0] sm:$0xff]
      %v336 = vld [vmem:[%s246 + $0xd8] sm:$0xff]
      %v337 = vld [vmem:[%s246 + $0xe0] sm:$0xff]
      %v338 = vld [vmem:[%s246 + $0xe8] sm:$0xff]
      %v339 = vld [vmem:[%s246 + $0xf0] sm:$0xff]
      %v340 = vld [vmem:[%s246 + $0xf8] sm:$0xff]
      %v341 = vld [vmem:[%s4] sm:$0xf]
      %v342 = vld [vmem:[%s5] sm:$0x3]
      %s343 = scalar_lea.vmem [#allocation2], 24
      %344 = vst.msk [vmem:[%s343 + $0x1] sm:$0xff] %vm253, %v309
      %345 = vst.msk [vmem:[%s343 + $0x9] sm:$0xff] %vm253, %v310
      %346 = vst.msk [vmem:[%s343 + $0x19] sm:$0xff] %vm253, %v311
      %347 = vst.msk [vmem:[%s343 + $0x21] sm:$0xff] %vm253, %v312
      %348 = vst.msk [vmem:[%s343 + $0x31] sm:$0xff] %vm253, %v313
      %349 = vst.msk [vmem:[%s343 + $0x39] sm:$0xff] %vm253, %v314
      %350 = vst.msk [vmem:[%s343 + $0x49] sm:$0xff] %vm253, %v315
      %351 = vst.msk [vmem:[%s343 + $0x51] sm:$0xff] %vm253, %v316
      %352 = vst.msk [vmem:[%s343 + $0x61] sm:$0xff] %vm253, %v317
      %353 = vst.msk [vmem:[%s343 + $0x69] sm:$0xff] %vm253, %v318
      %354 = vst.msk [vmem:[%s343 + $0x79] sm:$0xff] %vm253, %v319
      %355 = vst.msk [vmem:[%s343 + $0x81] sm:$0xff] %vm253, %v320
      %356 = vst.msk [vmem:[%s343 + $0x91] sm:$0xff] %vm253, %v321
      %357 = vst.msk [vmem:[%s343 + $0x99] sm:$0xff] %vm253, %v322
      %358 = vst.msk [vmem:[%s343 + $0xa9] sm:$0xff] %vm253, %v323
      %359 = vst.msk [vmem:[%s343 + $0xb1] sm:$0xff] %vm253, %v324
      %360 = vst.msk [vmem:[%s343 + $0xc1] sm:$0xff] %vm253, %v325
      %361 = vst.msk [vmem:[%s343 + $0xc9] sm:$0xff] %vm253, %v326
      %362 = vst.msk [vmem:[%s343 + $0xd9] sm:$0xff] %vm253, %v327
      %363 = vst.msk [vmem:[%s343 + $0xe1] sm:$0xff] %vm253, %v328
      %364 = vst.msk [vmem:[%s343 + $0xf1] sm:$0xff] %vm253, %v329
      %365 = vst.msk [vmem:[%s343 + $0xf9] sm:$0xff] %vm253, %v330
      %366 = vst.msk [vmem:[%s343 + $0x109] sm:$0xff] %vm253, %v331
      %367 = vst.msk [vmem:[%s343 + $0x111] sm:$0xff] %vm253, %v332
      %368 = vst.msk [vmem:[%s343 + $0x121] sm:$0xff] %vm253, %v333
      %369 = vst.msk [vmem:[%s343 + $0x129] sm:$0xff] %vm253, %v334
      %370 = vst.msk [vmem:[%s343 + $0x139] sm:$0xff] %vm253, %v335
      %371 = vst.msk [vmem:[%s343 + $0x141] sm:$0xff] %vm253, %v336
      %372 = vst.msk [vmem:[%s343 + $0x151] sm:$0xff] %vm253, %v337
      %373 = vst.msk [vmem:[%s343 + $0x159] sm:$0xff] %vm253, %v338
      %374 = vst.msk [vmem:[%s343 + $0x169] sm:$0xff] %vm253, %v339
      %375 = vst.msk [vmem:[%s343 + $0x171] sm:$0xff] %vm253, %v340
      %v376 = vld [vmem:[%s1] sm:$0xf]
      %v377 = vld [vmem:[%s1 + $0x4] sm:$0xf]
      %v378 = vld [vmem:[%s1 + $0x8] sm:$0xf]
      %v379 = vld [vmem:[%s1 + $0xc] sm:$0xf]
      %v380 = vld [vmem:[%s1 + $0x10] sm:$0xf]
      %v381 = vld [vmem:[%s1 + $0x14] sm:$0xf]
      %v382 = vld [vmem:[%s1 + $0x18] sm:$0xf]
      %v383 = vld [vmem:[%s1 + $0x1c] sm:$0xf]
      %v384 = vld [vmem:[%s1 + $0x20] sm:$0xf]
      %v385 = vld [vmem:[%s1 + $0x24] sm:$0xf]
      %v386 = vld [vmem:[%s1 + $0x28] sm:$0xf]
      %v387 = vld [vmem:[%s1 + $0x2c] sm:$0xf]
      %v388 = vld [vmem:[%s1 + $0x30] sm:$0xf]
      %v389 = vld [vmem:[%s1 + $0x34] sm:$0xf]
      %v390 = vld [vmem:[%s1 + $0x38] sm:$0xf]
      %v391 = vld [vmem:[%s1 + $0x3c] sm:$0xf]
      %v392 = vld [vmem:[%s1 + $0x40] sm:$0xf]
      %v393 = vld [vmem:[%s1 + $0x44] sm:$0xf]
      %v394 = vld [vmem:[#allocation2] sm:$0xff]
      %v395 = vld [vmem:[#allocation2 + $0x8] sm:$0xff]
      %v396 = vld [vmem:[#allocation2 + $0x10] sm:$0x3]
      %v397 = vld [vmem:[#allocation2 + $0x18] sm:$0xff]
      %v398 = vld [vmem:[#allocation2 + $0x20] sm:$0xff]
      %v399 = vld [vmem:[#allocation2 + $0x28] sm:$0x3]
      %v400 = vld [vmem:[#allocation2 + $0x30] sm:$0xff]
      %v401 = vld [vmem:[#allocation2 + $0x38] sm:$0xff]
      %v402 = vld [vmem:[#allocation2 + $0x40] sm:$0x3]
      %v403 = vld [vmem:[#allocation2 + $0x48] sm:$0xff]
      %v404 = vld [vmem:[#allocation2 + $0x50] sm:$0xff]
      %v405 = vld [vmem:[#allocation2 + $0x58] sm:$0x3]
      %v406 = vld [vmem:[#allocation2 + $0x60] sm:$0xff]
      %v407 = vld [vmem:[#allocation2 + $0x68] sm:$0xff]
      %v408 = vld [vmem:[#allocation2 + $0x70] sm:$0x3]
      %v409 = vld [vmem:[#allocation2 + $0x78] sm:$0xff]
      %v410 = vld [vmem:[#allocation2 + $0x80] sm:$0xff]
      %v411 = vld [vmem:[#allocation2 + $0x88] sm:$0x3]
      %v412 = vld [vmem:[#allocation2 + $0x90] sm:$0xff]
      %v413 = vld [vmem:[#allocation2 + $0x98] sm:$0xff]
      %v414 = vld [vmem:[#allocation2 + $0xa0] sm:$0x3]
      %v415 = vld [vmem:[#allocation2 + $0xa8] sm:$0xff]
      %v416 = vld [vmem:[#allocation2 + $0xb0] sm:$0xff]
      %v417 = vld [vmem:[#allocation2 + $0xb8] sm:$0x3]
      %v418 = vld [vmem:[#allocation2 + $0xc0] sm:$0xff]
      %v419 = vld [vmem:[#allocation2 + $0xc8] sm:$0xff]
      %v420 = vld [vmem:[#allocation2 + $0xd0] sm:$0x3]
      %v421 = vld [vmem:[#allocation2 + $0xd8] sm:$0xff]
      %v422 = vld [vmem:[#allocation2 + $0xe0] sm:$0xff]
      %v423 = vld [vmem:[#allocation2 + $0xe8] sm:$0x3]
      %v424 = vld [vmem:[#allocation2 + $0xf0] sm:$0xff]
      %v425 = vld [vmem:[#allocation2 + $0xf8] sm:$0xff]
      %v426 = vld [vmem:[#allocation2 + $0x100] sm:$0x3]
      %v427 = vld [vmem:[#allocation2 + $0x108] sm:$0xff]
      %v428 = vld [vmem:[#allocation2 + $0x110] sm:$0xff]
      %v429 = vld [vmem:[#allocation2 + $0x118] sm:$0x3]
      %v430 = vld [vmem:[#allocation2 + $0x120] sm:$0xff]
      %v431 = vld [vmem:[#allocation2 + $0x128] sm:$0xff]
      %v432 = vld [vmem:[#allocation2 + $0x130] sm:$0x3]
      %v433 = vld [vmem:[#allocation2 + $0x138] sm:$0xff]
      %v434 = vld [vmem:[#allocation2 + $0x140] sm:$0xff]
      %v435 = vld [vmem:[#allocation2 + $0x148] sm:$0x3]
      %v436 = vld [vmem:[#allocation2 + $0x150] sm:$0xff]
      %v437 = vld [vmem:[#allocation2 + $0x158] sm:$0xff]
      %v438 = vld [vmem:[#allocation2 + $0x160] sm:$0x3]
      %v439 = vld [vmem:[#allocation2 + $0x168] sm:$0xff]
      %v440 = vld [vmem:[#allocation2 + $0x170] sm:$0xff]
      %v441 = vld [vmem:[#allocation2 + $0x178] sm:$0x3]
      %v442 = vld [vmem:[#allocation2 + $0x180] sm:$0xff]
      %v443 = vld [vmem:[#allocation2 + $0x188] sm:$0xff]
      %v444 = vld [vmem:[#allocation2 + $0x190] sm:$0x3]
      %v445 = vld [vmem:[#allocation2 + $0x198] sm:$0xff]
      %v446 = vld [vmem:[#allocation2 + $0x1a0] sm:$0xff]
      %v447 = vld [vmem:[#allocation2 + $0x1a8] sm:$0x3]
      %vm496 = vcmask 1046528
      %v497 = vrot.slane %v394, 1
      %v498 = vrot.slane %v395, 1
      %v499 = vsel %vm496, %v497, %v498
      %v500 = vrot.slane %v396, 1
      %v501 = vsel %vm496, %v498, %v500
      %v502 = vrot.slane %v397, 1
      %v503 = vrot.slane %v398, 1
      %v504 = vsel %vm496, %v502, %v503
      %v505 = vrot.slane %v399, 1
      %v506 = vsel %vm496, %v503, %v505
      %v507 = vrot.slane %v400, 1
      %v508 = vrot.slane %v401, 1
      %v509 = vsel %vm496, %v507, %v508
      %v510 = vrot.slane %v402, 1
      %v511 = vsel %vm496, %v508, %v510
      %v512 = vrot.slane %v403, 1
      %v513 = vrot.slane %v404, 1
      %v514 = vsel %vm496, %v512, %v513
      %v515 = vrot.slane %v405, 1
      %v516 = vsel %vm496, %v513, %v515
      %v517 = vrot.slane %v406, 1
      %v518 = vrot.slane %v407, 1
      %v519 = vsel %vm496, %v517, %v518
      %v520 = vrot.slane %v408, 1
      %v521 = vsel %vm496, %v518, %v520
      %v522 = vrot.slane %v409, 1
      %v523 = vrot.slane %v410, 1
      %v524 = vsel %vm496, %v522, %v523
      %v525 = vrot.slane %v411, 1
      %v526 = vsel %vm496, %v523, %v525
      %v527 = vrot.slane %v412, 1
      %v528 = vrot.slane %v413, 1
      %v529 = vsel %vm496, %v527, %v528
      %v530 = vrot.slane %v414, 1
      %v531 = vsel %vm496, %v528, %v530
      %v532 = vrot.slane %v415, 1
      %v533 = vrot.slane %v416, 1
      %v534 = vsel %vm496, %v532, %v533
      %v535 = vrot.slane %v417, 1
      %v536 = vsel %vm496, %v533, %v535
      %v537 = vrot.slane %v418, 1
      %v538 = vrot.slane %v419, 1
      %v539 = vsel %vm496, %v537, %v538
      %v540 = vrot.slane %v420, 1
      %v541 = vsel %vm496, %v538, %v540
      %v542 = vrot.slane %v421, 1
      %v543 = vrot.slane %v422, 1
      %v544 = vsel %vm496, %v542, %v543
      %v545 = vrot.slane %v423, 1
      %v546 = vsel %vm496, %v543, %v545
      %v547 = vrot.slane %v424, 1
      %v548 = vrot.slane %v425, 1
      %v549 = vsel %vm496, %v547, %v548
      %v550 = vrot.slane %v426, 1
      %v551 = vsel %vm496, %v548, %v550
      %v552 = vrot.slane %v427, 1
      %v553 = vrot.slane %v428, 1
      %v554 = vsel %vm496, %v552, %v553
      %v555 = vrot.slane %v429, 1
      %v556 = vsel %vm496, %v553, %v555
      %v557 = vrot.slane %v430, 1
      %v558 = vrot.slane %v431, 1
      %v559 = vsel %vm496, %v557, %v558
      %v560 = vrot.slane %v432, 1
      %v561 = vsel %vm496, %v558, %v560
      %v562 = vrot.slane %v433, 1
      %v563 = vrot.slane %v434, 1
      %v564 = vsel %vm496, %v562, %v563
      %v565 = vrot.slane %v435, 1
      %v566 = vsel %vm496, %v563, %v565
      %v567 = vrot.slane %v436, 1
      %v568 = vrot.slane %v437, 1
      %v569 = vsel %vm496, %v567, %v568
      %v570 = vrot.slane %v438, 1
      %v571 = vsel %vm496, %v568, %v570
      %v572 = vrot.slane %v439, 1
      %v573 = vrot.slane %v440, 1
      %v574 = vsel %vm496, %v572, %v573
      %v575 = vrot.slane %v441, 1
      %v576 = vsel %vm496, %v573, %v575
      %vm577 = vcmask 1045504
      %v578 = vrot.slane %v394, 2
      %v579 = vrot.slane %v395, 2
      %v580 = vsel %vm577, %v578, %v579
      %v581 = vrot.slane %v396, 2
      %v582 = vsel %vm577, %v579, %v581
      %v583 = vrot.slane %v397, 2
      %v584 = vrot.slane %v398, 2
      %v585 = vsel %vm577, %v583, %v584
      %v586 = vrot.slane %v399, 2
      %v587 = vsel %vm577, %v584, %v586
      %v588 = vrot.slane %v400, 2
      %v589 = vrot.slane %v401, 2
      %v590 = vsel %vm577, %v588, %v589
      %v591 = vrot.slane %v402, 2
      %v592 = vsel %vm577, %v589, %v591
      %v593 = vrot.slane %v403, 2
      %v594 = vrot.slane %v404, 2
      %v595 = vsel %vm577, %v593, %v594
      %v596 = vrot.slane %v405, 2
      %v597 = vsel %vm577, %v594, %v596
      %v598 = vrot.slane %v406, 2
      %v599 = vrot.slane %v407, 2
      %v600 = vsel %vm577, %v598, %v599
      %v601 = vrot.slane %v408, 2
      %v602 = vsel %vm577, %v599, %v601
      %v603 = vrot.slane %v409, 2
      %v604 = vrot.slane %v410, 2
      %v605 = vsel %vm577, %v603, %v604
      %v606 = vrot.slane %v411, 2
      %v607 = vsel %vm577, %v604, %v606
      %v608 = vrot.slane %v412, 2
      %v609 = vrot.slane %v413, 2
      %v610 = vsel %vm577, %v608, %v609
      %v611 = vrot.slane %v414, 2
      %v612 = vsel %vm577, %v609, %v611
      %v613 = vrot.slane %v415, 2
      %v614 = vrot.slane %v416, 2
      %v615 = vsel %vm577, %v613, %v614
      %v616 = vrot.slane %v417, 2
      %v617 = vsel %vm577, %v614, %v616
      %v618 = vrot.slane %v418, 2
      %v619 = vrot.slane %v419, 2
      %v620 = vsel %vm577, %v618, %v619
      %v621 = vrot.slane %v420, 2
      %v622 = vsel %vm577, %v619, %v621
      %v623 = vrot.slane %v421, 2
      %v624 = vrot.slane %v422, 2
      %v625 = vsel %vm577, %v623, %v624
      %v626 = vrot.slane %v423, 2
      %v627 = vsel %vm577, %v624, %v626
      %v628 = vrot.slane %v424, 2
      %v629 = vrot.slane %v425, 2
      %v630 = vsel %vm577, %v628, %v629
      %v631 = vrot.slane %v426, 2
      %v632 = vsel %vm577, %v629, %v631
      %v633 = vrot.slane %v427, 2
      %v634 = vrot.slane %v428, 2
      %v635 = vsel %vm577, %v633, %v634
      %v636 = vrot.slane %v429, 2
      %v637 = vsel %vm577, %v634, %v636
      %v638 = vrot.slane %v430, 2
      %v639 = vrot.slane %v431, 2
      %v640 = vsel %vm577, %v638, %v639
      %v641 = vrot.slane %v432, 2
      %v642 = vsel %vm577, %v639, %v641
      %v643 = vrot.slane %v433, 2
      %v644 = vrot.slane %v434, 2
      %v645 = vsel %vm577, %v643, %v644
      %v646 = vrot.slane %v435, 2
      %v647 = vsel %vm577, %v644, %v646
      %v648 = vrot.slane %v436, 2
      %v649 = vrot.slane %v437, 2
      %v650 = vsel %vm577, %v648, %v649
      %v651 = vrot.slane %v438, 2
      %v652 = vsel %vm577, %v649, %v651
      %v653 = vrot.slane %v439, 2
      %v654 = vrot.slane %v440, 2
      %v655 = vsel %vm577, %v653, %v654
      %v656 = vrot.slane %v441, 2
      %v657 = vsel %vm577, %v654, %v656
      %v661 = vrot.slane %v442, 1
      %v662 = vrot.slane %v443, 1
      %v663 = vsel %vm496, %v661, %v662
      %v664 = vrot.slane %v444, 1
      %v665 = vsel %vm496, %v662, %v664
      %v666 = vrot.slane %v442, 2
      %v667 = vrot.slane %v443, 2
      %v668 = vsel %vm577, %v666, %v667
      %v669 = vrot.slane %v444, 2
      %v670 = vsel %vm577, %v667, %v669
      %v674 = vrot.slane %v445, 1
      %v675 = vrot.slane %v446, 1
      %v676 = vsel %vm496, %v674, %v675
      %v677 = vrot.slane %v447, 1
      %v678 = vsel %vm496, %v675, %v677
      %v679 = vrot.slane %v445, 2
      %v680 = vrot.slane %v446, 2
      %v681 = vsel %vm577, %v679, %v680
      %v682 = vrot.slane %v447, 2
      %v683 = vsel %vm577, %v680, %v682
      %716 = vrot.lane.b32.xlu0 %v499, 16
      %v717 = vpop.permute.xlu0 %716
      %718 = vrot.lane.b32.xlu0 %v501, 16
      %v719 = vpop.permute.xlu0 %718
      %720 = vrot.lane.b32.xlu0 %v504, 16
      %v721 = vpop.permute.xlu0 %720
      %722 = vrot.lane.b32.xlu0 %v506, 16
      %v723 = vpop.permute.xlu0 %722
      %724 = vrot.lane.b32.xlu0 %v509, 16
      %v725 = vpop.permute.xlu0 %724
      %726 = vrot.lane.b32.xlu0 %v511, 16
      %v727 = vpop.permute.xlu0 %726
      %728 = vrot.lane.b32.xlu0 %v514, 16
      %v729 = vpop.permute.xlu0 %728
      %730 = vrot.lane.b32.xlu0 %v516, 16
      %v731 = vpop.permute.xlu0 %730
      %732 = vrot.lane.b32.xlu0 %v519, 16
      %v733 = vpop.permute.xlu0 %732
      %734 = vrot.lane.b32.xlu0 %v521, 16
      %v735 = vpop.permute.xlu0 %734
      %736 = vrot.lane.b32.xlu0 %v524, 16
      %v737 = vpop.permute.xlu0 %736
      %738 = vrot.lane.b32.xlu0 %v526, 16
      %v739 = vpop.permute.xlu0 %738
      %740 = vrot.lane.b32.xlu0 %v529, 16
      %v741 = vpop.permute.xlu0 %740
      %742 = vrot.lane.b32.xlu0 %v531, 16
      %v743 = vpop.permute.xlu0 %742
      %744 = vrot.lane.b32.xlu0 %v534, 16
      %v745 = vpop.permute.xlu0 %744
      %746 = vrot.lane.b32.xlu0 %v536, 16
      %v747 = vpop.permute.xlu0 %746
      %748 = vrot.lane.b32.xlu0 %v539, 16
      %v749 = vpop.permute.xlu0 %748
      %750 = vrot.lane.b32.xlu0 %v541, 16
      %v751 = vpop.permute.xlu0 %750
      %752 = vrot.lane.b32.xlu0 %v544, 16
      %v753 = vpop.permute.xlu0 %752
      %754 = vrot.lane.b32.xlu0 %v546, 16
      %v755 = vpop.permute.xlu0 %754
      %756 = vrot.lane.b32.xlu0 %v549, 16
      %v757 = vpop.permute.xlu0 %756
      %758 = vrot.lane.b32.xlu0 %v551, 16
      %v759 = vpop.permute.xlu0 %758
      %760 = vrot.lane.b32.xlu0 %v554, 16
      %v761 = vpop.permute.xlu0 %760
      %762 = vrot.lane.b32.xlu0 %v556, 16
      %v763 = vpop.permute.xlu0 %762
      %764 = vrot.lane.b32.xlu0 %v559, 16
      %v765 = vpop.permute.xlu0 %764
      %766 = vrot.lane.b32.xlu0 %v561, 16
      %v767 = vpop.permute.xlu0 %766
      %768 = vrot.lane.b32.xlu0 %v564, 16
      %v769 = vpop.permute.xlu0 %768
      %770 = vrot.lane.b32.xlu0 %v566, 16
      %v771 = vpop.permute.xlu0 %770
      %772 = vrot.lane.b32.xlu0 %v569, 16
      %v773 = vpop.permute.xlu0 %772
      %774 = vrot.lane.b32.xlu0 %v571, 16
      %v775 = vpop.permute.xlu0 %774
      %776 = vrot.lane.b32.xlu0 %v574, 16
      %v777 = vpop.permute.xlu0 %776
      %778 = vrot.lane.b32.xlu0 %v576, 16
      %v779 = vpop.permute.xlu0 %778
      %812 = vrot.lane.b32.xlu0 %v580, 32
      %v813 = vpop.permute.xlu0 %812
      %814 = vrot.lane.b32.xlu0 %v582, 32
      %v815 = vpop.permute.xlu0 %814
      %816 = vrot.lane.b32.xlu0 %v585, 32
      %v817 = vpop.permute.xlu0 %816
      %818 = vrot.lane.b32.xlu0 %v587, 32
      %v819 = vpop.permute.xlu0 %818
      %820 = vrot.lane.b32.xlu0 %v590, 32
      %v821 = vpop.permute.xlu0 %820
      %822 = vrot.lane.b32.xlu0 %v592, 32
      %v823 = vpop.permute.xlu0 %822
      %824 = vrot.lane.b32.xlu0 %v595, 32
      %v825 = vpop.permute.xlu0 %824
      %826 = vrot.lane.b32.xlu0 %v597, 32
      %v827 = vpop.permute.xlu0 %826
      %828 = vrot.lane.b32.xlu0 %v600, 32
      %v829 = vpop.permute.xlu0 %828
      %830 = vrot.lane.b32.xlu0 %v602, 32
      %v831 = vpop.permute.xlu0 %830
      %832 = vrot.lane.b32.xlu0 %v605, 32
      %v833 = vpop.permute.xlu0 %832
      %834 = vrot.lane.b32.xlu0 %v607, 32
      %v835 = vpop.permute.xlu0 %834
      %836 = vrot.lane.b32.xlu0 %v610, 32
      %v837 = vpop.permute.xlu0 %836
      %838 = vrot.lane.b32.xlu0 %v612, 32
      %v839 = vpop.permute.xlu0 %838
      %840 = vrot.lane.b32.xlu0 %v615, 32
      %v841 = vpop.permute.xlu0 %840
      %842 = vrot.lane.b32.xlu0 %v617, 32
      %v843 = vpop.permute.xlu0 %842
      %844 = vrot.lane.b32.xlu0 %v620, 32
      %v845 = vpop.permute.xlu0 %844
      %846 = vrot.lane.b32.xlu0 %v622, 32
      %v847 = vpop.permute.xlu0 %846
      %848 = vrot.lane.b32.xlu0 %v625, 32
      %v849 = vpop.permute.xlu0 %848
      %850 = vrot.lane.b32.xlu0 %v627, 32
      %v851 = vpop.permute.xlu0 %850
      %852 = vrot.lane.b32.xlu0 %v630, 32
      %v853 = vpop.permute.xlu0 %852
      %854 = vrot.lane.b32.xlu0 %v632, 32
      %v855 = vpop.permute.xlu0 %854
      %856 = vrot.lane.b32.xlu0 %v635, 32
      %v857 = vpop.permute.xlu0 %856
      %858 = vrot.lane.b32.xlu0 %v637, 32
      %v859 = vpop.permute.xlu0 %858
      %860 = vrot.lane.b32.xlu0 %v640, 32
      %v861 = vpop.permute.xlu0 %860
      %862 = vrot.lane.b32.xlu0 %v642, 32
      %v863 = vpop.permute.xlu0 %862
      %864 = vrot.lane.b32.xlu0 %v645, 32
      %v865 = vpop.permute.xlu0 %864
      %866 = vrot.lane.b32.xlu0 %v647, 32
      %v867 = vpop.permute.xlu0 %866
      %868 = vrot.lane.b32.xlu0 %v650, 32
      %v869 = vpop.permute.xlu0 %868
      %870 = vrot.lane.b32.xlu0 %v652, 32
      %v871 = vpop.permute.xlu0 %870
      %872 = vrot.lane.b32.xlu0 %v655, 32
      %v873 = vpop.permute.xlu0 %872
      %874 = vrot.lane.b32.xlu0 %v657, 32
      %v875 = vpop.permute.xlu0 %874
      %908 = vrot.lane.b32.xlu0 %v397, 48
      %v909 = vpop.permute.xlu0 %908
      %910 = vrot.lane.b32.xlu0 %v398, 48
      %v911 = vpop.permute.xlu0 %910
      %912 = vrot.lane.b32.xlu0 %v400, 48
      %v913 = vpop.permute.xlu0 %912
      %914 = vrot.lane.b32.xlu0 %v401, 48
      %v915 = vpop.permute.xlu0 %914
      %916 = vrot.lane.b32.xlu0 %v403, 48
      %v917 = vpop.permute.xlu0 %916
      %918 = vrot.lane.b32.xlu0 %v404, 48
      %v919 = vpop.permute.xlu0 %918
      %920 = vrot.lane.b32.xlu0 %v406, 48
      %v921 = vpop.permute.xlu0 %920
      %922 = vrot.lane.b32.xlu0 %v407, 48
      %v923 = vpop.permute.xlu0 %922
      %924 = vrot.lane.b32.xlu0 %v409, 48
      %v925 = vpop.permute.xlu0 %924
      %926 = vrot.lane.b32.xlu0 %v410, 48
      %v927 = vpop.permute.xlu0 %926
      %928 = vrot.lane.b32.xlu0 %v412, 48
      %v929 = vpop.permute.xlu0 %928
      %930 = vrot.lane.b32.xlu0 %v413, 48
      %v931 = vpop.permute.xlu0 %930
      %932 = vrot.lane.b32.xlu0 %v415, 48
      %v933 = vpop.permute.xlu0 %932
      %934 = vrot.lane.b32.xlu0 %v416, 48
      %v935 = vpop.permute.xlu0 %934
      %936 = vrot.lane.b32.xlu0 %v418, 48
      %v937 = vpop.permute.xlu0 %936
      %938 = vrot.lane.b32.xlu0 %v419, 48
      %v939 = vpop.permute.xlu0 %938
      %940 = vrot.lane.b32.xlu0 %v421, 48
      %v941 = vpop.permute.xlu0 %940
      %942 = vrot.lane.b32.xlu0 %v422, 48
      %v943 = vpop.permute.xlu0 %942
      %944 = vrot.lane.b32.xlu0 %v424, 48
      %v945 = vpop.permute.xlu0 %944
      %946 = vrot.lane.b32.xlu0 %v425, 48
      %v947 = vpop.permute.xlu0 %946
      %948 = vrot.lane.b32.xlu0 %v427, 48
      %v949 = vpop.permute.xlu0 %948
      %950 = vrot.lane.b32.xlu0 %v428, 48
      %v951 = vpop.permute.xlu0 %950
      %952 = vrot.lane.b32.xlu0 %v430, 48
      %v953 = vpop.permute.xlu0 %952
      %954 = vrot.lane.b32.xlu0 %v431, 48
      %v955 = vpop.permute.xlu0 %954
      %956 = vrot.lane.b32.xlu0 %v433, 48
      %v957 = vpop.permute.xlu0 %956
      %958 = vrot.lane.b32.xlu0 %v434, 48
      %v959 = vpop.permute.xlu0 %958
      %960 = vrot.lane.b32.xlu0 %v436, 48
      %v961 = vpop.permute.xlu0 %960
      %962 = vrot.lane.b32.xlu0 %v437, 48
      %v963 = vpop.permute.xlu0 %962
      %964 = vrot.lane.b32.xlu0 %v439, 48
      %v965 = vpop.permute.xlu0 %964
      %966 = vrot.lane.b32.xlu0 %v440, 48
      %v967 = vpop.permute.xlu0 %966
      %968 = vrot.lane.b32.xlu0 %v442, 48
      %v969 = vpop.permute.xlu0 %968
      %970 = vrot.lane.b32.xlu0 %v443, 48
      %v971 = vpop.permute.xlu0 %970
      %1004 = vrot.lane.b32.xlu0 %v504, 64
      %v1005 = vpop.permute.xlu0 %1004
      %1006 = vrot.lane.b32.xlu0 %v506, 64
      %v1007 = vpop.permute.xlu0 %1006
      %1008 = vrot.lane.b32.xlu0 %v509, 64
      %v1009 = vpop.permute.xlu0 %1008
      %1010 = vrot.lane.b32.xlu0 %v511, 64
      %v1011 = vpop.permute.xlu0 %1010
      %1012 = vrot.lane.b32.xlu0 %v514, 64
      %v1013 = vpop.permute.xlu0 %1012
      %1014 = vrot.lane.b32.xlu0 %v516, 64
      %v1015 = vpop.permute.xlu0 %1014
      %1016 = vrot.lane.b32.xlu0 %v519, 64
      %v1017 = vpop.permute.xlu0 %1016
      %1018 = vrot.lane.b32.xlu0 %v521, 64
      %v1019 = vpop.permute.xlu0 %1018
      %1020 = vrot.lane.b32.xlu0 %v524, 64
      %v1021 = vpop.permute.xlu0 %1020
      %1022 = vrot.lane.b32.xlu0 %v526, 64
      %v1023 = vpop.permute.xlu0 %1022
      %1024 = vrot.lane.b32.xlu0 %v529, 64
      %v1025 = vpop.permute.xlu0 %1024
      %1026 = vrot.lane.b32.xlu0 %v531, 64
      %v1027 = vpop.permute.xlu0 %1026
      %1028 = vrot.lane.b32.xlu0 %v534, 64
      %v1029 = vpop.permute.xlu0 %1028
      %1030 = vrot.lane.b32.xlu0 %v536, 64
      %v1031 = vpop.permute.xlu0 %1030
      %1032 = vrot.lane.b32.xlu0 %v539, 64
      %v1033 = vpop.permute.xlu0 %1032
      %1034 = vrot.lane.b32.xlu0 %v541, 64
      %v1035 = vpop.permute.xlu0 %1034
      %1036 = vrot.lane.b32.xlu0 %v544, 64
      %v1037 = vpop.permute.xlu0 %1036
      %1038 = vrot.lane.b32.xlu0 %v546, 64
      %v1039 = vpop.permute.xlu0 %1038
      %1040 = vrot.lane.b32.xlu0 %v549, 64
      %v1041 = vpop.permute.xlu0 %1040
      %1042 = vrot.lane.b32.xlu0 %v551, 64
      %v1043 = vpop.permute.xlu0 %1042
      %1044 = vrot.lane.b32.xlu0 %v554, 64
      %v1045 = vpop.permute.xlu0 %1044
      %1046 = vrot.lane.b32.xlu0 %v556, 64
      %v1047 = vpop.permute.xlu0 %1046
      %1048 = vrot.lane.b32.xlu0 %v559, 64
      %v1049 = vpop.permute.xlu0 %1048
      %1050 = vrot.lane.b32.xlu0 %v561, 64
      %v1051 = vpop.permute.xlu0 %1050
      %1052 = vrot.lane.b32.xlu0 %v564, 64
      %v1053 = vpop.permute.xlu0 %1052
      %1054 = vrot.lane.b32.xlu0 %v566, 64
      %v1055 = vpop.permute.xlu0 %1054
      %1056 = vrot.lane.b32.xlu0 %v569, 64
      %v1057 = vpop.permute.xlu0 %1056
      %1058 = vrot.lane.b32.xlu0 %v571, 64
      %v1059 = vpop.permute.xlu0 %1058
      %1060 = vrot.lane.b32.xlu0 %v574, 64
      %v1061 = vpop.permute.xlu0 %1060
      %1062 = vrot.lane.b32.xlu0 %v576, 64
      %v1063 = vpop.permute.xlu0 %1062
      %1064 = vrot.lane.b32.xlu0 %v663, 64
      %v1065 = vpop.permute.xlu0 %1064
      %1066 = vrot.lane.b32.xlu0 %v665, 64
      %v1067 = vpop.permute.xlu0 %1066
      %1100 = vrot.lane.b32.xlu0 %v585, 80
      %v1101 = vpop.permute.xlu0 %1100
      %1102 = vrot.lane.b32.xlu0 %v587, 80
      %v1103 = vpop.permute.xlu0 %1102
      %1104 = vrot.lane.b32.xlu0 %v590, 80
      %v1105 = vpop.permute.xlu0 %1104
      %1106 = vrot.lane.b32.xlu0 %v592, 80
      %v1107 = vpop.permute.xlu0 %1106
      %1108 = vrot.lane.b32.xlu0 %v595, 80
      %v1109 = vpop.permute.xlu0 %1108
      %1110 = vrot.lane.b32.xlu0 %v597, 80
      %v1111 = vpop.permute.xlu0 %1110
      %1112 = vrot.lane.b32.xlu0 %v600, 80
      %v1113 = vpop.permute.xlu0 %1112
      %1114 = vrot.lane.b32.xlu0 %v602, 80
      %v1115 = vpop.permute.xlu0 %1114
      %1116 = vrot.lane.b32.xlu0 %v605, 80
      %v1117 = vpop.permute.xlu0 %1116
      %1118 = vrot.lane.b32.xlu0 %v607, 80
      %v1119 = vpop.permute.xlu0 %1118
      %1120 = vrot.lane.b32.xlu0 %v610, 80
      %v1121 = vpop.permute.xlu0 %1120
      %1122 = vrot.lane.b32.xlu0 %v612, 80
      %v1123 = vpop.permute.xlu0 %1122
      %1124 = vrot.lane.b32.xlu0 %v615, 80
      %v1125 = vpop.permute.xlu0 %1124
      %1126 = vrot.lane.b32.xlu0 %v617, 80
      %v1127 = vpop.permute.xlu0 %1126
      %1128 = vrot.lane.b32.xlu0 %v620, 80
      %v1129 = vpop.permute.xlu0 %1128
      %1130 = vrot.lane.b32.xlu0 %v622, 80
      %v1131 = vpop.permute.xlu0 %1130
      %1132 = vrot.lane.b32.xlu0 %v625, 80
      %v1133 = vpop.permute.xlu0 %1132
      %1134 = vrot.lane.b32.xlu0 %v627, 80
      %v1135 = vpop.permute.xlu0 %1134
      %1136 = vrot.lane.b32.xlu0 %v630, 80
      %v1137 = vpop.permute.xlu0 %1136
      %1138 = vrot.lane.b32.xlu0 %v632, 80
      %v1139 = vpop.permute.xlu0 %1138
      %1140 = vrot.lane.b32.xlu0 %v635, 80
      %v1141 = vpop.permute.xlu0 %1140
      %1142 = vrot.lane.b32.xlu0 %v637, 80
      %v1143 = vpop.permute.xlu0 %1142
      %1144 = vrot.lane.b32.xlu0 %v640, 80
      %v1145 = vpop.permute.xlu0 %1144
      %1146 = vrot.lane.b32.xlu0 %v642, 80
      %v1147 = vpop.permute.xlu0 %1146
      %1148 = vrot.lane.b32.xlu0 %v645, 80
      %v1149 = vpop.permute.xlu0 %1148
      %1150 = vrot.lane.b32.xlu0 %v647, 80
      %v1151 = vpop.permute.xlu0 %1150
      %1152 = vrot.lane.b32.xlu0 %v650, 80
      %v1153 = vpop.permute.xlu0 %1152
      %1154 = vrot.lane.b32.xlu0 %v652, 80
      %v1155 = vpop.permute.xlu0 %1154
      %1156 = vrot.lane.b32.xlu0 %v655, 80
      %v1157 = vpop.permute.xlu0 %1156
      %1158 = vrot.lane.b32.xlu0 %v657, 80
      %v1159 = vpop.permute.xlu0 %1158
      %1160 = vrot.lane.b32.xlu0 %v668, 80
      %v1161 = vpop.permute.xlu0 %1160
      %1162 = vrot.lane.b32.xlu0 %v670, 80
      %v1163 = vpop.permute.xlu0 %1162
      %1196 = vrot.lane.b32.xlu0 %v400, 96
      %v1197 = vpop.permute.xlu0 %1196
      %1198 = vrot.lane.b32.xlu0 %v401, 96
      %v1199 = vpop.permute.xlu0 %1198
      %1200 = vrot.lane.b32.xlu0 %v403, 96
      %v1201 = vpop.permute.xlu0 %1200
      %1202 = vrot.lane.b32.xlu0 %v404, 96
      %v1203 = vpop.permute.xlu0 %1202
      %1204 = vrot.lane.b32.xlu0 %v406, 96
      %v1205 = vpop.permute.xlu0 %1204
      %1206 = vrot.lane.b32.xlu0 %v407, 96
      %v1207 = vpop.permute.xlu0 %1206
      %1208 = vrot.lane.b32.xlu0 %v409, 96
      %v1209 = vpop.permute.xlu0 %1208
      %1210 = vrot.lane.b32.xlu0 %v410, 96
      %v1211 = vpop.permute.xlu0 %1210
      %1212 = vrot.lane.b32.xlu0 %v412, 96
      %v1213 = vpop.permute.xlu0 %1212
      %1214 = vrot.lane.b32.xlu0 %v413, 96
      %v1215 = vpop.permute.xlu0 %1214
      %1216 = vrot.lane.b32.xlu0 %v415, 96
      %v1217 = vpop.permute.xlu0 %1216
      %1218 = vrot.lane.b32.xlu0 %v416, 96
      %v1219 = vpop.permute.xlu0 %1218
      %1220 = vrot.lane.b32.xlu0 %v418, 96
      %v1221 = vpop.permute.xlu0 %1220
      %1222 = vrot.lane.b32.xlu0 %v419, 96
      %v1223 = vpop.permute.xlu0 %1222
      %1224 = vrot.lane.b32.xlu0 %v421, 96
      %v1225 = vpop.permute.xlu0 %1224
      %1226 = vrot.lane.b32.xlu0 %v422, 96
      %v1227 = vpop.permute.xlu0 %1226
      %1228 = vrot.lane.b32.xlu0 %v424, 96
      %v1229 = vpop.permute.xlu0 %1228
      %1230 = vrot.lane.b32.xlu0 %v425, 96
      %v1231 = vpop.permute.xlu0 %1230
      %1232 = vrot.lane.b32.xlu0 %v427, 96
      %v1233 = vpop.permute.xlu0 %1232
      %1234 = vrot.lane.b32.xlu0 %v428, 96
      %v1235 = vpop.permute.xlu0 %1234
      %1236 = vrot.lane.b32.xlu0 %v430, 96
      %v1237 = vpop.permute.xlu0 %1236
      %1238 = vrot.lane.b32.xlu0 %v431, 96
      %v1239 = vpop.permute.xlu0 %1238
      %1240 = vrot.lane.b32.xlu0 %v433, 96
      %v1241 = vpop.permute.xlu0 %1240
      %1242 = vrot.lane.b32.xlu0 %v434, 96
      %v1243 = vpop.permute.xlu0 %1242
      %1244 = vrot.lane.b32.xlu0 %v436, 96
      %v1245 = vpop.permute.xlu0 %1244
      %1246 = vrot.lane.b32.xlu0 %v437, 96
      %v1247 = vpop.permute.xlu0 %1246
      %1248 = vrot.lane.b32.xlu0 %v439, 96
      %v1249 = vpop.permute.xlu0 %1248
      %1250 = vrot.lane.b32.xlu0 %v440, 96
      %v1251 = vpop.permute.xlu0 %1250
      %1252 = vrot.lane.b32.xlu0 %v442, 96
      %v1253 = vpop.permute.xlu0 %1252
      %1254 = vrot.lane.b32.xlu0 %v443, 96
      %v1255 = vpop.permute.xlu0 %1254
      %1256 = vrot.lane.b32.xlu0 %v445, 96
      %v1257 = vpop.permute.xlu0 %1256
      %1258 = vrot.lane.b32.xlu0 %v446, 96
      %v1259 = vpop.permute.xlu0 %1258
      %1292 = vrot.lane.b32.xlu0 %v509, 112
      %v1293 = vpop.permute.xlu0 %1292
      %1294 = vrot.lane.b32.xlu0 %v511, 112
      %v1295 = vpop.permute.xlu0 %1294
      %1296 = vrot.lane.b32.xlu0 %v514, 112
      %v1297 = vpop.permute.xlu0 %1296
      %1298 = vrot.lane.b32.xlu0 %v516, 112
      %v1299 = vpop.permute.xlu0 %1298
      %1300 = vrot.lane.b32.xlu0 %v519, 112
      %v1301 = vpop.permute.xlu0 %1300
      %1302 = vrot.lane.b32.xlu0 %v521, 112
      %v1303 = vpop.permute.xlu0 %1302
      %1304 = vrot.lane.b32.xlu0 %v524, 112
      %v1305 = vpop.permute.xlu0 %1304
      %1306 = vrot.lane.b32.xlu0 %v526, 112
      %v1307 = vpop.permute.xlu0 %1306
      %1308 = vrot.lane.b32.xlu0 %v529, 112
      %v1309 = vpop.permute.xlu0 %1308
      %1310 = vrot.lane.b32.xlu0 %v531, 112
      %v1311 = vpop.permute.xlu0 %1310
      %1312 = vrot.lane.b32.xlu0 %v534, 112
      %v1313 = vpop.permute.xlu0 %1312
      %1314 = vrot.lane.b32.xlu0 %v536, 112
      %v1315 = vpop.permute.xlu0 %1314
      %1316 = vrot.lane.b32.xlu0 %v539, 112
      %v1317 = vpop.permute.xlu0 %1316
      %1318 = vrot.lane.b32.xlu0 %v541, 112
      %v1319 = vpop.permute.xlu0 %1318
      %1320 = vrot.lane.b32.xlu0 %v544, 112
      %v1321 = vpop.permute.xlu0 %1320
      %1322 = vrot.lane.b32.xlu0 %v546, 112
      %v1323 = vpop.permute.xlu0 %1322
      %1324 = vrot.lane.b32.xlu0 %v549, 112
      %v1325 = vpop.permute.xlu0 %1324
      %1326 = vrot.lane.b32.xlu0 %v551, 112
      %v1327 = vpop.permute.xlu0 %1326
      %1328 = vrot.lane.b32.xlu0 %v554, 112
      %v1329 = vpop.permute.xlu0 %1328
      %1330 = vrot.lane.b32.xlu0 %v556, 112
      %v1331 = vpop.permute.xlu0 %1330
      %1332 = vrot.lane.b32.xlu0 %v559, 112
      %v1333 = vpop.permute.xlu0 %1332
      %1334 = vrot.lane.b32.xlu0 %v561, 112
      %v1335 = vpop.permute.xlu0 %1334
      %1336 = vrot.lane.b32.xlu0 %v564, 112
      %v1337 = vpop.permute.xlu0 %1336
      %1338 = vrot.lane.b32.xlu0 %v566, 112
      %v1339 = vpop.permute.xlu0 %1338
      %1340 = vrot.lane.b32.xlu0 %v569, 112
      %v1341 = vpop.permute.xlu0 %1340
      %1342 = vrot.lane.b32.xlu0 %v571, 112
      %v1343 = vpop.permute.xlu0 %1342
      %1344 = vrot.lane.b32.xlu0 %v574, 112
      %v1345 = vpop.permute.xlu0 %1344
      %1346 = vrot.lane.b32.xlu0 %v576, 112
      %v1347 = vpop.permute.xlu0 %1346
      %1348 = vrot.lane.b32.xlu0 %v663, 112
      %v1349 = vpop.permute.xlu0 %1348
      %1350 = vrot.lane.b32.xlu0 %v665, 112
      %v1351 = vpop.permute.xlu0 %1350
      %1352 = vrot.lane.b32.xlu0 %v676, 112
      %v1353 = vpop.permute.xlu0 %1352
      %1354 = vrot.lane.b32.xlu0 %v678, 112
      %v1355 = vpop.permute.xlu0 %1354
      %v1388 = vsel %vm253, %v394, %v717
      %v1389 = vsel %vm253, %v395, %v719
      %v1390 = vsel %vm253, %v397, %v721
      %v1391 = vsel %vm253, %v398, %v723
      %v1392 = vsel %vm253, %v400, %v725
      %v1393 = vsel %vm253, %v401, %v727
      %v1394 = vsel %vm253, %v403, %v729
      %v1395 = vsel %vm253, %v404, %v731
      %v1396 = vsel %vm253, %v406, %v733
      %v1397 = vsel %vm253, %v407, %v735
      %v1398 = vsel %vm253, %v409, %v737
      %v1399 = vsel %vm253, %v410, %v739
      %v1400 = vsel %vm253, %v412, %v741
      %v1401 = vsel %vm253, %v413, %v743
      %v1402 = vsel %vm253, %v415, %v745
      %v1403 = vsel %vm253, %v416, %v747
      %v1404 = vsel %vm253, %v418, %v749
      %v1405 = vsel %vm253, %v419, %v751
      %v1406 = vsel %vm253, %v421, %v753
      %v1407 = vsel %vm253, %v422, %v755
      %v1408 = vsel %vm253, %v424, %v757
      %v1409 = vsel %vm253, %v425, %v759
      %v1410 = vsel %vm253, %v427, %v761
      %v1411 = vsel %vm253, %v428, %v763
      %v1412 = vsel %vm253, %v430, %v765
      %v1413 = vsel %vm253, %v431, %v767
      %v1414 = vsel %vm253, %v433, %v769
      %v1415 = vsel %vm253, %v434, %v771
      %v1416 = vsel %vm253, %v436, %v773
      %v1417 = vsel %vm253, %v437, %v775
      %v1418 = vsel %vm253, %v439, %v777
      %v1419 = vsel %vm253, %v440, %v779
      %vm1420 = vcmask 261120
      %v1421 = vsel %vm1420, %v1388, %v813
      %v1422 = vsel %vm1420, %v1389, %v815
      %v1423 = vsel %vm1420, %v1390, %v817
      %v1424 = vsel %vm1420, %v1391, %v819
      %v1425 = vsel %vm1420, %v1392, %v821
      %v1426 = vsel %vm1420, %v1393, %v823
      %v1427 = vsel %vm1420, %v1394, %v825
      %v1428 = vsel %vm1420, %v1395, %v827
      %v1429 = vsel %vm1420, %v1396, %v829
      %v1430 = vsel %vm1420, %v1397, %v831
      %v1431 = vsel %vm1420, %v1398, %v833
      %v1432 = vsel %vm1420, %v1399, %v835
      %v1433 = vsel %vm1420, %v1400, %v837
      %v1434 = vsel %vm1420, %v1401, %v839
      %v1435 = vsel %vm1420, %v1402, %v841
      %v1436 = vsel %vm1420, %v1403, %v843
      %v1437 = vsel %vm1420, %v1404, %v845
      %v1438 = vsel %vm1420, %v1405, %v847
      %v1439 = vsel %vm1420, %v1406, %v849
      %v1440 = vsel %vm1420, %v1407, %v851
      %v1441 = vsel %vm1420, %v1408, %v853
      %v1442 = vsel %vm1420, %v1409, %v855
      %v1443 = vsel %vm1420, %v1410, %v857
      %v1444 = vsel %vm1420, %v1411, %v859
      %v1445 = vsel %vm1420, %v1412, %v861
      %v1446 = vsel %vm1420, %v1413, %v863
      %v1447 = vsel %vm1420, %v1414, %v865
      %v1448 = vsel %vm1420, %v1415, %v867
      %v1449 = vsel %vm1420, %v1416, %v869
      %v1450 = vsel %vm1420, %v1417, %v871
      %v1451 = vsel %vm1420, %v1418, %v873
      %v1452 = vsel %vm1420, %v1419, %v875
      %vm1453 = vcmask 392192
      %v1454 = vsel %vm1453, %v1421, %v909
      %v1455 = vsel %vm1453, %v1422, %v911
      %v1456 = vsel %vm1453, %v1423, %v913
      %v1457 = vsel %vm1453, %v1424, %v915
      %v1458 = vsel %vm1453, %v1425, %v917
      %v1459 = vsel %vm1453, %v1426, %v919
      %v1460 = vsel %vm1453, %v1427, %v921
      %v1461 = vsel %vm1453, %v1428, %v923
      %v1462 = vsel %vm1453, %v1429, %v925
      %v1463 = vsel %vm1453, %v1430, %v927
      %v1464 = vsel %vm1453, %v1431, %v929
      %v1465 = vsel %vm1453, %v1432, %v931
      %v1466 = vsel %vm1453, %v1433, %v933
      %v1467 = vsel %vm1453, %v1434, %v935
      %v1468 = vsel %vm1453, %v1435, %v937
      %v1469 = vsel %vm1453, %v1436, %v939
      %v1470 = vsel %vm1453, %v1437, %v941
      %v1471 = vsel %vm1453, %v1438, %v943
      %v1472 = vsel %vm1453, %v1439, %v945
      %v1473 = vsel %vm1453, %v1440, %v947
      %v1474 = vsel %vm1453, %v1441, %v949
      %v1475 = vsel %vm1453, %v1442, %v951
      %v1476 = vsel %vm1453, %v1443, %v953
      %v1477 = vsel %vm1453, %v1444, %v955
      %v1478 = vsel %vm1453, %v1445, %v957
      %v1479 = vsel %vm1453, %v1446, %v959
      %v1480 = vsel %vm1453, %v1447, %v961
      %v1481 = vsel %vm1453, %v1448, %v963
      %v1482 = vsel %vm1453, %v1449, %v965
      %v1483 = vsel %vm1453, %v1450, %v967
      %v1484 = vsel %vm1453, %v1451, %v969
      %v1485 = vsel %vm1453, %v1452, %v971
      %vm1486 = vcmask 523264
      %v1487 = vsel %vm1486, %v1454, %v1005
      %v1488 = vsel %vm1486, %v1455, %v1007
      %v1489 = vsel %vm1486, %v1456, %v1009
      %v1490 = vsel %vm1486, %v1457, %v1011
      %v1491 = vsel %vm1486, %v1458, %v1013
      %v1492 = vsel %vm1486, %v1459, %v1015
      %v1493 = vsel %vm1486, %v1460, %v1017
      %v1494 = vsel %vm1486, %v1461, %v1019
      %v1495 = vsel %vm1486, %v1462, %v1021
      %v1496 = vsel %vm1486, %v1463, %v1023
      %v1497 = vsel %vm1486, %v1464, %v1025
      %v1498 = vsel %vm1486, %v1465, %v1027
      %v1499 = vsel %vm1486, %v1466, %v1029
      %v1500 = vsel %vm1486, %v1467, %v1031
      %v1501 = vsel %vm1486, %v1468, %v1033
      %v1502 = vsel %vm1486, %v1469, %v1035
      %v1503 = vsel %vm1486, %v1470, %v1037
      %v1504 = vsel %vm1486, %v1471, %v1039
      %v1505 = vsel %vm1486, %v1472, %v1041
      %v1506 = vsel %vm1486, %v1473, %v1043
      %v1507 = vsel %vm1486, %v1474, %v1045
      %v1508 = vsel %vm1486, %v1475, %v1047
      %v1509 = vsel %vm1486, %v1476, %v1049
      %v1510 = vsel %vm1486, %v1477, %v1051
      %v1511 = vsel %vm1486, %v1478, %v1053
      %v1512 = vsel %vm1486, %v1479, %v1055
      %v1513 = vsel %vm1486, %v1480, %v1057
      %v1514 = vsel %vm1486, %v1481, %v1059
      %v1515 = vsel %vm1486, %v1482, %v1061
      %v1516 = vsel %vm1486, %v1483, %v1063
      %v1517 = vsel %vm1486, %v1484, %v1065
      %v1518 = vsel %vm1486, %v1485, %v1067
      %vm1519 = vcmask 654336
      %v1520 = vsel %vm1519, %v1487, %v1101
      %v1521 = vsel %vm1519, %v1488, %v1103
      %v1522 = vsel %vm1519, %v1489, %v1105
      %v1523 = vsel %vm1519, %v1490, %v1107
      %v1524 = vsel %vm1519, %v1491, %v1109
      %v1525 = vsel %vm1519, %v1492, %v1111
      %v1526 = vsel %vm1519, %v1493, %v1113
      %v1527 = vsel %vm1519, %v1494, %v1115
      %v1528 = vsel %vm1519, %v1495, %v1117
      %v1529 = vsel %vm1519, %v1496, %v1119
      %v1530 = vsel %vm1519, %v1497, %v1121
      %v1531 = vsel %vm1519, %v1498, %v1123
      %v1532 = vsel %vm1519, %v1499, %v1125
      %v1533 = vsel %vm1519, %v1500, %v1127
      %v1534 = vsel %vm1519, %v1501, %v1129
      %v1535 = vsel %vm1519, %v1502, %v1131
      %v1536 = vsel %vm1519, %v1503, %v1133
      %v1537 = vsel %vm1519, %v1504, %v1135
      %v1538 = vsel %vm1519, %v1505, %v1137
      %v1539 = vsel %vm1519, %v1506, %v1139
      %v1540 = vsel %vm1519, %v1507, %v1141
      %v1541 = vsel %vm1519, %v1508, %v1143
      %v1542 = vsel %vm1519, %v1509, %v1145
      %v1543 = vsel %vm1519, %v1510, %v1147
      %v1544 = vsel %vm1519, %v1511, %v1149
      %v1545 = vsel %vm1519, %v1512, %v1151
      %v1546 = vsel %vm1519, %v1513, %v1153
      %v1547 = vsel %vm1519, %v1514, %v1155
      %v1548 = vsel %vm1519, %v1515, %v1157
      %v1549 = vsel %vm1519, %v1516, %v1159
      %v1550 = vsel %vm1519, %v1517, %v1161
      %v1551 = vsel %vm1519, %v1518, %v1163
      %vm1552 = vcmask 785408
      %v1553 = vsel %vm1552, %v1520, %v1197
      %v1554 = vsel %vm1552, %v1521, %v1199
      %v1555 = vsel %vm1552, %v1522, %v1201
      %v1556 = vsel %vm1552, %v1523, %v1203
      %v1557 = vsel %vm1552, %v1524, %v1205
      %v1558 = vsel %vm1552, %v1525, %v1207
      %v1559 = vsel %vm1552, %v1526, %v1209
      %v1560 = vsel %vm1552, %v1527, %v1211
      %v1561 = vsel %vm1552, %v1528, %v1213
      %v1562 = vsel %vm1552, %v1529, %v1215
      %v1563 = vsel %vm1552, %v1530, %v1217
      %v1564 = vsel %vm1552, %v1531, %v1219
      %v1565 = vsel %vm1552, %v1532, %v1221
      %v1566 = vsel %vm1552, %v1533, %v1223
      %v1567 = vsel %vm1552, %v1534, %v1225
      %v1568 = vsel %vm1552, %v1535, %v1227
      %v1569 = vsel %vm1552, %v1536, %v1229
      %v1570 = vsel %vm1552, %v1537, %v1231
      %v1571 = vsel %vm1552, %v1538, %v1233
      %v1572 = vsel %vm1552, %v1539, %v1235
      %v1573 = vsel %vm1552, %v1540, %v1237
      %v1574 = vsel %vm1552, %v1541, %v1239
      %v1575 = vsel %vm1552, %v1542, %v1241
      %v1576 = vsel %vm1552, %v1543, %v1243
      %v1577 = vsel %vm1552, %v1544, %v1245
      %v1578 = vsel %vm1552, %v1545, %v1247
      %v1579 = vsel %vm1552, %v1546, %v1249
      %v1580 = vsel %vm1552, %v1547, %v1251
      %v1581 = vsel %vm1552, %v1548, %v1253
      %v1582 = vsel %vm1552, %v1549, %v1255
      %v1583 = vsel %vm1552, %v1550, %v1257
      %v1584 = vsel %vm1552, %v1551, %v1259
      %vm1585 = vcmask 916480
      %v1586 = vsel %vm1585, %v1553, %v1293
      %v1587 = vsel %vm1585, %v1554, %v1295
      %v1588 = vsel %vm1585, %v1555, %v1297
      %v1589 = vsel %vm1585, %v1556, %v1299
      %v1590 = vsel %vm1585, %v1557, %v1301
      %v1591 = vsel %vm1585, %v1558, %v1303
      %v1592 = vsel %vm1585, %v1559, %v1305
      %v1593 = vsel %vm1585, %v1560, %v1307
      %v1594 = vsel %vm1585, %v1561, %v1309
      %v1595 = vsel %vm1585, %v1562, %v1311
      %v1596 = vsel %vm1585, %v1563, %v1313
      %v1597 = vsel %vm1585, %v1564, %v1315
      %v1598 = vsel %vm1585, %v1565, %v1317
      %v1599 = vsel %vm1585, %v1566, %v1319
      %v1600 = vsel %vm1585, %v1567, %v1321
      %v1601 = vsel %vm1585, %v1568, %v1323
      %v1602 = vsel %vm1585, %v1569, %v1325
      %v1603 = vsel %vm1585, %v1570, %v1327
      %v1604 = vsel %vm1585, %v1571, %v1329
      %v1605 = vsel %vm1585, %v1572, %v1331
      %v1606 = vsel %vm1585, %v1573, %v1333
      %v1607 = vsel %vm1585, %v1574, %v1335
      %v1608 = vsel %vm1585, %v1575, %v1337
      %v1609 = vsel %vm1585, %v1576, %v1339
      %v1610 = vsel %vm1585, %v1577, %v1341
      %v1611 = vsel %vm1585, %v1578, %v1343
      %v1612 = vsel %vm1585, %v1579, %v1345
      %v1613 = vsel %vm1585, %v1580, %v1347
      %v1614 = vsel %vm1585, %v1581, %v1349
      %v1615 = vsel %vm1585, %v1582, %v1351
      %v1616 = vsel %vm1585, %v1583, %v1353
      %v1617 = vsel %vm1585, %v1584, %v1355
      %v1618 = vpack.c.bf16 %v1587, %v1586
      %v1619 = vpack.c.bf16 %v592, %v590
      %v1620 = vpack.c.bf16 %v1589, %v1588
      %v1621 = vpack.c.bf16 %v597, %v595
      %v1622 = vpack.c.bf16 %v1591, %v1590
      %v1623 = vpack.c.bf16 %v602, %v600
      %v1624 = vpack.c.bf16 %v1593, %v1592
      %v1625 = vpack.c.bf16 %v607, %v605
      %v1626 = vpack.c.bf16 %v1595, %v1594
      %v1627 = vpack.c.bf16 %v612, %v610
      %v1628 = vpack.c.bf16 %v1597, %v1596
      %v1629 = vpack.c.bf16 %v617, %v615
      %v1630 = vpack.c.bf16 %v1599, %v1598
      %v1631 = vpack.c.bf16 %v622, %v620
      %v1632 = vpack.c.bf16 %v1601, %v1600
      %v1633 = vpack.c.bf16 %v627, %v625
      %v1634 = vpack.c.bf16 %v1603, %v1602
      %v1635 = vpack.c.bf16 %v632, %v630
      %v1636 = vpack.c.bf16 %v1605, %v1604
      %v1637 = vpack.c.bf16 %v637, %v635
      %v1638 = vpack.c.bf16 %v1607, %v1606
      %v1639 = vpack.c.bf16 %v642, %v640
      %v1640 = vpack.c.bf16 %v1609, %v1608
      %v1641 = vpack.c.bf16 %v647, %v645
      %v1642 = vpack.c.bf16 %v1611, %v1610
      %v1643 = vpack.c.bf16 %v652, %v650
      %v1644 = vpack.c.bf16 %v1613, %v1612
      %v1645 = vpack.c.bf16 %v657, %v655
      %v1646 = vpack.c.bf16 %v1615, %v1614
      %v1647 = vpack.c.bf16 %v670, %v668
      %v1648 = vpack.c.bf16 %v1617, %v1616
      %v1649 = vpack.c.bf16 %v683, %v681
      %v1650 = vlaneseq
      %v1651 = vshrl.u32 %v1650, 7
      %v1652 = vsub.s32 0, %v1651
      %v1653 = vrot.slane %v341, %v1652
      %v1672 = vunpack.c.l.b16 %v376
      %v1673 = vunpack.c.l.b16 %v377
      %v1674 = vunpack.c.l.b16 %v378
      %v1675 = vunpack.c.l.b16 %v379
      %v1676 = vunpack.c.l.b16 %v380
      %v1677 = vunpack.c.l.b16 %v381
      %v1678 = vunpack.c.l.b16 %v382
      %v1679 = vunpack.c.l.b16 %v383
      %v1680 = vunpack.c.l.b16 %v384
      %v1681 = vunpack.c.l.b16 %v385
      %v1682 = vunpack.c.l.b16 %v386
      %v1683 = vunpack.c.l.b16 %v387
      %v1684 = vunpack.c.l.b16 %v388
      %v1685 = vunpack.c.l.b16 %v389
      %v1686 = vunpack.c.l.b16 %v390
      %v1687 = vunpack.c.l.b16 %v391
      %v1688 = vunpack.c.l.b16 %v392
      %v1689 = vunpack.c.l.b16 %v393
      %v1690 = vpack.c.b16 %v1673, %v1672
      %v1691 = vpack.c.b16 %v1675, %v1674
      %v1692 = vpack.c.b16 %v1677, %v1676
      %v1693 = vpack.c.b16 %v1679, %v1678
      %v1694 = vpack.c.b16 %v1681, %v1680
      %v1695 = vpack.c.b16 %v1683, %v1682
      %v1696 = vpack.c.b16 %v1685, %v1684
      %v1697 = vpack.c.b16 %v1687, %v1686
      %v1698 = vpack.c.b16 %v1689, %v1688
      %v1709 = vsel %vm253, %v1619, 0
      %v1712 = vsel %vm253, %v1621, 0
      %v1715 = vsel %vm253, %v1623, 0
      %v1718 = vsel %vm253, %v1625, 0
      %v1721 = vsel %vm253, %v1627, 0
      %v1724 = vsel %vm253, %v1629, 0
      %v1727 = vsel %vm253, %v1631, 0
      %v1730 = vsel %vm253, %v1633, 0
      %v1733 = vsel %vm253, %v1635, 0
      %v1736 = vsel %vm253, %v1637, 0
      %v1739 = vsel %vm253, %v1639, 0
      %v1742 = vsel %vm253, %v1641, 0
      %v1745 = vsel %vm253, %v1643, 0
      %v1748 = vsel %vm253, %v1645, 0
      %v1751 = vsel %vm253, %v1647, 0
      %v1754 = vsel %vm253, %v1649, 0
      %1756 = vmatprep.subr.bf16.mxu0 0
      %1757 = vmatpush1.bf16.msra.mxu0 %v1697
      %1758 = vmatprep.subr.bf16.mxu0 0
      %1759 = vmatpush1.bf16.msra.mxu0 %v1696
      %1760 = vmatprep.subr.bf16.mxu0 0
      %1761 = vmatpush1.bf16.msra.mxu0 %v1695
      %1762 = vmatprep.subr.bf16.mxu0 0
      %1763 = vmatpush1.bf16.msra.mxu0 %v1694
      %1764 = vmatprep.subr.bf16.mxu0 0
      %1765 = vmatpush1.bf16.msra.mxu0 %v1693
      %1766 = vmatprep.subr.bf16.mxu0 0
      %1767 = vmatpush1.bf16.msra.mxu0 %v1692
      %1768 = vmatprep.subr.bf16.mxu0 0
      %1769 = vmatpush1.bf16.msra.mxu0 %v1691
      %1770 = vmatprep.subr.bf16.mxu0 0
      %1771 = vmatpush1.bf16.msra.mxu0 %v1690
      %1772 = vmatprep.subr.bf16.mxu0 0
      %1773 = vmatpush2.bf16.msra.mxu0 0
      %1774 = vmatprep.subr.bf16.mxu0 0
      %1775 = vmatpush2.bf16.msra.mxu0 0
      %1776 = vmatprep.subr.bf16.mxu0 0
      %1777 = vmatpush2.bf16.msra.mxu0 0
      %1778 = vmatprep.subr.bf16.mxu0 0
      %1779 = vmatpush2.bf16.msra.mxu0 0
      %1780 = vmatprep.subr.bf16.mxu0 0
      %1781 = vmatpush2.bf16.msra.mxu0 0
      %1782 = vmatprep.subr.bf16.mxu0 0
      %1783 = vmatpush2.bf16.msra.mxu0 0
      %1784 = vmatprep.subr.bf16.mxu0 0
      %1785 = vmatpush2.bf16.msra.mxu0 0
      %1786 = vmatprep.subr.bf16.mxu0 0
      %1787 = vmatpush2.bf16.msra.mxu0 %v1698
      %1788 = vmatprep.mubr.bf16.mxu0 %v1709
      %1789 = vmatmul.mubr.bf16.gmra.mxu0 %v1618
      %v1790 = vpop.f32.mrf.mxu0
      %v1791 = vadd.f32 %v1653, %v1790
      %v1792 = vpop.f32.mrf.mxu0
      %v1793 = vpop.f32.mrf.mxu0
      %v1794 = vadd.f32 %v1653, %v1793
      %v1795 = vpop.f32.mrf.mxu0
      %1796 = vmatprep.mubr.bf16.mxu0 %v1712
      %1797 = vmatmul.mubr.bf16.gmra.mxu0 %v1620
      %v1798 = vpop.f32.mrf.mxu0
      %v1799 = vadd.f32 %v1653, %v1798
      %v1800 = vpop.f32.mrf.mxu0
      %v1801 = vpop.f32.mrf.mxu0
      %v1802 = vadd.f32 %v1653, %v1801
      %v1803 = vpop.f32.mrf.mxu0
      %1804 = vmatprep.mubr.bf16.mxu0 %v1715
      %1805 = vmatmul.mubr.bf16.gmra.mxu0 %v1622
      %v1806 = vpop.f32.mrf.mxu0
      %v1807 = vadd.f32 %v1653, %v1806
      %v1808 = vpop.f32.mrf.mxu0
      %v1809 = vpop.f32.mrf.mxu0
      %v1810 = vadd.f32 %v1653, %v1809
      %v1811 = vpop.f32.mrf.mxu0
      %1812 = vmatprep.mubr.bf16.mxu0 %v1718
      %1813 = vmatmul.mubr.bf16.gmra.mxu0 %v1624
      %v1814 = vpop.f32.mrf.mxu0
      %v1815 = vadd.f32 %v1653, %v1814
      %v1816 = vpop.f32.mrf.mxu0
      %v1817 = vpop.f32.mrf.mxu0
      %v1818 = vadd.f32 %v1653, %v1817
      %v1819 = vpop.f32.mrf.mxu0
      %1820 = vmatprep.mubr.bf16.mxu0 %v1721
      %1821 = vmatmul.mubr.bf16.gmra.mxu0 %v1626
      %v1822 = vpop.f32.mrf.mxu0
      %v1823 = vadd.f32 %v1653, %v1822
      %v1824 = vpop.f32.mrf.mxu0
      %v1825 = vpop.f32.mrf.mxu0
      %v1826 = vadd.f32 %v1653, %v1825
      %v1827 = vpop.f32.mrf.mxu0
      %1828 = vmatprep.mubr.bf16.mxu0 %v1724
      %1829 = vmatmul.mubr.bf16.gmra.mxu0 %v1628
      %v1830 = vpop.f32.mrf.mxu0
      %v1831 = vadd.f32 %v1653, %v1830
      %v1832 = vpop.f32.mrf.mxu0
      %v1833 = vpop.f32.mrf.mxu0
      %v1834 = vadd.f32 %v1653, %v1833
      %v1835 = vpop.f32.mrf.mxu0
      %1836 = vmatprep.mubr.bf16.mxu0 %v1727
      %1837 = vmatmul.mubr.bf16.gmra.mxu0 %v1630
      %v1838 = vpop.f32.mrf.mxu0
      %v1839 = vadd.f32 %v1653, %v1838
      %v1840 = vpop.f32.mrf.mxu0
      %v1841 = vpop.f32.mrf.mxu0
      %v1842 = vadd.f32 %v1653, %v1841
      %v1843 = vpop.f32.mrf.mxu0
      %1844 = vmatprep.mubr.bf16.mxu0 %v1730
      %1845 = vmatmul.mubr.bf16.gmra.mxu0 %v1632
      %v1846 = vpop.f32.mrf.mxu0
      %v1847 = vadd.f32 %v1653, %v1846
      %v1848 = vpop.f32.mrf.mxu0
      %v1849 = vpop.f32.mrf.mxu0
      %v1850 = vadd.f32 %v1653, %v1849
      %v1851 = vpop.f32.mrf.mxu0
      %1852 = vmatprep.mubr.bf16.mxu0 %v1733
      %1853 = vmatmul.mubr.bf16.gmra.mxu0 %v1634
      %v1854 = vpop.f32.mrf.mxu0
      %v1855 = vadd.f32 %v1653, %v1854
      %v1856 = vpop.f32.mrf.mxu0
      %v1857 = vpop.f32.mrf.mxu0
      %v1858 = vadd.f32 %v1653, %v1857
      %v1859 = vpop.f32.mrf.mxu0
      %1860 = vmatprep.mubr.bf16.mxu0 %v1736
      %1861 = vmatmul.mubr.bf16.gmra.mxu0 %v1636
      %v1862 = vpop.f32.mrf.mxu0
      %v1863 = vadd.f32 %v1653, %v1862
      %v1864 = vpop.f32.mrf.mxu0
      %v1865 = vpop.f32.mrf.mxu0
      %v1866 = vadd.f32 %v1653, %v1865
      %v1867 = vpop.f32.mrf.mxu0
      %1868 = vmatprep.mubr.bf16.mxu0 %v1739
      %1869 = vmatmul.mubr.bf16.gmra.mxu0 %v1638
      %v1870 = vpop.f32.mrf.mxu0
      %v1871 = vadd.f32 %v1653, %v1870
      %v1872 = vpop.f32.mrf.mxu0
      %v1873 = vpop.f32.mrf.mxu0
      %v1874 = vadd.f32 %v1653, %v1873
      %v1875 = vpop.f32.mrf.mxu0
      %1876 = vmatprep.mubr.bf16.mxu0 %v1742
      %1877 = vmatmul.mubr.bf16.gmra.mxu0 %v1640
      %v1878 = vpop.f32.mrf.mxu0
      %v1879 = vadd.f32 %v1653, %v1878
      %v1880 = vpop.f32.mrf.mxu0
      %v1881 = vpop.f32.mrf.mxu0
      %v1882 = vadd.f32 %v1653, %v1881
      %v1883 = vpop.f32.mrf.mxu0
      %1884 = vmatprep.mubr.bf16.mxu0 %v1745
      %1885 = vmatmul.mubr.bf16.gmra.mxu0 %v1642
      %v1886 = vpop.f32.mrf.mxu0
      %v1887 = vadd.f32 %v1653, %v1886
      %v1888 = vpop.f32.mrf.mxu0
      %v1889 = vpop.f32.mrf.mxu0
      %v1890 = vadd.f32 %v1653, %v1889
      %v1891 = vpop.f32.mrf.mxu0
      %1892 = vmatprep.mubr.bf16.mxu0 %v1748
      %1893 = vmatmul.mubr.bf16.gmra.mxu0 %v1644
      %v1894 = vpop.f32.mrf.mxu0
      %v1895 = vadd.f32 %v1653, %v1894
      %v1896 = vpop.f32.mrf.mxu0
      %v1897 = vpop.f32.mrf.mxu0
      %v1898 = vadd.f32 %v1653, %v1897
      %v1899 = vpop.f32.mrf.mxu0
      %1900 = vmatprep.mubr.bf16.mxu0 %v1751
      %1901 = vmatmul.mubr.bf16.gmra.mxu0 %v1646
      %v1902 = vpop.f32.mrf.mxu0
      %v1903 = vadd.f32 %v1653, %v1902
      %v1904 = vpop.f32.mrf.mxu0
      %v1905 = vpop.f32.mrf.mxu0
      %v1906 = vadd.f32 %v1653, %v1905
      %v1907 = vpop.f32.mrf.mxu0
      %1908 = vmatprep.mubr.bf16.mxu0 %v1754
      %1909 = vmatmul.mubr.bf16.gmra.mxu0 %v1648
      %v1910 = vpop.f32.mrf.mxu0
      %v1911 = vadd.f32 %v1653, %v1910
      %v1912 = vpop.f32.mrf.mxu0
      %v1913 = vpop.f32.mrf.mxu0
      %v1914 = vadd.f32 %v1653, %v1913
      %v1915 = vpop.f32.mrf.mxu0
      %1916 = vdwg.mxu0
      %v1917 = vmax.f32 %v1791, 0.0
      %v1918 = vmax.f32 %v1794, 0.0
      %v1919 = vmax.f32 %v1799, 0.0
      %v1920 = vmax.f32 %v1802, 0.0
      %v1921 = vmax.f32 %v1807, 0.0
      %v1922 = vmax.f32 %v1810, 0.0
      %v1923 = vmax.f32 %v1815, 0.0
      %v1924 = vmax.f32 %v1818, 0.0
      %v1925 = vmax.f32 %v1823, 0.0
      %v1926 = vmax.f32 %v1826, 0.0
      %v1927 = vmax.f32 %v1831, 0.0
      %v1928 = vmax.f32 %v1834, 0.0
      %v1929 = vmax.f32 %v1839, 0.0
      %v1930 = vmax.f32 %v1842, 0.0
      %v1931 = vmax.f32 %v1847, 0.0
      %v1932 = vmax.f32 %v1850, 0.0
      %v1933 = vmax.f32 %v1855, 0.0
      %v1934 = vmax.f32 %v1858, 0.0
      %v1935 = vmax.f32 %v1863, 0.0
      %v1936 = vmax.f32 %v1866, 0.0
      %v1937 = vmax.f32 %v1871, 0.0
      %v1938 = vmax.f32 %v1874, 0.0
      %v1939 = vmax.f32 %v1879, 0.0
      %v1940 = vmax.f32 %v1882, 0.0
      %v1941 = vmax.f32 %v1887, 0.0
      %v1942 = vmax.f32 %v1890, 0.0
      %v1943 = vmax.f32 %v1895, 0.0
      %v1944 = vmax.f32 %v1898, 0.0
      %v1945 = vmax.f32 %v1903, 0.0
      %v1946 = vmax.f32 %v1906, 0.0
      %v1947 = vmax.f32 %v1911, 0.0
      %v1948 = vmax.f32 %v1914, 0.0
      %1949 = vst.msk [vmem:[%s343 + $0x1] sm:$0xff] %vm253, %v1917
      %1950 = vst.msk [vmem:[%s343 + $0x9] sm:$0xff] %vm253, %v1918
      %1951 = vst.msk [vmem:[%s343 + $0x19] sm:$0xff] %vm253, %v1919
      %1952 = vst.msk [vmem:[%s343 + $0x21] sm:$0xff] %vm253, %v1920
      %1953 = vst.msk [vmem:[%s343 + $0x31] sm:$0xff] %vm253, %v1921
      %1954 = vst.msk [vmem:[%s343 + $0x39] sm:$0xff] %vm253, %v1922
      %1955 = vst.msk [vmem:[%s343 + $0x49] sm:$0xff] %vm253, %v1923
      %1956 = vst.msk [vmem:[%s343 + $0x51] sm:$0xff] %vm253, %v1924
      %1957 = vst.msk [vmem:[%s343 + $0x61] sm:$0xff] %vm253, %v1925
      %1958 = vst.msk [vmem:[%s343 + $0x69] sm:$0xff] %vm253, %v1926
      %1959 = vst.msk [vmem:[%s343 + $0x79] sm:$0xff] %vm253, %v1927
      %1960 = vst.msk [vmem:[%s343 + $0x81] sm:$0xff] %vm253, %v1928
      %1961 = vst.msk [vmem:[%s343 + $0x91] sm:$0xff] %vm253, %v1929
      %1962 = vst.msk [vmem:[%s343 + $0x99] sm:$0xff] %vm253, %v1930
      %1963 = vst.msk [vmem:[%s343 + $0xa9] sm:$0xff] %vm253, %v1931
      %1964 = vst.msk [vmem:[%s343 + $0xb1] sm:$0xff] %vm253, %v1932
      %1965 = vst.msk [vmem:[%s343 + $0xc1] sm:$0xff] %vm253, %v1933
      %1966 = vst.msk [vmem:[%s343 + $0xc9] sm:$0xff] %vm253, %v1934
      %1967 = vst.msk [vmem:[%s343 + $0xd9] sm:$0xff] %vm253, %v1935
      %1968 = vst.msk [vmem:[%s343 + $0xe1] sm:$0xff] %vm253, %v1936
      %1969 = vst.msk [vmem:[%s343 + $0xf1] sm:$0xff] %vm253, %v1937
      %1970 = vst.msk [vmem:[%s343 + $0xf9] sm:$0xff] %vm253, %v1938
      %1971 = vst.msk [vmem:[%s343 + $0x109] sm:$0xff] %vm253, %v1939
      %1972 = vst.msk [vmem:[%s343 + $0x111] sm:$0xff] %vm253, %v1940
      %1973 = vst.msk [vmem:[%s343 + $0x121] sm:$0xff] %vm253, %v1941
      %1974 = vst.msk [vmem:[%s343 + $0x129] sm:$0xff] %vm253, %v1942
      %1975 = vst.msk [vmem:[%s343 + $0x139] sm:$0xff] %vm253, %v1943
      %1976 = vst.msk [vmem:[%s343 + $0x141] sm:$0xff] %vm253, %v1944
      %1977 = vst.msk [vmem:[%s343 + $0x151] sm:$0xff] %vm253, %v1945
      %1978 = vst.msk [vmem:[%s343 + $0x159] sm:$0xff] %vm253, %v1946
      %1979 = vst.msk [vmem:[%s343 + $0x169] sm:$0xff] %vm253, %v1947
      %1980 = vst.msk [vmem:[%s343 + $0x171] sm:$0xff] %vm253, %v1948
      %s1981 = scalar_lea.vmem %s1, 72
      %v1982 = vld [vmem:[%s1981] sm:$0xf]
      %v1983 = vld [vmem:[%s1981 + $0x4] sm:$0xf]
      %v1984 = vld [vmem:[%s1981 + $0x8] sm:$0xf]
      %v1985 = vld [vmem:[%s1981 + $0xc] sm:$0xf]
      %v1986 = vld [vmem:[%s1981 + $0x10] sm:$0xf]
      %v1987 = vld [vmem:[%s1981 + $0x14] sm:$0xf]
      %v1988 = vld [vmem:[%s1981 + $0x18] sm:$0xf]
      %v1989 = vld [vmem:[%s1981 + $0x1c] sm:$0xf]
      %v1990 = vld [vmem:[%s1981 + $0x20] sm:$0xf]
      %v1991 = vld [vmem:[%s1981 + $0x24] sm:$0xf]
      %v1992 = vld [vmem:[%s1981 + $0x28] sm:$0xf]
      %v1993 = vld [vmem:[%s1981 + $0x2c] sm:$0xf]
      %v1994 = vld [vmem:[%s1981 + $0x30] sm:$0xf]
      %v1995 = vld [vmem:[%s1981 + $0x34] sm:$0xf]
      %v1996 = vld [vmem:[%s1981 + $0x38] sm:$0xf]
      %v1997 = vld [vmem:[%s1981 + $0x3c] sm:$0xf]
      %v1998 = vld [vmem:[%s1981 + $0x40] sm:$0xf]
      %v1999 = vld [vmem:[%s1981 + $0x44] sm:$0xf]
      %v2000 = vld [vmem:[#allocation2] sm:$0xff]
      %v2001 = vld [vmem:[#allocation2 + $0x8] sm:$0xff]
      %v2002 = vld [vmem:[#allocation2 + $0x10] sm:$0x3]
      %v2003 = vld [vmem:[#allocation2 + $0x18] sm:$0xff]
      %v2004 = vld [vmem:[#allocation2 + $0x20] sm:$0xff]
      %v2005 = vld [vmem:[#allocation2 + $0x28] sm:$0x3]
      %v2006 = vld [vmem:[#allocation2 + $0x30] sm:$0xff]
      %v2007 = vld [vmem:[#allocation2 + $0x38] sm:$0xff]
      %v2008 = vld [vmem:[#allocation2 + $0x40] sm:$0x3]
      %v2009 = vld [vmem:[#allocation2 + $0x48] sm:$0xff]
      %v2010 = vld [vmem:[#allocation2 + $0x50] sm:$0xff]
      %v2011 = vld [vmem:[#allocation2 + $0x58] sm:$0x3]
      %v2012 = vld [vmem:[#allocation2 + $0x60] sm:$0xff]
      %v2013 = vld [vmem:[#allocation2 + $0x68] sm:$0xff]
      %v2014 = vld [vmem:[#allocation2 + $0x70] sm:$0x3]
      %v2015 = vld [vmem:[#allocation2 + $0x78] sm:$0xff]
      %v2016 = vld [vmem:[#allocation2 + $0x80] sm:$0xff]
      %v2017 = vld [vmem:[#allocation2 + $0x88] sm:$0x3]
      %v2018 = vld [vmem:[#allocation2 + $0x90] sm:$0xff]
      %v2019 = vld [vmem:[#allocation2 + $0x98] sm:$0xff]
      %v2020 = vld [vmem:[#allocation2 + $0xa0] sm:$0x3]
      %v2021 = vld [vmem:[#allocation2 + $0xa8] sm:$0xff]
      %v2022 = vld [vmem:[#allocation2 + $0xb0] sm:$0xff]
      %v2023 = vld [vmem:[#allocation2 + $0xb8] sm:$0x3]
      %v2024 = vld [vmem:[#allocation2 + $0xc0] sm:$0xff]
      %v2025 = vld [vmem:[#allocation2 + $0xc8] sm:$0xff]
      %v2026 = vld [vmem:[#allocation2 + $0xd0] sm:$0x3]
      %v2027 = vld [vmem:[#allocation2 + $0xd8] sm:$0xff]
      %v2028 = vld [vmem:[#allocation2 + $0xe0] sm:$0xff]
      %v2029 = vld [vmem:[#allocation2 + $0xe8] sm:$0x3]
      %v2030 = vld [vmem:[#allocation2 + $0xf0] sm:$0xff]
      %v2031 = vld [vmem:[#allocation2 + $0xf8] sm:$0xff]
      %v2032 = vld [vmem:[#allocation2 + $0x100] sm:$0x3]
      %v2033 = vld [vmem:[#allocation2 + $0x108] sm:$0xff]
      %v2034 = vld [vmem:[#allocation2 + $0x110] sm:$0xff]
      %v2035 = vld [vmem:[#allocation2 + $0x118] sm:$0x3]
      %v2036 = vld [vmem:[#allocation2 + $0x120] sm:$0xff]
      %v2037 = vld [vmem:[#allocation2 + $0x128] sm:$0xff]
      %v2038 = vld [vmem:[#allocation2 + $0x130] sm:$0x3]
      %v2039 = vld [vmem:[#allocation2 + $0x138] sm:$0xff]
      %v2040 = vld [vmem:[#allocation2 + $0x140] sm:$0xff]
      %v2041 = vld [vmem:[#allocation2 + $0x148] sm:$0x3]
      %v2042 = vld [vmem:[#allocation2 + $0x150] sm:$0xff]
      %v2043 = vld [vmem:[#allocation2 + $0x158] sm:$0xff]
      %v2044 = vld [vmem:[#allocation2 + $0x160] sm:$0x3]
      %v2045 = vld [vmem:[#allocation2 + $0x168] sm:$0xff]
      %v2046 = vld [vmem:[#allocation2 + $0x170] sm:$0xff]
      %v2047 = vld [vmem:[#allocation2 + $0x178] sm:$0x3]
      %v2048 = vld [vmem:[#allocation2 + $0x180] sm:$0xff]
      %v2049 = vld [vmem:[#allocation2 + $0x188] sm:$0xff]
      %v2050 = vld [vmem:[#allocation2 + $0x190] sm:$0x3]
      %v2051 = vld [vmem:[#allocation2 + $0x198] sm:$0xff]
      %v2052 = vld [vmem:[#allocation2 + $0x1a0] sm:$0xff]
      %v2053 = vld [vmem:[#allocation2 + $0x1a8] sm:$0x3]
      %v2102 = vrot.slane %v2000, 1
      %v2103 = vrot.slane %v2001, 1
      %v2104 = vsel %vm496, %v2102, %v2103
      %v2105 = vrot.slane %v2002, 1
      %v2106 = vsel %vm496, %v2103, %v2105
      %v2107 = vrot.slane %v2003, 1
      %v2108 = vrot.slane %v2004, 1
      %v2109 = vsel %vm496, %v2107, %v2108
      %v2110 = vrot.slane %v2005, 1
      %v2111 = vsel %vm496, %v2108, %v2110
      %v2112 = vrot.slane %v2006, 1
      %v2113 = vrot.slane %v2007, 1
      %v2114 = vsel %vm496, %v2112, %v2113
      %v2115 = vrot.slane %v2008, 1
      %v2116 = vsel %vm496, %v2113, %v2115
      %v2117 = vrot.slane %v2009, 1
      %v2118 = vrot.slane %v2010, 1
      %v2119 = vsel %vm496, %v2117, %v2118
      %v2120 = vrot.slane %v2011, 1
      %v2121 = vsel %vm496, %v2118, %v2120
      %v2122 = vrot.slane %v2012, 1
      %v2123 = vrot.slane %v2013, 1
      %v2124 = vsel %vm496, %v2122, %v2123
      %v2125 = vrot.slane %v2014, 1
      %v2126 = vsel %vm496, %v2123, %v2125
      %v2127 = vrot.slane %v2015, 1
      %v2128 = vrot.slane %v2016, 1
      %v2129 = vsel %vm496, %v2127, %v2128
      %v2130 = vrot.slane %v2017, 1
      %v2131 = vsel %vm496, %v2128, %v2130
      %v2132 = vrot.slane %v2018, 1
      %v2133 = vrot.slane %v2019, 1
      %v2134 = vsel %vm496, %v2132, %v2133
      %v2135 = vrot.slane %v2020, 1
      %v2136 = vsel %vm496, %v2133, %v2135
      %v2137 = vrot.slane %v2021, 1
      %v2138 = vrot.slane %v2022, 1
      %v2139 = vsel %vm496, %v2137, %v2138
      %v2140 = vrot.slane %v2023, 1
      %v2141 = vsel %vm496, %v2138, %v2140
      %v2142 = vrot.slane %v2024, 1
      %v2143 = vrot.slane %v2025, 1
      %v2144 = vsel %vm496, %v2142, %v2143
      %v2145 = vrot.slane %v2026, 1
      %v2146 = vsel %vm496, %v2143, %v2145
      %v2147 = vrot.slane %v2027, 1
      %v2148 = vrot.slane %v2028, 1
      %v2149 = vsel %vm496, %v2147, %v2148
      %v2150 = vrot.slane %v2029, 1
      %v2151 = vsel %vm496, %v2148, %v2150
      %v2152 = vrot.slane %v2030, 1
      %v2153 = vrot.slane %v2031, 1
      %v2154 = vsel %vm496, %v2152, %v2153
      %v2155 = vrot.slane %v2032, 1
      %v2156 = vsel %vm496, %v2153, %v2155
      %v2157 = vrot.slane %v2033, 1
      %v2158 = vrot.slane %v2034, 1
      %v2159 = vsel %vm496, %v2157, %v2158
      %v2160 = vrot.slane %v2035, 1
      %v2161 = vsel %vm496, %v2158, %v2160
      %v2162 = vrot.slane %v2036, 1
      %v2163 = vrot.slane %v2037, 1
      %v2164 = vsel %vm496, %v2162, %v2163
      %v2165 = vrot.slane %v2038, 1
      %v2166 = vsel %vm496, %v2163, %v2165
      %v2167 = vrot.slane %v2039, 1
      %v2168 = vrot.slane %v2040, 1
      %v2169 = vsel %vm496, %v2167, %v2168
      %v2170 = vrot.slane %v2041, 1
      %v2171 = vsel %vm496, %v2168, %v2170
      %v2172 = vrot.slane %v2042, 1
      %v2173 = vrot.slane %v2043, 1
      %v2174 = vsel %vm496, %v2172, %v2173
      %v2175 = vrot.slane %v2044, 1
      %v2176 = vsel %vm496, %v2173, %v2175
      %v2177 = vrot.slane %v2045, 1
      %v2178 = vrot.slane %v2046, 1
      %v2179 = vsel %vm496, %v2177, %v2178
      %v2180 = vrot.slane %v2047, 1
      %v2181 = vsel %vm496, %v2178, %v2180
      %v2182 = vrot.slane %v2000, 2
      %v2183 = vrot.slane %v2001, 2
      %v2184 = vsel %vm577, %v2182, %v2183
      %v2185 = vrot.slane %v2002, 2
      %v2186 = vsel %vm577, %v2183, %v2185
      %v2187 = vrot.slane %v2003, 2
      %v2188 = vrot.slane %v2004, 2
      %v2189 = vsel %vm577, %v2187, %v2188
      %v2190 = vrot.slane %v2005, 2
      %v2191 = vsel %vm577, %v2188, %v2190
      %v2192 = vrot.slane %v2006, 2
      %v2193 = vrot.slane %v2007, 2
      %v2194 = vsel %vm577, %v2192, %v2193
      %v2195 = vrot.slane %v2008, 2
      %v2196 = vsel %vm577, %v2193, %v2195
      %v2197 = vrot.slane %v2009, 2
      %v2198 = vrot.slane %v2010, 2
      %v2199 = vsel %vm577, %v2197, %v2198
      %v2200 = vrot.slane %v2011, 2
      %v2201 = vsel %vm577, %v2198, %v2200
      %v2202 = vrot.slane %v2012, 2
      %v2203 = vrot.slane %v2013, 2
      %v2204 = vsel %vm577, %v2202, %v2203
      %v2205 = vrot.slane %v2014, 2
      %v2206 = vsel %vm577, %v2203, %v2205
      %v2207 = vrot.slane %v2015, 2
      %v2208 = vrot.slane %v2016, 2
      %v2209 = vsel %vm577, %v2207, %v2208
      %v2210 = vrot.slane %v2017, 2
      %v2211 = vsel %vm577, %v2208, %v2210
      %v2212 = vrot.slane %v2018, 2
      %v2213 = vrot.slane %v2019, 2
      %v2214 = vsel %vm577, %v2212, %v2213
      %v2215 = vrot.slane %v2020, 2
      %v2216 = vsel %vm577, %v2213, %v2215
      %v2217 = vrot.slane %v2021, 2
      %v2218 = vrot.slane %v2022, 2
      %v2219 = vsel %vm577, %v2217, %v2218
      %v2220 = vrot.slane %v2023, 2
      %v2221 = vsel %vm577, %v2218, %v2220
      %v2222 = vrot.slane %v2024, 2
      %v2223 = vrot.slane %v2025, 2
      %v2224 = vsel %vm577, %v2222, %v2223
      %v2225 = vrot.slane %v2026, 2
      %v2226 = vsel %vm577, %v2223, %v2225
      %v2227 = vrot.slane %v2027, 2
      %v2228 = vrot.slane %v2028, 2
      %v2229 = vsel %vm577, %v2227, %v2228
      %v2230 = vrot.slane %v2029, 2
      %v2231 = vsel %vm577, %v2228, %v2230
      %v2232 = vrot.slane %v2030, 2
      %v2233 = vrot.slane %v2031, 2
      %v2234 = vsel %vm577, %v2232, %v2233
      %v2235 = vrot.slane %v2032, 2
      %v2236 = vsel %vm577, %v2233, %v2235
      %v2237 = vrot.slane %v2033, 2
      %v2238 = vrot.slane %v2034, 2
      %v2239 = vsel %vm577, %v2237, %v2238
      %v2240 = vrot.slane %v2035, 2
      %v2241 = vsel %vm577, %v2238, %v2240
      %v2242 = vrot.slane %v2036, 2
      %v2243 = vrot.slane %v2037, 2
      %v2244 = vsel %vm577, %v2242, %v2243
      %v2245 = vrot.slane %v2038, 2
      %v2246 = vsel %vm577, %v2243, %v2245
      %v2247 = vrot.slane %v2039, 2
      %v2248 = vrot.slane %v2040, 2
      %v2249 = vsel %vm577, %v2247, %v2248
      %v2250 = vrot.slane %v2041, 2
      %v2251 = vsel %vm577, %v2248, %v2250
      %v2252 = vrot.slane %v2042, 2
      %v2253 = vrot.slane %v2043, 2
      %v2254 = vsel %vm577, %v2252, %v2253
      %v2255 = vrot.slane %v2044, 2
      %v2256 = vsel %vm577, %v2253, %v2255
      %v2257 = vrot.slane %v2045, 2
      %v2258 = vrot.slane %v2046, 2
      %v2259 = vsel %vm577, %v2257, %v2258
      %v2260 = vrot.slane %v2047, 2
      %v2261 = vsel %vm577, %v2258, %v2260
      %v2265 = vrot.slane %v2048, 1
      %v2266 = vrot.slane %v2049, 1
      %v2267 = vsel %vm496, %v2265, %v2266
      %v2268 = vrot.slane %v2050, 1
      %v2269 = vsel %vm496, %v2266, %v2268
      %v2270 = vrot.slane %v2048, 2
      %v2271 = vrot.slane %v2049, 2
      %v2272 = vsel %vm577, %v2270, %v2271
      %v2273 = vrot.slane %v2050, 2
      %v2274 = vsel %vm577, %v2271, %v2273
      %v2278 = vrot.slane %v2051, 1
      %v2279 = vrot.slane %v2052, 1
      %v2280 = vsel %vm496, %v2278, %v2279
      %v2281 = vrot.slane %v2053, 1
      %v2282 = vsel %vm496, %v2279, %v2281
      %v2283 = vrot.slane %v2051, 2
      %v2284 = vrot.slane %v2052, 2
      %v2285 = vsel %vm577, %v2283, %v2284
      %v2286 = vrot.slane %v2053, 2
      %v2287 = vsel %vm577, %v2284, %v2286
      %2320 = vrot.lane.b32.xlu0 %v2104, 16
      %v2321 = vpop.permute.xlu0 %2320
      %2322 = vrot.lane.b32.xlu0 %v2106, 16
      %v2323 = vpop.permute.xlu0 %2322
      %2324 = vrot.lane.b32.xlu0 %v2109, 16
      %v2325 = vpop.permute.xlu0 %2324
      %2326 = vrot.lane.b32.xlu0 %v2111, 16
      %v2327 = vpop.permute.xlu0 %2326
      %2328 = vrot.lane.b32.xlu0 %v2114, 16
      %v2329 = vpop.permute.xlu0 %2328
      %2330 = vrot.lane.b32.xlu0 %v2116, 16
      %v2331 = vpop.permute.xlu0 %2330
      %2332 = vrot.lane.b32.xlu0 %v2119, 16
      %v2333 = vpop.permute.xlu0 %2332
      %2334 = vrot.lane.b32.xlu0 %v2121, 16
      %v2335 = vpop.permute.xlu0 %2334
      %2336 = vrot.lane.b32.xlu0 %v2124, 16
      %v2337 = vpop.permute.xlu0 %2336
      %2338 = vrot.lane.b32.xlu0 %v2126, 16
      %v2339 = vpop.permute.xlu0 %2338
      %2340 = vrot.lane.b32.xlu0 %v2129, 16
      %v2341 = vpop.permute.xlu0 %2340
      %2342 = vrot.lane.b32.xlu0 %v2131, 16
      %v2343 = vpop.permute.xlu0 %2342
      %2344 = vrot.lane.b32.xlu0 %v2134, 16
      %v2345 = vpop.permute.xlu0 %2344
      %2346 = vrot.lane.b32.xlu0 %v2136, 16
      %v2347 = vpop.permute.xlu0 %2346
      %2348 = vrot.lane.b32.xlu0 %v2139, 16
      %v2349 = vpop.permute.xlu0 %2348
      %2350 = vrot.lane.b32.xlu0 %v2141, 16
      %v2351 = vpop.permute.xlu0 %2350
      %2352 = vrot.lane.b32.xlu0 %v2144, 16
      %v2353 = vpop.permute.xlu0 %2352
      %2354 = vrot.lane.b32.xlu0 %v2146, 16
      %v2355 = vpop.permute.xlu0 %2354
      %2356 = vrot.lane.b32.xlu0 %v2149, 16
      %v2357 = vpop.permute.xlu0 %2356
      %2358 = vrot.lane.b32.xlu0 %v2151, 16
      %v2359 = vpop.permute.xlu0 %2358
      %2360 = vrot.lane.b32.xlu0 %v2154, 16
      %v2361 = vpop.permute.xlu0 %2360
      %2362 = vrot.lane.b32.xlu0 %v2156, 16
      %v2363 = vpop.permute.xlu0 %2362
      %2364 = vrot.lane.b32.xlu0 %v2159, 16
      %v2365 = vpop.permute.xlu0 %2364
      %2366 = vrot.lane.b32.xlu0 %v2161, 16
      %v2367 = vpop.permute.xlu0 %2366
      %2368 = vrot.lane.b32.xlu0 %v2164, 16
      %v2369 = vpop.permute.xlu0 %2368
      %2370 = vrot.lane.b32.xlu0 %v2166, 16
      %v2371 = vpop.permute.xlu0 %2370
      %2372 = vrot.lane.b32.xlu0 %v2169, 16
      %v2373 = vpop.permute.xlu0 %2372
      %2374 = vrot.lane.b32.xlu0 %v2171, 16
      %v2375 = vpop.permute.xlu0 %2374
      %2376 = vrot.lane.b32.xlu0 %v2174, 16
      %v2377 = vpop.permute.xlu0 %2376
      %2378 = vrot.lane.b32.xlu0 %v2176, 16
      %v2379 = vpop.permute.xlu0 %2378
      %2380 = vrot.lane.b32.xlu0 %v2179, 16
      %v2381 = vpop.permute.xlu0 %2380
      %2382 = vrot.lane.b32.xlu0 %v2181, 16
      %v2383 = vpop.permute.xlu0 %2382
      %2416 = vrot.lane.b32.xlu0 %v2184, 32
      %v2417 = vpop.permute.xlu0 %2416
      %2418 = vrot.lane.b32.xlu0 %v2186, 32
      %v2419 = vpop.permute.xlu0 %2418
      %2420 = vrot.lane.b32.xlu0 %v2189, 32
      %v2421 = vpop.permute.xlu0 %2420
      %2422 = vrot.lane.b32.xlu0 %v2191, 32
      %v2423 = vpop.permute.xlu0 %2422
      %2424 = vrot.lane.b32.xlu0 %v2194, 32
      %v2425 = vpop.permute.xlu0 %2424
      %2426 = vrot.lane.b32.xlu0 %v2196, 32
      %v2427 = vpop.permute.xlu0 %2426
      %2428 = vrot.lane.b32.xlu0 %v2199, 32
      %v2429 = vpop.permute.xlu0 %2428
      %2430 = vrot.lane.b32.xlu0 %v2201, 32
      %v2431 = vpop.permute.xlu0 %2430
      %2432 = vrot.lane.b32.xlu0 %v2204, 32
      %v2433 = vpop.permute.xlu0 %2432
      %2434 = vrot.lane.b32.xlu0 %v2206, 32
      %v2435 = vpop.permute.xlu0 %2434
      %2436 = vrot.lane.b32.xlu0 %v2209, 32
      %v2437 = vpop.permute.xlu0 %2436
      %2438 = vrot.lane.b32.xlu0 %v2211, 32
      %v2439 = vpop.permute.xlu0 %2438
      %2440 = vrot.lane.b32.xlu0 %v2214, 32
      %v2441 = vpop.permute.xlu0 %2440
      %2442 = vrot.lane.b32.xlu0 %v2216, 32
      %v2443 = vpop.permute.xlu0 %2442
      %2444 = vrot.lane.b32.xlu0 %v2219, 32
      %v2445 = vpop.permute.xlu0 %2444
      %2446 = vrot.lane.b32.xlu0 %v2221, 32
      %v2447 = vpop.permute.xlu0 %2446
      %2448 = vrot.lane.b32.xlu0 %v2224, 32
      %v2449 = vpop.permute.xlu0 %2448
      %2450 = vrot.lane.b32.xlu0 %v2226, 32
      %v2451 = vpop.permute.xlu0 %2450
      %2452 = vrot.lane.b32.xlu0 %v2229, 32
      %v2453 = vpop.permute.xlu0 %2452
      %2454 = vrot.lane.b32.xlu0 %v2231, 32
      %v2455 = vpop.permute.xlu0 %2454
      %2456 = vrot.lane.b32.xlu0 %v2234, 32
      %v2457 = vpop.permute.xlu0 %2456
      %2458 = vrot.lane.b32.xlu0 %v2236, 32
      %v2459 = vpop.permute.xlu0 %2458
      %2460 = vrot.lane.b32.xlu0 %v2239, 32
      %v2461 = vpop.permute.xlu0 %2460
      %2462 = vrot.lane.b32.xlu0 %v2241, 32
      %v2463 = vpop.permute.xlu0 %2462
      %2464 = vrot.lane.b32.xlu0 %v2244, 32
      %v2465 = vpop.permute.xlu0 %2464
      %2466 = vrot.lane.b32.xlu0 %v2246, 32
      %v2467 = vpop.permute.xlu0 %2466
      %2468 = vrot.lane.b32.xlu0 %v2249, 32
      %v2469 = vpop.permute.xlu0 %2468
      %2470 = vrot.lane.b32.xlu0 %v2251, 32
      %v2471 = vpop.permute.xlu0 %2470
      %2472 = vrot.lane.b32.xlu0 %v2254, 32
      %v2473 = vpop.permute.xlu0 %2472
      %2474 = vrot.lane.b32.xlu0 %v2256, 32
      %v2475 = vpop.permute.xlu0 %2474
      %2476 = vrot.lane.b32.xlu0 %v2259, 32
      %v2477 = vpop.permute.xlu0 %2476
      %2478 = vrot.lane.b32.xlu0 %v2261, 32
      %v2479 = vpop.permute.xlu0 %2478
      %2512 = vrot.lane.b32.xlu0 %v2003, 48
      %v2513 = vpop.permute.xlu0 %2512
      %2514 = vrot.lane.b32.xlu0 %v2004, 48
      %v2515 = vpop.permute.xlu0 %2514
      %2516 = vrot.lane.b32.xlu0 %v2006, 48
      %v2517 = vpop.permute.xlu0 %2516
      %2518 = vrot.lane.b32.xlu0 %v2007, 48
      %v2519 = vpop.permute.xlu0 %2518
      %2520 = vrot.lane.b32.xlu0 %v2009, 48
      %v2521 = vpop.permute.xlu0 %2520
      %2522 = vrot.lane.b32.xlu0 %v2010, 48
      %v2523 = vpop.permute.xlu0 %2522
      %2524 = vrot.lane.b32.xlu0 %v2012, 48
      %v2525 = vpop.permute.xlu0 %2524
      %2526 = vrot.lane.b32.xlu0 %v2013, 48
      %v2527 = vpop.permute.xlu0 %2526
      %2528 = vrot.lane.b32.xlu0 %v2015, 48
      %v2529 = vpop.permute.xlu0 %2528
      %2530 = vrot.lane.b32.xlu0 %v2016, 48
      %v2531 = vpop.permute.xlu0 %2530
      %2532 = vrot.lane.b32.xlu0 %v2018, 48
      %v2533 = vpop.permute.xlu0 %2532
      %2534 = vrot.lane.b32.xlu0 %v2019, 48
      %v2535 = vpop.permute.xlu0 %2534
      %2536 = vrot.lane.b32.xlu0 %v2021, 48
      %v2537 = vpop.permute.xlu0 %2536
      %2538 = vrot.lane.b32.xlu0 %v2022, 48
      %v2539 = vpop.permute.xlu0 %2538
      %2540 = vrot.lane.b32.xlu0 %v2024, 48
      %v2541 = vpop.permute.xlu0 %2540
      %2542 = vrot.lane.b32.xlu0 %v2025, 48
      %v2543 = vpop.permute.xlu0 %2542
      %2544 = vrot.lane.b32.xlu0 %v2027, 48
      %v2545 = vpop.permute.xlu0 %2544
      %2546 = vrot.lane.b32.xlu0 %v2028, 48
      %v2547 = vpop.permute.xlu0 %2546
      %2548 = vrot.lane.b32.xlu0 %v2030, 48
      %v2549 = vpop.permute.xlu0 %2548
      %2550 = vrot.lane.b32.xlu0 %v2031, 48
      %v2551 = vpop.permute.xlu0 %2550
      %2552 = vrot.lane.b32.xlu0 %v2033, 48
      %v2553 = vpop.permute.xlu0 %2552
      %2554 = vrot.lane.b32.xlu0 %v2034, 48
      %v2555 = vpop.permute.xlu0 %2554
      %2556 = vrot.lane.b32.xlu0 %v2036, 48
      %v2557 = vpop.permute.xlu0 %2556
      %2558 = vrot.lane.b32.xlu0 %v2037, 48
      %v2559 = vpop.permute.xlu0 %2558
      %2560 = vrot.lane.b32.xlu0 %v2039, 48
      %v2561 = vpop.permute.xlu0 %2560
      %2562 = vrot.lane.b32.xlu0 %v2040, 48
      %v2563 = vpop.permute.xlu0 %2562
      %2564 = vrot.lane.b32.xlu0 %v2042, 48
      %v2565 = vpop.permute.xlu0 %2564
      %2566 = vrot.lane.b32.xlu0 %v2043, 48
      %v2567 = vpop.permute.xlu0 %2566
      %2568 = vrot.lane.b32.xlu0 %v2045, 48
      %v2569 = vpop.permute.xlu0 %2568
      %2570 = vrot.lane.b32.xlu0 %v2046, 48
      %v2571 = vpop.permute.xlu0 %2570
      %2572 = vrot.lane.b32.xlu0 %v2048, 48
      %v2573 = vpop.permute.xlu0 %2572
      %2574 = vrot.lane.b32.xlu0 %v2049, 48
      %v2575 = vpop.permute.xlu0 %2574
      %2608 = vrot.lane.b32.xlu0 %v2109, 64
      %v2609 = vpop.permute.xlu0 %2608
      %2610 = vrot.lane.b32.xlu0 %v2111, 64
      %v2611 = vpop.permute.xlu0 %2610
      %2612 = vrot.lane.b32.xlu0 %v2114, 64
      %v2613 = vpop.permute.xlu0 %2612
      %2614 = vrot.lane.b32.xlu0 %v2116, 64
      %v2615 = vpop.permute.xlu0 %2614
      %2616 = vrot.lane.b32.xlu0 %v2119, 64
      %v2617 = vpop.permute.xlu0 %2616
      %2618 = vrot.lane.b32.xlu0 %v2121, 64
      %v2619 = vpop.permute.xlu0 %2618
      %2620 = vrot.lane.b32.xlu0 %v2124, 64
      %v2621 = vpop.permute.xlu0 %2620
      %2622 = vrot.lane.b32.xlu0 %v2126, 64
      %v2623 = vpop.permute.xlu0 %2622
      %2624 = vrot.lane.b32.xlu0 %v2129, 64
      %v2625 = vpop.permute.xlu0 %2624
      %2626 = vrot.lane.b32.xlu0 %v2131, 64
      %v2627 = vpop.permute.xlu0 %2626
      %2628 = vrot.lane.b32.xlu0 %v2134, 64
      %v2629 = vpop.permute.xlu0 %2628
      %2630 = vrot.lane.b32.xlu0 %v2136, 64
      %v2631 = vpop.permute.xlu0 %2630
      %2632 = vrot.lane.b32.xlu0 %v2139, 64
      %v2633 = vpop.permute.xlu0 %2632
      %2634 = vrot.lane.b32.xlu0 %v2141, 64
      %v2635 = vpop.permute.xlu0 %2634
      %2636 = vrot.lane.b32.xlu0 %v2144, 64
      %v2637 = vpop.permute.xlu0 %2636
      %2638 = vrot.lane.b32.xlu0 %v2146, 64
      %v2639 = vpop.permute.xlu0 %2638
      %2640 = vrot.lane.b32.xlu0 %v2149, 64
      %v2641 = vpop.permute.xlu0 %2640
      %2642 = vrot.lane.b32.xlu0 %v2151, 64
      %v2643 = vpop.permute.xlu0 %2642
      %2644 = vrot.lane.b32.xlu0 %v2154, 64
      %v2645 = vpop.permute.xlu0 %2644
      %2646 = vrot.lane.b32.xlu0 %v2156, 64
      %v2647 = vpop.permute.xlu0 %2646
      %2648 = vrot.lane.b32.xlu0 %v2159, 64
      %v2649 = vpop.permute.xlu0 %2648
      %2650 = vrot.lane.b32.xlu0 %v2161, 64
      %v2651 = vpop.permute.xlu0 %2650
      %2652 = vrot.lane.b32.xlu0 %v2164, 64
      %v2653 = vpop.permute.xlu0 %2652
      %2654 = vrot.lane.b32.xlu0 %v2166, 64
      %v2655 = vpop.permute.xlu0 %2654
      %2656 = vrot.lane.b32.xlu0 %v2169, 64
      %v2657 = vpop.permute.xlu0 %2656
      %2658 = vrot.lane.b32.xlu0 %v2171, 64
      %v2659 = vpop.permute.xlu0 %2658
      %2660 = vrot.lane.b32.xlu0 %v2174, 64
      %v2661 = vpop.permute.xlu0 %2660
      %2662 = vrot.lane.b32.xlu0 %v2176, 64
      %v2663 = vpop.permute.xlu0 %2662
      %2664 = vrot.lane.b32.xlu0 %v2179, 64
      %v2665 = vpop.permute.xlu0 %2664
      %2666 = vrot.lane.b32.xlu0 %v2181, 64
      %v2667 = vpop.permute.xlu0 %2666
      %2668 = vrot.lane.b32.xlu0 %v2267, 64
      %v2669 = vpop.permute.xlu0 %2668
      %2670 = vrot.lane.b32.xlu0 %v2269, 64
      %v2671 = vpop.permute.xlu0 %2670
      %2704 = vrot.lane.b32.xlu0 %v2189, 80
      %v2705 = vpop.permute.xlu0 %2704
      %2706 = vrot.lane.b32.xlu0 %v2191, 80
      %v2707 = vpop.permute.xlu0 %2706
      %2708 = vrot.lane.b32.xlu0 %v2194, 80
      %v2709 = vpop.permute.xlu0 %2708
      %2710 = vrot.lane.b32.xlu0 %v2196, 80
      %v2711 = vpop.permute.xlu0 %2710
      %2712 = vrot.lane.b32.xlu0 %v2199, 80
      %v2713 = vpop.permute.xlu0 %2712
      %2714 = vrot.lane.b32.xlu0 %v2201, 80
      %v2715 = vpop.permute.xlu0 %2714
      %2716 = vrot.lane.b32.xlu0 %v2204, 80
      %v2717 = vpop.permute.xlu0 %2716
      %2718 = vrot.lane.b32.xlu0 %v2206, 80
      %v2719 = vpop.permute.xlu0 %2718
      %2720 = vrot.lane.b32.xlu0 %v2209, 80
      %v2721 = vpop.permute.xlu0 %2720
      %2722 = vrot.lane.b32.xlu0 %v2211, 80
      %v2723 = vpop.permute.xlu0 %2722
      %2724 = vrot.lane.b32.xlu0 %v2214, 80
      %v2725 = vpop.permute.xlu0 %2724
      %2726 = vrot.lane.b32.xlu0 %v2216, 80
      %v2727 = vpop.permute.xlu0 %2726
      %2728 = vrot.lane.b32.xlu0 %v2219, 80
      %v2729 = vpop.permute.xlu0 %2728
      %2730 = vrot.lane.b32.xlu0 %v2221, 80
      %v2731 = vpop.permute.xlu0 %2730
      %2732 = vrot.lane.b32.xlu0 %v2224, 80
      %v2733 = vpop.permute.xlu0 %2732
      %2734 = vrot.lane.b32.xlu0 %v2226, 80
      %v2735 = vpop.permute.xlu0 %2734
      %2736 = vrot.lane.b32.xlu0 %v2229, 80
      %v2737 = vpop.permute.xlu0 %2736
      %2738 = vrot.lane.b32.xlu0 %v2231, 80
      %v2739 = vpop.permute.xlu0 %2738
      %2740 = vrot.lane.b32.xlu0 %v2234, 80
      %v2741 = vpop.permute.xlu0 %2740
      %2742 = vrot.lane.b32.xlu0 %v2236, 80
      %v2743 = vpop.permute.xlu0 %2742
      %2744 = vrot.lane.b32.xlu0 %v2239, 80
      %v2745 = vpop.permute.xlu0 %2744
      %2746 = vrot.lane.b32.xlu0 %v2241, 80
      %v2747 = vpop.permute.xlu0 %2746
      %2748 = vrot.lane.b32.xlu0 %v2244, 80
      %v2749 = vpop.permute.xlu0 %2748
      %2750 = vrot.lane.b32.xlu0 %v2246, 80
      %v2751 = vpop.permute.xlu0 %2750
      %2752 = vrot.lane.b32.xlu0 %v2249, 80
      %v2753 = vpop.permute.xlu0 %2752
      %2754 = vrot.lane.b32.xlu0 %v2251, 80
      %v2755 = vpop.permute.xlu0 %2754
      %2756 = vrot.lane.b32.xlu0 %v2254, 80
      %v2757 = vpop.permute.xlu0 %2756
      %2758 = vrot.lane.b32.xlu0 %v2256, 80
      %v2759 = vpop.permute.xlu0 %2758
      %2760 = vrot.lane.b32.xlu0 %v2259, 80
      %v2761 = vpop.permute.xlu0 %2760
      %2762 = vrot.lane.b32.xlu0 %v2261, 80
      %v2763 = vpop.permute.xlu0 %2762
      %2764 = vrot.lane.b32.xlu0 %v2272, 80
      %v2765 = vpop.permute.xlu0 %2764
      %2766 = vrot.lane.b32.xlu0 %v2274, 80
      %v2767 = vpop.permute.xlu0 %2766
      %2800 = vrot.lane.b32.xlu0 %v2006, 96
      %v2801 = vpop.permute.xlu0 %2800
      %2802 = vrot.lane.b32.xlu0 %v2007, 96
      %v2803 = vpop.permute.xlu0 %2802
      %2804 = vrot.lane.b32.xlu0 %v2009, 96
      %v2805 = vpop.permute.xlu0 %2804
      %2806 = vrot.lane.b32.xlu0 %v2010, 96
      %v2807 = vpop.permute.xlu0 %2806
      %2808 = vrot.lane.b32.xlu0 %v2012, 96
      %v2809 = vpop.permute.xlu0 %2808
      %2810 = vrot.lane.b32.xlu0 %v2013, 96
      %v2811 = vpop.permute.xlu0 %2810
      %2812 = vrot.lane.b32.xlu0 %v2015, 96
      %v2813 = vpop.permute.xlu0 %2812
      %2814 = vrot.lane.b32.xlu0 %v2016, 96
      %v2815 = vpop.permute.xlu0 %2814
      %2816 = vrot.lane.b32.xlu0 %v2018, 96
      %v2817 = vpop.permute.xlu0 %2816
      %2818 = vrot.lane.b32.xlu0 %v2019, 96
      %v2819 = vpop.permute.xlu0 %2818
      %2820 = vrot.lane.b32.xlu0 %v2021, 96
      %v2821 = vpop.permute.xlu0 %2820
      %2822 = vrot.lane.b32.xlu0 %v2022, 96
      %v2823 = vpop.permute.xlu0 %2822
      %2824 = vrot.lane.b32.xlu0 %v2024, 96
      %v2825 = vpop.permute.xlu0 %2824
      %2826 = vrot.lane.b32.xlu0 %v2025, 96
      %v2827 = vpop.permute.xlu0 %2826
      %2828 = vrot.lane.b32.xlu0 %v2027, 96
      %v2829 = vpop.permute.xlu0 %2828
      %2830 = vrot.lane.b32.xlu0 %v2028, 96
      %v2831 = vpop.permute.xlu0 %2830
      %2832 = vrot.lane.b32.xlu0 %v2030, 96
      %v2833 = vpop.permute.xlu0 %2832
      %2834 = vrot.lane.b32.xlu0 %v2031, 96
      %v2835 = vpop.permute.xlu0 %2834
      %2836 = vrot.lane.b32.xlu0 %v2033, 96
      %v2837 = vpop.permute.xlu0 %2836
      %2838 = vrot.lane.b32.xlu0 %v2034, 96
      %v2839 = vpop.permute.xlu0 %2838
      %2840 = vrot.lane.b32.xlu0 %v2036, 96
      %v2841 = vpop.permute.xlu0 %2840
      %2842 = vrot.lane.b32.xlu0 %v2037, 96
      %v2843 = vpop.permute.xlu0 %2842
      %2844 = vrot.lane.b32.xlu0 %v2039, 96
      %v2845 = vpop.permute.xlu0 %2844
      %2846 = vrot.lane.b32.xlu0 %v2040, 96
      %v2847 = vpop.permute.xlu0 %2846
      %2848 = vrot.lane.b32.xlu0 %v2042, 96
      %v2849 = vpop.permute.xlu0 %2848
      %2850 = vrot.lane.b32.xlu0 %v2043, 96
      %v2851 = vpop.permute.xlu0 %2850
      %2852 = vrot.lane.b32.xlu0 %v2045, 96
      %v2853 = vpop.permute.xlu0 %2852
      %2854 = vrot.lane.b32.xlu0 %v2046, 96
      %v2855 = vpop.permute.xlu0 %2854
      %2856 = vrot.lane.b32.xlu0 %v2048, 96
      %v2857 = vpop.permute.xlu0 %2856
      %2858 = vrot.lane.b32.xlu0 %v2049, 96
      %v2859 = vpop.permute.xlu0 %2858
      %2860 = vrot.lane.b32.xlu0 %v2051, 96
      %v2861 = vpop.permute.xlu0 %2860
      %2862 = vrot.lane.b32.xlu0 %v2052, 96
      %v2863 = vpop.permute.xlu0 %2862
      %2896 = vrot.lane.b32.xlu0 %v2114, 112
      %v2897 = vpop.permute.xlu0 %2896
      %2898 = vrot.lane.b32.xlu0 %v2116, 112
      %v2899 = vpop.permute.xlu0 %2898
      %2900 = vrot.lane.b32.xlu0 %v2119, 112
      %v2901 = vpop.permute.xlu0 %2900
      %2902 = vrot.lane.b32.xlu0 %v2121, 112
      %v2903 = vpop.permute.xlu0 %2902
      %2904 = vrot.lane.b32.xlu0 %v2124, 112
      %v2905 = vpop.permute.xlu0 %2904
      %2906 = vrot.lane.b32.xlu0 %v2126, 112
      %v2907 = vpop.permute.xlu0 %2906
      %2908 = vrot.lane.b32.xlu0 %v2129, 112
      %v2909 = vpop.permute.xlu0 %2908
      %2910 = vrot.lane.b32.xlu0 %v2131, 112
      %v2911 = vpop.permute.xlu0 %2910
      %2912 = vrot.lane.b32.xlu0 %v2134, 112
      %v2913 = vpop.permute.xlu0 %2912
      %2914 = vrot.lane.b32.xlu0 %v2136, 112
      %v2915 = vpop.permute.xlu0 %2914
      %2916 = vrot.lane.b32.xlu0 %v2139, 112
      %v2917 = vpop.permute.xlu0 %2916
      %2918 = vrot.lane.b32.xlu0 %v2141, 112
      %v2919 = vpop.permute.xlu0 %2918
      %2920 = vrot.lane.b32.xlu0 %v2144, 112
      %v2921 = vpop.permute.xlu0 %2920
      %2922 = vrot.lane.b32.xlu0 %v2146, 112
      %v2923 = vpop.permute.xlu0 %2922
      %2924 = vrot.lane.b32.xlu0 %v2149, 112
      %v2925 = vpop.permute.xlu0 %2924
      %2926 = vrot.lane.b32.xlu0 %v2151, 112
      %v2927 = vpop.permute.xlu0 %2926
      %2928 = vrot.lane.b32.xlu0 %v2154, 112
      %v2929 = vpop.permute.xlu0 %2928
      %2930 = vrot.lane.b32.xlu0 %v2156, 112
      %v2931 = vpop.permute.xlu0 %2930
      %2932 = vrot.lane.b32.xlu0 %v2159, 112
      %v2933 = vpop.permute.xlu0 %2932
      %2934 = vrot.lane.b32.xlu0 %v2161, 112
      %v2935 = vpop.permute.xlu0 %2934
      %2936 = vrot.lane.b32.xlu0 %v2164, 112
      %v2937 = vpop.permute.xlu0 %2936
      %2938 = vrot.lane.b32.xlu0 %v2166, 112
      %v2939 = vpop.permute.xlu0 %2938
      %2940 = vrot.lane.b32.xlu0 %v2169, 112
      %v2941 = vpop.permute.xlu0 %2940
      %2942 = vrot.lane.b32.xlu0 %v2171, 112
      %v2943 = vpop.permute.xlu0 %2942
      %2944 = vrot.lane.b32.xlu0 %v2174, 112
      %v2945 = vpop.permute.xlu0 %2944
      %2946 = vrot.lane.b32.xlu0 %v2176, 112
      %v2947 = vpop.permute.xlu0 %2946
      %2948 = vrot.lane.b32.xlu0 %v2179, 112
      %v2949 = vpop.permute.xlu0 %2948
      %2950 = vrot.lane.b32.xlu0 %v2181, 112
      %v2951 = vpop.permute.xlu0 %2950
      %2952 = vrot.lane.b32.xlu0 %v2267, 112
      %v2953 = vpop.permute.xlu0 %2952
      %2954 = vrot.lane.b32.xlu0 %v2269, 112
      %v2955 = vpop.permute.xlu0 %2954
      %2956 = vrot.lane.b32.xlu0 %v2280, 112
      %v2957 = vpop.permute.xlu0 %2956
      %2958 = vrot.lane.b32.xlu0 %v2282, 112
      %v2959 = vpop.permute.xlu0 %2958
      %v2992 = vsel %vm253, %v2000, %v2321
      %v2993 = vsel %vm253, %v2001, %v2323
      %v2994 = vsel %vm253, %v2003, %v2325
      %v2995 = vsel %vm253, %v2004, %v2327
      %v2996 = vsel %vm253, %v2006, %v2329
      %v2997 = vsel %vm253, %v2007, %v2331
      %v2998 = vsel %vm253, %v2009, %v2333
      %v2999 = vsel %vm253, %v2010, %v2335
      %v3000 = vsel %vm253, %v2012, %v2337
      %v3001 = vsel %vm253, %v2013, %v2339
      %v3002 = vsel %vm253, %v2015, %v2341
      %v3003 = vsel %vm253, %v2016, %v2343
      %v3004 = vsel %vm253, %v2018, %v2345
      %v3005 = vsel %vm253, %v2019, %v2347
      %v3006 = vsel %vm253, %v2021, %v2349
      %v3007 = vsel %vm253, %v2022, %v2351
      %v3008 = vsel %vm253, %v2024, %v2353
      %v3009 = vsel %vm253, %v2025, %v2355
      %v3010 = vsel %vm253, %v2027, %v2357
      %v3011 = vsel %vm253, %v2028, %v2359
      %v3012 = vsel %vm253, %v2030, %v2361
      %v3013 = vsel %vm253, %v2031, %v2363
      %v3014 = vsel %vm253, %v2033, %v2365
      %v3015 = vsel %vm253, %v2034, %v2367
      %v3016 = vsel %vm253, %v2036, %v2369
      %v3017 = vsel %vm253, %v2037, %v2371
      %v3018 = vsel %vm253, %v2039, %v2373
      %v3019 = vsel %vm253, %v2040, %v2375
      %v3020 = vsel %vm253, %v2042, %v2377
      %v3021 = vsel %vm253, %v2043, %v2379
      %v3022 = vsel %vm253, %v2045, %v2381
      %v3023 = vsel %vm253, %v2046, %v2383
      %v3024 = vsel %vm1420, %v2992, %v2417
      %v3025 = vsel %vm1420, %v2993, %v2419
      %v3026 = vsel %vm1420, %v2994, %v2421
      %v3027 = vsel %vm1420, %v2995, %v2423
      %v3028 = vsel %vm1420, %v2996, %v2425
      %v3029 = vsel %vm1420, %v2997, %v2427
      %v3030 = vsel %vm1420, %v2998, %v2429
      %v3031 = vsel %vm1420, %v2999, %v2431
      %v3032 = vsel %vm1420, %v3000, %v2433
      %v3033 = vsel %vm1420, %v3001, %v2435
      %v3034 = vsel %vm1420, %v3002, %v2437
      %v3035 = vsel %vm1420, %v3003, %v2439
      %v3036 = vsel %vm1420, %v3004, %v2441
      %v3037 = vsel %vm1420, %v3005, %v2443
      %v3038 = vsel %vm1420, %v3006, %v2445
      %v3039 = vsel %vm1420, %v3007, %v2447
      %v3040 = vsel %vm1420, %v3008, %v2449
      %v3041 = vsel %vm1420, %v3009, %v2451
      %v3042 = vsel %vm1420, %v3010, %v2453
      %v3043 = vsel %vm1420, %v3011, %v2455
      %v3044 = vsel %vm1420, %v3012, %v2457
      %v3045 = vsel %vm1420, %v3013, %v2459
      %v3046 = vsel %vm1420, %v3014, %v2461
      %v3047 = vsel %vm1420, %v3015, %v2463
      %v3048 = vsel %vm1420, %v3016, %v2465
      %v3049 = vsel %vm1420, %v3017, %v2467
      %v3050 = vsel %vm1420, %v3018, %v2469
      %v3051 = vsel %vm1420, %v3019, %v2471
      %v3052 = vsel %vm1420, %v3020, %v2473
      %v3053 = vsel %vm1420, %v3021, %v2475
      %v3054 = vsel %vm1420, %v3022, %v2477
      %v3055 = vsel %vm1420, %v3023, %v2479
      %v3056 = vsel %vm1453, %v3024, %v2513
      %v3057 = vsel %vm1453, %v3025, %v2515
      %v3058 = vsel %vm1453, %v3026, %v2517
      %v3059 = vsel %vm1453, %v3027, %v2519
      %v3060 = vsel %vm1453, %v3028, %v2521
      %v3061 = vsel %vm1453, %v3029, %v2523
      %v3062 = vsel %vm1453, %v3030, %v2525
      %v3063 = vsel %vm1453, %v3031, %v2527
      %v3064 = vsel %vm1453, %v3032, %v2529
      %v3065 = vsel %vm1453, %v3033, %v2531
      %v3066 = vsel %vm1453, %v3034, %v2533
      %v3067 = vsel %vm1453, %v3035, %v2535
      %v3068 = vsel %vm1453, %v3036, %v2537
      %v3069 = vsel %vm1453, %v3037, %v2539
      %v3070 = vsel %vm1453, %v3038, %v2541
      %v3071 = vsel %vm1453, %v3039, %v2543
      %v3072 = vsel %vm1453, %v3040, %v2545
      %v3073 = vsel %vm1453, %v3041, %v2547
      %v3074 = vsel %vm1453, %v3042, %v2549
      %v3075 = vsel %vm1453, %v3043, %v2551
      %v3076 = vsel %vm1453, %v3044, %v2553
      %v3077 = vsel %vm1453, %v3045, %v2555
      %v3078 = vsel %vm1453, %v3046, %v2557
      %v3079 = vsel %vm1453, %v3047, %v2559
      %v3080 = vsel %vm1453, %v3048, %v2561
      %v3081 = vsel %vm1453, %v3049, %v2563
      %v3082 = vsel %vm1453, %v3050, %v2565
      %v3083 = vsel %vm1453, %v3051, %v2567
      %v3084 = vsel %vm1453, %v3052, %v2569
      %v3085 = vsel %vm1453, %v3053, %v2571
      %v3086 = vsel %vm1453, %v3054, %v2573
      %v3087 = vsel %vm1453, %v3055, %v2575
      %v3088 = vsel %vm1486, %v3056, %v2609
      %v3089 = vsel %vm1486, %v3057, %v2611
      %v3090 = vsel %vm1486, %v3058, %v2613
      %v3091 = vsel %vm1486, %v3059, %v2615
      %v3092 = vsel %vm1486, %v3060, %v2617
      %v3093 = vsel %vm1486, %v3061, %v2619
      %v3094 = vsel %vm1486, %v3062, %v2621
      %v3095 = vsel %vm1486, %v3063, %v2623
      %v3096 = vsel %vm1486, %v3064, %v2625
      %v3097 = vsel %vm1486, %v3065, %v2627
      %v3098 = vsel %vm1486, %v3066, %v2629
      %v3099 = vsel %vm1486, %v3067, %v2631
      %v3100 = vsel %vm1486, %v3068, %v2633
      %v3101 = vsel %vm1486, %v3069, %v2635
      %v3102 = vsel %vm1486, %v3070, %v2637
      %v3103 = vsel %vm1486, %v3071, %v2639
      %v3104 = vsel %vm1486, %v3072, %v2641
      %v3105 = vsel %vm1486, %v3073, %v2643
      %v3106 = vsel %vm1486, %v3074, %v2645
      %v3107 = vsel %vm1486, %v3075, %v2647
      %v3108 = vsel %vm1486, %v3076, %v2649
      %v3109 = vsel %vm1486, %v3077, %v2651
      %v3110 = vsel %vm1486, %v3078, %v2653
      %v3111 = vsel %vm1486, %v3079, %v2655
      %v3112 = vsel %vm1486, %v3080, %v2657
      %v3113 = vsel %vm1486, %v3081, %v2659
      %v3114 = vsel %vm1486, %v3082, %v2661
      %v3115 = vsel %vm1486, %v3083, %v2663
      %v3116 = vsel %vm1486, %v3084, %v2665
      %v3117 = vsel %vm1486, %v3085, %v2667
      %v3118 = vsel %vm1486, %v3086, %v2669
      %v3119 = vsel %vm1486, %v3087, %v2671
      %v3120 = vsel %vm1519, %v3088, %v2705
      %v3121 = vsel %vm1519, %v3089, %v2707
      %v3122 = vsel %vm1519, %v3090, %v2709
      %v3123 = vsel %vm1519, %v3091, %v2711
      %v3124 = vsel %vm1519, %v3092, %v2713
      %v3125 = vsel %vm1519, %v3093, %v2715
      %v3126 = vsel %vm1519, %v3094, %v2717
      %v3127 = vsel %vm1519, %v3095, %v2719
      %v3128 = vsel %vm1519, %v3096, %v2721
      %v3129 = vsel %vm1519, %v3097, %v2723
      %v3130 = vsel %vm1519, %v3098, %v2725
      %v3131 = vsel %vm1519, %v3099, %v2727
      %v3132 = vsel %vm1519, %v3100, %v2729
      %v3133 = vsel %vm1519, %v3101, %v2731
      %v3134 = vsel %vm1519, %v3102, %v2733
      %v3135 = vsel %vm1519, %v3103, %v2735
      %v3136 = vsel %vm1519, %v3104, %v2737
      %v3137 = vsel %vm1519, %v3105, %v2739
      %v3138 = vsel %vm1519, %v3106, %v2741
      %v3139 = vsel %vm1519, %v3107, %v2743
      %v3140 = vsel %vm1519, %v3108, %v2745
      %v3141 = vsel %vm1519, %v3109, %v2747
      %v3142 = vsel %vm1519, %v3110, %v2749
      %v3143 = vsel %vm1519, %v3111, %v2751
      %v3144 = vsel %vm1519, %v3112, %v2753
      %v3145 = vsel %vm1519, %v3113, %v2755
      %v3146 = vsel %vm1519, %v3114, %v2757
      %v3147 = vsel %vm1519, %v3115, %v2759
      %v3148 = vsel %vm1519, %v3116, %v2761
      %v3149 = vsel %vm1519, %v3117, %v2763
      %v3150 = vsel %vm1519, %v3118, %v2765
      %v3151 = vsel %vm1519, %v3119, %v2767
      %v3152 = vsel %vm1552, %v3120, %v2801
      %v3153 = vsel %vm1552, %v3121, %v2803
      %v3154 = vsel %vm1552, %v3122, %v2805
      %v3155 = vsel %vm1552, %v3123, %v2807
      %v3156 = vsel %vm1552, %v3124, %v2809
      %v3157 = vsel %vm1552, %v3125, %v2811
      %v3158 = vsel %vm1552, %v3126, %v2813
      %v3159 = vsel %vm1552, %v3127, %v2815
      %v3160 = vsel %vm1552, %v3128, %v2817
      %v3161 = vsel %vm1552, %v3129, %v2819
      %v3162 = vsel %vm1552, %v3130, %v2821
      %v3163 = vsel %vm1552, %v3131, %v2823
      %v3164 = vsel %vm1552, %v3132, %v2825
      %v3165 = vsel %vm1552, %v3133, %v2827
      %v3166 = vsel %vm1552, %v3134, %v2829
      %v3167 = vsel %vm1552, %v3135, %v2831
      %v3168 = vsel %vm1552, %v3136, %v2833
      %v3169 = vsel %vm1552, %v3137, %v2835
      %v3170 = vsel %vm1552, %v3138, %v2837
      %v3171 = vsel %vm1552, %v3139, %v2839
      %v3172 = vsel %vm1552, %v3140, %v2841
      %v3173 = vsel %vm1552, %v3141, %v2843
      %v3174 = vsel %vm1552, %v3142, %v2845
      %v3175 = vsel %vm1552, %v3143, %v2847
      %v3176 = vsel %vm1552, %v3144, %v2849
      %v3177 = vsel %vm1552, %v3145, %v2851
      %v3178 = vsel %vm1552, %v3146, %v2853
      %v3179 = vsel %vm1552, %v3147, %v2855
      %v3180 = vsel %vm1552, %v3148, %v2857
      %v3181 = vsel %vm1552, %v3149, %v2859
      %v3182 = vsel %vm1552, %v3150, %v2861
      %v3183 = vsel %vm1552, %v3151, %v2863
      %v3184 = vsel %vm1585, %v3152, %v2897
      %v3185 = vsel %vm1585, %v3153, %v2899
      %v3186 = vsel %vm1585, %v3154, %v2901
      %v3187 = vsel %vm1585, %v3155, %v2903
      %v3188 = vsel %vm1585, %v3156, %v2905
      %v3189 = vsel %vm1585, %v3157, %v2907
      %v3190 = vsel %vm1585, %v3158, %v2909
      %v3191 = vsel %vm1585, %v3159, %v2911
      %v3192 = vsel %vm1585, %v3160, %v2913
      %v3193 = vsel %vm1585, %v3161, %v2915
      %v3194 = vsel %vm1585, %v3162, %v2917
      %v3195 = vsel %vm1585, %v3163, %v2919
      %v3196 = vsel %vm1585, %v3164, %v2921
      %v3197 = vsel %vm1585, %v3165, %v2923
      %v3198 = vsel %vm1585, %v3166, %v2925
      %v3199 = vsel %vm1585, %v3167, %v2927
      %v3200 = vsel %vm1585, %v3168, %v2929
      %v3201 = vsel %vm1585, %v3169, %v2931
      %v3202 = vsel %vm1585, %v3170, %v2933
      %v3203 = vsel %vm1585, %v3171, %v2935
      %v3204 = vsel %vm1585, %v3172, %v2937
      %v3205 = vsel %vm1585, %v3173, %v2939
      %v3206 = vsel %vm1585, %v3174, %v2941
      %v3207 = vsel %vm1585, %v3175, %v2943
      %v3208 = vsel %vm1585, %v3176, %v2945
      %v3209 = vsel %vm1585, %v3177, %v2947
      %v3210 = vsel %vm1585, %v3178, %v2949
      %v3211 = vsel %vm1585, %v3179, %v2951
      %v3212 = vsel %vm1585, %v3180, %v2953
      %v3213 = vsel %vm1585, %v3181, %v2955
      %v3214 = vsel %vm1585, %v3182, %v2957
      %v3215 = vsel %vm1585, %v3183, %v2959
      %v3216 = vpack.c.bf16 %v3185, %v3184
      %v3217 = vpack.c.bf16 %v2196, %v2194
      %v3218 = vpack.c.bf16 %v3187, %v3186
      %v3219 = vpack.c.bf16 %v2201, %v2199
      %v3220 = vpack.c.bf16 %v3189, %v3188
      %v3221 = vpack.c.bf16 %v2206, %v2204
      %v3222 = vpack.c.bf16 %v3191, %v3190
      %v3223 = vpack.c.bf16 %v2211, %v2209
      %v3224 = vpack.c.bf16 %v3193, %v3192
      %v3225 = vpack.c.bf16 %v2216, %v2214
      %v3226 = vpack.c.bf16 %v3195, %v3194
      %v3227 = vpack.c.bf16 %v2221, %v2219
      %v3228 = vpack.c.bf16 %v3197, %v3196
      %v3229 = vpack.c.bf16 %v2226, %v2224
      %v3230 = vpack.c.bf16 %v3199, %v3198
      %v3231 = vpack.c.bf16 %v2231, %v2229
      %v3232 = vpack.c.bf16 %v3201, %v3200
      %v3233 = vpack.c.bf16 %v2236, %v2234
      %v3234 = vpack.c.bf16 %v3203, %v3202
      %v3235 = vpack.c.bf16 %v2241, %v2239
      %v3236 = vpack.c.bf16 %v3205, %v3204
      %v3237 = vpack.c.bf16 %v2246, %v2244
      %v3238 = vpack.c.bf16 %v3207, %v3206
      %v3239 = vpack.c.bf16 %v2251, %v2249
      %v3240 = vpack.c.bf16 %v3209, %v3208
      %v3241 = vpack.c.bf16 %v2256, %v2254
      %v3242 = vpack.c.bf16 %v3211, %v3210
      %v3243 = vpack.c.bf16 %v2261, %v2259
      %v3244 = vpack.c.bf16 %v3213, %v3212
      %v3245 = vpack.c.bf16 %v2274, %v2272
      %v3246 = vpack.c.bf16 %v3215, %v3214
      %v3247 = vpack.c.bf16 %v2287, %v2285
      %v3248 = vlaneseq
      %v3249 = vshrl.u32 %v3248, 7
      %v3250 = vsub.s32 1, %v3249
      %v3251 = vrot.slane %v341, %v3250
      %v3270 = vunpack.c.l.b16 %v1982
      %v3271 = vunpack.c.l.b16 %v1983
      %v3272 = vunpack.c.l.b16 %v1984
      %v3273 = vunpack.c.l.b16 %v1985
      %v3274 = vunpack.c.l.b16 %v1986
      %v3275 = vunpack.c.l.b16 %v1987
      %v3276 = vunpack.c.l.b16 %v1988
      %v3277 = vunpack.c.l.b16 %v1989
      %v3278 = vunpack.c.l.b16 %v1990
      %v3279 = vunpack.c.l.b16 %v1991
      %v3280 = vunpack.c.l.b16 %v1992
      %v3281 = vunpack.c.l.b16 %v1993
      %v3282 = vunpack.c.l.b16 %v1994
      %v3283 = vunpack.c.l.b16 %v1995
      %v3284 = vunpack.c.l.b16 %v1996
      %v3285 = vunpack.c.l.b16 %v1997
      %v3286 = vunpack.c.l.b16 %v1998
      %v3287 = vunpack.c.l.b16 %v1999
      %v3288 = vpack.c.b16 %v3271, %v3270
      %v3289 = vpack.c.b16 %v3273, %v3272
      %v3290 = vpack.c.b16 %v3275, %v3274
      %v3291 = vpack.c.b16 %v3277, %v3276
      %v3292 = vpack.c.b16 %v3279, %v3278
      %v3293 = vpack.c.b16 %v3281, %v3280
      %v3294 = vpack.c.b16 %v3283, %v3282
      %v3295 = vpack.c.b16 %v3285, %v3284
      %v3296 = vpack.c.b16 %v3287, %v3286
      %v3307 = vsel %vm253, %v3217, 0
      %v3310 = vsel %vm253, %v3219, 0
      %v3313 = vsel %vm253, %v3221, 0
      %v3316 = vsel %vm253, %v3223, 0
      %v3319 = vsel %vm253, %v3225, 0
      %v3322 = vsel %vm253, %v3227, 0
      %v3325 = vsel %vm253, %v3229, 0
      %v3328 = vsel %vm253, %v3231, 0
      %v3331 = vsel %vm253, %v3233, 0
      %v3334 = vsel %vm253, %v3235, 0
      %v3337 = vsel %vm253, %v3237, 0
      %v3340 = vsel %vm253, %v3239, 0
      %v3343 = vsel %vm253, %v3241, 0
      %v3346 = vsel %vm253, %v3243, 0
      %v3349 = vsel %vm253, %v3245, 0
      %v3352 = vsel %vm253, %v3247, 0
      %3354 = vmatprep.subr.bf16.mxu0 0
      %3355 = vmatpush1.bf16.msra.mxu0 %v3295
      %3356 = vmatprep.subr.bf16.mxu0 0
      %3357 = vmatpush1.bf16.msra.mxu0 %v3294
      %3358 = vmatprep.subr.bf16.mxu0 0
      %3359 = vmatpush1.bf16.msra.mxu0 %v3293
      %3360 = vmatprep.subr.bf16.mxu0 0
      %3361 = vmatpush1.bf16.msra.mxu0 %v3292
      %3362 = vmatprep.subr.bf16.mxu0 0
      %3363 = vmatpush1.bf16.msra.mxu0 %v3291
      %3364 = vmatprep.subr.bf16.mxu0 0
      %3365 = vmatpush1.bf16.msra.mxu0 %v3290
      %3366 = vmatprep.subr.bf16.mxu0 0
      %3367 = vmatpush1.bf16.msra.mxu0 %v3289
      %3368 = vmatprep.subr.bf16.mxu0 0
      %3369 = vmatpush1.bf16.msra.mxu0 %v3288
      %3370 = vmatprep.subr.bf16.mxu0 0
      %3371 = vmatpush2.bf16.msra.mxu0 0
      %3372 = vmatprep.subr.bf16.mxu0 0
      %3373 = vmatpush2.bf16.msra.mxu0 0
      %3374 = vmatprep.subr.bf16.mxu0 0
      %3375 = vmatpush2.bf16.msra.mxu0 0
      %3376 = vmatprep.subr.bf16.mxu0 0
      %3377 = vmatpush2.bf16.msra.mxu0 0
      %3378 = vmatprep.subr.bf16.mxu0 0
      %3379 = vmatpush2.bf16.msra.mxu0 0
      %3380 = vmatprep.subr.bf16.mxu0 0
      %3381 = vmatpush2.bf16.msra.mxu0 0
      %3382 = vmatprep.subr.bf16.mxu0 0
      %3383 = vmatpush2.bf16.msra.mxu0 0
      %3384 = vmatprep.subr.bf16.mxu0 0
      %3385 = vmatpush2.bf16.msra.mxu0 %v3296
      %3386 = vmatprep.mubr.bf16.mxu0 %v3307
      %3387 = vmatmul.mubr.bf16.gmra.mxu0 %v3216
      %v3388 = vpop.f32.mrf.mxu0
      %v3389 = vadd.f32 %v3251, %v3388
      %v3390 = vpop.f32.mrf.mxu0
      %v3391 = vpop.f32.mrf.mxu0
      %v3392 = vadd.f32 %v3251, %v3391
      %v3393 = vpop.f32.mrf.mxu0
      %3394 = vmatprep.mubr.bf16.mxu0 %v3310
      %3395 = vmatmul.mubr.bf16.gmra.mxu0 %v3218
      %v3396 = vpop.f32.mrf.mxu0
      %v3397 = vadd.f32 %v3251, %v3396
      %v3398 = vpop.f32.mrf.mxu0
      %v3399 = vpop.f32.mrf.mxu0
      %v3400 = vadd.f32 %v3251, %v3399
      %v3401 = vpop.f32.mrf.mxu0
      %3402 = vmatprep.mubr.bf16.mxu0 %v3313
      %3403 = vmatmul.mubr.bf16.gmra.mxu0 %v3220
      %v3404 = vpop.f32.mrf.mxu0
      %v3405 = vadd.f32 %v3251, %v3404
      %v3406 = vpop.f32.mrf.mxu0
      %v3407 = vpop.f32.mrf.mxu0
      %v3408 = vadd.f32 %v3251, %v3407
      %v3409 = vpop.f32.mrf.mxu0
      %3410 = vmatprep.mubr.bf16.mxu0 %v3316
      %3411 = vmatmul.mubr.bf16.gmra.mxu0 %v3222
      %v3412 = vpop.f32.mrf.mxu0
      %v3413 = vadd.f32 %v3251, %v3412
      %v3414 = vpop.f32.mrf.mxu0
      %v3415 = vpop.f32.mrf.mxu0
      %v3416 = vadd.f32 %v3251, %v3415
      %v3417 = vpop.f32.mrf.mxu0
      %3418 = vmatprep.mubr.bf16.mxu0 %v3319
      %3419 = vmatmul.mubr.bf16.gmra.mxu0 %v3224
      %v3420 = vpop.f32.mrf.mxu0
      %v3421 = vadd.f32 %v3251, %v3420
      %v3422 = vpop.f32.mrf.mxu0
      %v3423 = vpop.f32.mrf.mxu0
      %v3424 = vadd.f32 %v3251, %v3423
      %v3425 = vpop.f32.mrf.mxu0
      %3426 = vmatprep.mubr.bf16.mxu0 %v3322
      %3427 = vmatmul.mubr.bf16.gmra.mxu0 %v3226
      %v3428 = vpop.f32.mrf.mxu0
      %v3429 = vadd.f32 %v3251, %v3428
      %v3430 = vpop.f32.mrf.mxu0
      %v3431 = vpop.f32.mrf.mxu0
      %v3432 = vadd.f32 %v3251, %v3431
      %v3433 = vpop.f32.mrf.mxu0
      %3434 = vmatprep.mubr.bf16.mxu0 %v3325
      %3435 = vmatmul.mubr.bf16.gmra.mxu0 %v3228
      %v3436 = vpop.f32.mrf.mxu0
      %v3437 = vadd.f32 %v3251, %v3436
      %v3438 = vpop.f32.mrf.mxu0
      %v3439 = vpop.f32.mrf.mxu0
      %v3440 = vadd.f32 %v3251, %v3439
      %v3441 = vpop.f32.mrf.mxu0
      %3442 = vmatprep.mubr.bf16.mxu0 %v3328
      %3443 = vmatmul.mubr.bf16.gmra.mxu0 %v3230
      %v3444 = vpop.f32.mrf.mxu0
      %v3445 = vadd.f32 %v3251, %v3444
      %v3446 = vpop.f32.mrf.mxu0
      %v3447 = vpop.f32.mrf.mxu0
      %v3448 = vadd.f32 %v3251, %v3447
      %v3449 = vpop.f32.mrf.mxu0
      %3450 = vmatprep.mubr.bf16.mxu0 %v3331
      %3451 = vmatmul.mubr.bf16.gmra.mxu0 %v3232
      %v3452 = vpop.f32.mrf.mxu0
      %v3453 = vadd.f32 %v3251, %v3452
      %v3454 = vpop.f32.mrf.mxu0
      %v3455 = vpop.f32.mrf.mxu0
      %v3456 = vadd.f32 %v3251, %v3455
      %v3457 = vpop.f32.mrf.mxu0
      %3458 = vmatprep.mubr.bf16.mxu0 %v3334
      %3459 = vmatmul.mubr.bf16.gmra.mxu0 %v3234
      %v3460 = vpop.f32.mrf.mxu0
      %v3461 = vadd.f32 %v3251, %v3460
      %v3462 = vpop.f32.mrf.mxu0
      %v3463 = vpop.f32.mrf.mxu0
      %v3464 = vadd.f32 %v3251, %v3463
      %v3465 = vpop.f32.mrf.mxu0
      %3466 = vmatprep.mubr.bf16.mxu0 %v3337
      %3467 = vmatmul.mubr.bf16.gmra.mxu0 %v3236
      %v3468 = vpop.f32.mrf.mxu0
      %v3469 = vadd.f32 %v3251, %v3468
      %v3470 = vpop.f32.mrf.mxu0
      %v3471 = vpop.f32.mrf.mxu0
      %v3472 = vadd.f32 %v3251, %v3471
      %v3473 = vpop.f32.mrf.mxu0
      %3474 = vmatprep.mubr.bf16.mxu0 %v3340
      %3475 = vmatmul.mubr.bf16.gmra.mxu0 %v3238
      %v3476 = vpop.f32.mrf.mxu0
      %v3477 = vadd.f32 %v3251, %v3476
      %v3478 = vpop.f32.mrf.mxu0
      %v3479 = vpop.f32.mrf.mxu0
      %v3480 = vadd.f32 %v3251, %v3479
      %v3481 = vpop.f32.mrf.mxu0
      %3482 = vmatprep.mubr.bf16.mxu0 %v3343
      %3483 = vmatmul.mubr.bf16.gmra.mxu0 %v3240
      %v3484 = vpop.f32.mrf.mxu0
      %v3485 = vadd.f32 %v3251, %v3484
      %v3486 = vpop.f32.mrf.mxu0
      %v3487 = vpop.f32.mrf.mxu0
      %v3488 = vadd.f32 %v3251, %v3487
      %v3489 = vpop.f32.mrf.mxu0
      %3490 = vmatprep.mubr.bf16.mxu0 %v3346
      %3491 = vmatmul.mubr.bf16.gmra.mxu0 %v3242
      %v3492 = vpop.f32.mrf.mxu0
      %v3493 = vadd.f32 %v3251, %v3492
      %v3494 = vpop.f32.mrf.mxu0
      %v3495 = vpop.f32.mrf.mxu0
      %v3496 = vadd.f32 %v3251, %v3495
      %v3497 = vpop.f32.mrf.mxu0
      %3498 = vmatprep.mubr.bf16.mxu0 %v3349
      %3499 = vmatmul.mubr.bf16.gmra.mxu0 %v3244
      %v3500 = vpop.f32.mrf.mxu0
      %v3501 = vadd.f32 %v3251, %v3500
      %v3502 = vpop.f32.mrf.mxu0
      %v3503 = vpop.f32.mrf.mxu0
      %v3504 = vadd.f32 %v3251, %v3503
      %v3505 = vpop.f32.mrf.mxu0
      %3506 = vmatprep.mubr.bf16.mxu0 %v3352
      %3507 = vmatmul.mubr.bf16.gmra.mxu0 %v3246
      %v3508 = vpop.f32.mrf.mxu0
      %v3509 = vadd.f32 %v3251, %v3508
      %v3510 = vpop.f32.mrf.mxu0
      %v3511 = vpop.f32.mrf.mxu0
      %v3512 = vadd.f32 %v3251, %v3511
      %v3513 = vpop.f32.mrf.mxu0
      %3514 = vdwg.mxu0
      %v3515 = vpack.c.bf16 %v3392, %v3389
      %v3516 = vpack.c.bf16 %v3400, %v3397
      %v3517 = vpack.c.bf16 %v3408, %v3405
      %v3518 = vpack.c.bf16 %v3416, %v3413
      %v3519 = vpack.c.bf16 %v3424, %v3421
      %v3520 = vpack.c.bf16 %v3432, %v3429
      %v3521 = vpack.c.bf16 %v3440, %v3437
      %v3522 = vpack.c.bf16 %v3448, %v3445
      %v3523 = vpack.c.bf16 %v3456, %v3453
      %v3524 = vpack.c.bf16 %v3464, %v3461
      %v3525 = vpack.c.bf16 %v3472, %v3469
      %v3526 = vpack.c.bf16 %v3480, %v3477
      %v3527 = vpack.c.bf16 %v3488, %v3485
      %v3528 = vpack.c.bf16 %v3496, %v3493
      %v3529 = vpack.c.bf16 %v3504, %v3501
      %v3530 = vpack.c.bf16 %v3512, %v3509
      %v3531 = vld [vmem:[%s2] sm:$0xf]
      %v3532 = vld [vmem:[%s2 + $0x4] sm:$0xf]
      %v3533 = vlaneseq
      %v3534 = vshrl.u32 %v3533, 7
      %v3535 = vsub.s32 0, %v3534
      %v3536 = vrot.slane %v342, %v3535
      %v3539 = vunpack.c.l.b16 %v3531
      %v3540 = vunpack.c.l.b16 %v3532
      %v3541 = vpack.c.b16 %v3540, %v3539
      %v3544 = vsel %vm253, %v3515, 0
      %v3547 = vsel %vm253, %v3516, 0
      %v3550 = vsel %vm253, %v3517, 0
      %v3553 = vsel %vm253, %v3518, 0
      %v3556 = vsel %vm253, %v3519, 0
      %v3559 = vsel %vm253, %v3520, 0
      %v3562 = vsel %vm253, %v3521, 0
      %v3565 = vsel %vm253, %v3522, 0
      %v3568 = vsel %vm253, %v3523, 0
      %v3571 = vsel %vm253, %v3524, 0
      %v3574 = vsel %vm253, %v3525, 0
      %v3577 = vsel %vm253, %v3526, 0
      %v3580 = vsel %vm253, %v3527, 0
      %v3583 = vsel %vm253, %v3528, 0
      %v3586 = vsel %vm253, %v3529, 0
      %v3589 = vsel %vm253, %v3530, 0
      %3591 = vmatprep.subr.bf16.mxu0 0
      %3592 = vmatpush1.bf16.msra.mxu0 0
      %3593 = vmatprep.subr.bf16.mxu0 0
      %3594 = vmatpush1.bf16.msra.mxu0 0
      %3595 = vmatprep.subr.bf16.mxu0 0
      %3596 = vmatpush1.bf16.msra.mxu0 0
      %3597 = vmatprep.subr.bf16.mxu0 0
      %3598 = vmatpush1.bf16.msra.mxu0 0
      %3599 = vmatprep.subr.bf16.mxu0 0
      %3600 = vmatpush1.bf16.msra.mxu0 0
      %3601 = vmatprep.subr.bf16.mxu0 0
      %3602 = vmatpush1.bf16.msra.mxu0 0
      %3603 = vmatprep.subr.bf16.mxu0 0
      %3604 = vmatpush1.bf16.msra.mxu0 0
      %3605 = vmatprep.subr.bf16.mxu0 0
      %3606 = vmatpush1.bf16.msra.mxu0 %v3541
      %3607 = vmatprep.subr.bf16.mxu0 0
      %3608 = vmatpush2.bf16.msra.mxu0 0
      %3609 = vmatprep.subr.bf16.mxu0 0
      %3610 = vmatpush2.bf16.msra.mxu0 0
      %3611 = vmatprep.subr.bf16.mxu0 0
      %3612 = vmatpush2.bf16.msra.mxu0 0
      %3613 = vmatprep.subr.bf16.mxu0 0
      %3614 = vmatpush2.bf16.msra.mxu0 0
      %3615 = vmatprep.subr.bf16.mxu0 0
      %3616 = vmatpush2.bf16.msra.mxu0 0
      %3617 = vmatprep.subr.bf16.mxu0 0
      %3618 = vmatpush2.bf16.msra.mxu0 0
      %3619 = vmatprep.subr.bf16.mxu0 0
      %3620 = vmatpush2.bf16.msra.mxu0 0
      %3621 = vmatprep.subr.bf16.mxu0 0
      %3622 = vmatpush2.bf16.msra.mxu0 0
      %3623 = vmatprep.mubr.bf16.mxu0 0
      %3624 = vmatmul.mubr.bf16.gmra.mxu0 %v3544
      %v3625 = vpop.f32.mrf.mxu0
      %v3626 = vadd.f32 %v3536, %v3625
      %v3627 = vpop.f32.mrf.mxu0
      %v3628 = vpop.f32.mrf.mxu0
      %v3629 = vadd.f32 %v3536, %v3628
      %v3630 = vpop.f32.mrf.mxu0
      %3631 = vmatprep.mubr.bf16.mxu0 0
      %3632 = vmatmul.mubr.bf16.gmra.mxu0 %v3547
      %v3633 = vpop.f32.mrf.mxu0
      %v3634 = vadd.f32 %v3536, %v3633
      %v3635 = vpop.f32.mrf.mxu0
      %v3636 = vpop.f32.mrf.mxu0
      %v3637 = vadd.f32 %v3536, %v3636
      %v3638 = vpop.f32.mrf.mxu0
      %3639 = vmatprep.mubr.bf16.mxu0 0
      %3640 = vmatmul.mubr.bf16.gmra.mxu0 %v3550
      %v3641 = vpop.f32.mrf.mxu0
      %v3642 = vadd.f32 %v3536, %v3641
      %v3643 = vpop.f32.mrf.mxu0
      %v3644 = vpop.f32.mrf.mxu0
      %v3645 = vadd.f32 %v3536, %v3644
      %v3646 = vpop.f32.mrf.mxu0
      %3647 = vmatprep.mubr.bf16.mxu0 0
      %3648 = vmatmul.mubr.bf16.gmra.mxu0 %v3553
      %v3649 = vpop.f32.mrf.mxu0
      %v3650 = vadd.f32 %v3536, %v3649
      %v3651 = vpop.f32.mrf.mxu0
      %v3652 = vpop.f32.mrf.mxu0
      %v3653 = vadd.f32 %v3536, %v3652
      %v3654 = vpop.f32.mrf.mxu0
      %3655 = vmatprep.mubr.bf16.mxu0 0
      %3656 = vmatmul.mubr.bf16.gmra.mxu0 %v3556
      %v3657 = vpop.f32.mrf.mxu0
      %v3658 = vadd.f32 %v3536, %v3657
      %v3659 = vpop.f32.mrf.mxu0
      %v3660 = vpop.f32.mrf.mxu0
      %v3661 = vadd.f32 %v3536, %v3660
      %v3662 = vpop.f32.mrf.mxu0
      %3663 = vmatprep.mubr.bf16.mxu0 0
      %3664 = vmatmul.mubr.bf16.gmra.mxu0 %v3559
      %v3665 = vpop.f32.mrf.mxu0
      %v3666 = vadd.f32 %v3536, %v3665
      %v3667 = vpop.f32.mrf.mxu0
      %v3668 = vpop.f32.mrf.mxu0
      %v3669 = vadd.f32 %v3536, %v3668
      %v3670 = vpop.f32.mrf.mxu0
      %3671 = vmatprep.mubr.bf16.mxu0 0
      %3672 = vmatmul.mubr.bf16.gmra.mxu0 %v3562
      %v3673 = vpop.f32.mrf.mxu0
      %v3674 = vadd.f32 %v3536, %v3673
      %v3675 = vpop.f32.mrf.mxu0
      %v3676 = vpop.f32.mrf.mxu0
      %v3677 = vadd.f32 %v3536, %v3676
      %v3678 = vpop.f32.mrf.mxu0
      %3679 = vmatprep.mubr.bf16.mxu0 0
      %3680 = vmatmul.mubr.bf16.gmra.mxu0 %v3565
      %v3681 = vpop.f32.mrf.mxu0
      %v3682 = vadd.f32 %v3536, %v3681
      %v3683 = vpop.f32.mrf.mxu0
      %v3684 = vpop.f32.mrf.mxu0
      %v3685 = vadd.f32 %v3536, %v3684
      %v3686 = vpop.f32.mrf.mxu0
      %3687 = vmatprep.mubr.bf16.mxu0 0
      %3688 = vmatmul.mubr.bf16.gmra.mxu0 %v3568
      %v3689 = vpop.f32.mrf.mxu0
      %v3690 = vadd.f32 %v3536, %v3689
      %v3691 = vpop.f32.mrf.mxu0
      %v3692 = vpop.f32.mrf.mxu0
      %v3693 = vadd.f32 %v3536, %v3692
      %v3694 = vpop.f32.mrf.mxu0
      %3695 = vmatprep.mubr.bf16.mxu0 0
      %3696 = vmatmul.mubr.bf16.gmra.mxu0 %v3571
      %v3697 = vpop.f32.mrf.mxu0
      %v3698 = vadd.f32 %v3536, %v3697
      %v3699 = vpop.f32.mrf.mxu0
      %v3700 = vpop.f32.mrf.mxu0
      %v3701 = vadd.f32 %v3536, %v3700
      %v3702 = vpop.f32.mrf.mxu0
      %3703 = vmatprep.mubr.bf16.mxu0 0
      %3704 = vmatmul.mubr.bf16.gmra.mxu0 %v3574
      %v3705 = vpop.f32.mrf.mxu0
      %v3706 = vadd.f32 %v3536, %v3705
      %v3707 = vpop.f32.mrf.mxu0
      %v3708 = vpop.f32.mrf.mxu0
      %v3709 = vadd.f32 %v3536, %v3708
      %v3710 = vpop.f32.mrf.mxu0
      %3711 = vmatprep.mubr.bf16.mxu0 0
      %3712 = vmatmul.mubr.bf16.gmra.mxu0 %v3577
      %v3713 = vpop.f32.mrf.mxu0
      %v3714 = vadd.f32 %v3536, %v3713
      %v3715 = vpop.f32.mrf.mxu0
      %v3716 = vpop.f32.mrf.mxu0
      %v3717 = vadd.f32 %v3536, %v3716
      %v3718 = vpop.f32.mrf.mxu0
      %3719 = vmatprep.mubr.bf16.mxu0 0
      %3720 = vmatmul.mubr.bf16.gmra.mxu0 %v3580
      %v3721 = vpop.f32.mrf.mxu0
      %v3722 = vadd.f32 %v3536, %v3721
      %v3723 = vpop.f32.mrf.mxu0
      %v3724 = vpop.f32.mrf.mxu0
      %v3725 = vadd.f32 %v3536, %v3724
      %v3726 = vpop.f32.mrf.mxu0
      %3727 = vmatprep.mubr.bf16.mxu0 0
      %3728 = vmatmul.mubr.bf16.gmra.mxu0 %v3583
      %v3729 = vpop.f32.mrf.mxu0
      %v3730 = vadd.f32 %v3536, %v3729
      %v3731 = vpop.f32.mrf.mxu0
      %v3732 = vpop.f32.mrf.mxu0
      %v3733 = vadd.f32 %v3536, %v3732
      %v3734 = vpop.f32.mrf.mxu0
      %3735 = vmatprep.mubr.bf16.mxu0 0
      %3736 = vmatmul.mubr.bf16.gmra.mxu0 %v3586
      %v3737 = vpop.f32.mrf.mxu0
      %v3738 = vadd.f32 %v3536, %v3737
      %v3739 = vpop.f32.mrf.mxu0
      %v3740 = vpop.f32.mrf.mxu0
      %v3741 = vadd.f32 %v3536, %v3740
      %v3742 = vpop.f32.mrf.mxu0
      %3743 = vmatprep.mubr.bf16.mxu0 0
      %3744 = vmatmul.mubr.bf16.gmra.mxu0 %v3589
      %v3745 = vpop.f32.mrf.mxu0
      %v3746 = vadd.f32 %v3536, %v3745
      %v3747 = vpop.f32.mrf.mxu0
      %v3748 = vpop.f32.mrf.mxu0
      %v3749 = vadd.f32 %v3536, %v3748
      %v3750 = vpop.f32.mrf.mxu0
      %3751 = vdwg.mxu0
      %v3752 = vmax.f32 %v3626, 0.0
      %v3753 = vmax.f32 %v3629, 0.0
      %v3754 = vmax.f32 %v3634, 0.0
      %v3755 = vmax.f32 %v3637, 0.0
      %v3756 = vmax.f32 %v3642, 0.0
      %v3757 = vmax.f32 %v3645, 0.0
      %v3758 = vmax.f32 %v3650, 0.0
      %v3759 = vmax.f32 %v3653, 0.0
      %v3760 = vmax.f32 %v3658, 0.0
      %v3761 = vmax.f32 %v3661, 0.0
      %v3762 = vmax.f32 %v3666, 0.0
      %v3763 = vmax.f32 %v3669, 0.0
      %v3764 = vmax.f32 %v3674, 0.0
      %v3765 = vmax.f32 %v3677, 0.0
      %v3766 = vmax.f32 %v3682, 0.0
      %v3767 = vmax.f32 %v3685, 0.0
      %v3768 = vmax.f32 %v3690, 0.0
      %v3769 = vmax.f32 %v3693, 0.0
      %v3770 = vmax.f32 %v3698, 0.0
      %v3771 = vmax.f32 %v3701, 0.0
      %v3772 = vmax.f32 %v3706, 0.0
      %v3773 = vmax.f32 %v3709, 0.0
      %v3774 = vmax.f32 %v3714, 0.0
      %v3775 = vmax.f32 %v3717, 0.0
      %v3776 = vmax.f32 %v3722, 0.0
      %v3777 = vmax.f32 %v3725, 0.0
      %v3778 = vmax.f32 %v3730, 0.0
      %v3779 = vmax.f32 %v3733, 0.0
      %v3780 = vmax.f32 %v3738, 0.0
      %v3781 = vmax.f32 %v3741, 0.0
      %v3782 = vmax.f32 %v3746, 0.0
      %v3783 = vmax.f32 %v3749, 0.0
      %v3784 = vpack.c.bf16 %v3753, %v3752
      %v3785 = vpack.c.bf16 %v3755, %v3754
      %v3786 = vpack.c.bf16 %v3757, %v3756
      %v3787 = vpack.c.bf16 %v3759, %v3758
      %v3788 = vpack.c.bf16 %v3761, %v3760
      %v3789 = vpack.c.bf16 %v3763, %v3762
      %v3790 = vpack.c.bf16 %v3765, %v3764
      %v3791 = vpack.c.bf16 %v3767, %v3766
      %v3792 = vpack.c.bf16 %v3769, %v3768
      %v3793 = vpack.c.bf16 %v3771, %v3770
      %v3794 = vpack.c.bf16 %v3773, %v3772
      %v3795 = vpack.c.bf16 %v3775, %v3774
      %v3796 = vpack.c.bf16 %v3777, %v3776
      %v3797 = vpack.c.bf16 %v3779, %v3778
      %v3798 = vpack.c.bf16 %v3781, %v3780
      %v3799 = vpack.c.bf16 %v3783, %v3782
      %v3800 = vld [vmem:[%s3] sm:$0x3]
      %v3801 = vlaneseq
      %v3802 = vshrl.u32 %v3801, 7
      %v3803 = vsub.s32 2, %v3802
      %v3804 = vrot.slane %v341, %v3803
      %vm3805 = vcmask 31744
      %v3807 = vsel %vm3805, %v3784, 0
      %v3810 = vsel %vm3805, %v3785, 0
      %v3813 = vsel %vm3805, %v3786, 0
      %v3816 = vsel %vm3805, %v3787, 0
      %v3819 = vsel %vm3805, %v3788, 0
      %v3822 = vsel %vm3805, %v3789, 0
      %v3825 = vsel %vm3805, %v3790, 0
      %v3828 = vsel %vm3805, %v3791, 0
      %v3831 = vsel %vm3805, %v3792, 0
      %v3834 = vsel %vm3805, %v3793, 0
      %v3837 = vsel %vm3805, %v3794, 0
      %v3840 = vsel %vm3805, %v3795, 0
      %v3843 = vsel %vm3805, %v3796, 0
      %v3846 = vsel %vm3805, %v3797, 0
      %v3849 = vsel %vm3805, %v3798, 0
      %v3852 = vsel %vm3805, %v3799, 0
      %vm3854 = vcmask 1041408
      %v3856 = vsel %vm3854, %v3800, 0
      %3858 = vmatprep.subr.bf16.mxu0 0
      %3859 = vmatpush1.bf16.msra.mxu0 0
      %3860 = vmatprep.subr.bf16.mxu0 0
      %3861 = vmatpush1.bf16.msra.mxu0 0
      %3862 = vmatprep.subr.bf16.mxu0 0
      %3863 = vmatpush1.bf16.msra.mxu0 0
      %3864 = vmatprep.subr.bf16.mxu0 0
      %3865 = vmatpush1.bf16.msra.mxu0 0
      %3866 = vmatprep.subr.bf16.mxu0 0
      %3867 = vmatpush1.bf16.msra.mxu0 0
      %3868 = vmatprep.subr.bf16.mxu0 0
      %3869 = vmatpush1.bf16.msra.mxu0 0
      %3870 = vmatprep.subr.bf16.mxu0 0
      %3871 = vmatpush1.bf16.msra.mxu0 0
      %3872 = vmatprep.subr.bf16.mxu0 0
      %3873 = vmatpush1.bf16.msra.mxu0 %v3856
      %3874 = vmatprep.subr.bf16.mxu0 0
      %3875 = vmatpush2.bf16.msra.mxu0 0
      %3876 = vmatprep.subr.bf16.mxu0 0
      %3877 = vmatpush2.bf16.msra.mxu0 0
      %3878 = vmatprep.subr.bf16.mxu0 0
      %3879 = vmatpush2.bf16.msra.mxu0 0
      %3880 = vmatprep.subr.bf16.mxu0 0
      %3881 = vmatpush2.bf16.msra.mxu0 0
      %3882 = vmatprep.subr.bf16.mxu0 0
      %3883 = vmatpush2.bf16.msra.mxu0 0
      %3884 = vmatprep.subr.bf16.mxu0 0
      %3885 = vmatpush2.bf16.msra.mxu0 0
      %3886 = vmatprep.subr.bf16.mxu0 0
      %3887 = vmatpush2.bf16.msra.mxu0 0
      %3888 = vmatprep.subr.bf16.mxu0 0
      %3889 = vmatpush2.bf16.msra.mxu0 0
      %3890 = vmatprep.mubr.bf16.mxu0 0
      %3891 = vmatmul.mubr.bf16.gmra.mxu0 %v3807
      %v3892 = vpop.f32.mrf.mxu0
      %v3893 = vadd.f32 %v3804, %v3892
      %v3894 = vpop.f32.mrf.mxu0
      %v3895 = vpop.f32.mrf.mxu0
      %v3896 = vadd.f32 %v3804, %v3895
      %v3897 = vpop.f32.mrf.mxu0
      %3898 = vmatprep.mubr.bf16.mxu0 0
      %3899 = vmatmul.mubr.bf16.gmra.mxu0 %v3810
      %v3900 = vpop.f32.mrf.mxu0
      %v3901 = vadd.f32 %v3804, %v3900
      %v3902 = vpop.f32.mrf.mxu0
      %v3903 = vpop.f32.mrf.mxu0
      %v3904 = vadd.f32 %v3804, %v3903
      %v3905 = vpop.f32.mrf.mxu0
      %3906 = vmatprep.mubr.bf16.mxu0 0
      %3907 = vmatmul.mubr.bf16.gmra.mxu0 %v3813
      %v3908 = vpop.f32.mrf.mxu0
      %v3909 = vadd.f32 %v3804, %v3908
      %v3910 = vpop.f32.mrf.mxu0
      %v3911 = vpop.f32.mrf.mxu0
      %v3912 = vadd.f32 %v3804, %v3911
      %v3913 = vpop.f32.mrf.mxu0
      %3914 = vmatprep.mubr.bf16.mxu0 0
      %3915 = vmatmul.mubr.bf16.gmra.mxu0 %v3816
      %v3916 = vpop.f32.mrf.mxu0
      %v3917 = vadd.f32 %v3804, %v3916
      %v3918 = vpop.f32.mrf.mxu0
      %v3919 = vpop.f32.mrf.mxu0
      %v3920 = vadd.f32 %v3804, %v3919
      %v3921 = vpop.f32.mrf.mxu0
      %3922 = vmatprep.mubr.bf16.mxu0 0
      %3923 = vmatmul.mubr.bf16.gmra.mxu0 %v3819
      %v3924 = vpop.f32.mrf.mxu0
      %v3925 = vadd.f32 %v3804, %v3924
      %v3926 = vpop.f32.mrf.mxu0
      %v3927 = vpop.f32.mrf.mxu0
      %v3928 = vadd.f32 %v3804, %v3927
      %v3929 = vpop.f32.mrf.mxu0
      %3930 = vmatprep.mubr.bf16.mxu0 0
      %3931 = vmatmul.mubr.bf16.gmra.mxu0 %v3822
      %v3932 = vpop.f32.mrf.mxu0
      %v3933 = vadd.f32 %v3804, %v3932
      %v3934 = vpop.f32.mrf.mxu0
      %v3935 = vpop.f32.mrf.mxu0
      %v3936 = vadd.f32 %v3804, %v3935
      %v3937 = vpop.f32.mrf.mxu0
      %3938 = vmatprep.mubr.bf16.mxu0 0
      %3939 = vmatmul.mubr.bf16.gmra.mxu0 %v3825
      %v3940 = vpop.f32.mrf.mxu0
      %v3941 = vadd.f32 %v3804, %v3940
      %v3942 = vpop.f32.mrf.mxu0
      %v3943 = vpop.f32.mrf.mxu0
      %v3944 = vadd.f32 %v3804, %v3943
      %v3945 = vpop.f32.mrf.mxu0
      %3946 = vmatprep.mubr.bf16.mxu0 0
      %3947 = vmatmul.mubr.bf16.gmra.mxu0 %v3828
      %v3948 = vpop.f32.mrf.mxu0
      %v3949 = vadd.f32 %v3804, %v3948
      %v3950 = vpop.f32.mrf.mxu0
      %v3951 = vpop.f32.mrf.mxu0
      %v3952 = vadd.f32 %v3804, %v3951
      %v3953 = vpop.f32.mrf.mxu0
      %3954 = vmatprep.mubr.bf16.mxu0 0
      %3955 = vmatmul.mubr.bf16.gmra.mxu0 %v3831
      %v3956 = vpop.f32.mrf.mxu0
      %v3957 = vadd.f32 %v3804, %v3956
      %v3958 = vpop.f32.mrf.mxu0
      %v3959 = vpop.f32.mrf.mxu0
      %v3960 = vadd.f32 %v3804, %v3959
      %v3961 = vpop.f32.mrf.mxu0
      %3962 = vmatprep.mubr.bf16.mxu0 0
      %3963 = vmatmul.mubr.bf16.gmra.mxu0 %v3834
      %v3964 = vpop.f32.mrf.mxu0
      %v3965 = vadd.f32 %v3804, %v3964
      %v3966 = vpop.f32.mrf.mxu0
      %v3967 = vpop.f32.mrf.mxu0
      %v3968 = vadd.f32 %v3804, %v3967
      %v3969 = vpop.f32.mrf.mxu0
      %3970 = vmatprep.mubr.bf16.mxu0 0
      %3971 = vmatmul.mubr.bf16.gmra.mxu0 %v3837
      %v3972 = vpop.f32.mrf.mxu0
      %v3973 = vadd.f32 %v3804, %v3972
      %v3974 = vpop.f32.mrf.mxu0
      %v3975 = vpop.f32.mrf.mxu0
      %v3976 = vadd.f32 %v3804, %v3975
      %v3977 = vpop.f32.mrf.mxu0
      %3978 = vmatprep.mubr.bf16.mxu0 0
      %3979 = vmatmul.mubr.bf16.gmra.mxu0 %v3840
      %v3980 = vpop.f32.mrf.mxu0
      %v3981 = vadd.f32 %v3804, %v3980
      %v3982 = vpop.f32.mrf.mxu0
      %v3983 = vpop.f32.mrf.mxu0
      %v3984 = vadd.f32 %v3804, %v3983
      %v3985 = vpop.f32.mrf.mxu0
      %3986 = vmatprep.mubr.bf16.mxu0 0
      %3987 = vmatmul.mubr.bf16.gmra.mxu0 %v3843
      %v3988 = vpop.f32.mrf.mxu0
      %v3989 = vadd.f32 %v3804, %v3988
      %v3990 = vpop.f32.mrf.mxu0
      %v3991 = vpop.f32.mrf.mxu0
      %v3992 = vadd.f32 %v3804, %v3991
      %v3993 = vpop.f32.mrf.mxu0
      %3994 = vmatprep.mubr.bf16.mxu0 0
      %3995 = vmatmul.mubr.bf16.gmra.mxu0 %v3846
      %v3996 = vpop.f32.mrf.mxu0
      %v3997 = vadd.f32 %v3804, %v3996
      %v3998 = vpop.f32.mrf.mxu0
      %v3999 = vpop.f32.mrf.mxu0
      %v4000 = vadd.f32 %v3804, %v3999
      %v4001 = vpop.f32.mrf.mxu0
      %4002 = vmatprep.mubr.bf16.mxu0 0
      %4003 = vmatmul.mubr.bf16.gmra.mxu0 %v3849
      %v4004 = vpop.f32.mrf.mxu0
      %v4005 = vadd.f32 %v3804, %v4004
      %v4006 = vpop.f32.mrf.mxu0
      %v4007 = vpop.f32.mrf.mxu0
      %v4008 = vadd.f32 %v3804, %v4007
      %v4009 = vpop.f32.mrf.mxu0
      %4010 = vmatprep.mubr.bf16.mxu0 0
      %4011 = vmatmul.mubr.bf16.gmra.mxu0 %v3852
      %v4012 = vpop.f32.mrf.mxu0
      %v4013 = vadd.f32 %v3804, %v4012
      %v4014 = vpop.f32.mrf.mxu0
      %v4015 = vpop.f32.mrf.mxu0
      %v4016 = vadd.f32 %v3804, %v4015
      %v4017 = vpop.f32.mrf.mxu0
      %4018 = vdwg.mxu0
      %v4019 = vsel %vm253, %v3389, 0.0
      %v4020 = vsel %vm253, %v3392, 0.0
      %v4021 = vadd.f32 %v4019, %v4020
      %v4022 = vsel %vm253, %v3397, 0.0
      %v4023 = vadd.f32 %v4021, %v4022
      %v4024 = vsel %vm253, %v3400, 0.0
      %v4025 = vadd.f32 %v4023, %v4024
      %v4026 = vsel %vm253, %v3405, 0.0
      %v4027 = vadd.f32 %v4025, %v4026
      %v4028 = vsel %vm253, %v3408, 0.0
      %v4029 = vadd.f32 %v4027, %v4028
      %v4030 = vsel %vm253, %v3413, 0.0
      %v4031 = vadd.f32 %v4029, %v4030
      %v4032 = vsel %vm253, %v3416, 0.0
      %v4033 = vadd.f32 %v4031, %v4032
      %v4034 = vsel %vm253, %v3421, 0.0
      %v4035 = vadd.f32 %v4033, %v4034
      %v4036 = vsel %vm253, %v3424, 0.0
      %v4037 = vadd.f32 %v4035, %v4036
      %v4038 = vsel %vm253, %v3429, 0.0
      %v4039 = vadd.f32 %v4037, %v4038
      %v4040 = vsel %vm253, %v3432, 0.0
      %v4041 = vadd.f32 %v4039, %v4040
      %v4042 = vsel %vm253, %v3437, 0.0
      %v4043 = vadd.f32 %v4041, %v4042
      %v4044 = vsel %vm253, %v3440, 0.0
      %v4045 = vadd.f32 %v4043, %v4044
      %v4046 = vsel %vm253, %v3445, 0.0
      %v4047 = vadd.f32 %v4045, %v4046
      %v4048 = vsel %vm253, %v3448, 0.0
      %v4049 = vadd.f32 %v4047, %v4048
      %v4050 = vsel %vm253, %v3453, 0.0
      %v4051 = vadd.f32 %v4049, %v4050
      %v4052 = vsel %vm253, %v3456, 0.0
      %v4053 = vadd.f32 %v4051, %v4052
      %v4054 = vsel %vm253, %v3461, 0.0
      %v4055 = vadd.f32 %v4053, %v4054
      %v4056 = vsel %vm253, %v3464, 0.0
      %v4057 = vadd.f32 %v4055, %v4056
      %v4058 = vsel %vm253, %v3469, 0.0
      %v4059 = vadd.f32 %v4057, %v4058
      %v4060 = vsel %vm253, %v3472, 0.0
      %v4061 = vadd.f32 %v4059, %v4060
      %v4062 = vsel %vm253, %v3477, 0.0
      %v4063 = vadd.f32 %v4061, %v4062
      %v4064 = vsel %vm253, %v3480, 0.0
      %v4065 = vadd.f32 %v4063, %v4064
      %v4066 = vsel %vm253, %v3485, 0.0
      %v4067 = vadd.f32 %v4065, %v4066
      %v4068 = vsel %vm253, %v3488, 0.0
      %v4069 = vadd.f32 %v4067, %v4068
      %v4070 = vsel %vm253, %v3493, 0.0
      %v4071 = vadd.f32 %v4069, %v4070
      %v4072 = vsel %vm253, %v3496, 0.0
      %v4073 = vadd.f32 %v4071, %v4072
      %v4074 = vsel %vm253, %v3501, 0.0
      %v4075 = vadd.f32 %v4073, %v4074
      %v4076 = vsel %vm253, %v3504, 0.0
      %v4077 = vadd.f32 %v4075, %v4076
      %v4078 = vsel %vm253, %v3509, 0.0
      %v4079 = vadd.f32 %v4077, %v4078
      %v4080 = vsel %vm253, %v3512, 0.0
      %v4081 = vadd.f32 %v4079, %v4080
      %v4082 = vrot.slane %v4081, 4
      %v4083 = vadd.f32 %v4081, %v4082
      %v4084 = vrot.slane %v4083, 2
      %v4085 = vadd.f32 %v4083, %v4084
      %v4086 = vrot.slane %v4085, 1
      %v4087 = vadd.f32 %v4085, %v4086
      %v4088 = vrcp.pop 256.0
      %v4089 = vmul.f32 %v4087, %v4088
      %v4090 = vpack.c.bf16 %v4089, %v4089
      %s4091 = scalar_lea.vmem %s2, 8
      %v4092 = vld [vmem:[%s4091] sm:$0xf]
      %v4093 = vld [vmem:[%s4091 + $0x4] sm:$0xf]
      %v4096 = vunpack.c.l.b16 %v4092
      %v4097 = vunpack.c.l.b16 %v4093
      %v4098 = vpack.c.b16 %v4097, %v4096
      %v4101 = vrot.slane %v342, 1
      %v4104 = vsel %vm253, %v4090, 0
      %4106 = vmatprep.subr.bf16.mxu0 0
      %4107 = vmatpush1.bf16.msra.mxu0 0
      %4108 = vmatprep.subr.bf16.mxu0 0
      %4109 = vmatpush1.bf16.msra.mxu0 0
      %4110 = vmatprep.subr.bf16.mxu0 0
      %4111 = vmatpush1.bf16.msra.mxu0 0
      %4112 = vmatprep.subr.bf16.mxu0 0
      %4113 = vmatpush1.bf16.msra.mxu0 0
      %4114 = vmatprep.subr.bf16.mxu0 0
      %4115 = vmatpush1.bf16.msra.mxu0 0
      %4116 = vmatprep.subr.bf16.mxu0 0
      %4117 = vmatpush1.bf16.msra.mxu0 0
      %4118 = vmatprep.subr.bf16.mxu0 0
      %4119 = vmatpush1.bf16.msra.mxu0 0
      %4120 = vmatprep.subr.bf16.mxu0 0
      %4121 = vmatpush1.bf16.msra.mxu0 %v4098
      %4122 = vmatprep.subr.bf16.mxu0 0
      %4123 = vmatpush2.bf16.msra.mxu0 0
      %4124 = vmatprep.subr.bf16.mxu0 0
      %4125 = vmatpush2.bf16.msra.mxu0 0
      %4126 = vmatprep.subr.bf16.mxu0 0
      %4127 = vmatpush2.bf16.msra.mxu0 0
      %4128 = vmatprep.subr.bf16.mxu0 0
      %4129 = vmatpush2.bf16.msra.mxu0 0
      %4130 = vmatprep.subr.bf16.mxu0 0
      %4131 = vmatpush2.bf16.msra.mxu0 0
      %4132 = vmatprep.subr.bf16.mxu0 0
      %4133 = vmatpush2.bf16.msra.mxu0 0
      %4134 = vmatprep.subr.bf16.mxu0 0
      %4135 = vmatpush2.bf16.msra.mxu0 0
      %4136 = vmatprep.subr.bf16.mxu0 0
      %4137 = vmatpush2.bf16.msra.mxu0 0
      %4138 = vmatprep.mubr.bf16.mxu0 0
      %4139 = vmatmul.mubr.bf16.gmra.mxu0 %v4104
      %v4140 = vpop.f32.mrf.mxu0
      %v4141 = vadd.f32 %v4101, %v4140
      %v4142 = vpop.f32.mrf.mxu0
      %v4143 = vpop.f32.mrf.mxu0
      %v4144 = vpop.f32.mrf.mxu0
      %4145 = vdwg.mxu0
      %v4146 = vmax.f32 %v4141, 0.0
      %v4147 = vpack.c.bf16 %v4146, %v4146
      %s4148 = scalar_lea.vmem %s3, 2
      %v4149 = vld [vmem:[%s4148] sm:$0x3]
      %v4151 = vrot.slane %v341, 3
      %v4154 = vsel %vm3805, %v4147, 0
      %v4157 = vsel %vm3854, %v4149, 0
      %4159 = vmatprep.subr.bf16.mxu0 0
      %4160 = vmatpush1.bf16.msra.mxu0 0
      %4161 = vmatprep.subr.bf16.mxu0 0
      %4162 = vmatpush1.bf16.msra.mxu0 0
      %4163 = vmatprep.subr.bf16.mxu0 0
      %4164 = vmatpush1.bf16.msra.mxu0 0
      %4165 = vmatprep.subr.bf16.mxu0 0
      %4166 = vmatpush1.bf16.msra.mxu0 0
      %4167 = vmatprep.subr.bf16.mxu0 0
      %4168 = vmatpush1.bf16.msra.mxu0 0
      %4169 = vmatprep.subr.bf16.mxu0 0
      %4170 = vmatpush1.bf16.msra.mxu0 0
      %4171 = vmatprep.subr.bf16.mxu0 0
      %4172 = vmatpush1.bf16.msra.mxu0 0
      %4173 = vmatprep.subr.bf16.mxu0 0
      %4174 = vmatpush1.bf16.msra.mxu0 %v4157
      %4175 = vmatprep.subr.bf16.mxu0 0
      %4176 = vmatpush2.bf16.msra.mxu0 0
      %4177 = vmatprep.subr.bf16.mxu0 0
      %4178 = vmatpush2.bf16.msra.mxu0 0
      %4179 = vmatprep.subr.bf16.mxu0 0
      %4180 = vmatpush2.bf16.msra.mxu0 0
      %4181 = vmatprep.subr.bf16.mxu0 0
      %4182 = vmatpush2.bf16.msra.mxu0 0
      %4183 = vmatprep.subr.bf16.mxu0 0
      %4184 = vmatpush2.bf16.msra.mxu0 0
      %4185 = vmatprep.subr.bf16.mxu0 0
      %4186 = vmatpush2.bf16.msra.mxu0 0
      %4187 = vmatprep.subr.bf16.mxu0 0
      %4188 = vmatpush2.bf16.msra.mxu0 0
      %4189 = vmatprep.subr.bf16.mxu0 0
      %4190 = vmatpush2.bf16.msra.mxu0 0
      %4191 = vmatprep.mubr.bf16.mxu0 0
      %4192 = vmatmul.mubr.bf16.gmra.mxu0 %v4154
      %v4193 = vpop.f32.mrf.mxu0
      %v4194 = vadd.f32 %v4151, %v4193
      %v4195 = vpop.f32.mrf.mxu0
      %v4196 = vpop.f32.mrf.mxu0
      %v4197 = vpop.f32.mrf.mxu0
      %4198 = vdwg.mxu0
      %v4199 = vlaneseq
      %v4200 = vshrl.u32 %v4199, 7
      %v4201 = vsub.s32 0, %v4200
      %v4202 = vrot.slane %v4194, %v4201
      %v4203 = vadd.f32 %v3893, %v4202
      %v4204 = vadd.f32 %v3896, %v4202
      %v4205 = vadd.f32 %v3901, %v4202
      %v4206 = vadd.f32 %v3904, %v4202
      %v4207 = vadd.f32 %v3909, %v4202
      %v4208 = vadd.f32 %v3912, %v4202
      %v4209 = vadd.f32 %v3917, %v4202
      %v4210 = vadd.f32 %v3920, %v4202
      %v4211 = vadd.f32 %v3925, %v4202
      %v4212 = vadd.f32 %v3928, %v4202
      %v4213 = vadd.f32 %v3933, %v4202
      %v4214 = vadd.f32 %v3936, %v4202
      %v4215 = vadd.f32 %v3941, %v4202
      %v4216 = vadd.f32 %v3944, %v4202
      %v4217 = vadd.f32 %v3949, %v4202
      %v4218 = vadd.f32 %v3952, %v4202
      %v4219 = vadd.f32 %v3957, %v4202
      %v4220 = vadd.f32 %v3960, %v4202
      %v4221 = vadd.f32 %v3965, %v4202
      %v4222 = vadd.f32 %v3968, %v4202
      %v4223 = vadd.f32 %v3973, %v4202
      %v4224 = vadd.f32 %v3976, %v4202
      %v4225 = vadd.f32 %v3981, %v4202
      %v4226 = vadd.f32 %v3984, %v4202
      %v4227 = vadd.f32 %v3989, %v4202
      %v4228 = vadd.f32 %v3992, %v4202
      %v4229 = vadd.f32 %v3997, %v4202
      %v4230 = vadd.f32 %v4000, %v4202
      %v4231 = vadd.f32 %v4005, %v4202
      %v4232 = vadd.f32 %v4008, %v4202
      %v4233 = vadd.f32 %v4013, %v4202
      %v4234 = vadd.f32 %v4016, %v4202
      %v4235 = vxor.u32 %v4203, 2147483648
      %v4236 = vxor.u32 %v4204, 2147483648
      %v4237 = vxor.u32 %v4205, 2147483648
      %v4238 = vxor.u32 %v4206, 2147483648
      %v4239 = vxor.u32 %v4207, 2147483648
      %v4240 = vxor.u32 %v4208, 2147483648
      %v4241 = vxor.u32 %v4209, 2147483648
      %v4242 = vxor.u32 %v4210, 2147483648
      %v4243 = vxor.u32 %v4211, 2147483648
      %v4244 = vxor.u32 %v4212, 2147483648
      %v4245 = vxor.u32 %v4213, 2147483648
      %v4246 = vxor.u32 %v4214, 2147483648
      %v4247 = vxor.u32 %v4215, 2147483648
      %v4248 = vxor.u32 %v4216, 2147483648
      %v4249 = vxor.u32 %v4217, 2147483648
      %v4250 = vxor.u32 %v4218, 2147483648
      %v4251 = vxor.u32 %v4219, 2147483648
      %v4252 = vxor.u32 %v4220, 2147483648
      %v4253 = vxor.u32 %v4221, 2147483648
      %v4254 = vxor.u32 %v4222, 2147483648
      %v4255 = vxor.u32 %v4223, 2147483648
      %v4256 = vxor.u32 %v4224, 2147483648
      %v4257 = vxor.u32 %v4225, 2147483648
      %v4258 = vxor.u32 %v4226, 2147483648
      %v4259 = vxor.u32 %v4227, 2147483648
      %v4260 = vxor.u32 %v4228, 2147483648
      %v4261 = vxor.u32 %v4229, 2147483648
      %v4262 = vxor.u32 %v4230, 2147483648
      %v4263 = vxor.u32 %v4231, 2147483648
      %v4264 = vxor.u32 %v4232, 2147483648
      %v4265 = vxor.u32 %v4233, 2147483648
      %v4266 = vxor.u32 %v4234, 2147483648
      %v4267 = vmul.f32 %v4235, 1.442695
      %v4268 = vpow.pop %v4267
      %v4269 = vmul.f32 %v4236, 1.442695
      %v4270 = vpow.pop %v4269
      %v4271 = vmul.f32 %v4237, 1.442695
      %v4272 = vpow.pop %v4271
      %v4273 = vmul.f32 %v4238, 1.442695
      %v4274 = vpow.pop %v4273
      %v4275 = vmul.f32 %v4239, 1.442695
      %v4276 = vpow.pop %v4275
      %v4277 = vmul.f32 %v4240, 1.442695
      %v4278 = vpow.pop %v4277
      %v4279 = vmul.f32 %v4241, 1.442695
      %v4280 = vpow.pop %v4279
      %v4281 = vmul.f32 %v4242, 1.442695
      %v4282 = vpow.pop %v4281
      %v4283 = vmul.f32 %v4243, 1.442695
      %v4284 = vpow.pop %v4283
      %v4285 = vmul.f32 %v4244, 1.442695
      %v4286 = vpow.pop %v4285
      %v4287 = vmul.f32 %v4245, 1.442695
      %v4288 = vpow.pop %v4287
      %v4289 = vmul.f32 %v4246, 1.442695
      %v4290 = vpow.pop %v4289
      %v4291 = vmul.f32 %v4247, 1.442695
      %v4292 = vpow.pop %v4291
      %v4293 = vmul.f32 %v4248, 1.442695
      %v4294 = vpow.pop %v4293
      %v4295 = vmul.f32 %v4249, 1.442695
      %v4296 = vpow.pop %v4295
      %v4297 = vmul.f32 %v4250, 1.442695
      %v4298 = vpow.pop %v4297
      %v4299 = vmul.f32 %v4251, 1.442695
      %v4300 = vpow.pop %v4299
      %v4301 = vmul.f32 %v4252, 1.442695
      %v4302 = vpow.pop %v4301
      %v4303 = vmul.f32 %v4253, 1.442695
      %v4304 = vpow.pop %v4303
      %v4305 = vmul.f32 %v4254, 1.442695
      %v4306 = vpow.pop %v4305
      %v4307 = vmul.f32 %v4255, 1.442695
      %v4308 = vpow.pop %v4307
      %v4309 = vmul.f32 %v4256, 1.442695
      %v4310 = vpow.pop %v4309
      %v4311 = vmul.f32 %v4257, 1.442695
      %v4312 = vpow.pop %v4311
      %v4313 = vmul.f32 %v4258, 1.442695
      %v4314 = vpow.pop %v4313
      %v4315 = vmul.f32 %v4259, 1.442695
      %v4316 = vpow.pop %v4315
      %v4317 = vmul.f32 %v4260, 1.442695
      %v4318 = vpow.pop %v4317
      %v4319 = vmul.f32 %v4261, 1.442695
      %v4320 = vpow.pop %v4319
      %v4321 = vmul.f32 %v4262, 1.442695
      %v4322 = vpow.pop %v4321
      %v4323 = vmul.f32 %v4263, 1.442695
      %v4324 = vpow.pop %v4323
      %v4325 = vmul.f32 %v4264, 1.442695
      %v4326 = vpow.pop %v4325
      %v4327 = vmul.f32 %v4265, 1.442695
      %v4328 = vpow.pop %v4327
      %v4329 = vmul.f32 %v4266, 1.442695
      %v4330 = vpow.pop %v4329
      %v4331 = vadd.f32 %v4268, 1.0
      %v4332 = vadd.f32 %v4270, 1.0
      %v4333 = vadd.f32 %v4272, 1.0
      %v4334 = vadd.f32 %v4274, 1.0
      %v4335 = vadd.f32 %v4276, 1.0
      %v4336 = vadd.f32 %v4278, 1.0
      %v4337 = vadd.f32 %v4280, 1.0
      %v4338 = vadd.f32 %v4282, 1.0
      %v4339 = vadd.f32 %v4284, 1.0
      %v4340 = vadd.f32 %v4286, 1.0
      %v4341 = vadd.f32 %v4288, 1.0
      %v4342 = vadd.f32 %v4290, 1.0
      %v4343 = vadd.f32 %v4292, 1.0
      %v4344 = vadd.f32 %v4294, 1.0
      %v4345 = vadd.f32 %v4296, 1.0
      %v4346 = vadd.f32 %v4298, 1.0
      %v4347 = vadd.f32 %v4300, 1.0
      %v4348 = vadd.f32 %v4302, 1.0
      %v4349 = vadd.f32 %v4304, 1.0
      %v4350 = vadd.f32 %v4306, 1.0
      %v4351 = vadd.f32 %v4308, 1.0
      %v4352 = vadd.f32 %v4310, 1.0
      %v4353 = vadd.f32 %v4312, 1.0
      %v4354 = vadd.f32 %v4314, 1.0
      %v4355 = vadd.f32 %v4316, 1.0
      %v4356 = vadd.f32 %v4318, 1.0
      %v4357 = vadd.f32 %v4320, 1.0
      %v4358 = vadd.f32 %v4322, 1.0
      %v4359 = vadd.f32 %v4324, 1.0
      %v4360 = vadd.f32 %v4326, 1.0
      %v4361 = vadd.f32 %v4328, 1.0
      %v4362 = vadd.f32 %v4330, 1.0
      %v4363 = vrcp.pop %v4331
      %v4364 = vmul.f32 1.0, %v4363
      %v4365 = vrcp.pop %v4332
      %v4366 = vmul.f32 1.0, %v4365
      %v4367 = vrcp.pop %v4333
      %v4368 = vmul.f32 1.0, %v4367
      %v4369 = vrcp.pop %v4334
      %v4370 = vmul.f32 1.0, %v4369
      %v4371 = vrcp.pop %v4335
      %v4372 = vmul.f32 1.0, %v4371
      %v4373 = vrcp.pop %v4336
      %v4374 = vmul.f32 1.0, %v4373
      %v4375 = vrcp.pop %v4337
      %v4376 = vmul.f32 1.0, %v4375
      %v4377 = vrcp.pop %v4338
      %v4378 = vmul.f32 1.0, %v4377
      %v4379 = vrcp.pop %v4339
      %v4380 = vmul.f32 1.0, %v4379
      %v4381 = vrcp.pop %v4340
      %v4382 = vmul.f32 1.0, %v4381
      %v4383 = vrcp.pop %v4341
      %v4384 = vmul.f32 1.0, %v4383
      %v4385 = vrcp.pop %v4342
      %v4386 = vmul.f32 1.0, %v4385
      %v4387 = vrcp.pop %v4343
      %v4388 = vmul.f32 1.0, %v4387
      %v4389 = vrcp.pop %v4344
      %v4390 = vmul.f32 1.0, %v4389
      %v4391 = vrcp.pop %v4345
      %v4392 = vmul.f32 1.0, %v4391
      %v4393 = vrcp.pop %v4346
      %v4394 = vmul.f32 1.0, %v4393
      %v4395 = vrcp.pop %v4347
      %v4396 = vmul.f32 1.0, %v4395
      %v4397 = vrcp.pop %v4348
      %v4398 = vmul.f32 1.0, %v4397
      %v4399 = vrcp.pop %v4349
      %v4400 = vmul.f32 1.0, %v4399
      %v4401 = vrcp.pop %v4350
      %v4402 = vmul.f32 1.0, %v4401
      %v4403 = vrcp.pop %v4351
      %v4404 = vmul.f32 1.0, %v4403
      %v4405 = vrcp.pop %v4352
      %v4406 = vmul.f32 1.0, %v4405
      %v4407 = vrcp.pop %v4353
      %v4408 = vmul.f32 1.0, %v4407
      %v4409 = vrcp.pop %v4354
      %v4410 = vmul.f32 1.0, %v4409
      %v4411 = vrcp.pop %v4355
      %v4412 = vmul.f32 1.0, %v4411
      %v4413 = vrcp.pop %v4356
      %v4414 = vmul.f32 1.0, %v4413
      %v4415 = vrcp.pop %v4357
      %v4416 = vmul.f32 1.0, %v4415
      %v4417 = vrcp.pop %v4358
      %v4418 = vmul.f32 1.0, %v4417
      %v4419 = vrcp.pop %v4359
      %v4420 = vmul.f32 1.0, %v4419
      %v4421 = vrcp.pop %v4360
      %v4422 = vmul.f32 1.0, %v4421
      %v4423 = vrcp.pop %v4361
      %v4424 = vmul.f32 1.0, %v4423
      %v4425 = vrcp.pop %v4362
      %v4426 = vmul.f32 1.0, %v4425
      %v4427 = vmul.f32 %v3389, %v4364
      %v4428 = vmul.f32 %v3392, %v4366
      %v4429 = vmul.f32 %v3397, %v4368
      %v4430 = vmul.f32 %v3400, %v4370
      %v4431 = vmul.f32 %v3405, %v4372
      %v4432 = vmul.f32 %v3408, %v4374
      %v4433 = vmul.f32 %v3413, %v4376
      %v4434 = vmul.f32 %v3416, %v4378
      %v4435 = vmul.f32 %v3421, %v4380
      %v4436 = vmul.f32 %v3424, %v4382
      %v4437 = vmul.f32 %v3429, %v4384
      %v4438 = vmul.f32 %v3432, %v4386
      %v4439 = vmul.f32 %v3437, %v4388
      %v4440 = vmul.f32 %v3440, %v4390
      %v4441 = vmul.f32 %v3445, %v4392
      %v4442 = vmul.f32 %v3448, %v4394
      %v4443 = vmul.f32 %v3453, %v4396
      %v4444 = vmul.f32 %v3456, %v4398
      %v4445 = vmul.f32 %v3461, %v4400
      %v4446 = vmul.f32 %v3464, %v4402
      %v4447 = vmul.f32 %v3469, %v4404
      %v4448 = vmul.f32 %v3472, %v4406
      %v4449 = vmul.f32 %v3477, %v4408
      %v4450 = vmul.f32 %v3480, %v4410
      %v4451 = vmul.f32 %v3485, %v4412
      %v4452 = vmul.f32 %v3488, %v4414
      %v4453 = vmul.f32 %v3493, %v4416
      %v4454 = vmul.f32 %v3496, %v4418
      %v4455 = vmul.f32 %v3501, %v4420
      %v4456 = vmul.f32 %v3504, %v4422
      %v4457 = vmul.f32 %v3509, %v4424
      %v4458 = vmul.f32 %v3512, %v4426
      %v4459 = vadd.f32 %v309, %v4427
      %v4460 = vadd.f32 %v310, %v4428
      %v4461 = vadd.f32 %v311, %v4429
      %v4462 = vadd.f32 %v312, %v4430
      %v4463 = vadd.f32 %v313, %v4431
      %v4464 = vadd.f32 %v314, %v4432
      %v4465 = vadd.f32 %v315, %v4433
      %v4466 = vadd.f32 %v316, %v4434
      %v4467 = vadd.f32 %v317, %v4435
      %v4468 = vadd.f32 %v318, %v4436
      %v4469 = vadd.f32 %v319, %v4437
      %v4470 = vadd.f32 %v320, %v4438
      %v4471 = vadd.f32 %v321, %v4439
      %v4472 = vadd.f32 %v322, %v4440
      %v4473 = vadd.f32 %v323, %v4441
      %v4474 = vadd.f32 %v324, %v4442
      %v4475 = vadd.f32 %v325, %v4443
      %v4476 = vadd.f32 %v326, %v4444
      %v4477 = vadd.f32 %v327, %v4445
      %v4478 = vadd.f32 %v328, %v4446
      %v4479 = vadd.f32 %v329, %v4447
      %v4480 = vadd.f32 %v330, %v4448
      %v4481 = vadd.f32 %v331, %v4449
      %v4482 = vadd.f32 %v332, %v4450
      %v4483 = vadd.f32 %v333, %v4451
      %v4484 = vadd.f32 %v334, %v4452
      %v4485 = vadd.f32 %v335, %v4453
      %v4486 = vadd.f32 %v336, %v4454
      %v4487 = vadd.f32 %v337, %v4455
      %v4488 = vadd.f32 %v338, %v4456
      %v4489 = vadd.f32 %v339, %v4457
      %v4490 = vadd.f32 %v340, %v4458
      %s4491 = scalar_lea.vmem %s4, 4
      %v4492 = vld [vmem:[%s4491] sm:$0xf]
      %s4493 = scalar_lea.vmem %s5, 2
      %v4494 = vld [vmem:[%s4493] sm:$0x3]
      %4495 = vst.msk [vmem:[%s343 + $0x1] sm:$0xff] %vm253, %v4459
      %4496 = vst.msk [vmem:[%s343 + $0x9] sm:$0xff] %vm253, %v4460
      %4497 = vst.msk [vmem:[%s343 + $0x19] sm:$0xff] %vm253, %v4461
      %4498 = vst.msk [vmem:[%s343 + $0x21] sm:$0xff] %vm253, %v4462
      %4499 = vst.msk [vmem:[%s343 + $0x31] sm:$0xff] %vm253, %v4463
      %4500 = vst.msk [vmem:[%s343 + $0x39] sm:$0xff] %vm253, %v4464
      %4501 = vst.msk [vmem:[%s343 + $0x49] sm:$0xff] %vm253, %v4465
      %4502 = vst.msk [vmem:[%s343 + $0x51] sm:$0xff] %vm253, %v4466
      %4503 = vst.msk [vmem:[%s343 + $0x61] sm:$0xff] %vm253, %v4467
      %4504 = vst.msk [vmem:[%s343 + $0x69] sm:$0xff] %vm253, %v4468
      %4505 = vst.msk [vmem:[%s343 + $0x79] sm:$0xff] %vm253, %v4469
      %4506 = vst.msk [vmem:[%s343 + $0x81] sm:$0xff] %vm253, %v4470
      %4507 = vst.msk [vmem:[%s343 + $0x91] sm:$0xff] %vm253, %v4471
      %4508 = vst.msk [vmem:[%s343 + $0x99] sm:$0xff] %vm253, %v4472
      %4509 = vst.msk [vmem:[%s343 + $0xa9] sm:$0xff] %vm253, %v4473
      %4510 = vst.msk [vmem:[%s343 + $0xb1] sm:$0xff] %vm253, %v4474
      %4511 = vst.msk [vmem:[%s343 + $0xc1] sm:$0xff] %vm253, %v4475
      %4512 = vst.msk [vmem:[%s343 + $0xc9] sm:$0xff] %vm253, %v4476
      %4513 = vst.msk [vmem:[%s343 + $0xd9] sm:$0xff] %vm253, %v4477
      %4514 = vst.msk [vmem:[%s343 + $0xe1] sm:$0xff] %vm253, %v4478
      %4515 = vst.msk [vmem:[%s343 + $0xf1] sm:$0xff] %vm253, %v4479
      %4516 = vst.msk [vmem:[%s343 + $0xf9] sm:$0xff] %vm253, %v4480
      %4517 = vst.msk [vmem:[%s343 + $0x109] sm:$0xff] %vm253, %v4481
      %4518 = vst.msk [vmem:[%s343 + $0x111] sm:$0xff] %vm253, %v4482
      %4519 = vst.msk [vmem:[%s343 + $0x121] sm:$0xff] %vm253, %v4483
      %4520 = vst.msk [vmem:[%s343 + $0x129] sm:$0xff] %vm253, %v4484
      %4521 = vst.msk [vmem:[%s343 + $0x139] sm:$0xff] %vm253, %v4485
      %4522 = vst.msk [vmem:[%s343 + $0x141] sm:$0xff] %vm253, %v4486
      %4523 = vst.msk [vmem:[%s343 + $0x151] sm:$0xff] %vm253, %v4487
      %4524 = vst.msk [vmem:[%s343 + $0x159] sm:$0xff] %vm253, %v4488
      %4525 = vst.msk [vmem:[%s343 + $0x169] sm:$0xff] %vm253, %v4489
      %4526 = vst.msk [vmem:[%s343 + $0x171] sm:$0xff] %vm253, %v4490
      %s4527 = scalar_lea.vmem %s1, 144
      %v4528 = vld [vmem:[%s4527] sm:$0xf]
      %v4529 = vld [vmem:[%s4527 + $0x4] sm:$0xf]
      %v4530 = vld [vmem:[%s4527 + $0x8] sm:$0xf]
      %v4531 = vld [vmem:[%s4527 + $0xc] sm:$0xf]
      %v4532 = vld [vmem:[%s4527 + $0x10] sm:$0xf]
      %v4533 = vld [vmem:[%s4527 + $0x14] sm:$0xf]
      %v4534 = vld [vmem:[%s4527 + $0x18] sm:$0xf]
      %v4535 = vld [vmem:[%s4527 + $0x1c] sm:$0xf]
      %v4536 = vld [vmem:[%s4527 + $0x20] sm:$0xf]
      %v4537 = vld [vmem:[%s4527 + $0x24] sm:$0xf]
      %v4538 = vld [vmem:[%s4527 + $0x28] sm:$0xf]
      %v4539 = vld [vmem:[%s4527 + $0x2c] sm:$0xf]
      %v4540 = vld [vmem:[%s4527 + $0x30] sm:$0xf]
      %v4541 = vld [vmem:[%s4527 + $0x34] sm:$0xf]
      %v4542 = vld [vmem:[%s4527 + $0x38] sm:$0xf]
      %v4543 = vld [vmem:[%s4527 + $0x3c] sm:$0xf]
      %v4544 = vld [vmem:[%s4527 + $0x40] sm:$0xf]
      %v4545 = vld [vmem:[%s4527 + $0x44] sm:$0xf]
      %v4546 = vld [vmem:[#allocation2] sm:$0xff]
      %v4547 = vld [vmem:[#allocation2 + $0x8] sm:$0xff]
      %v4548 = vld [vmem:[#allocation2 + $0x10] sm:$0x3]
      %v4549 = vld [vmem:[#allocation2 + $0x18] sm:$0xff]
      %v4550 = vld [vmem:[#allocation2 + $0x20] sm:$0xff]
      %v4551 = vld [vmem:[#allocation2 + $0x28] sm:$0x3]
      %v4552 = vld [vmem:[#allocation2 + $0x30] sm:$0xff]
      %v4553 = vld [vmem:[#allocation2 + $0x38] sm:$0xff]
      %v4554 = vld [vmem:[#allocation2 + $0x40] sm:$0x3]
      %v4555 = vld [vmem:[#allocation2 + $0x48] sm:$0xff]
      %v4556 = vld [vmem:[#allocation2 + $0x50] sm:$0xff]
      %v4557 = vld [vmem:[#allocation2 + $0x58] sm:$0x3]
      %v4558 = vld [vmem:[#allocation2 + $0x60] sm:$0xff]
      %v4559 = vld [vmem:[#allocation2 + $0x68] sm:$0xff]
      %v4560 = vld [vmem:[#allocation2 + $0x70] sm:$0x3]
      %v4561 = vld [vmem:[#allocation2 + $0x78] sm:$0xff]
      %v4562 = vld [vmem:[#allocation2 + $0x80] sm:$0xff]
      %v4563 = vld [vmem:[#allocation2 + $0x88] sm:$0x3]
      %v4564 = vld [vmem:[#allocation2 + $0x90] sm:$0xff]
      %v4565 = vld [vmem:[#allocation2 + $0x98] sm:$0xff]
      %v4566 = vld [vmem:[#allocation2 + $0xa0] sm:$0x3]
      %v4567 = vld [vmem:[#allocation2 + $0xa8] sm:$0xff]
      %v4568 = vld [vmem:[#allocation2 + $0xb0] sm:$0xff]
      %v4569 = vld [vmem:[#allocation2 + $0xb8] sm:$0x3]
      %v4570 = vld [vmem:[#allocation2 + $0xc0] sm:$0xff]
      %v4571 = vld [vmem:[#allocation2 + $0xc8] sm:$0xff]
      %v4572 = vld [vmem:[#allocation2 + $0xd0] sm:$0x3]
      %v4573 = vld [vmem:[#allocation2 + $0xd8] sm:$0xff]
      %v4574 = vld [vmem:[#allocation2 + $0xe0] sm:$0xff]
      %v4575 = vld [vmem:[#allocation2 + $0xe8] sm:$0x3]
      %v4576 = vld [vmem:[#allocation2 + $0xf0] sm:$0xff]
      %v4577 = vld [vmem:[#allocation2 + $0xf8] sm:$0xff]
      %v4578 = vld [vmem:[#allocation2 + $0x100] sm:$0x3]
      %v4579 = vld [vmem:[#allocation2 + $0x108] sm:$0xff]
      %v4580 = vld [vmem:[#allocation2 + $0x110] sm:$0xff]
      %v4581 = vld [vmem:[#allocation2 + $0x118] sm:$0x3]
      %v4582 = vld [vmem:[#allocation2 + $0x120] sm:$0xff]
      %v4583 = vld [vmem:[#allocation2 + $0x128] sm:$0xff]
      %v4584 = vld [vmem:[#allocation2 + $0x130] sm:$0x3]
      %v4585 = vld [vmem:[#allocation2 + $0x138] sm:$0xff]
      %v4586 = vld [vmem:[#allocation2 + $0x140] sm:$0xff]
      %v4587 = vld [vmem:[#allocation2 + $0x148] sm:$0x3]
      %v4588 = vld [vmem:[#allocation2 + $0x150] sm:$0xff]
      %v4589 = vld [vmem:[#allocation2 + $0x158] sm:$0xff]
      %v4590 = vld [vmem:[#allocation2 + $0x160] sm:$0x3]
      %v4591 = vld [vmem:[#allocation2 + $0x168] sm:$0xff]
      %v4592 = vld [vmem:[#allocation2 + $0x170] sm:$0xff]
      %v4593 = vld [vmem:[#allocation2 + $0x178] sm:$0x3]
      %v4594 = vld [vmem:[#allocation2 + $0x180] sm:$0xff]
      %v4595 = vld [vmem:[#allocation2 + $0x188] sm:$0xff]
      %v4596 = vld [vmem:[#allocation2 + $0x190] sm:$0x3]
      %v4597 = vld [vmem:[#allocation2 + $0x198] sm:$0xff]
      %v4598 = vld [vmem:[#allocation2 + $0x1a0] sm:$0xff]
      %v4599 = vld [vmem:[#allocation2 + $0x1a8] sm:$0x3]
      %v4648 = vrot.slane %v4546, 1
      %v4649 = vrot.slane %v4547, 1
      %v4650 = vsel %vm496, %v4648, %v4649
      %v4651 = vrot.slane %v4548, 1
      %v4652 = vsel %vm496, %v4649, %v4651
      %v4653 = vrot.slane %v4549, 1
      %v4654 = vrot.slane %v4550, 1
      %v4655 = vsel %vm496, %v4653, %v4654
      %v4656 = vrot.slane %v4551, 1
      %v4657 = vsel %vm496, %v4654, %v4656
      %v4658 = vrot.slane %v4552, 1
      %v4659 = vrot.slane %v4553, 1
      %v4660 = vsel %vm496, %v4658, %v4659
      %v4661 = vrot.slane %v4554, 1
      %v4662 = vsel %vm496, %v4659, %v4661
      %v4663 = vrot.slane %v4555, 1
      %v4664 = vrot.slane %v4556, 1
      %v4665 = vsel %vm496, %v4663, %v4664
      %v4666 = vrot.slane %v4557, 1
      %v4667 = vsel %vm496, %v4664, %v4666
      %v4668 = vrot.slane %v4558, 1
      %v4669 = vrot.slane %v4559, 1
      %v4670 = vsel %vm496, %v4668, %v4669
      %v4671 = vrot.slane %v4560, 1
      %v4672 = vsel %vm496, %v4669, %v4671
      %v4673 = vrot.slane %v4561, 1
      %v4674 = vrot.slane %v4562, 1
      %v4675 = vsel %vm496, %v4673, %v4674
      %v4676 = vrot.slane %v4563, 1
      %v4677 = vsel %vm496, %v4674, %v4676
      %v4678 = vrot.slane %v4564, 1
      %v4679 = vrot.slane %v4565, 1
      %v4680 = vsel %vm496, %v4678, %v4679
      %v4681 = vrot.slane %v4566, 1
      %v4682 = vsel %vm496, %v4679, %v4681
      %v4683 = vrot.slane %v4567, 1
      %v4684 = vrot.slane %v4568, 1
      %v4685 = vsel %vm496, %v4683, %v4684
      %v4686 = vrot.slane %v4569, 1
      %v4687 = vsel %vm496, %v4684, %v4686
      %v4688 = vrot.slane %v4570, 1
      %v4689 = vrot.slane %v4571, 1
      %v4690 = vsel %vm496, %v4688, %v4689
      %v4691 = vrot.slane %v4572, 1
      %v4692 = vsel %vm496, %v4689, %v4691
      %v4693 = vrot.slane %v4573, 1
      %v4694 = vrot.slane %v4574, 1
      %v4695 = vsel %vm496, %v4693, %v4694
      %v4696 = vrot.slane %v4575, 1
      %v4697 = vsel %vm496, %v4694, %v4696
      %v4698 = vrot.slane %v4576, 1
      %v4699 = vrot.slane %v4577, 1
      %v4700 = vsel %vm496, %v4698, %v4699
      %v4701 = vrot.slane %v4578, 1
      %v4702 = vsel %vm496, %v4699, %v4701
      %v4703 = vrot.slane %v4579, 1
      %v4704 = vrot.slane %v4580, 1
      %v4705 = vsel %vm496, %v4703, %v4704
      %v4706 = vrot.slane %v4581, 1
      %v4707 = vsel %vm496, %v4704, %v4706
      %v4708 = vrot.slane %v4582, 1
      %v4709 = vrot.slane %v4583, 1
      %v4710 = vsel %vm496, %v4708, %v4709
      %v4711 = vrot.slane %v4584, 1
      %v4712 = vsel %vm496, %v4709, %v4711
      %v4713 = vrot.slane %v4585, 1
      %v4714 = vrot.slane %v4586, 1
      %v4715 = vsel %vm496, %v4713, %v4714
      %v4716 = vrot.slane %v4587, 1
      %v4717 = vsel %vm496, %v4714, %v4716
      %v4718 = vrot.slane %v4588, 1
      %v4719 = vrot.slane %v4589, 1
      %v4720 = vsel %vm496, %v4718, %v4719
      %v4721 = vrot.slane %v4590, 1
      %v4722 = vsel %vm496, %v4719, %v4721
      %v4723 = vrot.slane %v4591, 1
      %v4724 = vrot.slane %v4592, 1
      %v4725 = vsel %vm496, %v4723, %v4724
      %v4726 = vrot.slane %v4593, 1
      %v4727 = vsel %vm496, %v4724, %v4726
      %v4728 = vrot.slane %v4546, 2
      %v4729 = vrot.slane %v4547, 2
      %v4730 = vsel %vm577, %v4728, %v4729
      %v4731 = vrot.slane %v4548, 2
      %v4732 = vsel %vm577, %v4729, %v4731
      %v4733 = vrot.slane %v4549, 2
      %v4734 = vrot.slane %v4550, 2
      %v4735 = vsel %vm577, %v4733, %v4734
      %v4736 = vrot.slane %v4551, 2
      %v4737 = vsel %vm577, %v4734, %v4736
      %v4738 = vrot.slane %v4552, 2
      %v4739 = vrot.slane %v4553, 2
      %v4740 = vsel %vm577, %v4738, %v4739
      %v4741 = vrot.slane %v4554, 2
      %v4742 = vsel %vm577, %v4739, %v4741
      %v4743 = vrot.slane %v4555, 2
      %v4744 = vrot.slane %v4556, 2
      %v4745 = vsel %vm577, %v4743, %v4744
      %v4746 = vrot.slane %v4557, 2
      %v4747 = vsel %vm577, %v4744, %v4746
      %v4748 = vrot.slane %v4558, 2
      %v4749 = vrot.slane %v4559, 2
      %v4750 = vsel %vm577, %v4748, %v4749
      %v4751 = vrot.slane %v4560, 2
      %v4752 = vsel %vm577, %v4749, %v4751
      %v4753 = vrot.slane %v4561, 2
      %v4754 = vrot.slane %v4562, 2
      %v4755 = vsel %vm577, %v4753, %v4754
      %v4756 = vrot.slane %v4563, 2
      %v4757 = vsel %vm577, %v4754, %v4756
      %v4758 = vrot.slane %v4564, 2
      %v4759 = vrot.slane %v4565, 2
      %v4760 = vsel %vm577, %v4758, %v4759
      %v4761 = vrot.slane %v4566, 2
      %v4762 = vsel %vm577, %v4759, %v4761
      %v4763 = vrot.slane %v4567, 2
      %v4764 = vrot.slane %v4568, 2
      %v4765 = vsel %vm577, %v4763, %v4764
      %v4766 = vrot.slane %v4569, 2
      %v4767 = vsel %vm577, %v4764, %v4766
      %v4768 = vrot.slane %v4570, 2
      %v4769 = vrot.slane %v4571, 2
      %v4770 = vsel %vm577, %v4768, %v4769
      %v4771 = vrot.slane %v4572, 2
      %v4772 = vsel %vm577, %v4769, %v4771
      %v4773 = vrot.slane %v4573, 2
      %v4774 = vrot.slane %v4574, 2
      %v4775 = vsel %vm577, %v4773, %v4774
      %v4776 = vrot.slane %v4575, 2
      %v4777 = vsel %vm577, %v4774, %v4776
      %v4778 = vrot.slane %v4576, 2
      %v4779 = vrot.slane %v4577, 2
      %v4780 = vsel %vm577, %v4778, %v4779
      %v4781 = vrot.slane %v4578, 2
      %v4782 = vsel %vm577, %v4779, %v4781
      %v4783 = vrot.slane %v4579, 2
      %v4784 = vrot.slane %v4580, 2
      %v4785 = vsel %vm577, %v4783, %v4784
      %v4786 = vrot.slane %v4581, 2
      %v4787 = vsel %vm577, %v4784, %v4786
      %v4788 = vrot.slane %v4582, 2
      %v4789 = vrot.slane %v4583, 2
      %v4790 = vsel %vm577, %v4788, %v4789
      %v4791 = vrot.slane %v4584, 2
      %v4792 = vsel %vm577, %v4789, %v4791
      %v4793 = vrot.slane %v4585, 2
      %v4794 = vrot.slane %v4586, 2
      %v4795 = vsel %vm577, %v4793, %v4794
      %v4796 = vrot.slane %v4587, 2
      %v4797 = vsel %vm577, %v4794, %v4796
      %v4798 = vrot.slane %v4588, 2
      %v4799 = vrot.slane %v4589, 2
      %v4800 = vsel %vm577, %v4798, %v4799
      %v4801 = vrot.slane %v4590, 2
      %v4802 = vsel %vm577, %v4799, %v4801
      %v4803 = vrot.slane %v4591, 2
      %v4804 = vrot.slane %v4592, 2
      %v4805 = vsel %vm577, %v4803, %v4804
      %v4806 = vrot.slane %v4593, 2
      %v4807 = vsel %vm577, %v4804, %v4806
      %v4811 = vrot.slane %v4594, 1
      %v4812 = vrot.slane %v4595, 1
      %v4813 = vsel %vm496, %v4811, %v4812
      %v4814 = vrot.slane %v4596, 1
      %v4815 = vsel %vm496, %v4812, %v4814
      %v4816 = vrot.slane %v4594, 2
      %v4817 = vrot.slane %v4595, 2
      %v4818 = vsel %vm577, %v4816, %v4817
      %v4819 = vrot.slane %v4596, 2
      %v4820 = vsel %vm577, %v4817, %v4819
      %v4824 = vrot.slane %v4597, 1
      %v4825 = vrot.slane %v4598, 1
      %v4826 = vsel %vm496, %v4824, %v4825
      %v4827 = vrot.slane %v4599, 1
      %v4828 = vsel %vm496, %v4825, %v4827
      %v4829 = vrot.slane %v4597, 2
      %v4830 = vrot.slane %v4598, 2
      %v4831 = vsel %vm577, %v4829, %v4830
      %v4832 = vrot.slane %v4599, 2
      %v4833 = vsel %vm577, %v4830, %v4832
      %4866 = vrot.lane.b32.xlu0 %v4650, 16
      %v4867 = vpop.permute.xlu0 %4866
      %4868 = vrot.lane.b32.xlu0 %v4652, 16
      %v4869 = vpop.permute.xlu0 %4868
      %4870 = vrot.lane.b32.xlu0 %v4655, 16
      %v4871 = vpop.permute.xlu0 %4870
      %4872 = vrot.lane.b32.xlu0 %v4657, 16
      %v4873 = vpop.permute.xlu0 %4872
      %4874 = vrot.lane.b32.xlu0 %v4660, 16
      %v4875 = vpop.permute.xlu0 %4874
      %4876 = vrot.lane.b32.xlu0 %v4662, 16
      %v4877 = vpop.permute.xlu0 %4876
      %4878 = vrot.lane.b32.xlu0 %v4665, 16
      %v4879 = vpop.permute.xlu0 %4878
      %4880 = vrot.lane.b32.xlu0 %v4667, 16
      %v4881 = vpop.permute.xlu0 %4880
      %4882 = vrot.lane.b32.xlu0 %v4670, 16
      %v4883 = vpop.permute.xlu0 %4882
      %4884 = vrot.lane.b32.xlu0 %v4672, 16
      %v4885 = vpop.permute.xlu0 %4884
      %4886 = vrot.lane.b32.xlu0 %v4675, 16
      %v4887 = vpop.permute.xlu0 %4886
      %4888 = vrot.lane.b32.xlu0 %v4677, 16
      %v4889 = vpop.permute.xlu0 %4888
      %4890 = vrot.lane.b32.xlu0 %v4680, 16
      %v4891 = vpop.permute.xlu0 %4890
      %4892 = vrot.lane.b32.xlu0 %v4682, 16
      %v4893 = vpop.permute.xlu0 %4892
      %4894 = vrot.lane.b32.xlu0 %v4685, 16
      %v4895 = vpop.permute.xlu0 %4894
      %4896 = vrot.lane.b32.xlu0 %v4687, 16
      %v4897 = vpop.permute.xlu0 %4896
      %4898 = vrot.lane.b32.xlu0 %v4690, 16
      %v4899 = vpop.permute.xlu0 %4898
      %4900 = vrot.lane.b32.xlu0 %v4692, 16
      %v4901 = vpop.permute.xlu0 %4900
      %4902 = vrot.lane.b32.xlu0 %v4695, 16
      %v4903 = vpop.permute.xlu0 %4902
      %4904 = vrot.lane.b32.xlu0 %v4697, 16
      %v4905 = vpop.permute.xlu0 %4904
      %4906 = vrot.lane.b32.xlu0 %v4700, 16
      %v4907 = vpop.permute.xlu0 %4906
      %4908 = vrot.lane.b32.xlu0 %v4702, 16
      %v4909 = vpop.permute.xlu0 %4908
      %4910 = vrot.lane.b32.xlu0 %v4705, 16
      %v4911 = vpop.permute.xlu0 %4910
      %4912 = vrot.lane.b32.xlu0 %v4707, 16
      %v4913 = vpop.permute.xlu0 %4912
      %4914 = vrot.lane.b32.xlu0 %v4710, 16
      %v4915 = vpop.permute.xlu0 %4914
      %4916 = vrot.lane.b32.xlu0 %v4712, 16
      %v4917 = vpop.permute.xlu0 %4916
      %4918 = vrot.lane.b32.xlu0 %v4715, 16
      %v4919 = vpop.permute.xlu0 %4918
      %4920 = vrot.lane.b32.xlu0 %v4717, 16
      %v4921 = vpop.permute.xlu0 %4920
      %4922 = vrot.lane.b32.xlu0 %v4720, 16
      %v4923 = vpop.permute.xlu0 %4922
      %4924 = vrot.lane.b32.xlu0 %v4722, 16
      %v4925 = vpop.permute.xlu0 %4924
      %4926 = vrot.lane.b32.xlu0 %v4725, 16
      %v4927 = vpop.permute.xlu0 %4926
      %4928 = vrot.lane.b32.xlu0 %v4727, 16
      %v4929 = vpop.permute.xlu0 %4928
      %4962 = vrot.lane.b32.xlu0 %v4730, 32
      %v4963 = vpop.permute.xlu0 %4962
      %4964 = vrot.lane.b32.xlu0 %v4732, 32
      %v4965 = vpop.permute.xlu0 %4964
      %4966 = vrot.lane.b32.xlu0 %v4735, 32
      %v4967 = vpop.permute.xlu0 %4966
      %4968 = vrot.lane.b32.xlu0 %v4737, 32
      %v4969 = vpop.permute.xlu0 %4968
      %4970 = vrot.lane.b32.xlu0 %v4740, 32
      %v4971 = vpop.permute.xlu0 %4970
      %4972 = vrot.lane.b32.xlu0 %v4742, 32
      %v4973 = vpop.permute.xlu0 %4972
      %4974 = vrot.lane.b32.xlu0 %v4745, 32
      %v4975 = vpop.permute.xlu0 %4974
      %4976 = vrot.lane.b32.xlu0 %v4747, 32
      %v4977 = vpop.permute.xlu0 %4976
      %4978 = vrot.lane.b32.xlu0 %v4750, 32
      %v4979 = vpop.permute.xlu0 %4978
      %4980 = vrot.lane.b32.xlu0 %v4752, 32
      %v4981 = vpop.permute.xlu0 %4980
      %4982 = vrot.lane.b32.xlu0 %v4755, 32
      %v4983 = vpop.permute.xlu0 %4982
      %4984 = vrot.lane.b32.xlu0 %v4757, 32
      %v4985 = vpop.permute.xlu0 %4984
      %4986 = vrot.lane.b32.xlu0 %v4760, 32
      %v4987 = vpop.permute.xlu0 %4986
      %4988 = vrot.lane.b32.xlu0 %v4762, 32
      %v4989 = vpop.permute.xlu0 %4988
      %4990 = vrot.lane.b32.xlu0 %v4765, 32
      %v4991 = vpop.permute.xlu0 %4990
      %4992 = vrot.lane.b32.xlu0 %v4767, 32
      %v4993 = vpop.permute.xlu0 %4992
      %4994 = vrot.lane.b32.xlu0 %v4770, 32
      %v4995 = vpop.permute.xlu0 %4994
      %4996 = vrot.lane.b32.xlu0 %v4772, 32
      %v4997 = vpop.permute.xlu0 %4996
      %4998 = vrot.lane.b32.xlu0 %v4775, 32
      %v4999 = vpop.permute.xlu0 %4998
      %5000 = vrot.lane.b32.xlu0 %v4777, 32
      %v5001 = vpop.permute.xlu0 %5000
      %5002 = vrot.lane.b32.xlu0 %v4780, 32
      %v5003 = vpop.permute.xlu0 %5002
      %5004 = vrot.lane.b32.xlu0 %v4782, 32
      %v5005 = vpop.permute.xlu0 %5004
      %5006 = vrot.lane.b32.xlu0 %v4785, 32
      %v5007 = vpop.permute.xlu0 %5006
      %5008 = vrot.lane.b32.xlu0 %v4787, 32
      %v5009 = vpop.permute.xlu0 %5008
      %5010 = vrot.lane.b32.xlu0 %v4790, 32
      %v5011 = vpop.permute.xlu0 %5010
      %5012 = vrot.lane.b32.xlu0 %v4792, 32
      %v5013 = vpop.permute.xlu0 %5012
      %5014 = vrot.lane.b32.xlu0 %v4795, 32
      %v5015 = vpop.permute.xlu0 %5014
      %5016 = vrot.lane.b32.xlu0 %v4797, 32
      %v5017 = vpop.permute.xlu0 %5016
      %5018 = vrot.lane.b32.xlu0 %v4800, 32
      %v5019 = vpop.permute.xlu0 %5018
      %5020 = vrot.lane.b32.xlu0 %v4802, 32
      %v5021 = vpop.permute.xlu0 %5020
      %5022 = vrot.lane.b32.xlu0 %v4805, 32
      %v5023 = vpop.permute.xlu0 %5022
      %5024 = vrot.lane.b32.xlu0 %v4807, 32
      %v5025 = vpop.permute.xlu0 %5024
      %5058 = vrot.lane.b32.xlu0 %v4549, 48
      %v5059 = vpop.permute.xlu0 %5058
      %5060 = vrot.lane.b32.xlu0 %v4550, 48
      %v5061 = vpop.permute.xlu0 %5060
      %5062 = vrot.lane.b32.xlu0 %v4552, 48
      %v5063 = vpop.permute.xlu0 %5062
      %5064 = vrot.lane.b32.xlu0 %v4553, 48
      %v5065 = vpop.permute.xlu0 %5064
      %5066 = vrot.lane.b32.xlu0 %v4555, 48
      %v5067 = vpop.permute.xlu0 %5066
      %5068 = vrot.lane.b32.xlu0 %v4556, 48
      %v5069 = vpop.permute.xlu0 %5068
      %5070 = vrot.lane.b32.xlu0 %v4558, 48
      %v5071 = vpop.permute.xlu0 %5070
      %5072 = vrot.lane.b32.xlu0 %v4559, 48
      %v5073 = vpop.permute.xlu0 %5072
      %5074 = vrot.lane.b32.xlu0 %v4561, 48
      %v5075 = vpop.permute.xlu0 %5074
      %5076 = vrot.lane.b32.xlu0 %v4562, 48
      %v5077 = vpop.permute.xlu0 %5076
      %5078 = vrot.lane.b32.xlu0 %v4564, 48
      %v5079 = vpop.permute.xlu0 %5078
      %5080 = vrot.lane.b32.xlu0 %v4565, 48
      %v5081 = vpop.permute.xlu0 %5080
      %5082 = vrot.lane.b32.xlu0 %v4567, 48
      %v5083 = vpop.permute.xlu0 %5082
      %5084 = vrot.lane.b32.xlu0 %v4568, 48
      %v5085 = vpop.permute.xlu0 %5084
      %5086 = vrot.lane.b32.xlu0 %v4570, 48
      %v5087 = vpop.permute.xlu0 %5086
      %5088 = vrot.lane.b32.xlu0 %v4571, 48
      %v5089 = vpop.permute.xlu0 %5088
      %5090 = vrot.lane.b32.xlu0 %v4573, 48
      %v5091 = vpop.permute.xlu0 %5090
      %5092 = vrot.lane.b32.xlu0 %v4574, 48
      %v5093 = vpop.permute.xlu0 %5092
      %5094 = vrot.lane.b32.xlu0 %v4576, 48
      %v5095 = vpop.permute.xlu0 %5094
      %5096 = vrot.lane.b32.xlu0 %v4577, 48
      %v5097 = vpop.permute.xlu0 %5096
      %5098 = vrot.lane.b32.xlu0 %v4579, 48
      %v5099 = vpop.permute.xlu0 %5098
      %5100 = vrot.lane.b32.xlu0 %v4580, 48
      %v5101 = vpop.permute.xlu0 %5100
      %5102 = vrot.lane.b32.xlu0 %v4582, 48
      %v5103 = vpop.permute.xlu0 %5102
      %5104 = vrot.lane.b32.xlu0 %v4583, 48
      %v5105 = vpop.permute.xlu0 %5104
      %5106 = vrot.lane.b32.xlu0 %v4585, 48
      %v5107 = vpop.permute.xlu0 %5106
      %5108 = vrot.lane.b32.xlu0 %v4586, 48
      %v5109 = vpop.permute.xlu0 %5108
      %5110 = vrot.lane.b32.xlu0 %v4588, 48
      %v5111 = vpop.permute.xlu0 %5110
      %5112 = vrot.lane.b32.xlu0 %v4589, 48
      %v5113 = vpop.permute.xlu0 %5112
      %5114 = vrot.lane.b32.xlu0 %v4591, 48
      %v5115 = vpop.permute.xlu0 %5114
      %5116 = vrot.lane.b32.xlu0 %v4592, 48
      %v5117 = vpop.permute.xlu0 %5116
      %5118 = vrot.lane.b32.xlu0 %v4594, 48
      %v5119 = vpop.permute.xlu0 %5118
      %5120 = vrot.lane.b32.xlu0 %v4595, 48
      %v5121 = vpop.permute.xlu0 %5120
      %5154 = vrot.lane.b32.xlu0 %v4655, 64
      %v5155 = vpop.permute.xlu0 %5154
      %5156 = vrot.lane.b32.xlu0 %v4657, 64
      %v5157 = vpop.permute.xlu0 %5156
      %5158 = vrot.lane.b32.xlu0 %v4660, 64
      %v5159 = vpop.permute.xlu0 %5158
      %5160 = vrot.lane.b32.xlu0 %v4662, 64
      %v5161 = vpop.permute.xlu0 %5160
      %5162 = vrot.lane.b32.xlu0 %v4665, 64
      %v5163 = vpop.permute.xlu0 %5162
      %5164 = vrot.lane.b32.xlu0 %v4667, 64
      %v5165 = vpop.permute.xlu0 %5164
      %5166 = vrot.lane.b32.xlu0 %v4670, 64
      %v5167 = vpop.permute.xlu0 %5166
      %5168 = vrot.lane.b32.xlu0 %v4672, 64
      %v5169 = vpop.permute.xlu0 %5168
      %5170 = vrot.lane.b32.xlu0 %v4675, 64
      %v5171 = vpop.permute.xlu0 %5170
      %5172 = vrot.lane.b32.xlu0 %v4677, 64
      %v5173 = vpop.permute.xlu0 %5172
      %5174 = vrot.lane.b32.xlu0 %v4680, 64
      %v5175 = vpop.permute.xlu0 %5174
      %5176 = vrot.lane.b32.xlu0 %v4682, 64
      %v5177 = vpop.permute.xlu0 %5176
      %5178 = vrot.lane.b32.xlu0 %v4685, 64
      %v5179 = vpop.permute.xlu0 %5178
      %5180 = vrot.lane.b32.xlu0 %v4687, 64
      %v5181 = vpop.permute.xlu0 %5180
      %5182 = vrot.lane.b32.xlu0 %v4690, 64
      %v5183 = vpop.permute.xlu0 %5182
      %5184 = vrot.lane.b32.xlu0 %v4692, 64
      %v5185 = vpop.permute.xlu0 %5184
      %5186 = vrot.lane.b32.xlu0 %v4695, 64
      %v5187 = vpop.permute.xlu0 %5186
      %5188 = vrot.lane.b32.xlu0 %v4697, 64
      %v5189 = vpop.permute.xlu0 %5188
      %5190 = vrot.lane.b32.xlu0 %v4700, 64
      %v5191 = vpop.permute.xlu0 %5190
      %5192 = vrot.lane.b32.xlu0 %v4702, 64
      %v5193 = vpop.permute.xlu0 %5192
      %5194 = vrot.lane.b32.xlu0 %v4705, 64
      %v5195 = vpop.permute.xlu0 %5194
      %5196 = vrot.lane.b32.xlu0 %v4707, 64
      %v5197 = vpop.permute.xlu0 %5196
      %5198 = vrot.lane.b32.xlu0 %v4710, 64
      %v5199 = vpop.permute.xlu0 %5198
      %5200 = vrot.lane.b32.xlu0 %v4712, 64
      %v5201 = vpop.permute.xlu0 %5200
      %5202 = vrot.lane.b32.xlu0 %v4715, 64
      %v5203 = vpop.permute.xlu0 %5202
      %5204 = vrot.lane.b32.xlu0 %v4717, 64
      %v5205 = vpop.permute.xlu0 %5204
      %5206 = vrot.lane.b32.xlu0 %v4720, 64
      %v5207 = vpop.permute.xlu0 %5206
      %5208 = vrot.lane.b32.xlu0 %v4722, 64
      %v5209 = vpop.permute.xlu0 %5208
      %5210 = vrot.lane.b32.xlu0 %v4725, 64
      %v5211 = vpop.permute.xlu0 %5210
      %5212 = vrot.lane.b32.xlu0 %v4727, 64
      %v5213 = vpop.permute.xlu0 %5212
      %5214 = vrot.lane.b32.xlu0 %v4813, 64
      %v5215 = vpop.permute.xlu0 %5214
      %5216 = vrot.lane.b32.xlu0 %v4815, 64
      %v5217 = vpop.permute.xlu0 %5216
      %5250 = vrot.lane.b32.xlu0 %v4735, 80
      %v5251 = vpop.permute.xlu0 %5250
      %5252 = vrot.lane.b32.xlu0 %v4737, 80
      %v5253 = vpop.permute.xlu0 %5252
      %5254 = vrot.lane.b32.xlu0 %v4740, 80
      %v5255 = vpop.permute.xlu0 %5254
      %5256 = vrot.lane.b32.xlu0 %v4742, 80
      %v5257 = vpop.permute.xlu0 %5256
      %5258 = vrot.lane.b32.xlu0 %v4745, 80
      %v5259 = vpop.permute.xlu0 %5258
      %5260 = vrot.lane.b32.xlu0 %v4747, 80
      %v5261 = vpop.permute.xlu0 %5260
      %5262 = vrot.lane.b32.xlu0 %v4750, 80
      %v5263 = vpop.permute.xlu0 %5262
      %5264 = vrot.lane.b32.xlu0 %v4752, 80
      %v5265 = vpop.permute.xlu0 %5264
      %5266 = vrot.lane.b32.xlu0 %v4755, 80
      %v5267 = vpop.permute.xlu0 %5266
      %5268 = vrot.lane.b32.xlu0 %v4757, 80
      %v5269 = vpop.permute.xlu0 %5268
      %5270 = vrot.lane.b32.xlu0 %v4760, 80
      %v5271 = vpop.permute.xlu0 %5270
      %5272 = vrot.lane.b32.xlu0 %v4762, 80
      %v5273 = vpop.permute.xlu0 %5272
      %5274 = vrot.lane.b32.xlu0 %v4765, 80
      %v5275 = vpop.permute.xlu0 %5274
      %5276 = vrot.lane.b32.xlu0 %v4767, 80
      %v5277 = vpop.permute.xlu0 %5276
      %5278 = vrot.lane.b32.xlu0 %v4770, 80
      %v5279 = vpop.permute.xlu0 %5278
      %5280 = vrot.lane.b32.xlu0 %v4772, 80
      %v5281 = vpop.permute.xlu0 %5280
      %5282 = vrot.lane.b32.xlu0 %v4775, 80
      %v5283 = vpop.permute.xlu0 %5282
      %5284 = vrot.lane.b32.xlu0 %v4777, 80
      %v5285 = vpop.permute.xlu0 %5284
      %5286 = vrot.lane.b32.xlu0 %v4780, 80
      %v5287 = vpop.permute.xlu0 %5286
      %5288 = vrot.lane.b32.xlu0 %v4782, 80
      %v5289 = vpop.permute.xlu0 %5288
      %5290 = vrot.lane.b32.xlu0 %v4785, 80
      %v5291 = vpop.permute.xlu0 %5290
      %5292 = vrot.lane.b32.xlu0 %v4787, 80
      %v5293 = vpop.permute.xlu0 %5292
      %5294 = vrot.lane.b32.xlu0 %v4790, 80
      %v5295 = vpop.permute.xlu0 %5294
      %5296 = vrot.lane.b32.xlu0 %v4792, 80
      %v5297 = vpop.permute.xlu0 %5296
      %5298 = vrot.lane.b32.xlu0 %v4795, 80
      %v5299 = vpop.permute.xlu0 %5298
      %5300 = vrot.lane.b32.xlu0 %v4797, 80
      %v5301 = vpop.permute.xlu0 %5300
      %5302 = vrot.lane.b32.xlu0 %v4800, 80
      %v5303 = vpop.permute.xlu0 %5302
      %5304 = vrot.lane.b32.xlu0 %v4802, 80
      %v5305 = vpop.permute.xlu0 %5304
      %5306 = vrot.lane.b32.xlu0 %v4805, 80
      %v5307 = vpop.permute.xlu0 %5306
      %5308 = vrot.lane.b32.xlu0 %v4807, 80
      %v5309 = vpop.permute.xlu0 %5308
      %5310 = vrot.lane.b32.xlu0 %v4818, 80
      %v5311 = vpop.permute.xlu0 %5310
      %5312 = vrot.lane.b32.xlu0 %v4820, 80
      %v5313 = vpop.permute.xlu0 %5312
      %5346 = vrot.lane.b32.xlu0 %v4552, 96
      %v5347 = vpop.permute.xlu0 %5346
      %5348 = vrot.lane.b32.xlu0 %v4553, 96
      %v5349 = vpop.permute.xlu0 %5348
      %5350 = vrot.lane.b32.xlu0 %v4555, 96
      %v5351 = vpop.permute.xlu0 %5350
      %5352 = vrot.lane.b32.xlu0 %v4556, 96
      %v5353 = vpop.permute.xlu0 %5352
      %5354 = vrot.lane.b32.xlu0 %v4558, 96
      %v5355 = vpop.permute.xlu0 %5354
      %5356 = vrot.lane.b32.xlu0 %v4559, 96
      %v5357 = vpop.permute.xlu0 %5356
      %5358 = vrot.lane.b32.xlu0 %v4561, 96
      %v5359 = vpop.permute.xlu0 %5358
      %5360 = vrot.lane.b32.xlu0 %v4562, 96
      %v5361 = vpop.permute.xlu0 %5360
      %5362 = vrot.lane.b32.xlu0 %v4564, 96
      %v5363 = vpop.permute.xlu0 %5362
      %5364 = vrot.lane.b32.xlu0 %v4565, 96
      %v5365 = vpop.permute.xlu0 %5364
      %5366 = vrot.lane.b32.xlu0 %v4567, 96
      %v5367 = vpop.permute.xlu0 %5366
      %5368 = vrot.lane.b32.xlu0 %v4568, 96
      %v5369 = vpop.permute.xlu0 %5368
      %5370 = vrot.lane.b32.xlu0 %v4570, 96
      %v5371 = vpop.permute.xlu0 %5370
      %5372 = vrot.lane.b32.xlu0 %v4571, 96
      %v5373 = vpop.permute.xlu0 %5372
      %5374 = vrot.lane.b32.xlu0 %v4573, 96
      %v5375 = vpop.permute.xlu0 %5374
      %5376 = vrot.lane.b32.xlu0 %v4574, 96
      %v5377 = vpop.permute.xlu0 %5376
      %5378 = vrot.lane.b32.xlu0 %v4576, 96
      %v5379 = vpop.permute.xlu0 %5378
      %5380 = vrot.lane.b32.xlu0 %v4577, 96
      %v5381 = vpop.permute.xlu0 %5380
      %5382 = vrot.lane.b32.xlu0 %v4579, 96
      %v5383 = vpop.permute.xlu0 %5382
      %5384 = vrot.lane.b32.xlu0 %v4580, 96
      %v5385 = vpop.permute.xlu0 %5384
      %5386 = vrot.lane.b32.xlu0 %v4582, 96
      %v5387 = vpop.permute.xlu0 %5386
      %5388 = vrot.lane.b32.xlu0 %v4583, 96
      %v5389 = vpop.permute.xlu0 %5388
      %5390 = vrot.lane.b32.xlu0 %v4585, 96
      %v5391 = vpop.permute.xlu0 %5390
      %5392 = vrot.lane.b32.xlu0 %v4586, 96
      %v5393 = vpop.permute.xlu0 %5392
      %5394 = vrot.lane.b32.xlu0 %v4588, 96
      %v5395 = vpop.permute.xlu0 %5394
      %5396 = vrot.lane.b32.xlu0 %v4589, 96
      %v5397 = vpop.permute.xlu0 %5396
      %5398 = vrot.lane.b32.xlu0 %v4591, 96
      %v5399 = vpop.permute.xlu0 %5398
      %5400 = vrot.lane.b32.xlu0 %v4592, 96
      %v5401 = vpop.permute.xlu0 %5400
      %5402 = vrot.lane.b32.xlu0 %v4594, 96
      %v5403 = vpop.permute.xlu0 %5402
      %5404 = vrot.lane.b32.xlu0 %v4595, 96
      %v5405 = vpop.permute.xlu0 %5404
      %5406 = vrot.lane.b32.xlu0 %v4597, 96
      %v5407 = vpop.permute.xlu0 %5406
      %5408 = vrot.lane.b32.xlu0 %v4598, 96
      %v5409 = vpop.permute.xlu0 %5408
      %5442 = vrot.lane.b32.xlu0 %v4660, 112
      %v5443 = vpop.permute.xlu0 %5442
      %5444 = vrot.lane.b32.xlu0 %v4662, 112
      %v5445 = vpop.permute.xlu0 %5444
      %5446 = vrot.lane.b32.xlu0 %v4665, 112
      %v5447 = vpop.permute.xlu0 %5446
      %5448 = vrot.lane.b32.xlu0 %v4667, 112
      %v5449 = vpop.permute.xlu0 %5448
      %5450 = vrot.lane.b32.xlu0 %v4670, 112
      %v5451 = vpop.permute.xlu0 %5450
      %5452 = vrot.lane.b32.xlu0 %v4672, 112
      %v5453 = vpop.permute.xlu0 %5452
      %5454 = vrot.lane.b32.xlu0 %v4675, 112
      %v5455 = vpop.permute.xlu0 %5454
      %5456 = vrot.lane.b32.xlu0 %v4677, 112
      %v5457 = vpop.permute.xlu0 %5456
      %5458 = vrot.lane.b32.xlu0 %v4680, 112
      %v5459 = vpop.permute.xlu0 %5458
      %5460 = vrot.lane.b32.xlu0 %v4682, 112
      %v5461 = vpop.permute.xlu0 %5460
      %5462 = vrot.lane.b32.xlu0 %v4685, 112
      %v5463 = vpop.permute.xlu0 %5462
      %5464 = vrot.lane.b32.xlu0 %v4687, 112
      %v5465 = vpop.permute.xlu0 %5464
      %5466 = vrot.lane.b32.xlu0 %v4690, 112
      %v5467 = vpop.permute.xlu0 %5466
      %5468 = vrot.lane.b32.xlu0 %v4692, 112
      %v5469 = vpop.permute.xlu0 %5468
      %5470 = vrot.lane.b32.xlu0 %v4695, 112
      %v5471 = vpop.permute.xlu0 %5470
      %5472 = vrot.lane.b32.xlu0 %v4697, 112
      %v5473 = vpop.permute.xlu0 %5472
      %5474 = vrot.lane.b32.xlu0 %v4700, 112
      %v5475 = vpop.permute.xlu0 %5474
      %5476 = vrot.lane.b32.xlu0 %v4702, 112
      %v5477 = vpop.permute.xlu0 %5476
      %5478 = vrot.lane.b32.xlu0 %v4705, 112
      %v5479 = vpop.permute.xlu0 %5478
      %5480 = vrot.lane.b32.xlu0 %v4707, 112
      %v5481 = vpop.permute.xlu0 %5480
      %5482 = vrot.lane.b32.xlu0 %v4710, 112
      %v5483 = vpop.permute.xlu0 %5482
      %5484 = vrot.lane.b32.xlu0 %v4712, 112
      %v5485 = vpop.permute.xlu0 %5484
      %5486 = vrot.lane.b32.xlu0 %v4715, 112
      %v5487 = vpop.permute.xlu0 %5486
      %5488 = vrot.lane.b32.xlu0 %v4717, 112
      %v5489 = vpop.permute.xlu0 %5488
      %5490 = vrot.lane.b32.xlu0 %v4720, 112
      %v5491 = vpop.permute.xlu0 %5490
      %5492 = vrot.lane.b32.xlu0 %v4722, 112
      %v5493 = vpop.permute.xlu0 %5492
      %5494 = vrot.lane.b32.xlu0 %v4725, 112
      %v5495 = vpop.permute.xlu0 %5494
      %5496 = vrot.lane.b32.xlu0 %v4727, 112
      %v5497 = vpop.permute.xlu0 %5496
      %5498 = vrot.lane.b32.xlu0 %v4813, 112
      %v5499 = vpop.permute.xlu0 %5498
      %5500 = vrot.lane.b32.xlu0 %v4815, 112
      %v5501 = vpop.permute.xlu0 %5500
      %5502 = vrot.lane.b32.xlu0 %v4826, 112
      %v5503 = vpop.permute.xlu0 %5502
      %5504 = vrot.lane.b32.xlu0 %v4828, 112
      %v5505 = vpop.permute.xlu0 %5504
      %v5538 = vsel %vm253, %v4546, %v4867
      %v5539 = vsel %vm253, %v4547, %v4869
      %v5540 = vsel %vm253, %v4549, %v4871
      %v5541 = vsel %vm253, %v4550, %v4873
      %v5542 = vsel %vm253, %v4552, %v4875
      %v5543 = vsel %vm253, %v4553, %v4877
      %v5544 = vsel %vm253, %v4555, %v4879
      %v5545 = vsel %vm253, %v4556, %v4881
      %v5546 = vsel %vm253, %v4558, %v4883
      %v5547 = vsel %vm253, %v4559, %v4885
      %v5548 = vsel %vm253, %v4561, %v4887
      %v5549 = vsel %vm253, %v4562, %v4889
      %v5550 = vsel %vm253, %v4564, %v4891
      %v5551 = vsel %vm253, %v4565, %v4893
      %v5552 = vsel %vm253, %v4567, %v4895
      %v5553 = vsel %vm253, %v4568, %v4897
      %v5554 = vsel %vm253, %v4570, %v4899
      %v5555 = vsel %vm253, %v4571, %v4901
      %v5556 = vsel %vm253, %v4573, %v4903
      %v5557 = vsel %vm253, %v4574, %v4905
      %v5558 = vsel %vm253, %v4576, %v4907
      %v5559 = vsel %vm253, %v4577, %v4909
      %v5560 = vsel %vm253, %v4579, %v4911
      %v5561 = vsel %vm253, %v4580, %v4913
      %v5562 = vsel %vm253, %v4582, %v4915
      %v5563 = vsel %vm253, %v4583, %v4917
      %v5564 = vsel %vm253, %v4585, %v4919
      %v5565 = vsel %vm253, %v4586, %v4921
      %v5566 = vsel %vm253, %v4588, %v4923
      %v5567 = vsel %vm253, %v4589, %v4925
      %v5568 = vsel %vm253, %v4591, %v4927
      %v5569 = vsel %vm253, %v4592, %v4929
      %v5570 = vsel %vm1420, %v5538, %v4963
      %v5571 = vsel %vm1420, %v5539, %v4965
      %v5572 = vsel %vm1420, %v5540, %v4967
      %v5573 = vsel %vm1420, %v5541, %v4969
      %v5574 = vsel %vm1420, %v5542, %v4971
      %v5575 = vsel %vm1420, %v5543, %v4973
      %v5576 = vsel %vm1420, %v5544, %v4975
      %v5577 = vsel %vm1420, %v5545, %v4977
      %v5578 = vsel %vm1420, %v5546, %v4979
      %v5579 = vsel %vm1420, %v5547, %v4981
      %v5580 = vsel %vm1420, %v5548, %v4983
      %v5581 = vsel %vm1420, %v5549, %v4985
      %v5582 = vsel %vm1420, %v5550, %v4987
      %v5583 = vsel %vm1420, %v5551, %v4989
      %v5584 = vsel %vm1420, %v5552, %v4991
      %v5585 = vsel %vm1420, %v5553, %v4993
      %v5586 = vsel %vm1420, %v5554, %v4995
      %v5587 = vsel %vm1420, %v5555, %v4997
      %v5588 = vsel %vm1420, %v5556, %v4999
      %v5589 = vsel %vm1420, %v5557, %v5001
      %v5590 = vsel %vm1420, %v5558, %v5003
      %v5591 = vsel %vm1420, %v5559, %v5005
      %v5592 = vsel %vm1420, %v5560, %v5007
      %v5593 = vsel %vm1420, %v5561, %v5009
      %v5594 = vsel %vm1420, %v5562, %v5011
      %v5595 = vsel %vm1420, %v5563, %v5013
      %v5596 = vsel %vm1420, %v5564, %v5015
      %v5597 = vsel %vm1420, %v5565, %v5017
      %v5598 = vsel %vm1420, %v5566, %v5019
      %v5599 = vsel %vm1420, %v5567, %v5021
      %v5600 = vsel %vm1420, %v5568, %v5023
      %v5601 = vsel %vm1420, %v5569, %v5025
      %v5602 = vsel %vm1453, %v5570, %v5059
      %v5603 = vsel %vm1453, %v5571, %v5061
      %v5604 = vsel %vm1453, %v5572, %v5063
      %v5605 = vsel %vm1453, %v5573, %v5065
      %v5606 = vsel %vm1453, %v5574, %v5067
      %v5607 = vsel %vm1453, %v5575, %v5069
      %v5608 = vsel %vm1453, %v5576, %v5071
      %v5609 = vsel %vm1453, %v5577, %v5073
      %v5610 = vsel %vm1453, %v5578, %v5075
      %v5611 = vsel %vm1453, %v5579, %v5077
      %v5612 = vsel %vm1453, %v5580, %v5079
      %v5613 = vsel %vm1453, %v5581, %v5081
      %v5614 = vsel %vm1453, %v5582, %v5083
      %v5615 = vsel %vm1453, %v5583, %v5085
      %v5616 = vsel %vm1453, %v5584, %v5087
      %v5617 = vsel %vm1453, %v5585, %v5089
      %v5618 = vsel %vm1453, %v5586, %v5091
      %v5619 = vsel %vm1453, %v5587, %v5093
      %v5620 = vsel %vm1453, %v5588, %v5095
      %v5621 = vsel %vm1453, %v5589, %v5097
      %v5622 = vsel %vm1453, %v5590, %v5099
      %v5623 = vsel %vm1453, %v5591, %v5101
      %v5624 = vsel %vm1453, %v5592, %v5103
      %v5625 = vsel %vm1453, %v5593, %v5105
      %v5626 = vsel %vm1453, %v5594, %v5107
      %v5627 = vsel %vm1453, %v5595, %v5109
      %v5628 = vsel %vm1453, %v5596, %v5111
      %v5629 = vsel %vm1453, %v5597, %v5113
      %v5630 = vsel %vm1453, %v5598, %v5115
      %v5631 = vsel %vm1453, %v5599, %v5117
      %v5632 = vsel %vm1453, %v5600, %v5119
      %v5633 = vsel %vm1453, %v5601, %v5121
      %v5634 = vsel %vm1486, %v5602, %v5155
      %v5635 = vsel %vm1486, %v5603, %v5157
      %v5636 = vsel %vm1486, %v5604, %v5159
      %v5637 = vsel %vm1486, %v5605, %v5161
      %v5638 = vsel %vm1486, %v5606, %v5163
      %v5639 = vsel %vm1486, %v5607, %v5165
      %v5640 = vsel %vm1486, %v5608, %v5167
      %v5641 = vsel %vm1486, %v5609, %v5169
      %v5642 = vsel %vm1486, %v5610, %v5171
      %v5643 = vsel %vm1486, %v5611, %v5173
      %v5644 = vsel %vm1486, %v5612, %v5175
      %v5645 = vsel %vm1486, %v5613, %v5177
      %v5646 = vsel %vm1486, %v5614, %v5179
      %v5647 = vsel %vm1486, %v5615, %v5181
      %v5648 = vsel %vm1486, %v5616, %v5183
      %v5649 = vsel %vm1486, %v5617, %v5185
      %v5650 = vsel %vm1486, %v5618, %v5187
      %v5651 = vsel %vm1486, %v5619, %v5189
      %v5652 = vsel %vm1486, %v5620, %v5191
      %v5653 = vsel %vm1486, %v5621, %v5193
      %v5654 = vsel %vm1486, %v5622, %v5195
      %v5655 = vsel %vm1486, %v5623, %v5197
      %v5656 = vsel %vm1486, %v5624, %v5199
      %v5657 = vsel %vm1486, %v5625, %v5201
      %v5658 = vsel %vm1486, %v5626, %v5203
      %v5659 = vsel %vm1486, %v5627, %v5205
      %v5660 = vsel %vm1486, %v5628, %v5207
      %v5661 = vsel %vm1486, %v5629, %v5209
      %v5662 = vsel %vm1486, %v5630, %v5211
      %v5663 = vsel %vm1486, %v5631, %v5213
      %v5664 = vsel %vm1486, %v5632, %v5215
      %v5665 = vsel %vm1486, %v5633, %v5217
      %v5666 = vsel %vm1519, %v5634, %v5251
      %v5667 = vsel %vm1519, %v5635, %v5253
      %v5668 = vsel %vm1519, %v5636, %v5255
      %v5669 = vsel %vm1519, %v5637, %v5257
      %v5670 = vsel %vm1519, %v5638, %v5259
      %v5671 = vsel %vm1519, %v5639, %v5261
      %v5672 = vsel %vm1519, %v5640, %v5263
      %v5673 = vsel %vm1519, %v5641, %v5265
      %v5674 = vsel %vm1519, %v5642, %v5267
      %v5675 = vsel %vm1519, %v5643, %v5269
      %v5676 = vsel %vm1519, %v5644, %v5271
      %v5677 = vsel %vm1519, %v5645, %v5273
      %v5678 = vsel %vm1519, %v5646, %v5275
      %v5679 = vsel %vm1519, %v5647, %v5277
      %v5680 = vsel %vm1519, %v5648, %v5279
      %v5681 = vsel %vm1519, %v5649, %v5281
      %v5682 = vsel %vm1519, %v5650, %v5283
      %v5683 = vsel %vm1519, %v5651, %v5285
      %v5684 = vsel %vm1519, %v5652, %v5287
      %v5685 = vsel %vm1519, %v5653, %v5289
      %v5686 = vsel %vm1519, %v5654, %v5291
      %v5687 = vsel %vm1519, %v5655, %v5293
      %v5688 = vsel %vm1519, %v5656, %v5295
      %v5689 = vsel %vm1519, %v5657, %v5297
      %v5690 = vsel %vm1519, %v5658, %v5299
      %v5691 = vsel %vm1519, %v5659, %v5301
      %v5692 = vsel %vm1519, %v5660, %v5303
      %v5693 = vsel %vm1519, %v5661, %v5305
      %v5694 = vsel %vm1519, %v5662, %v5307
      %v5695 = vsel %vm1519, %v5663, %v5309
      %v5696 = vsel %vm1519, %v5664, %v5311
      %v5697 = vsel %vm1519, %v5665, %v5313
      %v5698 = vsel %vm1552, %v5666, %v5347
      %v5699 = vsel %vm1552, %v5667, %v5349
      %v5700 = vsel %vm1552, %v5668, %v5351
      %v5701 = vsel %vm1552, %v5669, %v5353
      %v5702 = vsel %vm1552, %v5670, %v5355
      %v5703 = vsel %vm1552, %v5671, %v5357
      %v5704 = vsel %vm1552, %v5672, %v5359
      %v5705 = vsel %vm1552, %v5673, %v5361
      %v5706 = vsel %vm1552, %v5674, %v5363
      %v5707 = vsel %vm1552, %v5675, %v5365
      %v5708 = vsel %vm1552, %v5676, %v5367
      %v5709 = vsel %vm1552, %v5677, %v5369
      %v5710 = vsel %vm1552, %v5678, %v5371
      %v5711 = vsel %vm1552, %v5679, %v5373
      %v5712 = vsel %vm1552, %v5680, %v5375
      %v5713 = vsel %vm1552, %v5681, %v5377
      %v5714 = vsel %vm1552, %v5682, %v5379
      %v5715 = vsel %vm1552, %v5683, %v5381
      %v5716 = vsel %vm1552, %v5684, %v5383
      %v5717 = vsel %vm1552, %v5685, %v5385
      %v5718 = vsel %vm1552, %v5686, %v5387
      %v5719 = vsel %vm1552, %v5687, %v5389
      %v5720 = vsel %vm1552, %v5688, %v5391
      %v5721 = vsel %vm1552, %v5689, %v5393
      %v5722 = vsel %vm1552, %v5690, %v5395
      %v5723 = vsel %vm1552, %v5691, %v5397
      %v5724 = vsel %vm1552, %v5692, %v5399
      %v5725 = vsel %vm1552, %v5693, %v5401
      %v5726 = vsel %vm1552, %v5694, %v5403
      %v5727 = vsel %vm1552, %v5695, %v5405
      %v5728 = vsel %vm1552, %v5696, %v5407
      %v5729 = vsel %vm1552, %v5697, %v5409
      %v5730 = vsel %vm1585, %v5698, %v5443
      %v5731 = vsel %vm1585, %v5699, %v5445
      %v5732 = vsel %vm1585, %v5700, %v5447
      %v5733 = vsel %vm1585, %v5701, %v5449
      %v5734 = vsel %vm1585, %v5702, %v5451
      %v5735 = vsel %vm1585, %v5703, %v5453
      %v5736 = vsel %vm1585, %v5704, %v5455
      %v5737 = vsel %vm1585, %v5705, %v5457
      %v5738 = vsel %vm1585, %v5706, %v5459
      %v5739 = vsel %vm1585, %v5707, %v5461
      %v5740 = vsel %vm1585, %v5708, %v5463
      %v5741 = vsel %vm1585, %v5709, %v5465
      %v5742 = vsel %vm1585, %v5710, %v5467
      %v5743 = vsel %vm1585, %v5711, %v5469
      %v5744 = vsel %vm1585, %v5712, %v5471
      %v5745 = vsel %vm1585, %v5713, %v5473
      %v5746 = vsel %vm1585, %v5714, %v5475
      %v5747 = vsel %vm1585, %v5715, %v5477
      %v5748 = vsel %vm1585, %v5716, %v5479
      %v5749 = vsel %vm1585, %v5717, %v5481
      %v5750 = vsel %vm1585, %v5718, %v5483
      %v5751 = vsel %vm1585, %v5719, %v5485
      %v5752 = vsel %vm1585, %v5720, %v5487
      %v5753 = vsel %vm1585, %v5721, %v5489
      %v5754 = vsel %vm1585, %v5722, %v5491
      %v5755 = vsel %vm1585, %v5723, %v5493
      %v5756 = vsel %vm1585, %v5724, %v5495
      %v5757 = vsel %vm1585, %v5725, %v5497
      %v5758 = vsel %vm1585, %v5726, %v5499
      %v5759 = vsel %vm1585, %v5727, %v5501
      %v5760 = vsel %vm1585, %v5728, %v5503
      %v5761 = vsel %vm1585, %v5729, %v5505
      %v5762 = vpack.c.bf16 %v5731, %v5730
      %v5763 = vpack.c.bf16 %v4742, %v4740
      %v5764 = vpack.c.bf16 %v5733, %v5732
      %v5765 = vpack.c.bf16 %v4747, %v4745
      %v5766 = vpack.c.bf16 %v5735, %v5734
      %v5767 = vpack.c.bf16 %v4752, %v4750
      %v5768 = vpack.c.bf16 %v5737, %v5736
      %v5769 = vpack.c.bf16 %v4757, %v4755
      %v5770 = vpack.c.bf16 %v5739, %v5738
      %v5771 = vpack.c.bf16 %v4762, %v4760
      %v5772 = vpack.c.bf16 %v5741, %v5740
      %v5773 = vpack.c.bf16 %v4767, %v4765
      %v5774 = vpack.c.bf16 %v5743, %v5742
      %v5775 = vpack.c.bf16 %v4772, %v4770
      %v5776 = vpack.c.bf16 %v5745, %v5744
      %v5777 = vpack.c.bf16 %v4777, %v4775
      %v5778 = vpack.c.bf16 %v5747, %v5746
      %v5779 = vpack.c.bf16 %v4782, %v4780
      %v5780 = vpack.c.bf16 %v5749, %v5748
      %v5781 = vpack.c.bf16 %v4787, %v4785
      %v5782 = vpack.c.bf16 %v5751, %v5750
      %v5783 = vpack.c.bf16 %v4792, %v4790
      %v5784 = vpack.c.bf16 %v5753, %v5752
      %v5785 = vpack.c.bf16 %v4797, %v4795
      %v5786 = vpack.c.bf16 %v5755, %v5754
      %v5787 = vpack.c.bf16 %v4802, %v4800
      %v5788 = vpack.c.bf16 %v5757, %v5756
      %v5789 = vpack.c.bf16 %v4807, %v4805
      %v5790 = vpack.c.bf16 %v5759, %v5758
      %v5791 = vpack.c.bf16 %v4820, %v4818
      %v5792 = vpack.c.bf16 %v5761, %v5760
      %v5793 = vpack.c.bf16 %v4833, %v4831
      %v5794 = vlaneseq
      %v5795 = vshrl.u32 %v5794, 7
      %v5796 = vsub.s32 0, %v5795
      %v5797 = vrot.slane %v4492, %v5796
      %v5816 = vunpack.c.l.b16 %v4528
      %v5817 = vunpack.c.l.b16 %v4529
      %v5818 = vunpack.c.l.b16 %v4530
      %v5819 = vunpack.c.l.b16 %v4531
      %v5820 = vunpack.c.l.b16 %v4532
      %v5821 = vunpack.c.l.b16 %v4533
      %v5822 = vunpack.c.l.b16 %v4534
      %v5823 = vunpack.c.l.b16 %v4535
      %v5824 = vunpack.c.l.b16 %v4536
      %v5825 = vunpack.c.l.b16 %v4537
      %v5826 = vunpack.c.l.b16 %v4538
      %v5827 = vunpack.c.l.b16 %v4539
      %v5828 = vunpack.c.l.b16 %v4540
      %v5829 = vunpack.c.l.b16 %v4541
      %v5830 = vunpack.c.l.b16 %v4542
      %v5831 = vunpack.c.l.b16 %v4543
      %v5832 = vunpack.c.l.b16 %v4544
      %v5833 = vunpack.c.l.b16 %v4545
      %v5834 = vpack.c.b16 %v5817, %v5816
      %v5835 = vpack.c.b16 %v5819, %v5818
      %v5836 = vpack.c.b16 %v5821, %v5820
      %v5837 = vpack.c.b16 %v5823, %v5822
      %v5838 = vpack.c.b16 %v5825, %v5824
      %v5839 = vpack.c.b16 %v5827, %v5826
      %v5840 = vpack.c.b16 %v5829, %v5828
      %v5841 = vpack.c.b16 %v5831, %v5830
      %v5842 = vpack.c.b16 %v5833, %v5832
      %v5853 = vsel %vm253, %v5763, 0
      %v5856 = vsel %vm253, %v5765, 0
      %v5859 = vsel %vm253, %v5767, 0
      %v5862 = vsel %vm253, %v5769, 0
      %v5865 = vsel %vm253, %v5771, 0
      %v5868 = vsel %vm253, %v5773, 0
      %v5871 = vsel %vm253, %v5775, 0
      %v5874 = vsel %vm253, %v5777, 0
      %v5877 = vsel %vm253, %v5779, 0
      %v5880 = vsel %vm253, %v5781, 0
      %v5883 = vsel %vm253, %v5783, 0
      %v5886 = vsel %vm253, %v5785, 0
      %v5889 = vsel %vm253, %v5787, 0
      %v5892 = vsel %vm253, %v5789, 0
      %v5895 = vsel %vm253, %v5791, 0
      %v5898 = vsel %vm253, %v5793, 0
      %5900 = vmatprep.subr.bf16.mxu0 0
      %5901 = vmatpush1.bf16.msra.mxu0 %v5841
      %5902 = vmatprep.subr.bf16.mxu0 0
      %5903 = vmatpush1.bf16.msra.mxu0 %v5840
      %5904 = vmatprep.subr.bf16.mxu0 0
      %5905 = vmatpush1.bf16.msra.mxu0 %v5839
      %5906 = vmatprep.subr.bf16.mxu0 0
      %5907 = vmatpush1.bf16.msra.mxu0 %v5838
      %5908 = vmatprep.subr.bf16.mxu0 0
      %5909 = vmatpush1.bf16.msra.mxu0 %v5837
      %5910 = vmatprep.subr.bf16.mxu0 0
      %5911 = vmatpush1.bf16.msra.mxu0 %v5836
      %5912 = vmatprep.subr.bf16.mxu0 0
      %5913 = vmatpush1.bf16.msra.mxu0 %v5835
      %5914 = vmatprep.subr.bf16.mxu0 0
      %5915 = vmatpush1.bf16.msra.mxu0 %v5834
      %5916 = vmatprep.subr.bf16.mxu0 0
      %5917 = vmatpush2.bf16.msra.mxu0 0
      %5918 = vmatprep.subr.bf16.mxu0 0
      %5919 = vmatpush2.bf16.msra.mxu0 0
      %5920 = vmatprep.subr.bf16.mxu0 0
      %5921 = vmatpush2.bf16.msra.mxu0 0
      %5922 = vmatprep.subr.bf16.mxu0 0
      %5923 = vmatpush2.bf16.msra.mxu0 0
      %5924 = vmatprep.subr.bf16.mxu0 0
      %5925 = vmatpush2.bf16.msra.mxu0 0
      %5926 = vmatprep.subr.bf16.mxu0 0
      %5927 = vmatpush2.bf16.msra.mxu0 0
      %5928 = vmatprep.subr.bf16.mxu0 0
      %5929 = vmatpush2.bf16.msra.mxu0 0
      %5930 = vmatprep.subr.bf16.mxu0 0
      %5931 = vmatpush2.bf16.msra.mxu0 %v5842
      %5932 = vmatprep.mubr.bf16.mxu0 %v5853
      %5933 = vmatmul.mubr.bf16.gmra.mxu0 %v5762
      %v5934 = vpop.f32.mrf.mxu0
      %v5935 = vadd.f32 %v5797, %v5934
      %v5936 = vpop.f32.mrf.mxu0
      %v5937 = vpop.f32.mrf.mxu0
      %v5938 = vadd.f32 %v5797, %v5937
      %v5939 = vpop.f32.mrf.mxu0
      %5940 = vmatprep.mubr.bf16.mxu0 %v5856
      %5941 = vmatmul.mubr.bf16.gmra.mxu0 %v5764
      %v5942 = vpop.f32.mrf.mxu0
      %v5943 = vadd.f32 %v5797, %v5942
      %v5944 = vpop.f32.mrf.mxu0
      %v5945 = vpop.f32.mrf.mxu0
      %v5946 = vadd.f32 %v5797, %v5945
      %v5947 = vpop.f32.mrf.mxu0
      %5948 = vmatprep.mubr.bf16.mxu0 %v5859
      %5949 = vmatmul.mubr.bf16.gmra.mxu0 %v5766
      %v5950 = vpop.f32.mrf.mxu0
      %v5951 = vadd.f32 %v5797, %v5950
      %v5952 = vpop.f32.mrf.mxu0
      %v5953 = vpop.f32.mrf.mxu0
      %v5954 = vadd.f32 %v5797, %v5953
      %v5955 = vpop.f32.mrf.mxu0
      %5956 = vmatprep.mubr.bf16.mxu0 %v5862
      %5957 = vmatmul.mubr.bf16.gmra.mxu0 %v5768
      %v5958 = vpop.f32.mrf.mxu0
      %v5959 = vadd.f32 %v5797, %v5958
      %v5960 = vpop.f32.mrf.mxu0
      %v5961 = vpop.f32.mrf.mxu0
      %v5962 = vadd.f32 %v5797, %v5961
      %v5963 = vpop.f32.mrf.mxu0
      %5964 = vmatprep.mubr.bf16.mxu0 %v5865
      %5965 = vmatmul.mubr.bf16.gmra.mxu0 %v5770
      %v5966 = vpop.f32.mrf.mxu0
      %v5967 = vadd.f32 %v5797, %v5966
      %v5968 = vpop.f32.mrf.mxu0
      %v5969 = vpop.f32.mrf.mxu0
      %v5970 = vadd.f32 %v5797, %v5969
      %v5971 = vpop.f32.mrf.mxu0
      %5972 = vmatprep.mubr.bf16.mxu0 %v5868
      %5973 = vmatmul.mubr.bf16.gmra.mxu0 %v5772
      %v5974 = vpop.f32.mrf.mxu0
      %v5975 = vadd.f32 %v5797, %v5974
      %v5976 = vpop.f32.mrf.mxu0
      %v5977 = vpop.f32.mrf.mxu0
      %v5978 = vadd.f32 %v5797, %v5977
      %v5979 = vpop.f32.mrf.mxu0
      %5980 = vmatprep.mubr.bf16.mxu0 %v5871
      %5981 = vmatmul.mubr.bf16.gmra.mxu0 %v5774
      %v5982 = vpop.f32.mrf.mxu0
      %v5983 = vadd.f32 %v5797, %v5982
      %v5984 = vpop.f32.mrf.mxu0
      %v5985 = vpop.f32.mrf.mxu0
      %v5986 = vadd.f32 %v5797, %v5985
      %v5987 = vpop.f32.mrf.mxu0
      %5988 = vmatprep.mubr.bf16.mxu0 %v5874
      %5989 = vmatmul.mubr.bf16.gmra.mxu0 %v5776
      %v5990 = vpop.f32.mrf.mxu0
      %v5991 = vadd.f32 %v5797, %v5990
      %v5992 = vpop.f32.mrf.mxu0
      %v5993 = vpop.f32.mrf.mxu0
      %v5994 = vadd.f32 %v5797, %v5993
      %v5995 = vpop.f32.mrf.mxu0
      %5996 = vmatprep.mubr.bf16.mxu0 %v5877
      %5997 = vmatmul.mubr.bf16.gmra.mxu0 %v5778
      %v5998 = vpop.f32.mrf.mxu0
      %v5999 = vadd.f32 %v5797, %v5998
      %v6000 = vpop.f32.mrf.mxu0
      %v6001 = vpop.f32.mrf.mxu0
      %v6002 = vadd.f32 %v5797, %v6001
      %v6003 = vpop.f32.mrf.mxu0
      %6004 = vmatprep.mubr.bf16.mxu0 %v5880
      %6005 = vmatmul.mubr.bf16.gmra.mxu0 %v5780
      %v6006 = vpop.f32.mrf.mxu0
      %v6007 = vadd.f32 %v5797, %v6006
      %v6008 = vpop.f32.mrf.mxu0
      %v6009 = vpop.f32.mrf.mxu0
      %v6010 = vadd.f32 %v5797, %v6009
      %v6011 = vpop.f32.mrf.mxu0
      %6012 = vmatprep.mubr.bf16.mxu0 %v5883
      %6013 = vmatmul.mubr.bf16.gmra.mxu0 %v5782
      %v6014 = vpop.f32.mrf.mxu0
      %v6015 = vadd.f32 %v5797, %v6014
      %v6016 = vpop.f32.mrf.mxu0
      %v6017 = vpop.f32.mrf.mxu0
      %v6018 = vadd.f32 %v5797, %v6017
      %v6019 = vpop.f32.mrf.mxu0
      %6020 = vmatprep.mubr.bf16.mxu0 %v5886
      %6021 = vmatmul.mubr.bf16.gmra.mxu0 %v5784
      %v6022 = vpop.f32.mrf.mxu0
      %v6023 = vadd.f32 %v5797, %v6022
      %v6024 = vpop.f32.mrf.mxu0
      %v6025 = vpop.f32.mrf.mxu0
      %v6026 = vadd.f32 %v5797, %v6025
      %v6027 = vpop.f32.mrf.mxu0
      %6028 = vmatprep.mubr.bf16.mxu0 %v5889
      %6029 = vmatmul.mubr.bf16.gmra.mxu0 %v5786
      %v6030 = vpop.f32.mrf.mxu0
      %v6031 = vadd.f32 %v5797, %v6030
      %v6032 = vpop.f32.mrf.mxu0
      %v6033 = vpop.f32.mrf.mxu0
      %v6034 = vadd.f32 %v5797, %v6033
      %v6035 = vpop.f32.mrf.mxu0
      %6036 = vmatprep.mubr.bf16.mxu0 %v5892
      %6037 = vmatmul.mubr.bf16.gmra.mxu0 %v5788
      %v6038 = vpop.f32.mrf.mxu0
      %v6039 = vadd.f32 %v5797, %v6038
      %v6040 = vpop.f32.mrf.mxu0
      %v6041 = vpop.f32.mrf.mxu0
      %v6042 = vadd.f32 %v5797, %v6041
      %v6043 = vpop.f32.mrf.mxu0
      %6044 = vmatprep.mubr.bf16.mxu0 %v5895
      %6045 = vmatmul.mubr.bf16.gmra.mxu0 %v5790
      %v6046 = vpop.f32.mrf.mxu0
      %v6047 = vadd.f32 %v5797, %v6046
      %v6048 = vpop.f32.mrf.mxu0
      %v6049 = vpop.f32.mrf.mxu0
      %v6050 = vadd.f32 %v5797, %v6049
      %v6051 = vpop.f32.mrf.mxu0
      %6052 = vmatprep.mubr.bf16.mxu0 %v5898
      %6053 = vmatmul.mubr.bf16.gmra.mxu0 %v5792
      %v6054 = vpop.f32.mrf.mxu0
      %v6055 = vadd.f32 %v5797, %v6054
      %v6056 = vpop.f32.mrf.mxu0
      %v6057 = vpop.f32.mrf.mxu0
      %v6058 = vadd.f32 %v5797, %v6057
      %v6059 = vpop.f32.mrf.mxu0
      %6060 = vdwg.mxu0
      %v6061 = vmax.f32 %v5935, 0.0
      %v6062 = vmax.f32 %v5938, 0.0
      %v6063 = vmax.f32 %v5943, 0.0
      %v6064 = vmax.f32 %v5946, 0.0
      %v6065 = vmax.f32 %v5951, 0.0
      %v6066 = vmax.f32 %v5954, 0.0
      %v6067 = vmax.f32 %v5959, 0.0
      %v6068 = vmax.f32 %v5962, 0.0
      %v6069 = vmax.f32 %v5967, 0.0
      %v6070 = vmax.f32 %v5970, 0.0
      %v6071 = vmax.f32 %v5975, 0.0
      %v6072 = vmax.f32 %v5978, 0.0
      %v6073 = vmax.f32 %v5983, 0.0
      %v6074 = vmax.f32 %v5986, 0.0
      %v6075 = vmax.f32 %v5991, 0.0
      %v6076 = vmax.f32 %v5994, 0.0
      %v6077 = vmax.f32 %v5999, 0.0
      %v6078 = vmax.f32 %v6002, 0.0
      %v6079 = vmax.f32 %v6007, 0.0
      %v6080 = vmax.f32 %v6010, 0.0
      %v6081 = vmax.f32 %v6015, 0.0
      %v6082 = vmax.f32 %v6018, 0.0
      %v6083 = vmax.f32 %v6023, 0.0
      %v6084 = vmax.f32 %v6026, 0.0
      %v6085 = vmax.f32 %v6031, 0.0
      %v6086 = vmax.f32 %v6034, 0.0
      %v6087 = vmax.f32 %v6039, 0.0
      %v6088 = vmax.f32 %v6042, 0.0
      %v6089 = vmax.f32 %v6047, 0.0
      %v6090 = vmax.f32 %v6050, 0.0
      %v6091 = vmax.f32 %v6055, 0.0
      %v6092 = vmax.f32 %v6058, 0.0
      %6093 = vst.msk [vmem:[%s343 + $0x1] sm:$0xff] %vm253, %v6061
      %6094 = vst.msk [vmem:[%s343 + $0x9] sm:$0xff] %vm253, %v6062
      %6095 = vst.msk [vmem:[%s343 + $0x19] sm:$0xff] %vm253, %v6063
      %6096 = vst.msk [vmem:[%s343 + $0x21] sm:$0xff] %vm253, %v6064
      %6097 = vst.msk [vmem:[%s343 + $0x31] sm:$0xff] %vm253, %v6065
      %6098 = vst.msk [vmem:[%s343 + $0x39] sm:$0xff] %vm253, %v6066
      %6099 = vst.msk [vmem:[%s343 + $0x49] sm:$0xff] %vm253, %v6067
      %6100 = vst.msk [vmem:[%s343 + $0x51] sm:$0xff] %vm253, %v6068
      %6101 = vst.msk [vmem:[%s343 + $0x61] sm:$0xff] %vm253, %v6069
      %6102 = vst.msk [vmem:[%s343 + $0x69] sm:$0xff] %vm253, %v6070
      %6103 = vst.msk [vmem:[%s343 + $0x79] sm:$0xff] %vm253, %v6071
      %6104 = vst.msk [vmem:[%s343 + $0x81] sm:$0xff] %vm253, %v6072
      %6105 = vst.msk [vmem:[%s343 + $0x91] sm:$0xff] %vm253, %v6073
      %6106 = vst.msk [vmem:[%s343 + $0x99] sm:$0xff] %vm253, %v6074
      %6107 = vst.msk [vmem:[%s343 + $0xa9] sm:$0xff] %vm253, %v6075
      %6108 = vst.msk [vmem:[%s343 + $0xb1] sm:$0xff] %vm253, %v6076
      %6109 = vst.msk [vmem:[%s343 + $0xc1] sm:$0xff] %vm253, %v6077
      %6110 = vst.msk [vmem:[%s343 + $0xc9] sm:$0xff] %vm253, %v6078
      %6111 = vst.msk [vmem:[%s343 + $0xd9] sm:$0xff] %vm253, %v6079
      %6112 = vst.msk [vmem:[%s343 + $0xe1] sm:$0xff] %vm253, %v6080
      %6113 = vst.msk [vmem:[%s343 + $0xf1] sm:$0xff] %vm253, %v6081
      %6114 = vst.msk [vmem:[%s343 + $0xf9] sm:$0xff] %vm253, %v6082
      %6115 = vst.msk [vmem:[%s343 + $0x109] sm:$0xff] %vm253, %v6083
      %6116 = vst.msk [vmem:[%s343 + $0x111] sm:$0xff] %vm253, %v6084
      %6117 = vst.msk [vmem:[%s343 + $0x121] sm:$0xff] %vm253, %v6085
      %6118 = vst.msk [vmem:[%s343 + $0x129] sm:$0xff] %vm253, %v6086
      %6119 = vst.msk [vmem:[%s343 + $0x139] sm:$0xff] %vm253, %v6087
      %6120 = vst.msk [vmem:[%s343 + $0x141] sm:$0xff] %vm253, %v6088
      %6121 = vst.msk [vmem:[%s343 + $0x151] sm:$0xff] %vm253, %v6089
      %6122 = vst.msk [vmem:[%s343 + $0x159] sm:$0xff] %vm253, %v6090
      %6123 = vst.msk [vmem:[%s343 + $0x169] sm:$0xff] %vm253, %v6091
      %6124 = vst.msk [vmem:[%s343 + $0x171] sm:$0xff] %vm253, %v6092
      %s6125 = scalar_lea.vmem %s1, 216
      %v6126 = vld [vmem:[%s6125] sm:$0xf]
      %v6127 = vld [vmem:[%s6125 + $0x4] sm:$0xf]
      %v6128 = vld [vmem:[%s6125 + $0x8] sm:$0xf]
      %v6129 = vld [vmem:[%s6125 + $0xc] sm:$0xf]
      %v6130 = vld [vmem:[%s6125 + $0x10] sm:$0xf]
      %v6131 = vld [vmem:[%s6125 + $0x14] sm:$0xf]
      %v6132 = vld [vmem:[%s6125 + $0x18] sm:$0xf]
      %v6133 = vld [vmem:[%s6125 + $0x1c] sm:$0xf]
      %v6134 = vld [vmem:[%s6125 + $0x20] sm:$0xf]
      %v6135 = vld [vmem:[%s6125 + $0x24] sm:$0xf]
      %v6136 = vld [vmem:[%s6125 + $0x28] sm:$0xf]
      %v6137 = vld [vmem:[%s6125 + $0x2c] sm:$0xf]
      %v6138 = vld [vmem:[%s6125 + $0x30] sm:$0xf]
      %v6139 = vld [vmem:[%s6125 + $0x34] sm:$0xf]
      %v6140 = vld [vmem:[%s6125 + $0x38] sm:$0xf]
      %v6141 = vld [vmem:[%s6125 + $0x3c] sm:$0xf]
      %v6142 = vld [vmem:[%s6125 + $0x40] sm:$0xf]
      %v6143 = vld [vmem:[%s6125 + $0x44] sm:$0xf]
      %v6144 = vld [vmem:[#allocation2] sm:$0xff]
      %v6145 = vld [vmem:[#allocation2 + $0x8] sm:$0xff]
      %v6146 = vld [vmem:[#allocation2 + $0x10] sm:$0x3]
      %v6147 = vld [vmem:[#allocation2 + $0x18] sm:$0xff]
      %v6148 = vld [vmem:[#allocation2 + $0x20] sm:$0xff]
      %v6149 = vld [vmem:[#allocation2 + $0x28] sm:$0x3]
      %v6150 = vld [vmem:[#allocation2 + $0x30] sm:$0xff]
      %v6151 = vld [vmem:[#allocation2 + $0x38] sm:$0xff]
      %v6152 = vld [vmem:[#allocation2 + $0x40] sm:$0x3]
      %v6153 = vld [vmem:[#allocation2 + $0x48] sm:$0xff]
      %v6154 = vld [vmem:[#allocation2 + $0x50] sm:$0xff]
      %v6155 = vld [vmem:[#allocation2 + $0x58] sm:$0x3]
      %v6156 = vld [vmem:[#allocation2 + $0x60] sm:$0xff]
      %v6157 = vld [vmem:[#allocation2 + $0x68] sm:$0xff]
      %v6158 = vld [vmem:[#allocation2 + $0x70] sm:$0x3]
      %v6159 = vld [vmem:[#allocation2 + $0x78] sm:$0xff]
      %v6160 = vld [vmem:[#allocation2 + $0x80] sm:$0xff]
      %v6161 = vld [vmem:[#allocation2 + $0x88] sm:$0x3]
      %v6162 = vld [vmem:[#allocation2 + $0x90] sm:$0xff]
      %v6163 = vld [vmem:[#allocation2 + $0x98] sm:$0xff]
      %v6164 = vld [vmem:[#allocation2 + $0xa0] sm:$0x3]
      %v6165 = vld [vmem:[#allocation2 + $0xa8] sm:$0xff]
      %v6166 = vld [vmem:[#allocation2 + $0xb0] sm:$0xff]
      %v6167 = vld [vmem:[#allocation2 + $0xb8] sm:$0x3]
      %v6168 = vld [vmem:[#allocation2 + $0xc0] sm:$0xff]
      %v6169 = vld [vmem:[#allocation2 + $0xc8] sm:$0xff]
      %v6170 = vld [vmem:[#allocation2 + $0xd0] sm:$0x3]
      %v6171 = vld [vmem:[#allocation2 + $0xd8] sm:$0xff]
      %v6172 = vld [vmem:[#allocation2 + $0xe0] sm:$0xff]
      %v6173 = vld [vmem:[#allocation2 + $0xe8] sm:$0x3]
      %v6174 = vld [vmem:[#allocation2 + $0xf0] sm:$0xff]
      %v6175 = vld [vmem:[#allocation2 + $0xf8] sm:$0xff]
      %v6176 = vld [vmem:[#allocation2 + $0x100] sm:$0x3]
      %v6177 = vld [vmem:[#allocation2 + $0x108] sm:$0xff]
      %v6178 = vld [vmem:[#allocation2 + $0x110] sm:$0xff]
      %v6179 = vld [vmem:[#allocation2 + $0x118] sm:$0x3]
      %v6180 = vld [vmem:[#allocation2 + $0x120] sm:$0xff]
      %v6181 = vld [vmem:[#allocation2 + $0x128] sm:$0xff]
      %v6182 = vld [vmem:[#allocation2 + $0x130] sm:$0x3]
      %v6183 = vld [vmem:[#allocation2 + $0x138] sm:$0xff]
      %v6184 = vld [vmem:[#allocation2 + $0x140] sm:$0xff]
      %v6185 = vld [vmem:[#allocation2 + $0x148] sm:$0x3]
      %v6186 = vld [vmem:[#allocation2 + $0x150] sm:$0xff]
      %v6187 = vld [vmem:[#allocation2 + $0x158] sm:$0xff]
      %v6188 = vld [vmem:[#allocation2 + $0x160] sm:$0x3]
      %v6189 = vld [vmem:[#allocation2 + $0x168] sm:$0xff]
      %v6190 = vld [vmem:[#allocation2 + $0x170] sm:$0xff]
      %v6191 = vld [vmem:[#allocation2 + $0x178] sm:$0x3]
      %v6192 = vld [vmem:[#allocation2 + $0x180] sm:$0xff]
      %v6193 = vld [vmem:[#allocation2 + $0x188] sm:$0xff]
      %v6194 = vld [vmem:[#allocation2 + $0x190] sm:$0x3]
      %v6195 = vld [vmem:[#allocation2 + $0x198] sm:$0xff]
      %v6196 = vld [vmem:[#allocation2 + $0x1a0] sm:$0xff]
      %v6197 = vld [vmem:[#allocation2 + $0x1a8] sm:$0x3]
      %v6246 = vrot.slane %v6144, 1
      %v6247 = vrot.slane %v6145, 1
      %v6248 = vsel %vm496, %v6246, %v6247
      %v6249 = vrot.slane %v6146, 1
      %v6250 = vsel %vm496, %v6247, %v6249
      %v6251 = vrot.slane %v6147, 1
      %v6252 = vrot.slane %v6148, 1
      %v6253 = vsel %vm496, %v6251, %v6252
      %v6254 = vrot.slane %v6149, 1
      %v6255 = vsel %vm496, %v6252, %v6254
      %v6256 = vrot.slane %v6150, 1
      %v6257 = vrot.slane %v6151, 1
      %v6258 = vsel %vm496, %v6256, %v6257
      %v6259 = vrot.slane %v6152, 1
      %v6260 = vsel %vm496, %v6257, %v6259
      %v6261 = vrot.slane %v6153, 1
      %v6262 = vrot.slane %v6154, 1
      %v6263 = vsel %vm496, %v6261, %v6262
      %v6264 = vrot.slane %v6155, 1
      %v6265 = vsel %vm496, %v6262, %v6264
      %v6266 = vrot.slane %v6156, 1
      %v6267 = vrot.slane %v6157, 1
      %v6268 = vsel %vm496, %v6266, %v6267
      %v6269 = vrot.slane %v6158, 1
      %v6270 = vsel %vm496, %v6267, %v6269
      %v6271 = vrot.slane %v6159, 1
      %v6272 = vrot.slane %v6160, 1
      %v6273 = vsel %vm496, %v6271, %v6272
      %v6274 = vrot.slane %v6161, 1
      %v6275 = vsel %vm496, %v6272, %v6274
      %v6276 = vrot.slane %v6162, 1
      %v6277 = vrot.slane %v6163, 1
      %v6278 = vsel %vm496, %v6276, %v6277
      %v6279 = vrot.slane %v6164, 1
      %v6280 = vsel %vm496, %v6277, %v6279
      %v6281 = vrot.slane %v6165, 1
      %v6282 = vrot.slane %v6166, 1
      %v6283 = vsel %vm496, %v6281, %v6282
      %v6284 = vrot.slane %v6167, 1
      %v6285 = vsel %vm496, %v6282, %v6284
      %v6286 = vrot.slane %v6168, 1
      %v6287 = vrot.slane %v6169, 1
      %v6288 = vsel %vm496, %v6286, %v6287
      %v6289 = vrot.slane %v6170, 1
      %v6290 = vsel %vm496, %v6287, %v6289
      %v6291 = vrot.slane %v6171, 1
      %v6292 = vrot.slane %v6172, 1
      %v6293 = vsel %vm496, %v6291, %v6292
      %v6294 = vrot.slane %v6173, 1
      %v6295 = vsel %vm496, %v6292, %v6294
      %v6296 = vrot.slane %v6174, 1
      %v6297 = vrot.slane %v6175, 1
      %v6298 = vsel %vm496, %v6296, %v6297
      %v6299 = vrot.slane %v6176, 1
      %v6300 = vsel %vm496, %v6297, %v6299
      %v6301 = vrot.slane %v6177, 1
      %v6302 = vrot.slane %v6178, 1
      %v6303 = vsel %vm496, %v6301, %v6302
      %v6304 = vrot.slane %v6179, 1
      %v6305 = vsel %vm496, %v6302, %v6304
      %v6306 = vrot.slane %v6180, 1
      %v6307 = vrot.slane %v6181, 1
      %v6308 = vsel %vm496, %v6306, %v6307
      %v6309 = vrot.slane %v6182, 1
      %v6310 = vsel %vm496, %v6307, %v6309
      %v6311 = vrot.slane %v6183, 1
      %v6312 = vrot.slane %v6184, 1
      %v6313 = vsel %vm496, %v6311, %v6312
      %v6314 = vrot.slane %v6185, 1
      %v6315 = vsel %vm496, %v6312, %v6314
      %v6316 = vrot.slane %v6186, 1
      %v6317 = vrot.slane %v6187, 1
      %v6318 = vsel %vm496, %v6316, %v6317
      %v6319 = vrot.slane %v6188, 1
      %v6320 = vsel %vm496, %v6317, %v6319
      %v6321 = vrot.slane %v6189, 1
      %v6322 = vrot.slane %v6190, 1
      %v6323 = vsel %vm496, %v6321, %v6322
      %v6324 = vrot.slane %v6191, 1
      %v6325 = vsel %vm496, %v6322, %v6324
      %v6326 = vrot.slane %v6144, 2
      %v6327 = vrot.slane %v6145, 2
      %v6328 = vsel %vm577, %v6326, %v6327
      %v6329 = vrot.slane %v6146, 2
      %v6330 = vsel %vm577, %v6327, %v6329
      %v6331 = vrot.slane %v6147, 2
      %v6332 = vrot.slane %v6148, 2
      %v6333 = vsel %vm577, %v6331, %v6332
      %v6334 = vrot.slane %v6149, 2
      %v6335 = vsel %vm577, %v6332, %v6334
      %v6336 = vrot.slane %v6150, 2
      %v6337 = vrot.slane %v6151, 2
      %v6338 = vsel %vm577, %v6336, %v6337
      %v6339 = vrot.slane %v6152, 2
      %v6340 = vsel %vm577, %v6337, %v6339
      %v6341 = vrot.slane %v6153, 2
      %v6342 = vrot.slane %v6154, 2
      %v6343 = vsel %vm577, %v6341, %v6342
      %v6344 = vrot.slane %v6155, 2
      %v6345 = vsel %vm577, %v6342, %v6344
      %v6346 = vrot.slane %v6156, 2
      %v6347 = vrot.slane %v6157, 2
      %v6348 = vsel %vm577, %v6346, %v6347
      %v6349 = vrot.slane %v6158, 2
      %v6350 = vsel %vm577, %v6347, %v6349
      %v6351 = vrot.slane %v6159, 2
      %v6352 = vrot.slane %v6160, 2
      %v6353 = vsel %vm577, %v6351, %v6352
      %v6354 = vrot.slane %v6161, 2
      %v6355 = vsel %vm577, %v6352, %v6354
      %v6356 = vrot.slane %v6162, 2
      %v6357 = vrot.slane %v6163, 2
      %v6358 = vsel %vm577, %v6356, %v6357
      %v6359 = vrot.slane %v6164, 2
      %v6360 = vsel %vm577, %v6357, %v6359
      %v6361 = vrot.slane %v6165, 2
      %v6362 = vrot.slane %v6166, 2
      %v6363 = vsel %vm577, %v6361, %v6362
      %v6364 = vrot.slane %v6167, 2
      %v6365 = vsel %vm577, %v6362, %v6364
      %v6366 = vrot.slane %v6168, 2
      %v6367 = vrot.slane %v6169, 2
      %v6368 = vsel %vm577, %v6366, %v6367
      %v6369 = vrot.slane %v6170, 2
      %v6370 = vsel %vm577, %v6367, %v6369
      %v6371 = vrot.slane %v6171, 2
      %v6372 = vrot.slane %v6172, 2
      %v6373 = vsel %vm577, %v6371, %v6372
      %v6374 = vrot.slane %v6173, 2
      %v6375 = vsel %vm577, %v6372, %v6374
      %v6376 = vrot.slane %v6174, 2
      %v6377 = vrot.slane %v6175, 2
      %v6378 = vsel %vm577, %v6376, %v6377
      %v6379 = vrot.slane %v6176, 2
      %v6380 = vsel %vm577, %v6377, %v6379
      %v6381 = vrot.slane %v6177, 2
      %v6382 = vrot.slane %v6178, 2
      %v6383 = vsel %vm577, %v6381, %v6382
      %v6384 = vrot.slane %v6179, 2
      %v6385 = vsel %vm577, %v6382, %v6384
      %v6386 = vrot.slane %v6180, 2
      %v6387 = vrot.slane %v6181, 2
      %v6388 = vsel %vm577, %v6386, %v6387
      %v6389 = vrot.slane %v6182, 2
      %v6390 = vsel %vm577, %v6387, %v6389
      %v6391 = vrot.slane %v6183, 2
      %v6392 = vrot.slane %v6184, 2
      %v6393 = vsel %vm577, %v6391, %v6392
      %v6394 = vrot.slane %v6185, 2
      %v6395 = vsel %vm577, %v6392, %v6394
      %v6396 = vrot.slane %v6186, 2
      %v6397 = vrot.slane %v6187, 2
      %v6398 = vsel %vm577, %v6396, %v6397
      %v6399 = vrot.slane %v6188, 2
      %v6400 = vsel %vm577, %v6397, %v6399
      %v6401 = vrot.slane %v6189, 2
      %v6402 = vrot.slane %v6190, 2
      %v6403 = vsel %vm577, %v6401, %v6402
      %v6404 = vrot.slane %v6191, 2
      %v6405 = vsel %vm577, %v6402, %v6404
      %v6409 = vrot.slane %v6192, 1
      %v6410 = vrot.slane %v6193, 1
      %v6411 = vsel %vm496, %v6409, %v6410
      %v6412 = vrot.slane %v6194, 1
      %v6413 = vsel %vm496, %v6410, %v6412
      %v6414 = vrot.slane %v6192, 2
      %v6415 = vrot.slane %v6193, 2
      %v6416 = vsel %vm577, %v6414, %v6415
      %v6417 = vrot.slane %v6194, 2
      %v6418 = vsel %vm577, %v6415, %v6417
      %v6422 = vrot.slane %v6195, 1
      %v6423 = vrot.slane %v6196, 1
      %v6424 = vsel %vm496, %v6422, %v6423
      %v6425 = vrot.slane %v6197, 1
      %v6426 = vsel %vm496, %v6423, %v6425
      %v6427 = vrot.slane %v6195, 2
      %v6428 = vrot.slane %v6196, 2
      %v6429 = vsel %vm577, %v6427, %v6428
      %v6430 = vrot.slane %v6197, 2
      %v6431 = vsel %vm577, %v6428, %v6430
      %6464 = vrot.lane.b32.xlu0 %v6248, 16
      %v6465 = vpop.permute.xlu0 %6464
      %6466 = vrot.lane.b32.xlu0 %v6250, 16
      %v6467 = vpop.permute.xlu0 %6466
      %6468 = vrot.lane.b32.xlu0 %v6253, 16
      %v6469 = vpop.permute.xlu0 %6468
      %6470 = vrot.lane.b32.xlu0 %v6255, 16
      %v6471 = vpop.permute.xlu0 %6470
      %6472 = vrot.lane.b32.xlu0 %v6258, 16
      %v6473 = vpop.permute.xlu0 %6472
      %6474 = vrot.lane.b32.xlu0 %v6260, 16
      %v6475 = vpop.permute.xlu0 %6474
      %6476 = vrot.lane.b32.xlu0 %v6263, 16
      %v6477 = vpop.permute.xlu0 %6476
      %6478 = vrot.lane.b32.xlu0 %v6265, 16
      %v6479 = vpop.permute.xlu0 %6478
      %6480 = vrot.lane.b32.xlu0 %v6268, 16
      %v6481 = vpop.permute.xlu0 %6480
      %6482 = vrot.lane.b32.xlu0 %v6270, 16
      %v6483 = vpop.permute.xlu0 %6482
      %6484 = vrot.lane.b32.xlu0 %v6273, 16
      %v6485 = vpop.permute.xlu0 %6484
      %6486 = vrot.lane.b32.xlu0 %v6275, 16
      %v6487 = vpop.permute.xlu0 %6486
      %6488 = vrot.lane.b32.xlu0 %v6278, 16
      %v6489 = vpop.permute.xlu0 %6488
      %6490 = vrot.lane.b32.xlu0 %v6280, 16
      %v6491 = vpop.permute.xlu0 %6490
      %6492 = vrot.lane.b32.xlu0 %v6283, 16
      %v6493 = vpop.permute.xlu0 %6492
      %6494 = vrot.lane.b32.xlu0 %v6285, 16
      %v6495 = vpop.permute.xlu0 %6494
      %6496 = vrot.lane.b32.xlu0 %v6288, 16
      %v6497 = vpop.permute.xlu0 %6496
      %6498 = vrot.lane.b32.xlu0 %v6290, 16
      %v6499 = vpop.permute.xlu0 %6498
      %6500 = vrot.lane.b32.xlu0 %v6293, 16
      %v6501 = vpop.permute.xlu0 %6500
      %6502 = vrot.lane.b32.xlu0 %v6295, 16
      %v6503 = vpop.permute.xlu0 %6502
      %6504 = vrot.lane.b32.xlu0 %v6298, 16
      %v6505 = vpop.permute.xlu0 %6504
      %6506 = vrot.lane.b32.xlu0 %v6300, 16
      %v6507 = vpop.permute.xlu0 %6506
      %6508 = vrot.lane.b32.xlu0 %v6303, 16
      %v6509 = vpop.permute.xlu0 %6508
      %6510 = vrot.lane.b32.xlu0 %v6305, 16
      %v6511 = vpop.permute.xlu0 %6510
      %6512 = vrot.lane.b32.xlu0 %v6308, 16
      %v6513 = vpop.permute.xlu0 %6512
      %6514 = vrot.lane.b32.xlu0 %v6310, 16
      %v6515 = vpop.permute.xlu0 %6514
      %6516 = vrot.lane.b32.xlu0 %v6313, 16
      %v6517 = vpop.permute.xlu0 %6516
      %6518 = vrot.lane.b32.xlu0 %v6315, 16
      %v6519 = vpop.permute.xlu0 %6518
      %6520 = vrot.lane.b32.xlu0 %v6318, 16
      %v6521 = vpop.permute.xlu0 %6520
      %6522 = vrot.lane.b32.xlu0 %v6320, 16
      %v6523 = vpop.permute.xlu0 %6522
      %6524 = vrot.lane.b32.xlu0 %v6323, 16
      %v6525 = vpop.permute.xlu0 %6524
      %6526 = vrot.lane.b32.xlu0 %v6325, 16
      %v6527 = vpop.permute.xlu0 %6526
      %6560 = vrot.lane.b32.xlu0 %v6328, 32
      %v6561 = vpop.permute.xlu0 %6560
      %6562 = vrot.lane.b32.xlu0 %v6330, 32
      %v6563 = vpop.permute.xlu0 %6562
      %6564 = vrot.lane.b32.xlu0 %v6333, 32
      %v6565 = vpop.permute.xlu0 %6564
      %6566 = vrot.lane.b32.xlu0 %v6335, 32
      %v6567 = vpop.permute.xlu0 %6566
      %6568 = vrot.lane.b32.xlu0 %v6338, 32
      %v6569 = vpop.permute.xlu0 %6568
      %6570 = vrot.lane.b32.xlu0 %v6340, 32
      %v6571 = vpop.permute.xlu0 %6570
      %6572 = vrot.lane.b32.xlu0 %v6343, 32
      %v6573 = vpop.permute.xlu0 %6572
      %6574 = vrot.lane.b32.xlu0 %v6345, 32
      %v6575 = vpop.permute.xlu0 %6574
      %6576 = vrot.lane.b32.xlu0 %v6348, 32
      %v6577 = vpop.permute.xlu0 %6576
      %6578 = vrot.lane.b32.xlu0 %v6350, 32
      %v6579 = vpop.permute.xlu0 %6578
      %6580 = vrot.lane.b32.xlu0 %v6353, 32
      %v6581 = vpop.permute.xlu0 %6580
      %6582 = vrot.lane.b32.xlu0 %v6355, 32
      %v6583 = vpop.permute.xlu0 %6582
      %6584 = vrot.lane.b32.xlu0 %v6358, 32
      %v6585 = vpop.permute.xlu0 %6584
      %6586 = vrot.lane.b32.xlu0 %v6360, 32
      %v6587 = vpop.permute.xlu0 %6586
      %6588 = vrot.lane.b32.xlu0 %v6363, 32
      %v6589 = vpop.permute.xlu0 %6588
      %6590 = vrot.lane.b32.xlu0 %v6365, 32
      %v6591 = vpop.permute.xlu0 %6590
      %6592 = vrot.lane.b32.xlu0 %v6368, 32
      %v6593 = vpop.permute.xlu0 %6592
      %6594 = vrot.lane.b32.xlu0 %v6370, 32
      %v6595 = vpop.permute.xlu0 %6594
      %6596 = vrot.lane.b32.xlu0 %v6373, 32
      %v6597 = vpop.permute.xlu0 %6596
      %6598 = vrot.lane.b32.xlu0 %v6375, 32
      %v6599 = vpop.permute.xlu0 %6598
      %6600 = vrot.lane.b32.xlu0 %v6378, 32
      %v6601 = vpop.permute.xlu0 %6600
      %6602 = vrot.lane.b32.xlu0 %v6380, 32
      %v6603 = vpop.permute.xlu0 %6602
      %6604 = vrot.lane.b32.xlu0 %v6383, 32
      %v6605 = vpop.permute.xlu0 %6604
      %6606 = vrot.lane.b32.xlu0 %v6385, 32
      %v6607 = vpop.permute.xlu0 %6606
      %6608 = vrot.lane.b32.xlu0 %v6388, 32
      %v6609 = vpop.permute.xlu0 %6608
      %6610 = vrot.lane.b32.xlu0 %v6390, 32
      %v6611 = vpop.permute.xlu0 %6610
      %6612 = vrot.lane.b32.xlu0 %v6393, 32
      %v6613 = vpop.permute.xlu0 %6612
      %6614 = vrot.lane.b32.xlu0 %v6395, 32
      %v6615 = vpop.permute.xlu0 %6614
      %6616 = vrot.lane.b32.xlu0 %v6398, 32
      %v6617 = vpop.permute.xlu0 %6616
      %6618 = vrot.lane.b32.xlu0 %v6400, 32
      %v6619 = vpop.permute.xlu0 %6618
      %6620 = vrot.lane.b32.xlu0 %v6403, 32
      %v6621 = vpop.permute.xlu0 %6620
      %6622 = vrot.lane.b32.xlu0 %v6405, 32
      %v6623 = vpop.permute.xlu0 %6622
      %6656 = vrot.lane.b32.xlu0 %v6147, 48
      %v6657 = vpop.permute.xlu0 %6656
      %6658 = vrot.lane.b32.xlu0 %v6148, 48
      %v6659 = vpop.permute.xlu0 %6658
      %6660 = vrot.lane.b32.xlu0 %v6150, 48
      %v6661 = vpop.permute.xlu0 %6660
      %6662 = vrot.lane.b32.xlu0 %v6151, 48
      %v6663 = vpop.permute.xlu0 %6662
      %6664 = vrot.lane.b32.xlu0 %v6153, 48
      %v6665 = vpop.permute.xlu0 %6664
      %6666 = vrot.lane.b32.xlu0 %v6154, 48
      %v6667 = vpop.permute.xlu0 %6666
      %6668 = vrot.lane.b32.xlu0 %v6156, 48
      %v6669 = vpop.permute.xlu0 %6668
      %6670 = vrot.lane.b32.xlu0 %v6157, 48
      %v6671 = vpop.permute.xlu0 %6670
      %6672 = vrot.lane.b32.xlu0 %v6159, 48
      %v6673 = vpop.permute.xlu0 %6672
      %6674 = vrot.lane.b32.xlu0 %v6160, 48
      %v6675 = vpop.permute.xlu0 %6674
      %6676 = vrot.lane.b32.xlu0 %v6162, 48
      %v6677 = vpop.permute.xlu0 %6676
      %6678 = vrot.lane.b32.xlu0 %v6163, 48
      %v6679 = vpop.permute.xlu0 %6678
      %6680 = vrot.lane.b32.xlu0 %v6165, 48
      %v6681 = vpop.permute.xlu0 %6680
      %6682 = vrot.lane.b32.xlu0 %v6166, 48
      %v6683 = vpop.permute.xlu0 %6682
      %6684 = vrot.lane.b32.xlu0 %v6168, 48
      %v6685 = vpop.permute.xlu0 %6684
      %6686 = vrot.lane.b32.xlu0 %v6169, 48
      %v6687 = vpop.permute.xlu0 %6686
      %6688 = vrot.lane.b32.xlu0 %v6171, 48
      %v6689 = vpop.permute.xlu0 %6688
      %6690 = vrot.lane.b32.xlu0 %v6172, 48
      %v6691 = vpop.permute.xlu0 %6690
      %6692 = vrot.lane.b32.xlu0 %v6174, 48
      %v6693 = vpop.permute.xlu0 %6692
      %6694 = vrot.lane.b32.xlu0 %v6175, 48
      %v6695 = vpop.permute.xlu0 %6694
      %6696 = vrot.lane.b32.xlu0 %v6177, 48
      %v6697 = vpop.permute.xlu0 %6696
      %6698 = vrot.lane.b32.xlu0 %v6178, 48
      %v6699 = vpop.permute.xlu0 %6698
      %6700 = vrot.lane.b32.xlu0 %v6180, 48
      %v6701 = vpop.permute.xlu0 %6700
      %6702 = vrot.lane.b32.xlu0 %v6181, 48
      %v6703 = vpop.permute.xlu0 %6702
      %6704 = vrot.lane.b32.xlu0 %v6183, 48
      %v6705 = vpop.permute.xlu0 %6704
      %6706 = vrot.lane.b32.xlu0 %v6184, 48
      %v6707 = vpop.permute.xlu0 %6706
      %6708 = vrot.lane.b32.xlu0 %v6186, 48
      %v6709 = vpop.permute.xlu0 %6708
      %6710 = vrot.lane.b32.xlu0 %v6187, 48
      %v6711 = vpop.permute.xlu0 %6710
      %6712 = vrot.lane.b32.xlu0 %v6189, 48
      %v6713 = vpop.permute.xlu0 %6712
      %6714 = vrot.lane.b32.xlu0 %v6190, 48
      %v6715 = vpop.permute.xlu0 %6714
      %6716 = vrot.lane.b32.xlu0 %v6192, 48
      %v6717 = vpop.permute.xlu0 %6716
      %6718 = vrot.lane.b32.xlu0 %v6193, 48
      %v6719 = vpop.permute.xlu0 %6718
      %6752 = vrot.lane.b32.xlu0 %v6253, 64
      %v6753 = vpop.permute.xlu0 %6752
      %6754 = vrot.lane.b32.xlu0 %v6255, 64
      %v6755 = vpop.permute.xlu0 %6754
      %6756 = vrot.lane.b32.xlu0 %v6258, 64
      %v6757 = vpop.permute.xlu0 %6756
      %6758 = vrot.lane.b32.xlu0 %v6260, 64
      %v6759 = vpop.permute.xlu0 %6758
      %6760 = vrot.lane.b32.xlu0 %v6263, 64
      %v6761 = vpop.permute.xlu0 %6760
      %6762 = vrot.lane.b32.xlu0 %v6265, 64
      %v6763 = vpop.permute.xlu0 %6762
      %6764 = vrot.lane.b32.xlu0 %v6268, 64
      %v6765 = vpop.permute.xlu0 %6764
      %6766 = vrot.lane.b32.xlu0 %v6270, 64
      %v6767 = vpop.permute.xlu0 %6766
      %6768 = vrot.lane.b32.xlu0 %v6273, 64
      %v6769 = vpop.permute.xlu0 %6768
      %6770 = vrot.lane.b32.xlu0 %v6275, 64
      %v6771 = vpop.permute.xlu0 %6770
      %6772 = vrot.lane.b32.xlu0 %v6278, 64
      %v6773 = vpop.permute.xlu0 %6772
      %6774 = vrot.lane.b32.xlu0 %v6280, 64
      %v6775 = vpop.permute.xlu0 %6774
      %6776 = vrot.lane.b32.xlu0 %v6283, 64
      %v6777 = vpop.permute.xlu0 %6776
      %6778 = vrot.lane.b32.xlu0 %v6285, 64
      %v6779 = vpop.permute.xlu0 %6778
      %6780 = vrot.lane.b32.xlu0 %v6288, 64
      %v6781 = vpop.permute.xlu0 %6780
      %6782 = vrot.lane.b32.xlu0 %v6290, 64
      %v6783 = vpop.permute.xlu0 %6782
      %6784 = vrot.lane.b32.xlu0 %v6293, 64
      %v6785 = vpop.permute.xlu0 %6784
      %6786 = vrot.lane.b32.xlu0 %v6295, 64
      %v6787 = vpop.permute.xlu0 %6786
      %6788 = vrot.lane.b32.xlu0 %v6298, 64
      %v6789 = vpop.permute.xlu0 %6788
      %6790 = vrot.lane.b32.xlu0 %v6300, 64
      %v6791 = vpop.permute.xlu0 %6790
      %6792 = vrot.lane.b32.xlu0 %v6303, 64
      %v6793 = vpop.permute.xlu0 %6792
      %6794 = vrot.lane.b32.xlu0 %v6305, 64
      %v6795 = vpop.permute.xlu0 %6794
      %6796 = vrot.lane.b32.xlu0 %v6308, 64
      %v6797 = vpop.permute.xlu0 %6796
      %6798 = vrot.lane.b32.xlu0 %v6310, 64
      %v6799 = vpop.permute.xlu0 %6798
      %6800 = vrot.lane.b32.xlu0 %v6313, 64
      %v6801 = vpop.permute.xlu0 %6800
      %6802 = vrot.lane.b32.xlu0 %v6315, 64
      %v6803 = vpop.permute.xlu0 %6802
      %6804 = vrot.lane.b32.xlu0 %v6318, 64
      %v6805 = vpop.permute.xlu0 %6804
      %6806 = vrot.lane.b32.xlu0 %v6320, 64
      %v6807 = vpop.permute.xlu0 %6806
      %6808 = vrot.lane.b32.xlu0 %v6323, 64
      %v6809 = vpop.permute.xlu0 %6808
      %6810 = vrot.lane.b32.xlu0 %v6325, 64
      %v6811 = vpop.permute.xlu0 %6810
      %6812 = vrot.lane.b32.xlu0 %v6411, 64
      %v6813 = vpop.permute.xlu0 %6812
      %6814 = vrot.lane.b32.xlu0 %v6413, 64
      %v6815 = vpop.permute.xlu0 %6814
      %6848 = vrot.lane.b32.xlu0 %v6333, 80
      %v6849 = vpop.permute.xlu0 %6848
      %6850 = vrot.lane.b32.xlu0 %v6335, 80
      %v6851 = vpop.permute.xlu0 %6850
      %6852 = vrot.lane.b32.xlu0 %v6338, 80
      %v6853 = vpop.permute.xlu0 %6852
      %6854 = vrot.lane.b32.xlu0 %v6340, 80
      %v6855 = vpop.permute.xlu0 %6854
      %6856 = vrot.lane.b32.xlu0 %v6343, 80
      %v6857 = vpop.permute.xlu0 %6856
      %6858 = vrot.lane.b32.xlu0 %v6345, 80
      %v6859 = vpop.permute.xlu0 %6858
      %6860 = vrot.lane.b32.xlu0 %v6348, 80
      %v6861 = vpop.permute.xlu0 %6860
      %6862 = vrot.lane.b32.xlu0 %v6350, 80
      %v6863 = vpop.permute.xlu0 %6862
      %6864 = vrot.lane.b32.xlu0 %v6353, 80
      %v6865 = vpop.permute.xlu0 %6864
      %6866 = vrot.lane.b32.xlu0 %v6355, 80
      %v6867 = vpop.permute.xlu0 %6866
      %6868 = vrot.lane.b32.xlu0 %v6358, 80
      %v6869 = vpop.permute.xlu0 %6868
      %6870 = vrot.lane.b32.xlu0 %v6360, 80
      %v6871 = vpop.permute.xlu0 %6870
      %6872 = vrot.lane.b32.xlu0 %v6363, 80
      %v6873 = vpop.permute.xlu0 %6872
      %6874 = vrot.lane.b32.xlu0 %v6365, 80
      %v6875 = vpop.permute.xlu0 %6874
      %6876 = vrot.lane.b32.xlu0 %v6368, 80
      %v6877 = vpop.permute.xlu0 %6876
      %6878 = vrot.lane.b32.xlu0 %v6370, 80
      %v6879 = vpop.permute.xlu0 %6878
      %6880 = vrot.lane.b32.xlu0 %v6373, 80
      %v6881 = vpop.permute.xlu0 %6880
      %6882 = vrot.lane.b32.xlu0 %v6375, 80
      %v6883 = vpop.permute.xlu0 %6882
      %6884 = vrot.lane.b32.xlu0 %v6378, 80
      %v6885 = vpop.permute.xlu0 %6884
      %6886 = vrot.lane.b32.xlu0 %v6380, 80
      %v6887 = vpop.permute.xlu0 %6886
      %6888 = vrot.lane.b32.xlu0 %v6383, 80
      %v6889 = vpop.permute.xlu0 %6888
      %6890 = vrot.lane.b32.xlu0 %v6385, 80
      %v6891 = vpop.permute.xlu0 %6890
      %6892 = vrot.lane.b32.xlu0 %v6388, 80
      %v6893 = vpop.permute.xlu0 %6892
      %6894 = vrot.lane.b32.xlu0 %v6390, 80
      %v6895 = vpop.permute.xlu0 %6894
      %6896 = vrot.lane.b32.xlu0 %v6393, 80
      %v6897 = vpop.permute.xlu0 %6896
      %6898 = vrot.lane.b32.xlu0 %v6395, 80
      %v6899 = vpop.permute.xlu0 %6898
      %6900 = vrot.lane.b32.xlu0 %v6398, 80
      %v6901 = vpop.permute.xlu0 %6900
      %6902 = vrot.lane.b32.xlu0 %v6400, 80
      %v6903 = vpop.permute.xlu0 %6902
      %6904 = vrot.lane.b32.xlu0 %v6403, 80
      %v6905 = vpop.permute.xlu0 %6904
      %6906 = vrot.lane.b32.xlu0 %v6405, 80
      %v6907 = vpop.permute.xlu0 %6906
      %6908 = vrot.lane.b32.xlu0 %v6416, 80
      %v6909 = vpop.permute.xlu0 %6908
      %6910 = vrot.lane.b32.xlu0 %v6418, 80
      %v6911 = vpop.permute.xlu0 %6910
      %6944 = vrot.lane.b32.xlu0 %v6150, 96
      %v6945 = vpop.permute.xlu0 %6944
      %6946 = vrot.lane.b32.xlu0 %v6151, 96
      %v6947 = vpop.permute.xlu0 %6946
      %6948 = vrot.lane.b32.xlu0 %v6153, 96
      %v6949 = vpop.permute.xlu0 %6948
      %6950 = vrot.lane.b32.xlu0 %v6154, 96
      %v6951 = vpop.permute.xlu0 %6950
      %6952 = vrot.lane.b32.xlu0 %v6156, 96
      %v6953 = vpop.permute.xlu0 %6952
      %6954 = vrot.lane.b32.xlu0 %v6157, 96
      %v6955 = vpop.permute.xlu0 %6954
      %6956 = vrot.lane.b32.xlu0 %v6159, 96
      %v6957 = vpop.permute.xlu0 %6956
      %6958 = vrot.lane.b32.xlu0 %v6160, 96
      %v6959 = vpop.permute.xlu0 %6958
      %6960 = vrot.lane.b32.xlu0 %v6162, 96
      %v6961 = vpop.permute.xlu0 %6960
      %6962 = vrot.lane.b32.xlu0 %v6163, 96
      %v6963 = vpop.permute.xlu0 %6962
      %6964 = vrot.lane.b32.xlu0 %v6165, 96
      %v6965 = vpop.permute.xlu0 %6964
      %6966 = vrot.lane.b32.xlu0 %v6166, 96
      %v6967 = vpop.permute.xlu0 %6966
      %6968 = vrot.lane.b32.xlu0 %v6168, 96
      %v6969 = vpop.permute.xlu0 %6968
      %6970 = vrot.lane.b32.xlu0 %v6169, 96
      %v6971 = vpop.permute.xlu0 %6970
      %6972 = vrot.lane.b32.xlu0 %v6171, 96
      %v6973 = vpop.permute.xlu0 %6972
      %6974 = vrot.lane.b32.xlu0 %v6172, 96
      %v6975 = vpop.permute.xlu0 %6974
      %6976 = vrot.lane.b32.xlu0 %v6174, 96
      %v6977 = vpop.permute.xlu0 %6976
      %6978 = vrot.lane.b32.xlu0 %v6175, 96
      %v6979 = vpop.permute.xlu0 %6978
      %6980 = vrot.lane.b32.xlu0 %v6177, 96
      %v6981 = vpop.permute.xlu0 %6980
      %6982 = vrot.lane.b32.xlu0 %v6178, 96
      %v6983 = vpop.permute.xlu0 %6982
      %6984 = vrot.lane.b32.xlu0 %v6180, 96
      %v6985 = vpop.permute.xlu0 %6984
      %6986 = vrot.lane.b32.xlu0 %v6181, 96
      %v6987 = vpop.permute.xlu0 %6986
      %6988 = vrot.lane.b32.xlu0 %v6183, 96
      %v6989 = vpop.permute.xlu0 %6988
      %6990 = vrot.lane.b32.xlu0 %v6184, 96
      %v6991 = vpop.permute.xlu0 %6990
      %6992 = vrot.lane.b32.xlu0 %v6186, 96
      %v6993 = vpop.permute.xlu0 %6992
      %6994 = vrot.lane.b32.xlu0 %v6187, 96
      %v6995 = vpop.permute.xlu0 %6994
      %6996 = vrot.lane.b32.xlu0 %v6189, 96
      %v6997 = vpop.permute.xlu0 %6996
      %6998 = vrot.lane.b32.xlu0 %v6190, 96
      %v6999 = vpop.permute.xlu0 %6998
      %7000 = vrot.lane.b32.xlu0 %v6192, 96
      %v7001 = vpop.permute.xlu0 %7000
      %7002 = vrot.lane.b32.xlu0 %v6193, 96
      %v7003 = vpop.permute.xlu0 %7002
      %7004 = vrot.lane.b32.xlu0 %v6195, 96
      %v7005 = vpop.permute.xlu0 %7004
      %7006 = vrot.lane.b32.xlu0 %v6196, 96
      %v7007 = vpop.permute.xlu0 %7006
      %7040 = vrot.lane.b32.xlu0 %v6258, 112
      %v7041 = vpop.permute.xlu0 %7040
      %7042 = vrot.lane.b32.xlu0 %v6260, 112
      %v7043 = vpop.permute.xlu0 %7042
      %7044 = vrot.lane.b32.xlu0 %v6263, 112
      %v7045 = vpop.permute.xlu0 %7044
      %7046 = vrot.lane.b32.xlu0 %v6265, 112
      %v7047 = vpop.permute.xlu0 %7046
      %7048 = vrot.lane.b32.xlu0 %v6268, 112
      %v7049 = vpop.permute.xlu0 %7048
      %7050 = vrot.lane.b32.xlu0 %v6270, 112
      %v7051 = vpop.permute.xlu0 %7050
      %7052 = vrot.lane.b32.xlu0 %v6273, 112
      %v7053 = vpop.permute.xlu0 %7052
      %7054 = vrot.lane.b32.xlu0 %v6275, 112
      %v7055 = vpop.permute.xlu0 %7054
      %7056 = vrot.lane.b32.xlu0 %v6278, 112
      %v7057 = vpop.permute.xlu0 %7056
      %7058 = vrot.lane.b32.xlu0 %v6280, 112
      %v7059 = vpop.permute.xlu0 %7058
      %7060 = vrot.lane.b32.xlu0 %v6283, 112
      %v7061 = vpop.permute.xlu0 %7060
      %7062 = vrot.lane.b32.xlu0 %v6285, 112
      %v7063 = vpop.permute.xlu0 %7062
      %7064 = vrot.lane.b32.xlu0 %v6288, 112
      %v7065 = vpop.permute.xlu0 %7064
      %7066 = vrot.lane.b32.xlu0 %v6290, 112
      %v7067 = vpop.permute.xlu0 %7066
      %7068 = vrot.lane.b32.xlu0 %v6293, 112
      %v7069 = vpop.permute.xlu0 %7068
      %7070 = vrot.lane.b32.xlu0 %v6295, 112
      %v7071 = vpop.permute.xlu0 %7070
      %7072 = vrot.lane.b32.xlu0 %v6298, 112
      %v7073 = vpop.permute.xlu0 %7072
      %7074 = vrot.lane.b32.xlu0 %v6300, 112
      %v7075 = vpop.permute.xlu0 %7074
      %7076 = vrot.lane.b32.xlu0 %v6303, 112
      %v7077 = vpop.permute.xlu0 %7076
      %7078 = vrot.lane.b32.xlu0 %v6305, 112
      %v7079 = vpop.permute.xlu0 %7078
      %7080 = vrot.lane.b32.xlu0 %v6308, 112
      %v7081 = vpop.permute.xlu0 %7080
      %7082 = vrot.lane.b32.xlu0 %v6310, 112
      %v7083 = vpop.permute.xlu0 %7082
      %7084 = vrot.lane.b32.xlu0 %v6313, 112
      %v7085 = vpop.permute.xlu0 %7084
      %7086 = vrot.lane.b32.xlu0 %v6315, 112
      %v7087 = vpop.permute.xlu0 %7086
      %7088 = vrot.lane.b32.xlu0 %v6318, 112
      %v7089 = vpop.permute.xlu0 %7088
      %7090 = vrot.lane.b32.xlu0 %v6320, 112
      %v7091 = vpop.permute.xlu0 %7090
      %7092 = vrot.lane.b32.xlu0 %v6323, 112
      %v7093 = vpop.permute.xlu0 %7092
      %7094 = vrot.lane.b32.xlu0 %v6325, 112
      %v7095 = vpop.permute.xlu0 %7094
      %7096 = vrot.lane.b32.xlu0 %v6411, 112
      %v7097 = vpop.permute.xlu0 %7096
      %7098 = vrot.lane.b32.xlu0 %v6413, 112
      %v7099 = vpop.permute.xlu0 %7098
      %7100 = vrot.lane.b32.xlu0 %v6424, 112
      %v7101 = vpop.permute.xlu0 %7100
      %7102 = vrot.lane.b32.xlu0 %v6426, 112
      %v7103 = vpop.permute.xlu0 %7102
      %v7136 = vsel %vm253, %v6144, %v6465
      %v7137 = vsel %vm253, %v6145, %v6467
      %v7138 = vsel %vm253, %v6147, %v6469
      %v7139 = vsel %vm253, %v6148, %v6471
      %v7140 = vsel %vm253, %v6150, %v6473
      %v7141 = vsel %vm253, %v6151, %v6475
      %v7142 = vsel %vm253, %v6153, %v6477
      %v7143 = vsel %vm253, %v6154, %v6479
      %v7144 = vsel %vm253, %v6156, %v6481
      %v7145 = vsel %vm253, %v6157, %v6483
      %v7146 = vsel %vm253, %v6159, %v6485
      %v7147 = vsel %vm253, %v6160, %v6487
      %v7148 = vsel %vm253, %v6162, %v6489
      %v7149 = vsel %vm253, %v6163, %v6491
      %v7150 = vsel %vm253, %v6165, %v6493
      %v7151 = vsel %vm253, %v6166, %v6495
      %v7152 = vsel %vm253, %v6168, %v6497
      %v7153 = vsel %vm253, %v6169, %v6499
      %v7154 = vsel %vm253, %v6171, %v6501
      %v7155 = vsel %vm253, %v6172, %v6503
      %v7156 = vsel %vm253, %v6174, %v6505
      %v7157 = vsel %vm253, %v6175, %v6507
      %v7158 = vsel %vm253, %v6177, %v6509
      %v7159 = vsel %vm253, %v6178, %v6511
      %v7160 = vsel %vm253, %v6180, %v6513
      %v7161 = vsel %vm253, %v6181, %v6515
      %v7162 = vsel %vm253, %v6183, %v6517
      %v7163 = vsel %vm253, %v6184, %v6519
      %v7164 = vsel %vm253, %v6186, %v6521
      %v7165 = vsel %vm253, %v6187, %v6523
      %v7166 = vsel %vm253, %v6189, %v6525
      %v7167 = vsel %vm253, %v6190, %v6527
      %v7168 = vsel %vm1420, %v7136, %v6561
      %v7169 = vsel %vm1420, %v7137, %v6563
      %v7170 = vsel %vm1420, %v7138, %v6565
      %v7171 = vsel %vm1420, %v7139, %v6567
      %v7172 = vsel %vm1420, %v7140, %v6569
      %v7173 = vsel %vm1420, %v7141, %v6571
      %v7174 = vsel %vm1420, %v7142, %v6573
      %v7175 = vsel %vm1420, %v7143, %v6575
      %v7176 = vsel %vm1420, %v7144, %v6577
      %v7177 = vsel %vm1420, %v7145, %v6579
      %v7178 = vsel %vm1420, %v7146, %v6581
      %v7179 = vsel %vm1420, %v7147, %v6583
      %v7180 = vsel %vm1420, %v7148, %v6585
      %v7181 = vsel %vm1420, %v7149, %v6587
      %v7182 = vsel %vm1420, %v7150, %v6589
      %v7183 = vsel %vm1420, %v7151, %v6591
      %v7184 = vsel %vm1420, %v7152, %v6593
      %v7185 = vsel %vm1420, %v7153, %v6595
      %v7186 = vsel %vm1420, %v7154, %v6597
      %v7187 = vsel %vm1420, %v7155, %v6599
      %v7188 = vsel %vm1420, %v7156, %v6601
      %v7189 = vsel %vm1420, %v7157, %v6603
      %v7190 = vsel %vm1420, %v7158, %v6605
      %v7191 = vsel %vm1420, %v7159, %v6607
      %v7192 = vsel %vm1420, %v7160, %v6609
      %v7193 = vsel %vm1420, %v7161, %v6611
      %v7194 = vsel %vm1420, %v7162, %v6613
      %v7195 = vsel %vm1420, %v7163, %v6615
      %v7196 = vsel %vm1420, %v7164, %v6617
      %v7197 = vsel %vm1420, %v7165, %v6619
      %v7198 = vsel %vm1420, %v7166, %v6621
      %v7199 = vsel %vm1420, %v7167, %v6623
      %v7200 = vsel %vm1453, %v7168, %v6657
      %v7201 = vsel %vm1453, %v7169, %v6659
      %v7202 = vsel %vm1453, %v7170, %v6661
      %v7203 = vsel %vm1453, %v7171, %v6663
      %v7204 = vsel %vm1453, %v7172, %v6665
      %v7205 = vsel %vm1453, %v7173, %v6667
      %v7206 = vsel %vm1453, %v7174, %v6669
      %v7207 = vsel %vm1453, %v7175, %v6671
      %v7208 = vsel %vm1453, %v7176, %v6673
      %v7209 = vsel %vm1453, %v7177, %v6675
      %v7210 = vsel %vm1453, %v7178, %v6677
      %v7211 = vsel %vm1453, %v7179, %v6679
      %v7212 = vsel %vm1453, %v7180, %v6681
      %v7213 = vsel %vm1453, %v7181, %v6683
      %v7214 = vsel %vm1453, %v7182, %v6685
      %v7215 = vsel %vm1453, %v7183, %v6687
      %v7216 = vsel %vm1453, %v7184, %v6689
      %v7217 = vsel %vm1453, %v7185, %v6691
      %v7218 = vsel %vm1453, %v7186, %v6693
      %v7219 = vsel %vm1453, %v7187, %v6695
      %v7220 = vsel %vm1453, %v7188, %v6697
      %v7221 = vsel %vm1453, %v7189, %v6699
      %v7222 = vsel %vm1453, %v7190, %v6701
      %v7223 = vsel %vm1453, %v7191, %v6703
      %v7224 = vsel %vm1453, %v7192, %v6705
      %v7225 = vsel %vm1453, %v7193, %v6707
      %v7226 = vsel %vm1453, %v7194, %v6709
      %v7227 = vsel %vm1453, %v7195, %v6711
      %v7228 = vsel %vm1453, %v7196, %v6713
      %v7229 = vsel %vm1453, %v7197, %v6715
      %v7230 = vsel %vm1453, %v7198, %v6717
      %v7231 = vsel %vm1453, %v7199, %v6719
      %v7232 = vsel %vm1486, %v7200, %v6753
      %v7233 = vsel %vm1486, %v7201, %v6755
      %v7234 = vsel %vm1486, %v7202, %v6757
      %v7235 = vsel %vm1486, %v7203, %v6759
      %v7236 = vsel %vm1486, %v7204, %v6761
      %v7237 = vsel %vm1486, %v7205, %v6763
      %v7238 = vsel %vm1486, %v7206, %v6765
      %v7239 = vsel %vm1486, %v7207, %v6767
      %v7240 = vsel %vm1486, %v7208, %v6769
      %v7241 = vsel %vm1486, %v7209, %v6771
      %v7242 = vsel %vm1486, %v7210, %v6773
      %v7243 = vsel %vm1486, %v7211, %v6775
      %v7244 = vsel %vm1486, %v7212, %v6777
      %v7245 = vsel %vm1486, %v7213, %v6779
      %v7246 = vsel %vm1486, %v7214, %v6781
      %v7247 = vsel %vm1486, %v7215, %v6783
      %v7248 = vsel %vm1486, %v7216, %v6785
      %v7249 = vsel %vm1486, %v7217, %v6787
      %v7250 = vsel %vm1486, %v7218, %v6789
      %v7251 = vsel %vm1486, %v7219, %v6791
      %v7252 = vsel %vm1486, %v7220, %v6793
      %v7253 = vsel %vm1486, %v7221, %v6795
      %v7254 = vsel %vm1486, %v7222, %v6797
      %v7255 = vsel %vm1486, %v7223, %v6799
      %v7256 = vsel %vm1486, %v7224, %v6801
      %v7257 = vsel %vm1486, %v7225, %v6803
      %v7258 = vsel %vm1486, %v7226, %v6805
      %v7259 = vsel %vm1486, %v7227, %v6807
      %v7260 = vsel %vm1486, %v7228, %v6809
      %v7261 = vsel %vm1486, %v7229, %v6811
      %v7262 = vsel %vm1486, %v7230, %v6813
      %v7263 = vsel %vm1486, %v7231, %v6815
      %v7264 = vsel %vm1519, %v7232, %v6849
      %v7265 = vsel %vm1519, %v7233, %v6851
      %v7266 = vsel %vm1519, %v7234, %v6853
      %v7267 = vsel %vm1519, %v7235, %v6855
      %v7268 = vsel %vm1519, %v7236, %v6857
      %v7269 = vsel %vm1519, %v7237, %v6859
      %v7270 = vsel %vm1519, %v7238, %v6861
      %v7271 = vsel %vm1519, %v7239, %v6863
      %v7272 = vsel %vm1519, %v7240, %v6865
      %v7273 = vsel %vm1519, %v7241, %v6867
      %v7274 = vsel %vm1519, %v7242, %v6869
      %v7275 = vsel %vm1519, %v7243, %v6871
      %v7276 = vsel %vm1519, %v7244, %v6873
      %v7277 = vsel %vm1519, %v7245, %v6875
      %v7278 = vsel %vm1519, %v7246, %v6877
      %v7279 = vsel %vm1519, %v7247, %v6879
      %v7280 = vsel %vm1519, %v7248, %v6881
      %v7281 = vsel %vm1519, %v7249, %v6883
      %v7282 = vsel %vm1519, %v7250, %v6885
      %v7283 = vsel %vm1519, %v7251, %v6887
      %v7284 = vsel %vm1519, %v7252, %v6889
      %v7285 = vsel %vm1519, %v7253, %v6891
      %v7286 = vsel %vm1519, %v7254, %v6893
      %v7287 = vsel %vm1519, %v7255, %v6895
      %v7288 = vsel %vm1519, %v7256, %v6897
      %v7289 = vsel %vm1519, %v7257, %v6899
      %v7290 = vsel %vm1519, %v7258, %v6901
      %v7291 = vsel %vm1519, %v7259, %v6903
      %v7292 = vsel %vm1519, %v7260, %v6905
      %v7293 = vsel %vm1519, %v7261, %v6907
      %v7294 = vsel %vm1519, %v7262, %v6909
      %v7295 = vsel %vm1519, %v7263, %v6911
      %v7296 = vsel %vm1552, %v7264, %v6945
      %v7297 = vsel %vm1552, %v7265, %v6947
      %v7298 = vsel %vm1552, %v7266, %v6949
      %v7299 = vsel %vm1552, %v7267, %v6951
      %v7300 = vsel %vm1552, %v7268, %v6953
      %v7301 = vsel %vm1552, %v7269, %v6955
      %v7302 = vsel %vm1552, %v7270, %v6957
      %v7303 = vsel %vm1552, %v7271, %v6959
      %v7304 = vsel %vm1552, %v7272, %v6961
      %v7305 = vsel %vm1552, %v7273, %v6963
      %v7306 = vsel %vm1552, %v7274, %v6965
      %v7307 = vsel %vm1552, %v7275, %v6967
      %v7308 = vsel %vm1552, %v7276, %v6969
      %v7309 = vsel %vm1552, %v7277, %v6971
      %v7310 = vsel %vm1552, %v7278, %v6973
      %v7311 = vsel %vm1552, %v7279, %v6975
      %v7312 = vsel %vm1552, %v7280, %v6977
      %v7313 = vsel %vm1552, %v7281, %v6979
      %v7314 = vsel %vm1552, %v7282, %v6981
      %v7315 = vsel %vm1552, %v7283, %v6983
      %v7316 = vsel %vm1552, %v7284, %v6985
      %v7317 = vsel %vm1552, %v7285, %v6987
      %v7318 = vsel %vm1552, %v7286, %v6989
      %v7319 = vsel %vm1552, %v7287, %v6991
      %v7320 = vsel %vm1552, %v7288, %v6993
      %v7321 = vsel %vm1552, %v7289, %v6995
      %v7322 = vsel %vm1552, %v7290, %v6997
      %v7323 = vsel %vm1552, %v7291, %v6999
      %v7324 = vsel %vm1552, %v7292, %v7001
      %v7325 = vsel %vm1552, %v7293, %v7003
      %v7326 = vsel %vm1552, %v7294, %v7005
      %v7327 = vsel %vm1552, %v7295, %v7007
      %v7328 = vsel %vm1585, %v7296, %v7041
      %v7329 = vsel %vm1585, %v7297, %v7043
      %v7330 = vsel %vm1585, %v7298, %v7045
      %v7331 = vsel %vm1585, %v7299, %v7047
      %v7332 = vsel %vm1585, %v7300, %v7049
      %v7333 = vsel %vm1585, %v7301, %v7051
      %v7334 = vsel %vm1585, %v7302, %v7053
      %v7335 = vsel %vm1585, %v7303, %v7055
      %v7336 = vsel %vm1585, %v7304, %v7057
      %v7337 = vsel %vm1585, %v7305, %v7059
      %v7338 = vsel %vm1585, %v7306, %v7061
      %v7339 = vsel %vm1585, %v7307, %v7063
      %v7340 = vsel %vm1585, %v7308, %v7065
      %v7341 = vsel %vm1585, %v7309, %v7067
      %v7342 = vsel %vm1585, %v7310, %v7069
      %v7343 = vsel %vm1585, %v7311, %v7071
      %v7344 = vsel %vm1585, %v7312, %v7073
      %v7345 = vsel %vm1585, %v7313, %v7075
      %v7346 = vsel %vm1585, %v7314, %v7077
      %v7347 = vsel %vm1585, %v7315, %v7079
      %v7348 = vsel %vm1585, %v7316, %v7081
      %v7349 = vsel %vm1585, %v7317, %v7083
      %v7350 = vsel %vm1585, %v7318, %v7085
      %v7351 = vsel %vm1585, %v7319, %v7087
      %v7352 = vsel %vm1585, %v7320, %v7089
      %v7353 = vsel %vm1585, %v7321, %v7091
      %v7354 = vsel %vm1585, %v7322, %v7093
      %v7355 = vsel %vm1585, %v7323, %v7095
      %v7356 = vsel %vm1585, %v7324, %v7097
      %v7357 = vsel %vm1585, %v7325, %v7099
      %v7358 = vsel %vm1585, %v7326, %v7101
      %v7359 = vsel %vm1585, %v7327, %v7103
      %v7360 = vpack.c.bf16 %v7329, %v7328
      %v7361 = vpack.c.bf16 %v6340, %v6338
      %v7362 = vpack.c.bf16 %v7331, %v7330
      %v7363 = vpack.c.bf16 %v6345, %v6343
      %v7364 = vpack.c.bf16 %v7333, %v7332
      %v7365 = vpack.c.bf16 %v6350, %v6348
      %v7366 = vpack.c.bf16 %v7335, %v7334
      %v7367 = vpack.c.bf16 %v6355, %v6353
      %v7368 = vpack.c.bf16 %v7337, %v7336
      %v7369 = vpack.c.bf16 %v6360, %v6358
      %v7370 = vpack.c.bf16 %v7339, %v7338
      %v7371 = vpack.c.bf16 %v6365, %v6363
      %v7372 = vpack.c.bf16 %v7341, %v7340
      %v7373 = vpack.c.bf16 %v6370, %v6368
      %v7374 = vpack.c.bf16 %v7343, %v7342
      %v7375 = vpack.c.bf16 %v6375, %v6373
      %v7376 = vpack.c.bf16 %v7345, %v7344
      %v7377 = vpack.c.bf16 %v6380, %v6378
      %v7378 = vpack.c.bf16 %v7347, %v7346
      %v7379 = vpack.c.bf16 %v6385, %v6383
      %v7380 = vpack.c.bf16 %v7349, %v7348
      %v7381 = vpack.c.bf16 %v6390, %v6388
      %v7382 = vpack.c.bf16 %v7351, %v7350
      %v7383 = vpack.c.bf16 %v6395, %v6393
      %v7384 = vpack.c.bf16 %v7353, %v7352
      %v7385 = vpack.c.bf16 %v6400, %v6398
      %v7386 = vpack.c.bf16 %v7355, %v7354
      %v7387 = vpack.c.bf16 %v6405, %v6403
      %v7388 = vpack.c.bf16 %v7357, %v7356
      %v7389 = vpack.c.bf16 %v6418, %v6416
      %v7390 = vpack.c.bf16 %v7359, %v7358
      %v7391 = vpack.c.bf16 %v6431, %v6429
      %v7392 = vlaneseq
      %v7393 = vshrl.u32 %v7392, 7
      %v7394 = vsub.s32 1, %v7393
      %v7395 = vrot.slane %v4492, %v7394
      %v7414 = vunpack.c.l.b16 %v6126
      %v7415 = vunpack.c.l.b16 %v6127
      %v7416 = vunpack.c.l.b16 %v6128
      %v7417 = vunpack.c.l.b16 %v6129
      %v7418 = vunpack.c.l.b16 %v6130
      %v7419 = vunpack.c.l.b16 %v6131
      %v7420 = vunpack.c.l.b16 %v6132
      %v7421 = vunpack.c.l.b16 %v6133
      %v7422 = vunpack.c.l.b16 %v6134
      %v7423 = vunpack.c.l.b16 %v6135
      %v7424 = vunpack.c.l.b16 %v6136
      %v7425 = vunpack.c.l.b16 %v6137
      %v7426 = vunpack.c.l.b16 %v6138
      %v7427 = vunpack.c.l.b16 %v6139
      %v7428 = vunpack.c.l.b16 %v6140
      %v7429 = vunpack.c.l.b16 %v6141
      %v7430 = vunpack.c.l.b16 %v6142
      %v7431 = vunpack.c.l.b16 %v6143
      %v7432 = vpack.c.b16 %v7415, %v7414
      %v7433 = vpack.c.b16 %v7417, %v7416
      %v7434 = vpack.c.b16 %v7419, %v7418
      %v7435 = vpack.c.b16 %v7421, %v7420
      %v7436 = vpack.c.b16 %v7423, %v7422
      %v7437 = vpack.c.b16 %v7425, %v7424
      %v7438 = vpack.c.b16 %v7427, %v7426
      %v7439 = vpack.c.b16 %v7429, %v7428
      %v7440 = vpack.c.b16 %v7431, %v7430
      %v7451 = vsel %vm253, %v7361, 0
      %v7454 = vsel %vm253, %v7363, 0
      %v7457 = vsel %vm253, %v7365, 0
      %v7460 = vsel %vm253, %v7367, 0
      %v7463 = vsel %vm253, %v7369, 0
      %v7466 = vsel %vm253, %v7371, 0
      %v7469 = vsel %vm253, %v7373, 0
      %v7472 = vsel %vm253, %v7375, 0
      %v7475 = vsel %vm253, %v7377, 0
      %v7478 = vsel %vm253, %v7379, 0
      %v7481 = vsel %vm253, %v7381, 0
      %v7484 = vsel %vm253, %v7383, 0
      %v7487 = vsel %vm253, %v7385, 0
      %v7490 = vsel %vm253, %v7387, 0
      %v7493 = vsel %vm253, %v7389, 0
      %v7496 = vsel %vm253, %v7391, 0
      %7498 = vmatprep.subr.bf16.mxu0 0
      %7499 = vmatpush1.bf16.msra.mxu0 %v7439
      %7500 = vmatprep.subr.bf16.mxu0 0
      %7501 = vmatpush1.bf16.msra.mxu0 %v7438
      %7502 = vmatprep.subr.bf16.mxu0 0
      %7503 = vmatpush1.bf16.msra.mxu0 %v7437
      %7504 = vmatprep.subr.bf16.mxu0 0
      %7505 = vmatpush1.bf16.msra.mxu0 %v7436
      %7506 = vmatprep.subr.bf16.mxu0 0
      %7507 = vmatpush1.bf16.msra.mxu0 %v7435
      %7508 = vmatprep.subr.bf16.mxu0 0
      %7509 = vmatpush1.bf16.msra.mxu0 %v7434
      %7510 = vmatprep.subr.bf16.mxu0 0
      %7511 = vmatpush1.bf16.msra.mxu0 %v7433
      %7512 = vmatprep.subr.bf16.mxu0 0
      %7513 = vmatpush1.bf16.msra.mxu0 %v7432
      %7514 = vmatprep.subr.bf16.mxu0 0
      %7515 = vmatpush2.bf16.msra.mxu0 0
      %7516 = vmatprep.subr.bf16.mxu0 0
      %7517 = vmatpush2.bf16.msra.mxu0 0
      %7518 = vmatprep.subr.bf16.mxu0 0
      %7519 = vmatpush2.bf16.msra.mxu0 0
      %7520 = vmatprep.subr.bf16.mxu0 0
      %7521 = vmatpush2.bf16.msra.mxu0 0
      %7522 = vmatprep.subr.bf16.mxu0 0
      %7523 = vmatpush2.bf16.msra.mxu0 0
      %7524 = vmatprep.subr.bf16.mxu0 0
      %7525 = vmatpush2.bf16.msra.mxu0 0
      %7526 = vmatprep.subr.bf16.mxu0 0
      %7527 = vmatpush2.bf16.msra.mxu0 0
      %7528 = vmatprep.subr.bf16.mxu0 0
      %7529 = vmatpush2.bf16.msra.mxu0 %v7440
      %7530 = vmatprep.mubr.bf16.mxu0 %v7451
      %7531 = vmatmul.mubr.bf16.gmra.mxu0 %v7360
      %v7532 = vpop.f32.mrf.mxu0
      %v7533 = vadd.f32 %v7395, %v7532
      %v7534 = vpop.f32.mrf.mxu0
      %v7535 = vpop.f32.mrf.mxu0
      %v7536 = vadd.f32 %v7395, %v7535
      %v7537 = vpop.f32.mrf.mxu0
      %7538 = vmatprep.mubr.bf16.mxu0 %v7454
      %7539 = vmatmul.mubr.bf16.gmra.mxu0 %v7362
      %v7540 = vpop.f32.mrf.mxu0
      %v7541 = vadd.f32 %v7395, %v7540
      %v7542 = vpop.f32.mrf.mxu0
      %v7543 = vpop.f32.mrf.mxu0
      %v7544 = vadd.f32 %v7395, %v7543
      %v7545 = vpop.f32.mrf.mxu0
      %7546 = vmatprep.mubr.bf16.mxu0 %v7457
      %7547 = vmatmul.mubr.bf16.gmra.mxu0 %v7364
      %v7548 = vpop.f32.mrf.mxu0
      %v7549 = vadd.f32 %v7395, %v7548
      %v7550 = vpop.f32.mrf.mxu0
      %v7551 = vpop.f32.mrf.mxu0
      %v7552 = vadd.f32 %v7395, %v7551
      %v7553 = vpop.f32.mrf.mxu0
      %7554 = vmatprep.mubr.bf16.mxu0 %v7460
      %7555 = vmatmul.mubr.bf16.gmra.mxu0 %v7366
      %v7556 = vpop.f32.mrf.mxu0
      %v7557 = vadd.f32 %v7395, %v7556
      %v7558 = vpop.f32.mrf.mxu0
      %v7559 = vpop.f32.mrf.mxu0
      %v7560 = vadd.f32 %v7395, %v7559
      %v7561 = vpop.f32.mrf.mxu0
      %7562 = vmatprep.mubr.bf16.mxu0 %v7463
      %7563 = vmatmul.mubr.bf16.gmra.mxu0 %v7368
      %v7564 = vpop.f32.mrf.mxu0
      %v7565 = vadd.f32 %v7395, %v7564
      %v7566 = vpop.f32.mrf.mxu0
      %v7567 = vpop.f32.mrf.mxu0
      %v7568 = vadd.f32 %v7395, %v7567
      %v7569 = vpop.f32.mrf.mxu0
      %7570 = vmatprep.mubr.bf16.mxu0 %v7466
      %7571 = vmatmul.mubr.bf16.gmra.mxu0 %v7370
      %v7572 = vpop.f32.mrf.mxu0
      %v7573 = vadd.f32 %v7395, %v7572
      %v7574 = vpop.f32.mrf.mxu0
      %v7575 = vpop.f32.mrf.mxu0
      %v7576 = vadd.f32 %v7395, %v7575
      %v7577 = vpop.f32.mrf.mxu0
      %7578 = vmatprep.mubr.bf16.mxu0 %v7469
      %7579 = vmatmul.mubr.bf16.gmra.mxu0 %v7372
      %v7580 = vpop.f32.mrf.mxu0
      %v7581 = vadd.f32 %v7395, %v7580
      %v7582 = vpop.f32.mrf.mxu0
      %v7583 = vpop.f32.mrf.mxu0
      %v7584 = vadd.f32 %v7395, %v7583
      %v7585 = vpop.f32.mrf.mxu0
      %7586 = vmatprep.mubr.bf16.mxu0 %v7472
      %7587 = vmatmul.mubr.bf16.gmra.mxu0 %v7374
      %v7588 = vpop.f32.mrf.mxu0
      %v7589 = vadd.f32 %v7395, %v7588
      %v7590 = vpop.f32.mrf.mxu0
      %v7591 = vpop.f32.mrf.mxu0
      %v7592 = vadd.f32 %v7395, %v7591
      %v7593 = vpop.f32.mrf.mxu0
      %7594 = vmatprep.mubr.bf16.mxu0 %v7475
      %7595 = vmatmul.mubr.bf16.gmra.mxu0 %v7376
      %v7596 = vpop.f32.mrf.mxu0
      %v7597 = vadd.f32 %v7395, %v7596
      %v7598 = vpop.f32.mrf.mxu0
      %v7599 = vpop.f32.mrf.mxu0
      %v7600 = vadd.f32 %v7395, %v7599
      %v7601 = vpop.f32.mrf.mxu0
      %7602 = vmatprep.mubr.bf16.mxu0 %v7478
      %7603 = vmatmul.mubr.bf16.gmra.mxu0 %v7378
      %v7604 = vpop.f32.mrf.mxu0
      %v7605 = vadd.f32 %v7395, %v7604
      %v7606 = vpop.f32.mrf.mxu0
      %v7607 = vpop.f32.mrf.mxu0
      %v7608 = vadd.f32 %v7395, %v7607
      %v7609 = vpop.f32.mrf.mxu0
      %7610 = vmatprep.mubr.bf16.mxu0 %v7481
      %7611 = vmatmul.mubr.bf16.gmra.mxu0 %v7380
      %v7612 = vpop.f32.mrf.mxu0
      %v7613 = vadd.f32 %v7395, %v7612
      %v7614 = vpop.f32.mrf.mxu0
      %v7615 = vpop.f32.mrf.mxu0
      %v7616 = vadd.f32 %v7395, %v7615
      %v7617 = vpop.f32.mrf.mxu0
      %7618 = vmatprep.mubr.bf16.mxu0 %v7484
      %7619 = vmatmul.mubr.bf16.gmra.mxu0 %v7382
      %v7620 = vpop.f32.mrf.mxu0
      %v7621 = vadd.f32 %v7395, %v7620
      %v7622 = vpop.f32.mrf.mxu0
      %v7623 = vpop.f32.mrf.mxu0
      %v7624 = vadd.f32 %v7395, %v7623
      %v7625 = vpop.f32.mrf.mxu0
      %7626 = vmatprep.mubr.bf16.mxu0 %v7487
      %7627 = vmatmul.mubr.bf16.gmra.mxu0 %v7384
      %v7628 = vpop.f32.mrf.mxu0
      %v7629 = vadd.f32 %v7395, %v7628
      %v7630 = vpop.f32.mrf.mxu0
      %v7631 = vpop.f32.mrf.mxu0
      %v7632 = vadd.f32 %v7395, %v7631
      %v7633 = vpop.f32.mrf.mxu0
      %7634 = vmatprep.mubr.bf16.mxu0 %v7490
      %7635 = vmatmul.mubr.bf16.gmra.mxu0 %v7386
      %v7636 = vpop.f32.mrf.mxu0
      %v7637 = vadd.f32 %v7395, %v7636
      %v7638 = vpop.f32.mrf.mxu0
      %v7639 = vpop.f32.mrf.mxu0
      %v7640 = vadd.f32 %v7395, %v7639
      %v7641 = vpop.f32.mrf.mxu0
      %7642 = vmatprep.mubr.bf16.mxu0 %v7493
      %7643 = vmatmul.mubr.bf16.gmra.mxu0 %v7388
      %v7644 = vpop.f32.mrf.mxu0
      %v7645 = vadd.f32 %v7395, %v7644
      %v7646 = vpop.f32.mrf.mxu0
      %v7647 = vpop.f32.mrf.mxu0
      %v7648 = vadd.f32 %v7395, %v7647
      %v7649 = vpop.f32.mrf.mxu0
      %7650 = vmatprep.mubr.bf16.mxu0 %v7496
      %7651 = vmatmul.mubr.bf16.gmra.mxu0 %v7390
      %v7652 = vpop.f32.mrf.mxu0
      %v7653 = vadd.f32 %v7395, %v7652
      %v7654 = vpop.f32.mrf.mxu0
      %v7655 = vpop.f32.mrf.mxu0
      %v7656 = vadd.f32 %v7395, %v7655
      %v7657 = vpop.f32.mrf.mxu0
      %7658 = vdwg.mxu0
      %v7659 = vpack.c.bf16 %v7536, %v7533
      %v7660 = vpack.c.bf16 %v7544, %v7541
      %v7661 = vpack.c.bf16 %v7552, %v7549
      %v7662 = vpack.c.bf16 %v7560, %v7557
      %v7663 = vpack.c.bf16 %v7568, %v7565
      %v7664 = vpack.c.bf16 %v7576, %v7573
      %v7665 = vpack.c.bf16 %v7584, %v7581
      %v7666 = vpack.c.bf16 %v7592, %v7589
      %v7667 = vpack.c.bf16 %v7600, %v7597
      %v7668 = vpack.c.bf16 %v7608, %v7605
      %v7669 = vpack.c.bf16 %v7616, %v7613
      %v7670 = vpack.c.bf16 %v7624, %v7621
      %v7671 = vpack.c.bf16 %v7632, %v7629
      %v7672 = vpack.c.bf16 %v7640, %v7637
      %v7673 = vpack.c.bf16 %v7648, %v7645
      %v7674 = vpack.c.bf16 %v7656, %v7653
      %s7675 = scalar_lea.vmem %s2, 16
      %v7676 = vld [vmem:[%s7675] sm:$0xf]
      %v7677 = vld [vmem:[%s7675 + $0x4] sm:$0xf]
      %v7678 = vlaneseq
      %v7679 = vshrl.u32 %v7678, 7
      %v7680 = vsub.s32 0, %v7679
      %v7681 = vrot.slane %v4494, %v7680
      %v7684 = vunpack.c.l.b16 %v7676
      %v7685 = vunpack.c.l.b16 %v7677
      %v7686 = vpack.c.b16 %v7685, %v7684
      %v7689 = vsel %vm253, %v7659, 0
      %v7692 = vsel %vm253, %v7660, 0
      %v7695 = vsel %vm253, %v7661, 0
      %v7698 = vsel %vm253, %v7662, 0
      %v7701 = vsel %vm253, %v7663, 0
      %v7704 = vsel %vm253, %v7664, 0
      %v7707 = vsel %vm253, %v7665, 0
      %v7710 = vsel %vm253, %v7666, 0
      %v7713 = vsel %vm253, %v7667, 0
      %v7716 = vsel %vm253, %v7668, 0
      %v7719 = vsel %vm253, %v7669, 0
      %v7722 = vsel %vm253, %v7670, 0
      %v7725 = vsel %vm253, %v7671, 0
      %v7728 = vsel %vm253, %v7672, 0
      %v7731 = vsel %vm253, %v7673, 0
      %v7734 = vsel %vm253, %v7674, 0
      %7736 = vmatprep.subr.bf16.mxu0 0
      %7737 = vmatpush1.bf16.msra.mxu0 0
      %7738 = vmatprep.subr.bf16.mxu0 0
      %7739 = vmatpush1.bf16.msra.mxu0 0
      %7740 = vmatprep.subr.bf16.mxu0 0
      %7741 = vmatpush1.bf16.msra.mxu0 0
      %7742 = vmatprep.subr.bf16.mxu0 0
      %7743 = vmatpush1.bf16.msra.mxu0 0
      %7744 = vmatprep.subr.bf16.mxu0 0
      %7745 = vmatpush1.bf16.msra.mxu0 0
      %7746 = vmatprep.subr.bf16.mxu0 0
      %7747 = vmatpush1.bf16.msra.mxu0 0
      %7748 = vmatprep.subr.bf16.mxu0 0
      %7749 = vmatpush1.bf16.msra.mxu0 0
      %7750 = vmatprep.subr.bf16.mxu0 0
      %7751 = vmatpush1.bf16.msra.mxu0 %v7686
      %7752 = vmatprep.subr.bf16.mxu0 0
      %7753 = vmatpush2.bf16.msra.mxu0 0
      %7754 = vmatprep.subr.bf16.mxu0 0
      %7755 = vmatpush2.bf16.msra.mxu0 0
      %7756 = vmatprep.subr.bf16.mxu0 0
      %7757 = vmatpush2.bf16.msra.mxu0 0
      %7758 = vmatprep.subr.bf16.mxu0 0
      %7759 = vmatpush2.bf16.msra.mxu0 0
      %7760 = vmatprep.subr.bf16.mxu0 0
      %7761 = vmatpush2.bf16.msra.mxu0 0
      %7762 = vmatprep.subr.bf16.mxu0 0
      %7763 = vmatpush2.bf16.msra.mxu0 0
      %7764 = vmatprep.subr.bf16.mxu0 0
      %7765 = vmatpush2.bf16.msra.mxu0 0
      %7766 = vmatprep.subr.bf16.mxu0 0
      %7767 = vmatpush2.bf16.msra.mxu0 0
      %7768 = vmatprep.mubr.bf16.mxu0 0
      %7769 = vmatmul.mubr.bf16.gmra.mxu0 %v7689
      %v7770 = vpop.f32.mrf.mxu0
      %v7771 = vadd.f32 %v7681, %v7770
      %v7772 = vpop.f32.mrf.mxu0
      %v7773 = vpop.f32.mrf.mxu0
      %v7774 = vadd.f32 %v7681, %v7773
      %v7775 = vpop.f32.mrf.mxu0
      %7776 = vmatprep.mubr.bf16.mxu0 0
      %7777 = vmatmul.mubr.bf16.gmra.mxu0 %v7692
      %v7778 = vpop.f32.mrf.mxu0
      %v7779 = vadd.f32 %v7681, %v7778
      %v7780 = vpop.f32.mrf.mxu0
      %v7781 = vpop.f32.mrf.mxu0
      %v7782 = vadd.f32 %v7681, %v7781
      %v7783 = vpop.f32.mrf.mxu0
      %7784 = vmatprep.mubr.bf16.mxu0 0
      %7785 = vmatmul.mubr.bf16.gmra.mxu0 %v7695
      %v7786 = vpop.f32.mrf.mxu0
      %v7787 = vadd.f32 %v7681, %v7786
      %v7788 = vpop.f32.mrf.mxu0
      %v7789 = vpop.f32.mrf.mxu0
      %v7790 = vadd.f32 %v7681, %v7789
      %v7791 = vpop.f32.mrf.mxu0
      %7792 = vmatprep.mubr.bf16.mxu0 0
      %7793 = vmatmul.mubr.bf16.gmra.mxu0 %v7698
      %v7794 = vpop.f32.mrf.mxu0
      %v7795 = vadd.f32 %v7681, %v7794
      %v7796 = vpop.f32.mrf.mxu0
      %v7797 = vpop.f32.mrf.mxu0
      %v7798 = vadd.f32 %v7681, %v7797
      %v7799 = vpop.f32.mrf.mxu0
      %7800 = vmatprep.mubr.bf16.mxu0 0
      %7801 = vmatmul.mubr.bf16.gmra.mxu0 %v7701
      %v7802 = vpop.f32.mrf.mxu0
      %v7803 = vadd.f32 %v7681, %v7802
      %v7804 = vpop.f32.mrf.mxu0
      %v7805 = vpop.f32.mrf.mxu0
      %v7806 = vadd.f32 %v7681, %v7805
      %v7807 = vpop.f32.mrf.mxu0
      %7808 = vmatprep.mubr.bf16.mxu0 0
      %7809 = vmatmul.mubr.bf16.gmra.mxu0 %v7704
      %v7810 = vpop.f32.mrf.mxu0
      %v7811 = vadd.f32 %v7681, %v7810
      %v7812 = vpop.f32.mrf.mxu0
      %v7813 = vpop.f32.mrf.mxu0
      %v7814 = vadd.f32 %v7681, %v7813
      %v7815 = vpop.f32.mrf.mxu0
      %7816 = vmatprep.mubr.bf16.mxu0 0
      %7817 = vmatmul.mubr.bf16.gmra.mxu0 %v7707
      %v7818 = vpop.f32.mrf.mxu0
      %v7819 = vadd.f32 %v7681, %v7818
      %v7820 = vpop.f32.mrf.mxu0
      %v7821 = vpop.f32.mrf.mxu0
      %v7822 = vadd.f32 %v7681, %v7821
      %v7823 = vpop.f32.mrf.mxu0
      %7824 = vmatprep.mubr.bf16.mxu0 0
      %7825 = vmatmul.mubr.bf16.gmra.mxu0 %v7710
      %v7826 = vpop.f32.mrf.mxu0
      %v7827 = vadd.f32 %v7681, %v7826
      %v7828 = vpop.f32.mrf.mxu0
      %v7829 = vpop.f32.mrf.mxu0
      %v7830 = vadd.f32 %v7681, %v7829
      %v7831 = vpop.f32.mrf.mxu0
      %7832 = vmatprep.mubr.bf16.mxu0 0
      %7833 = vmatmul.mubr.bf16.gmra.mxu0 %v7713
      %v7834 = vpop.f32.mrf.mxu0
      %v7835 = vadd.f32 %v7681, %v7834
      %v7836 = vpop.f32.mrf.mxu0
      %v7837 = vpop.f32.mrf.mxu0
      %v7838 = vadd.f32 %v7681, %v7837
      %v7839 = vpop.f32.mrf.mxu0
      %7840 = vmatprep.mubr.bf16.mxu0 0
      %7841 = vmatmul.mubr.bf16.gmra.mxu0 %v7716
      %v7842 = vpop.f32.mrf.mxu0
      %v7843 = vadd.f32 %v7681, %v7842
      %v7844 = vpop.f32.mrf.mxu0
      %v7845 = vpop.f32.mrf.mxu0
      %v7846 = vadd.f32 %v7681, %v7845
      %v7847 = vpop.f32.mrf.mxu0
      %7848 = vmatprep.mubr.bf16.mxu0 0
      %7849 = vmatmul.mubr.bf16.gmra.mxu0 %v7719
      %v7850 = vpop.f32.mrf.mxu0
      %v7851 = vadd.f32 %v7681, %v7850
      %v7852 = vpop.f32.mrf.mxu0
      %v7853 = vpop.f32.mrf.mxu0
      %v7854 = vadd.f32 %v7681, %v7853
      %v7855 = vpop.f32.mrf.mxu0
      %7856 = vmatprep.mubr.bf16.mxu0 0
      %7857 = vmatmul.mubr.bf16.gmra.mxu0 %v7722
      %v7858 = vpop.f32.mrf.mxu0
      %v7859 = vadd.f32 %v7681, %v7858
      %v7860 = vpop.f32.mrf.mxu0
      %v7861 = vpop.f32.mrf.mxu0
      %v7862 = vadd.f32 %v7681, %v7861
      %v7863 = vpop.f32.mrf.mxu0
      %7864 = vmatprep.mubr.bf16.mxu0 0
      %7865 = vmatmul.mubr.bf16.gmra.mxu0 %v7725
      %v7866 = vpop.f32.mrf.mxu0
      %v7867 = vadd.f32 %v7681, %v7866
      %v7868 = vpop.f32.mrf.mxu0
      %v7869 = vpop.f32.mrf.mxu0
      %v7870 = vadd.f32 %v7681, %v7869
      %v7871 = vpop.f32.mrf.mxu0
      %7872 = vmatprep.mubr.bf16.mxu0 0
      %7873 = vmatmul.mubr.bf16.gmra.mxu0 %v7728
      %v7874 = vpop.f32.mrf.mxu0
      %v7875 = vadd.f32 %v7681, %v7874
      %v7876 = vpop.f32.mrf.mxu0
      %v7877 = vpop.f32.mrf.mxu0
      %v7878 = vadd.f32 %v7681, %v7877
      %v7879 = vpop.f32.mrf.mxu0
      %7880 = vmatprep.mubr.bf16.mxu0 0
      %7881 = vmatmul.mubr.bf16.gmra.mxu0 %v7731
      %v7882 = vpop.f32.mrf.mxu0
      %v7883 = vadd.f32 %v7681, %v7882
      %v7884 = vpop.f32.mrf.mxu0
      %v7885 = vpop.f32.mrf.mxu0
      %v7886 = vadd.f32 %v7681, %v7885
      %v7887 = vpop.f32.mrf.mxu0
      %7888 = vmatprep.mubr.bf16.mxu0 0
      %7889 = vmatmul.mubr.bf16.gmra.mxu0 %v7734
      %v7890 = vpop.f32.mrf.mxu0
      %v7891 = vadd.f32 %v7681, %v7890
      %v7892 = vpop.f32.mrf.mxu0
      %v7893 = vpop.f32.mrf.mxu0
      %v7894 = vadd.f32 %v7681, %v7893
      %v7895 = vpop.f32.mrf.mxu0
      %7896 = vdwg.mxu0
      %v7897 = vmax.f32 %v7771, 0.0
      %v7898 = vmax.f32 %v7774, 0.0
      %v7899 = vmax.f32 %v7779, 0.0
      %v7900 = vmax.f32 %v7782, 0.0
      %v7901 = vmax.f32 %v7787, 0.0
      %v7902 = vmax.f32 %v7790, 0.0
      %v7903 = vmax.f32 %v7795, 0.0
      %v7904 = vmax.f32 %v7798, 0.0
      %v7905 = vmax.f32 %v7803, 0.0
      %v7906 = vmax.f32 %v7806, 0.0
      %v7907 = vmax.f32 %v7811, 0.0
      %v7908 = vmax.f32 %v7814, 0.0
      %v7909 = vmax.f32 %v7819, 0.0
      %v7910 = vmax.f32 %v7822, 0.0
      %v7911 = vmax.f32 %v7827, 0.0
      %v7912 = vmax.f32 %v7830, 0.0
      %v7913 = vmax.f32 %v7835, 0.0
      %v7914 = vmax.f32 %v7838, 0.0
      %v7915 = vmax.f32 %v7843, 0.0
      %v7916 = vmax.f32 %v7846, 0.0
      %v7917 = vmax.f32 %v7851, 0.0
      %v7918 = vmax.f32 %v7854, 0.0
      %v7919 = vmax.f32 %v7859, 0.0
      %v7920 = vmax.f32 %v7862, 0.0
      %v7921 = vmax.f32 %v7867, 0.0
      %v7922 = vmax.f32 %v7870, 0.0
      %v7923 = vmax.f32 %v7875, 0.0
      %v7924 = vmax.f32 %v7878, 0.0
      %v7925 = vmax.f32 %v7883, 0.0
      %v7926 = vmax.f32 %v7886, 0.0
      %v7927 = vmax.f32 %v7891, 0.0
      %v7928 = vmax.f32 %v7894, 0.0
      %v7929 = vpack.c.bf16 %v7898, %v7897
      %v7930 = vpack.c.bf16 %v7900, %v7899
      %v7931 = vpack.c.bf16 %v7902, %v7901
      %v7932 = vpack.c.bf16 %v7904, %v7903
      %v7933 = vpack.c.bf16 %v7906, %v7905
      %v7934 = vpack.c.bf16 %v7908, %v7907
      %v7935 = vpack.c.bf16 %v7910, %v7909
      %v7936 = vpack.c.bf16 %v7912, %v7911
      %v7937 = vpack.c.bf16 %v7914, %v7913
      %v7938 = vpack.c.bf16 %v7916, %v7915
      %v7939 = vpack.c.bf16 %v7918, %v7917
      %v7940 = vpack.c.bf16 %v7920, %v7919
      %v7941 = vpack.c.bf16 %v7922, %v7921
      %v7942 = vpack.c.bf16 %v7924, %v7923
      %v7943 = vpack.c.bf16 %v7926, %v7925
      %v7944 = vpack.c.bf16 %v7928, %v7927
      %s7945 = scalar_lea.vmem %s3, 4
      %v7946 = vld [vmem:[%s7945] sm:$0x3]
      %v7947 = vlaneseq
      %v7948 = vshrl.u32 %v7947, 7
      %v7949 = vsub.s32 2, %v7948
      %v7950 = vrot.slane %v4492, %v7949
      %v7952 = vsel %vm3805, %v7929, 0
      %v7955 = vsel %vm3805, %v7930, 0
      %v7958 = vsel %vm3805, %v7931, 0
      %v7961 = vsel %vm3805, %v7932, 0
      %v7964 = vsel %vm3805, %v7933, 0
      %v7967 = vsel %vm3805, %v7934, 0
      %v7970 = vsel %vm3805, %v7935, 0
      %v7973 = vsel %vm3805, %v7936, 0
      %v7976 = vsel %vm3805, %v7937, 0
      %v7979 = vsel %vm3805, %v7938, 0
      %v7982 = vsel %vm3805, %v7939, 0
      %v7985 = vsel %vm3805, %v7940, 0
      %v7988 = vsel %vm3805, %v7941, 0
      %v7991 = vsel %vm3805, %v7942, 0
      %v7994 = vsel %vm3805, %v7943, 0
      %v7997 = vsel %vm3805, %v7944, 0
      %v8000 = vsel %vm3854, %v7946, 0
      %8002 = vmatprep.subr.bf16.mxu0 0
      %8003 = vmatpush1.bf16.msra.mxu0 0
      %8004 = vmatprep.subr.bf16.mxu0 0
      %8005 = vmatpush1.bf16.msra.mxu0 0
      %8006 = vmatprep.subr.bf16.mxu0 0
      %8007 = vmatpush1.bf16.msra.mxu0 0
      %8008 = vmatprep.subr.bf16.mxu0 0
      %8009 = vmatpush1.bf16.msra.mxu0 0
      %8010 = vmatprep.subr.bf16.mxu0 0
      %8011 = vmatpush1.bf16.msra.mxu0 0
      %8012 = vmatprep.subr.bf16.mxu0 0
      %8013 = vmatpush1.bf16.msra.mxu0 0
      %8014 = vmatprep.subr.bf16.mxu0 0
      %8015 = vmatpush1.bf16.msra.mxu0 0
      %8016 = vmatprep.subr.bf16.mxu0 0
      %8017 = vmatpush1.bf16.msra.mxu0 %v8000
      %8018 = vmatprep.subr.bf16.mxu0 0
      %8019 = vmatpush2.bf16.msra.mxu0 0
      %8020 = vmatprep.subr.bf16.mxu0 0
      %8021 = vmatpush2.bf16.msra.mxu0 0
      %8022 = vmatprep.subr.bf16.mxu0 0
      %8023 = vmatpush2.bf16.msra.mxu0 0
      %8024 = vmatprep.subr.bf16.mxu0 0
      %8025 = vmatpush2.bf16.msra.mxu0 0
      %8026 = vmatprep.subr.bf16.mxu0 0
      %8027 = vmatpush2.bf16.msra.mxu0 0
      %8028 = vmatprep.subr.bf16.mxu0 0
      %8029 = vmatpush2.bf16.msra.mxu0 0
      %8030 = vmatprep.subr.bf16.mxu0 0
      %8031 = vmatpush2.bf16.msra.mxu0 0
      %8032 = vmatprep.subr.bf16.mxu0 0
      %8033 = vmatpush2.bf16.msra.mxu0 0
      %8034 = vmatprep.mubr.bf16.mxu0 0
      %8035 = vmatmul.mubr.bf16.gmra.mxu0 %v7952
      %v8036 = vpop.f32.mrf.mxu0
      %v8037 = vadd.f32 %v7950, %v8036
      %v8038 = vpop.f32.mrf.mxu0
      %v8039 = vpop.f32.mrf.mxu0
      %v8040 = vadd.f32 %v7950, %v8039
      %v8041 = vpop.f32.mrf.mxu0
      %8042 = vmatprep.mubr.bf16.mxu0 0
      %8043 = vmatmul.mubr.bf16.gmra.mxu0 %v7955
      %v8044 = vpop.f32.mrf.mxu0
      %v8045 = vadd.f32 %v7950, %v8044
      %v8046 = vpop.f32.mrf.mxu0
      %v8047 = vpop.f32.mrf.mxu0
      %v8048 = vadd.f32 %v7950, %v8047
      %v8049 = vpop.f32.mrf.mxu0
      %8050 = vmatprep.mubr.bf16.mxu0 0
      %8051 = vmatmul.mubr.bf16.gmra.mxu0 %v7958
      %v8052 = vpop.f32.mrf.mxu0
      %v8053 = vadd.f32 %v7950, %v8052
      %v8054 = vpop.f32.mrf.mxu0
      %v8055 = vpop.f32.mrf.mxu0
      %v8056 = vadd.f32 %v7950, %v8055
      %v8057 = vpop.f32.mrf.mxu0
      %8058 = vmatprep.mubr.bf16.mxu0 0
      %8059 = vmatmul.mubr.bf16.gmra.mxu0 %v7961
      %v8060 = vpop.f32.mrf.mxu0
      %v8061 = vadd.f32 %v7950, %v8060
      %v8062 = vpop.f32.mrf.mxu0
      %v8063 = vpop.f32.mrf.mxu0
      %v8064 = vadd.f32 %v7950, %v8063
      %v8065 = vpop.f32.mrf.mxu0
      %8066 = vmatprep.mubr.bf16.mxu0 0
      %8067 = vmatmul.mubr.bf16.gmra.mxu0 %v7964
      %v8068 = vpop.f32.mrf.mxu0
      %v8069 = vadd.f32 %v7950, %v8068
      %v8070 = vpop.f32.mrf.mxu0
      %v8071 = vpop.f32.mrf.mxu0
      %v8072 = vadd.f32 %v7950, %v8071
      %v8073 = vpop.f32.mrf.mxu0
      %8074 = vmatprep.mubr.bf16.mxu0 0
      %8075 = vmatmul.mubr.bf16.gmra.mxu0 %v7967
      %v8076 = vpop.f32.mrf.mxu0
      %v8077 = vadd.f32 %v7950, %v8076
      %v8078 = vpop.f32.mrf.mxu0
      %v8079 = vpop.f32.mrf.mxu0
      %v8080 = vadd.f32 %v7950, %v8079
      %v8081 = vpop.f32.mrf.mxu0
      %8082 = vmatprep.mubr.bf16.mxu0 0
      %8083 = vmatmul.mubr.bf16.gmra.mxu0 %v7970
      %v8084 = vpop.f32.mrf.mxu0
      %v8085 = vadd.f32 %v7950, %v8084
      %v8086 = vpop.f32.mrf.mxu0
      %v8087 = vpop.f32.mrf.mxu0
      %v8088 = vadd.f32 %v7950, %v8087
      %v8089 = vpop.f32.mrf.mxu0
      %8090 = vmatprep.mubr.bf16.mxu0 0
      %8091 = vmatmul.mubr.bf16.gmra.mxu0 %v7973
      %v8092 = vpop.f32.mrf.mxu0
      %v8093 = vadd.f32 %v7950, %v8092
      %v8094 = vpop.f32.mrf.mxu0
      %v8095 = vpop.f32.mrf.mxu0
      %v8096 = vadd.f32 %v7950, %v8095
      %v8097 = vpop.f32.mrf.mxu0
      %8098 = vmatprep.mubr.bf16.mxu0 0
      %8099 = vmatmul.mubr.bf16.gmra.mxu0 %v7976
      %v8100 = vpop.f32.mrf.mxu0
      %v8101 = vadd.f32 %v7950, %v8100
      %v8102 = vpop.f32.mrf.mxu0
      %v8103 = vpop.f32.mrf.mxu0
      %v8104 = vadd.f32 %v7950, %v8103
      %v8105 = vpop.f32.mrf.mxu0
      %8106 = vmatprep.mubr.bf16.mxu0 0
      %8107 = vmatmul.mubr.bf16.gmra.mxu0 %v7979
      %v8108 = vpop.f32.mrf.mxu0
      %v8109 = vadd.f32 %v7950, %v8108
      %v8110 = vpop.f32.mrf.mxu0
      %v8111 = vpop.f32.mrf.mxu0
      %v8112 = vadd.f32 %v7950, %v8111
      %v8113 = vpop.f32.mrf.mxu0
      %8114 = vmatprep.mubr.bf16.mxu0 0
      %8115 = vmatmul.mubr.bf16.gmra.mxu0 %v7982
      %v8116 = vpop.f32.mrf.mxu0
      %v8117 = vadd.f32 %v7950, %v8116
      %v8118 = vpop.f32.mrf.mxu0
      %v8119 = vpop.f32.mrf.mxu0
      %v8120 = vadd.f32 %v7950, %v8119
      %v8121 = vpop.f32.mrf.mxu0
      %8122 = vmatprep.mubr.bf16.mxu0 0
      %8123 = vmatmul.mubr.bf16.gmra.mxu0 %v7985
      %v8124 = vpop.f32.mrf.mxu0
      %v8125 = vadd.f32 %v7950, %v8124
      %v8126 = vpop.f32.mrf.mxu0
      %v8127 = vpop.f32.mrf.mxu0
      %v8128 = vadd.f32 %v7950, %v8127
      %v8129 = vpop.f32.mrf.mxu0
      %8130 = vmatprep.mubr.bf16.mxu0 0
      %8131 = vmatmul.mubr.bf16.gmra.mxu0 %v7988
      %v8132 = vpop.f32.mrf.mxu0
      %v8133 = vadd.f32 %v7950, %v8132
      %v8134 = vpop.f32.mrf.mxu0
      %v8135 = vpop.f32.mrf.mxu0
      %v8136 = vadd.f32 %v7950, %v8135
      %v8137 = vpop.f32.mrf.mxu0
      %8138 = vmatprep.mubr.bf16.mxu0 0
      %8139 = vmatmul.mubr.bf16.gmra.mxu0 %v7991
      %v8140 = vpop.f32.mrf.mxu0
      %v8141 = vadd.f32 %v7950, %v8140
      %v8142 = vpop.f32.mrf.mxu0
      %v8143 = vpop.f32.mrf.mxu0
      %v8144 = vadd.f32 %v7950, %v8143
      %v8145 = vpop.f32.mrf.mxu0
      %8146 = vmatprep.mubr.bf16.mxu0 0
      %8147 = vmatmul.mubr.bf16.gmra.mxu0 %v7994
      %v8148 = vpop.f32.mrf.mxu0
      %v8149 = vadd.f32 %v7950, %v8148
      %v8150 = vpop.f32.mrf.mxu0
      %v8151 = vpop.f32.mrf.mxu0
      %v8152 = vadd.f32 %v7950, %v8151
      %v8153 = vpop.f32.mrf.mxu0
      %8154 = vmatprep.mubr.bf16.mxu0 0
      %8155 = vmatmul.mubr.bf16.gmra.mxu0 %v7997
      %v8156 = vpop.f32.mrf.mxu0
      %v8157 = vadd.f32 %v7950, %v8156
      %v8158 = vpop.f32.mrf.mxu0
      %v8159 = vpop.f32.mrf.mxu0
      %v8160 = vadd.f32 %v7950, %v8159
      %v8161 = vpop.f32.mrf.mxu0
      %8162 = vdwg.mxu0
      %v8163 = vsel %vm253, %v7533, 0.0
      %v8164 = vsel %vm253, %v7536, 0.0
      %v8165 = vadd.f32 %v8163, %v8164
      %v8166 = vsel %vm253, %v7541, 0.0
      %v8167 = vadd.f32 %v8165, %v8166
      %v8168 = vsel %vm253, %v7544, 0.0
      %v8169 = vadd.f32 %v8167, %v8168
      %v8170 = vsel %vm253, %v7549, 0.0
      %v8171 = vadd.f32 %v8169, %v8170
      %v8172 = vsel %vm253, %v7552, 0.0
      %v8173 = vadd.f32 %v8171, %v8172
      %v8174 = vsel %vm253, %v7557, 0.0
      %v8175 = vadd.f32 %v8173, %v8174
      %v8176 = vsel %vm253, %v7560, 0.0
      %v8177 = vadd.f32 %v8175, %v8176
      %v8178 = vsel %vm253, %v7565, 0.0
      %v8179 = vadd.f32 %v8177, %v8178
      %v8180 = vsel %vm253, %v7568, 0.0
      %v8181 = vadd.f32 %v8179, %v8180
      %v8182 = vsel %vm253, %v7573, 0.0
      %v8183 = vadd.f32 %v8181, %v8182
      %v8184 = vsel %vm253, %v7576, 0.0
      %v8185 = vadd.f32 %v8183, %v8184
      %v8186 = vsel %vm253, %v7581, 0.0
      %v8187 = vadd.f32 %v8185, %v8186
      %v8188 = vsel %vm253, %v7584, 0.0
      %v8189 = vadd.f32 %v8187, %v8188
      %v8190 = vsel %vm253, %v7589, 0.0
      %v8191 = vadd.f32 %v8189, %v8190
      %v8192 = vsel %vm253, %v7592, 0.0
      %v8193 = vadd.f32 %v8191, %v8192
      %v8194 = vsel %vm253, %v7597, 0.0
      %v8195 = vadd.f32 %v8193, %v8194
      %v8196 = vsel %vm253, %v7600, 0.0
      %v8197 = vadd.f32 %v8195, %v8196
      %v8198 = vsel %vm253, %v7605, 0.0
      %v8199 = vadd.f32 %v8197, %v8198
      %v8200 = vsel %vm253, %v7608, 0.0
      %v8201 = vadd.f32 %v8199, %v8200
      %v8202 = vsel %vm253, %v7613, 0.0
      %v8203 = vadd.f32 %v8201, %v8202
      %v8204 = vsel %vm253, %v7616, 0.0
      %v8205 = vadd.f32 %v8203, %v8204
      %v8206 = vsel %vm253, %v7621, 0.0
      %v8207 = vadd.f32 %v8205, %v8206
      %v8208 = vsel %vm253, %v7624, 0.0
      %v8209 = vadd.f32 %v8207, %v8208
      %v8210 = vsel %vm253, %v7629, 0.0
      %v8211 = vadd.f32 %v8209, %v8210
      %v8212 = vsel %vm253, %v7632, 0.0
      %v8213 = vadd.f32 %v8211, %v8212
      %v8214 = vsel %vm253, %v7637, 0.0
      %v8215 = vadd.f32 %v8213, %v8214
      %v8216 = vsel %vm253, %v7640, 0.0
      %v8217 = vadd.f32 %v8215, %v8216
      %v8218 = vsel %vm253, %v7645, 0.0
      %v8219 = vadd.f32 %v8217, %v8218
      %v8220 = vsel %vm253, %v7648, 0.0
      %v8221 = vadd.f32 %v8219, %v8220
      %v8222 = vsel %vm253, %v7653, 0.0
      %v8223 = vadd.f32 %v8221, %v8222
      %v8224 = vsel %vm253, %v7656, 0.0
      %v8225 = vadd.f32 %v8223, %v8224
      %v8226 = vrot.slane %v8225, 4
      %v8227 = vadd.f32 %v8225, %v8226
      %v8228 = vrot.slane %v8227, 2
      %v8229 = vadd.f32 %v8227, %v8228
      %v8230 = vrot.slane %v8229, 1
      %v8231 = vadd.f32 %v8229, %v8230
      %v8232 = vmul.f32 %v8231, %v4088
      %v8233 = vpack.c.bf16 %v8232, %v8232
      %s8234 = scalar_lea.vmem %s2, 24
      %v8235 = vld [vmem:[%s8234] sm:$0xf]
      %v8236 = vld [vmem:[%s8234 + $0x4] sm:$0xf]
      %v8239 = vunpack.c.l.b16 %v8235
      %v8240 = vunpack.c.l.b16 %v8236
      %v8241 = vpack.c.b16 %v8240, %v8239
      %v8244 = vrot.slane %v4494, 1
      %v8247 = vsel %vm253, %v8233, 0
      %8249 = vmatprep.subr.bf16.mxu0 0
      %8250 = vmatpush1.bf16.msra.mxu0 0
      %8251 = vmatprep.subr.bf16.mxu0 0
      %8252 = vmatpush1.bf16.msra.mxu0 0
      %8253 = vmatprep.subr.bf16.mxu0 0
      %8254 = vmatpush1.bf16.msra.mxu0 0
      %8255 = vmatprep.subr.bf16.mxu0 0
      %8256 = vmatpush1.bf16.msra.mxu0 0
      %8257 = vmatprep.subr.bf16.mxu0 0
      %8258 = vmatpush1.bf16.msra.mxu0 0
      %8259 = vmatprep.subr.bf16.mxu0 0
      %8260 = vmatpush1.bf16.msra.mxu0 0
      %8261 = vmatprep.subr.bf16.mxu0 0
      %8262 = vmatpush1.bf16.msra.mxu0 0
      %8263 = vmatprep.subr.bf16.mxu0 0
      %8264 = vmatpush1.bf16.msra.mxu0 %v8241
      %8265 = vmatprep.subr.bf16.mxu0 0
      %8266 = vmatpush2.bf16.msra.mxu0 0
      %8267 = vmatprep.subr.bf16.mxu0 0
      %8268 = vmatpush2.bf16.msra.mxu0 0
      %8269 = vmatprep.subr.bf16.mxu0 0
      %8270 = vmatpush2.bf16.msra.mxu0 0
      %8271 = vmatprep.subr.bf16.mxu0 0
      %8272 = vmatpush2.bf16.msra.mxu0 0
      %8273 = vmatprep.subr.bf16.mxu0 0
      %8274 = vmatpush2.bf16.msra.mxu0 0
      %8275 = vmatprep.subr.bf16.mxu0 0
      %8276 = vmatpush2.bf16.msra.mxu0 0
      %8277 = vmatprep.subr.bf16.mxu0 0
      %8278 = vmatpush2.bf16.msra.mxu0 0
      %8279 = vmatprep.subr.bf16.mxu0 0
      %8280 = vmatpush2.bf16.msra.mxu0 0
      %8281 = vmatprep.mubr.bf16.mxu0 0
      %8282 = vmatmul.mubr.bf16.gmra.mxu0 %v8247
      %v8283 = vpop.f32.mrf.mxu0
      %v8284 = vadd.f32 %v8244, %v8283
      %v8285 = vpop.f32.mrf.mxu0
      %v8286 = vpop.f32.mrf.mxu0
      %v8287 = vpop.f32.mrf.mxu0
      %8288 = vdwg.mxu0
      %v8289 = vmax.f32 %v8284, 0.0
      %v8290 = vpack.c.bf16 %v8289, %v8289
      %s8291 = scalar_lea.vmem %s3, 6
      %v8292 = vld [vmem:[%s8291] sm:$0x3]
      %v8294 = vrot.slane %v4492, 3
      %v8297 = vsel %vm3805, %v8290, 0
      %v8300 = vsel %vm3854, %v8292, 0
      %8302 = vmatprep.subr.bf16.mxu0 0
      %8303 = vmatpush1.bf16.msra.mxu0 0
      %8304 = vmatprep.subr.bf16.mxu0 0
      %8305 = vmatpush1.bf16.msra.mxu0 0
      %8306 = vmatprep.subr.bf16.mxu0 0
      %8307 = vmatpush1.bf16.msra.mxu0 0
      %8308 = vmatprep.subr.bf16.mxu0 0
      %8309 = vmatpush1.bf16.msra.mxu0 0
      %8310 = vmatprep.subr.bf16.mxu0 0
      %8311 = vmatpush1.bf16.msra.mxu0 0
      %8312 = vmatprep.subr.bf16.mxu0 0
      %8313 = vmatpush1.bf16.msra.mxu0 0
      %8314 = vmatprep.subr.bf16.mxu0 0
      %8315 = vmatpush1.bf16.msra.mxu0 0
      %8316 = vmatprep.subr.bf16.mxu0 0
      %8317 = vmatpush1.bf16.msra.mxu0 %v8300
      %8318 = vmatprep.subr.bf16.mxu0 0
      %8319 = vmatpush2.bf16.msra.mxu0 0
      %8320 = vmatprep.subr.bf16.mxu0 0
      %8321 = vmatpush2.bf16.msra.mxu0 0
      %8322 = vmatprep.subr.bf16.mxu0 0
      %8323 = vmatpush2.bf16.msra.mxu0 0
      %8324 = vmatprep.subr.bf16.mxu0 0
      %8325 = vmatpush2.bf16.msra.mxu0 0
      %8326 = vmatprep.subr.bf16.mxu0 0
      %8327 = vmatpush2.bf16.msra.mxu0 0
      %8328 = vmatprep.subr.bf16.mxu0 0
      %8329 = vmatpush2.bf16.msra.mxu0 0
      %8330 = vmatprep.subr.bf16.mxu0 0
      %8331 = vmatpush2.bf16.msra.mxu0 0
      %8332 = vmatprep.subr.bf16.mxu0 0
      %8333 = vmatpush2.bf16.msra.mxu0 0
      %8334 = vmatprep.mubr.bf16.mxu0 0
      %8335 = vmatmul.mubr.bf16.gmra.mxu0 %v8297
      %v8336 = vpop.f32.mrf.mxu0
      %v8337 = vadd.f32 %v8294, %v8336
      %v8338 = vpop.f32.mrf.mxu0
      %v8339 = vpop.f32.mrf.mxu0
      %v8340 = vpop.f32.mrf.mxu0
      %8341 = vdwg.mxu0
      %v8342 = vlaneseq
      %v8343 = vshrl.u32 %v8342, 7
      %v8344 = vsub.s32 0, %v8343
      %v8345 = vrot.slane %v8337, %v8344
      %v8346 = vadd.f32 %v8037, %v8345
      %v8347 = vadd.f32 %v8040, %v8345
      %v8348 = vadd.f32 %v8045, %v8345
      %v8349 = vadd.f32 %v8048, %v8345
      %v8350 = vadd.f32 %v8053, %v8345
      %v8351 = vadd.f32 %v8056, %v8345
      %v8352 = vadd.f32 %v8061, %v8345
      %v8353 = vadd.f32 %v8064, %v8345
      %v8354 = vadd.f32 %v8069, %v8345
      %v8355 = vadd.f32 %v8072, %v8345
      %v8356 = vadd.f32 %v8077, %v8345
      %v8357 = vadd.f32 %v8080, %v8345
      %v8358 = vadd.f32 %v8085, %v8345
      %v8359 = vadd.f32 %v8088, %v8345
      %v8360 = vadd.f32 %v8093, %v8345
      %v8361 = vadd.f32 %v8096, %v8345
      %v8362 = vadd.f32 %v8101, %v8345
      %v8363 = vadd.f32 %v8104, %v8345
      %v8364 = vadd.f32 %v8109, %v8345
      %v8365 = vadd.f32 %v8112, %v8345
      %v8366 = vadd.f32 %v8117, %v8345
      %v8367 = vadd.f32 %v8120, %v8345
      %v8368 = vadd.f32 %v8125, %v8345
      %v8369 = vadd.f32 %v8128, %v8345
      %v8370 = vadd.f32 %v8133, %v8345
      %v8371 = vadd.f32 %v8136, %v8345
      %v8372 = vadd.f32 %v8141, %v8345
      %v8373 = vadd.f32 %v8144, %v8345
      %v8374 = vadd.f32 %v8149, %v8345
      %v8375 = vadd.f32 %v8152, %v8345
      %v8376 = vadd.f32 %v8157, %v8345
      %v8377 = vadd.f32 %v8160, %v8345
      %v8378 = vxor.u32 %v8346, 2147483648
      %v8379 = vxor.u32 %v8347, 2147483648
      %v8380 = vxor.u32 %v8348, 2147483648
      %v8381 = vxor.u32 %v8349, 2147483648
      %v8382 = vxor.u32 %v8350, 2147483648
      %v8383 = vxor.u32 %v8351, 2147483648
      %v8384 = vxor.u32 %v8352, 2147483648
      %v8385 = vxor.u32 %v8353, 2147483648
      %v8386 = vxor.u32 %v8354, 2147483648
      %v8387 = vxor.u32 %v8355, 2147483648
      %v8388 = vxor.u32 %v8356, 2147483648
      %v8389 = vxor.u32 %v8357, 2147483648
      %v8390 = vxor.u32 %v8358, 2147483648
      %v8391 = vxor.u32 %v8359, 2147483648
      %v8392 = vxor.u32 %v8360, 2147483648
      %v8393 = vxor.u32 %v8361, 2147483648
      %v8394 = vxor.u32 %v8362, 2147483648
      %v8395 = vxor.u32 %v8363, 2147483648
      %v8396 = vxor.u32 %v8364, 2147483648
      %v8397 = vxor.u32 %v8365, 2147483648
      %v8398 = vxor.u32 %v8366, 2147483648
      %v8399 = vxor.u32 %v8367, 2147483648
      %v8400 = vxor.u32 %v8368, 2147483648
      %v8401 = vxor.u32 %v8369, 2147483648
      %v8402 = vxor.u32 %v8370, 2147483648
      %v8403 = vxor.u32 %v8371, 2147483648
      %v8404 = vxor.u32 %v8372, 2147483648
      %v8405 = vxor.u32 %v8373, 2147483648
      %v8406 = vxor.u32 %v8374, 2147483648
      %v8407 = vxor.u32 %v8375, 2147483648
      %v8408 = vxor.u32 %v8376, 2147483648
      %v8409 = vxor.u32 %v8377, 2147483648
      %v8410 = vmul.f32 %v8378, 1.442695
      %v8411 = vpow.pop %v8410
      %v8412 = vmul.f32 %v8379, 1.442695
      %v8413 = vpow.pop %v8412
      %v8414 = vmul.f32 %v8380, 1.442695
      %v8415 = vpow.pop %v8414
      %v8416 = vmul.f32 %v8381, 1.442695
      %v8417 = vpow.pop %v8416
      %v8418 = vmul.f32 %v8382, 1.442695
      %v8419 = vpow.pop %v8418
      %v8420 = vmul.f32 %v8383, 1.442695
      %v8421 = vpow.pop %v8420
      %v8422 = vmul.f32 %v8384, 1.442695
      %v8423 = vpow.pop %v8422
      %v8424 = vmul.f32 %v8385, 1.442695
      %v8425 = vpow.pop %v8424
      %v8426 = vmul.f32 %v8386, 1.442695
      %v8427 = vpow.pop %v8426
      %v8428 = vmul.f32 %v8387, 1.442695
      %v8429 = vpow.pop %v8428
      %v8430 = vmul.f32 %v8388, 1.442695
      %v8431 = vpow.pop %v8430
      %v8432 = vmul.f32 %v8389, 1.442695
      %v8433 = vpow.pop %v8432
      %v8434 = vmul.f32 %v8390, 1.442695
      %v8435 = vpow.pop %v8434
      %v8436 = vmul.f32 %v8391, 1.442695
      %v8437 = vpow.pop %v8436
      %v8438 = vmul.f32 %v8392, 1.442695
      %v8439 = vpow.pop %v8438
      %v8440 = vmul.f32 %v8393, 1.442695
      %v8441 = vpow.pop %v8440
      %v8442 = vmul.f32 %v8394, 1.442695
      %v8443 = vpow.pop %v8442
      %v8444 = vmul.f32 %v8395, 1.442695
      %v8445 = vpow.pop %v8444
      %v8446 = vmul.f32 %v8396, 1.442695
      %v8447 = vpow.pop %v8446
      %v8448 = vmul.f32 %v8397, 1.442695
      %v8449 = vpow.pop %v8448
      %v8450 = vmul.f32 %v8398, 1.442695
      %v8451 = vpow.pop %v8450
      %v8452 = vmul.f32 %v8399, 1.442695
      %v8453 = vpow.pop %v8452
      %v8454 = vmul.f32 %v8400, 1.442695
      %v8455 = vpow.pop %v8454
      %v8456 = vmul.f32 %v8401, 1.442695
      %v8457 = vpow.pop %v8456
      %v8458 = vmul.f32 %v8402, 1.442695
      %v8459 = vpow.pop %v8458
      %v8460 = vmul.f32 %v8403, 1.442695
      %v8461 = vpow.pop %v8460
      %v8462 = vmul.f32 %v8404, 1.442695
      %v8463 = vpow.pop %v8462
      %v8464 = vmul.f32 %v8405, 1.442695
      %v8465 = vpow.pop %v8464
      %v8466 = vmul.f32 %v8406, 1.442695
      %v8467 = vpow.pop %v8466
      %v8468 = vmul.f32 %v8407, 1.442695
      %v8469 = vpow.pop %v8468
      %v8470 = vmul.f32 %v8408, 1.442695
      %v8471 = vpow.pop %v8470
      %v8472 = vmul.f32 %v8409, 1.442695
      %v8473 = vpow.pop %v8472
      %v8474 = vadd.f32 %v8411, 1.0
      %v8475 = vadd.f32 %v8413, 1.0
      %v8476 = vadd.f32 %v8415, 1.0
      %v8477 = vadd.f32 %v8417, 1.0
      %v8478 = vadd.f32 %v8419, 1.0
      %v8479 = vadd.f32 %v8421, 1.0
      %v8480 = vadd.f32 %v8423, 1.0
      %v8481 = vadd.f32 %v8425, 1.0
      %v8482 = vadd.f32 %v8427, 1.0
      %v8483 = vadd.f32 %v8429, 1.0
      %v8484 = vadd.f32 %v8431, 1.0
      %v8485 = vadd.f32 %v8433, 1.0
      %v8486 = vadd.f32 %v8435, 1.0
      %v8487 = vadd.f32 %v8437, 1.0
      %v8488 = vadd.f32 %v8439, 1.0
      %v8489 = vadd.f32 %v8441, 1.0
      %v8490 = vadd.f32 %v8443, 1.0
      %v8491 = vadd.f32 %v8445, 1.0
      %v8492 = vadd.f32 %v8447, 1.0
      %v8493 = vadd.f32 %v8449, 1.0
      %v8494 = vadd.f32 %v8451, 1.0
      %v8495 = vadd.f32 %v8453, 1.0
      %v8496 = vadd.f32 %v8455, 1.0
      %v8497 = vadd.f32 %v8457, 1.0
      %v8498 = vadd.f32 %v8459, 1.0
      %v8499 = vadd.f32 %v8461, 1.0
      %v8500 = vadd.f32 %v8463, 1.0
      %v8501 = vadd.f32 %v8465, 1.0
      %v8502 = vadd.f32 %v8467, 1.0
      %v8503 = vadd.f32 %v8469, 1.0
      %v8504 = vadd.f32 %v8471, 1.0
      %v8505 = vadd.f32 %v8473, 1.0
      %v8506 = vrcp.pop %v8474
      %v8507 = vmul.f32 1.0, %v8506
      %v8508 = vrcp.pop %v8475
      %v8509 = vmul.f32 1.0, %v8508
      %v8510 = vrcp.pop %v8476
      %v8511 = vmul.f32 1.0, %v8510
      %v8512 = vrcp.pop %v8477
      %v8513 = vmul.f32 1.0, %v8512
      %v8514 = vrcp.pop %v8478
      %v8515 = vmul.f32 1.0, %v8514
      %v8516 = vrcp.pop %v8479
      %v8517 = vmul.f32 1.0, %v8516
      %v8518 = vrcp.pop %v8480
      %v8519 = vmul.f32 1.0, %v8518
      %v8520 = vrcp.pop %v8481
      %v8521 = vmul.f32 1.0, %v8520
      %v8522 = vrcp.pop %v8482
      %v8523 = vmul.f32 1.0, %v8522
      %v8524 = vrcp.pop %v8483
      %v8525 = vmul.f32 1.0, %v8524
      %v8526 = vrcp.pop %v8484
      %v8527 = vmul.f32 1.0, %v8526
      %v8528 = vrcp.pop %v8485
      %v8529 = vmul.f32 1.0, %v8528
      %v8530 = vrcp.pop %v8486
      %v8531 = vmul.f32 1.0, %v8530
      %v8532 = vrcp.pop %v8487
      %v8533 = vmul.f32 1.0, %v8532
      %v8534 = vrcp.pop %v8488
      %v8535 = vmul.f32 1.0, %v8534
      %v8536 = vrcp.pop %v8489
      %v8537 = vmul.f32 1.0, %v8536
      %v8538 = vrcp.pop %v8490
      %v8539 = vmul.f32 1.0, %v8538
      %v8540 = vrcp.pop %v8491
      %v8541 = vmul.f32 1.0, %v8540
      %v8542 = vrcp.pop %v8492
      %v8543 = vmul.f32 1.0, %v8542
      %v8544 = vrcp.pop %v8493
      %v8545 = vmul.f32 1.0, %v8544
      %v8546 = vrcp.pop %v8494
      %v8547 = vmul.f32 1.0, %v8546
      %v8548 = vrcp.pop %v8495
      %v8549 = vmul.f32 1.0, %v8548
      %v8550 = vrcp.pop %v8496
      %v8551 = vmul.f32 1.0, %v8550
      %v8552 = vrcp.pop %v8497
      %v8553 = vmul.f32 1.0, %v8552
      %v8554 = vrcp.pop %v8498
      %v8555 = vmul.f32 1.0, %v8554
      %v8556 = vrcp.pop %v8499
      %v8557 = vmul.f32 1.0, %v8556
      %v8558 = vrcp.pop %v8500
      %v8559 = vmul.f32 1.0, %v8558
      %v8560 = vrcp.pop %v8501
      %v8561 = vmul.f32 1.0, %v8560
      %v8562 = vrcp.pop %v8502
      %v8563 = vmul.f32 1.0, %v8562
      %v8564 = vrcp.pop %v8503
      %v8565 = vmul.f32 1.0, %v8564
      %v8566 = vrcp.pop %v8504
      %v8567 = vmul.f32 1.0, %v8566
      %v8568 = vrcp.pop %v8505
      %v8569 = vmul.f32 1.0, %v8568
      %v8570 = vmul.f32 %v7533, %v8507
      %v8571 = vmul.f32 %v7536, %v8509
      %v8572 = vmul.f32 %v7541, %v8511
      %v8573 = vmul.f32 %v7544, %v8513
      %v8574 = vmul.f32 %v7549, %v8515
      %v8575 = vmul.f32 %v7552, %v8517
      %v8576 = vmul.f32 %v7557, %v8519
      %v8577 = vmul.f32 %v7560, %v8521
      %v8578 = vmul.f32 %v7565, %v8523
      %v8579 = vmul.f32 %v7568, %v8525
      %v8580 = vmul.f32 %v7573, %v8527
      %v8581 = vmul.f32 %v7576, %v8529
      %v8582 = vmul.f32 %v7581, %v8531
      %v8583 = vmul.f32 %v7584, %v8533
      %v8584 = vmul.f32 %v7589, %v8535
      %v8585 = vmul.f32 %v7592, %v8537
      %v8586 = vmul.f32 %v7597, %v8539
      %v8587 = vmul.f32 %v7600, %v8541
      %v8588 = vmul.f32 %v7605, %v8543
      %v8589 = vmul.f32 %v7608, %v8545
      %v8590 = vmul.f32 %v7613, %v8547
      %v8591 = vmul.f32 %v7616, %v8549
      %v8592 = vmul.f32 %v7621, %v8551
      %v8593 = vmul.f32 %v7624, %v8553
      %v8594 = vmul.f32 %v7629, %v8555
      %v8595 = vmul.f32 %v7632, %v8557
      %v8596 = vmul.f32 %v7637, %v8559
      %v8597 = vmul.f32 %v7640, %v8561
      %v8598 = vmul.f32 %v7645, %v8563
      %v8599 = vmul.f32 %v7648, %v8565
      %v8600 = vmul.f32 %v7653, %v8567
      %v8601 = vmul.f32 %v7656, %v8569
      %v8602 = vadd.f32 %v4459, %v8570
      %v8603 = vadd.f32 %v4460, %v8571
      %v8604 = vadd.f32 %v4461, %v8572
      %v8605 = vadd.f32 %v4462, %v8573
      %v8606 = vadd.f32 %v4463, %v8574
      %v8607 = vadd.f32 %v4464, %v8575
      %v8608 = vadd.f32 %v4465, %v8576
      %v8609 = vadd.f32 %v4466, %v8577
      %v8610 = vadd.f32 %v4467, %v8578
      %v8611 = vadd.f32 %v4468, %v8579
      %v8612 = vadd.f32 %v4469, %v8580
      %v8613 = vadd.f32 %v4470, %v8581
      %v8614 = vadd.f32 %v4471, %v8582
      %v8615 = vadd.f32 %v4472, %v8583
      %v8616 = vadd.f32 %v4473, %v8584
      %v8617 = vadd.f32 %v4474, %v8585
      %v8618 = vadd.f32 %v4475, %v8586
      %v8619 = vadd.f32 %v4476, %v8587
      %v8620 = vadd.f32 %v4477, %v8588
      %v8621 = vadd.f32 %v4478, %v8589
      %v8622 = vadd.f32 %v4479, %v8590
      %v8623 = vadd.f32 %v4480, %v8591
      %v8624 = vadd.f32 %v4481, %v8592
      %v8625 = vadd.f32 %v4482, %v8593
      %v8626 = vadd.f32 %v4483, %v8594
      %v8627 = vadd.f32 %v4484, %v8595
      %v8628 = vadd.f32 %v4485, %v8596
      %v8629 = vadd.f32 %v4486, %v8597
      %v8630 = vadd.f32 %v4487, %v8598
      %v8631 = vadd.f32 %v4488, %v8599
      %v8632 = vadd.f32 %v4489, %v8600
      %v8633 = vadd.f32 %v4490, %v8601
      %s8634 = scalar_lea.vmem %s4, 8
      %v8635 = vld [vmem:[%s8634] sm:$0xf]
      %s8636 = scalar_lea.vmem %s5, 4
      %v8637 = vld [vmem:[%s8636] sm:$0x3]
      %8638 = vst.msk [vmem:[%s343 + $0x1] sm:$0xff] %vm253, %v8602
      %8639 = vst.msk [vmem:[%s343 + $0x9] sm:$0xff] %vm253, %v8603
      %8640 = vst.msk [vmem:[%s343 + $0x19] sm:$0xff] %vm253, %v8604
      %8641 = vst.msk [vmem:[%s343 + $0x21] sm:$0xff] %vm253, %v8605
      %8642 = vst.msk [vmem:[%s343 + $0x31] sm:$0xff] %vm253, %v8606
      %8643 = vst.msk [vmem:[%s343 + $0x39] sm:$0xff] %vm253, %v8607
      %8644 = vst.msk [vmem:[%s343 + $0x49] sm:$0xff] %vm253, %v8608
      %8645 = vst.msk [vmem:[%s343 + $0x51] sm:$0xff] %vm253, %v8609
      %8646 = vst.msk [vmem:[%s343 + $0x61] sm:$0xff] %vm253, %v8610
      %8647 = vst.msk [vmem:[%s343 + $0x69] sm:$0xff] %vm253, %v8611
      %8648 = vst.msk [vmem:[%s343 + $0x79] sm:$0xff] %vm253, %v8612
      %8649 = vst.msk [vmem:[%s343 + $0x81] sm:$0xff] %vm253, %v8613
      %8650 = vst.msk [vmem:[%s343 + $0x91] sm:$0xff] %vm253, %v8614
      %8651 = vst.msk [vmem:[%s343 + $0x99] sm:$0xff] %vm253, %v8615
      %8652 = vst.msk [vmem:[%s343 + $0xa9] sm:$0xff] %vm253, %v8616
      %8653 = vst.msk [vmem:[%s343 + $0xb1] sm:$0xff] %vm253, %v8617
      %8654 = vst.msk [vmem:[%s343 + $0xc1] sm:$0xff] %vm253, %v8618
      %8655 = vst.msk [vmem:[%s343 + $0xc9] sm:$0xff] %vm253, %v8619
      %8656 = vst.msk [vmem:[%s343 + $0xd9] sm:$0xff] %vm253, %v8620
      %8657 = vst.msk [vmem:[%s343 + $0xe1] sm:$0xff] %vm253, %v8621
      %8658 = vst.msk [vmem:[%s343 + $0xf1] sm:$0xff] %vm253, %v8622
      %8659 = vst.msk [vmem:[%s343 + $0xf9] sm:$0xff] %vm253, %v8623
      %8660 = vst.msk [vmem:[%s343 + $0x109] sm:$0xff] %vm253, %v8624
      %8661 = vst.msk [vmem:[%s343 + $0x111] sm:$0xff] %vm253, %v8625
      %8662 = vst.msk [vmem:[%s343 + $0x121] sm:$0xff] %vm253, %v8626
      %8663 = vst.msk [vmem:[%s343 + $0x129] sm:$0xff] %vm253, %v8627
      %8664 = vst.msk [vmem:[%s343 + $0x139] sm:$0xff] %vm253, %v8628
      %8665 = vst.msk [vmem:[%s343 + $0x141] sm:$0xff] %vm253, %v8629
      %8666 = vst.msk [vmem:[%s343 + $0x151] sm:$0xff] %vm253, %v8630
      %8667 = vst.msk [vmem:[%s343 + $0x159] sm:$0xff] %vm253, %v8631
      %8668 = vst.msk [vmem:[%s343 + $0x169] sm:$0xff] %vm253, %v8632
      %8669 = vst.msk [vmem:[%s343 + $0x171] sm:$0xff] %vm253, %v8633
      %s8670 = scalar_lea.vmem %s1, 288
      %v8671 = vld [vmem:[%s8670] sm:$0xf]
      %v8672 = vld [vmem:[%s8670 + $0x4] sm:$0xf]
      %v8673 = vld [vmem:[%s8670 + $0x8] sm:$0xf]
      %v8674 = vld [vmem:[%s8670 + $0xc] sm:$0xf]
      %v8675 = vld [vmem:[%s8670 + $0x10] sm:$0xf]
      %v8676 = vld [vmem:[%s8670 + $0x14] sm:$0xf]
      %v8677 = vld [vmem:[%s8670 + $0x18] sm:$0xf]
      %v8678 = vld [vmem:[%s8670 + $0x1c] sm:$0xf]
      %v8679 = vld [vmem:[%s8670 + $0x20] sm:$0xf]
      %v8680 = vld [vmem:[%s8670 + $0x24] sm:$0xf]
      %v8681 = vld [vmem:[%s8670 + $0x28] sm:$0xf]
      %v8682 = vld [vmem:[%s8670 + $0x2c] sm:$0xf]
      %v8683 = vld [vmem:[%s8670 + $0x30] sm:$0xf]
      %v8684 = vld [vmem:[%s8670 + $0x34] sm:$0xf]
      %v8685 = vld [vmem:[%s8670 + $0x38] sm:$0xf]
      %v8686 = vld [vmem:[%s8670 + $0x3c] sm:$0xf]
      %v8687 = vld [vmem:[%s8670 + $0x40] sm:$0xf]
      %v8688 = vld [vmem:[%s8670 + $0x44] sm:$0xf]
      %v8689 = vld [vmem:[#allocation2] sm:$0xff]
      %v8690 = vld [vmem:[#allocation2 + $0x8] sm:$0xff]
      %v8691 = vld [vmem:[#allocation2 + $0x10] sm:$0x3]
      %v8692 = vld [vmem:[#allocation2 + $0x18] sm:$0xff]
      %v8693 = vld [vmem:[#allocation2 + $0x20] sm:$0xff]
      %v8694 = vld [vmem:[#allocation2 + $0x28] sm:$0x3]
      %v8695 = vld [vmem:[#allocation2 + $0x30] sm:$0xff]
      %v8696 = vld [vmem:[#allocation2 + $0x38] sm:$0xff]
      %v8697 = vld [vmem:[#allocation2 + $0x40] sm:$0x3]
      %v8698 = vld [vmem:[#allocation2 + $0x48] sm:$0xff]
      %v8699 = vld [vmem:[#allocation2 + $0x50] sm:$0xff]
      %v8700 = vld [vmem:[#allocation2 + $0x58] sm:$0x3]
      %v8701 = vld [vmem:[#allocation2 + $0x60] sm:$0xff]
      %v8702 = vld [vmem:[#allocation2 + $0x68] sm:$0xff]
      %v8703 = vld [vmem:[#allocation2 + $0x70] sm:$0x3]
      %v8704 = vld [vmem:[#allocation2 + $0x78] sm:$0xff]
      %v8705 = vld [vmem:[#allocation2 + $0x80] sm:$0xff]
      %v8706 = vld [vmem:[#allocation2 + $0x88] sm:$0x3]
      %v8707 = vld [vmem:[#allocation2 + $0x90] sm:$0xff]
      %v8708 = vld [vmem:[#allocation2 + $0x98] sm:$0xff]
      %v8709 = vld [vmem:[#allocation2 + $0xa0] sm:$0x3]
      %v8710 = vld [vmem:[#allocation2 + $0xa8] sm:$0xff]
      %v8711 = vld [vmem:[#allocation2 + $0xb0] sm:$0xff]
      %v8712 = vld [vmem:[#allocation2 + $0xb8] sm:$0x3]
      %v8713 = vld [vmem:[#allocation2 + $0xc0] sm:$0xff]
      %v8714 = vld [vmem:[#allocation2 + $0xc8] sm:$0xff]
      %v8715 = vld [vmem:[#allocation2 + $0xd0] sm:$0x3]
      %v8716 = vld [vmem:[#allocation2 + $0xd8] sm:$0xff]
      %v8717 = vld [vmem:[#allocation2 + $0xe0] sm:$0xff]
      %v8718 = vld [vmem:[#allocation2 + $0xe8] sm:$0x3]
      %v8719 = vld [vmem:[#allocation2 + $0xf0] sm:$0xff]
      %v8720 = vld [vmem:[#allocation2 + $0xf8] sm:$0xff]
      %v8721 = vld [vmem:[#allocation2 + $0x100] sm:$0x3]
      %v8722 = vld [vmem:[#allocation2 + $0x108] sm:$0xff]
      %v8723 = vld [vmem:[#allocation2 + $0x110] sm:$0xff]
      %v8724 = vld [vmem:[#allocation2 + $0x118] sm:$0x3]
      %v8725 = vld [vmem:[#allocation2 + $0x120] sm:$0xff]
      %v8726 = vld [vmem:[#allocation2 + $0x128] sm:$0xff]
      %v8727 = vld [vmem:[#allocation2 + $0x130] sm:$0x3]
      %v8728 = vld [vmem:[#allocation2 + $0x138] sm:$0xff]
      %v8729 = vld [vmem:[#allocation2 + $0x140] sm:$0xff]
      %v8730 = vld [vmem:[#allocation2 + $0x148] sm:$0x3]
      %v8731 = vld [vmem:[#allocation2 + $0x150] sm:$0xff]
      %v8732 = vld [vmem:[#allocation2 + $0x158] sm:$0xff]
      %v8733 = vld [vmem:[#allocation2 + $0x160] sm:$0x3]
      %v8734 = vld [vmem:[#allocation2 + $0x168] sm:$0xff]
      %v8735 = vld [vmem:[#allocation2 + $0x170] sm:$0xff]
      %v8736 = vld [vmem:[#allocation2 + $0x178] sm:$0x3]
      %v8737 = vld [vmem:[#allocation2 + $0x180] sm:$0xff]
      %v8738 = vld [vmem:[#allocation2 + $0x188] sm:$0xff]
      %v8739 = vld [vmem:[#allocation2 + $0x190] sm:$0x3]
      %v8740 = vld [vmem:[#allocation2 + $0x198] sm:$0xff]
      %v8741 = vld [vmem:[#allocation2 + $0x1a0] sm:$0xff]
      %v8742 = vld [vmem:[#allocation2 + $0x1a8] sm:$0x3]
      %v8791 = vrot.slane %v8689, 1
      %v8792 = vrot.slane %v8690, 1
      %v8793 = vsel %vm496, %v8791, %v8792
      %v8794 = vrot.slane %v8691, 1
      %v8795 = vsel %vm496, %v8792, %v8794
      %v8796 = vrot.slane %v8692, 1
      %v8797 = vrot.slane %v8693, 1
      %v8798 = vsel %vm496, %v8796, %v8797
      %v8799 = vrot.slane %v8694, 1
      %v8800 = vsel %vm496, %v8797, %v8799
      %v8801 = vrot.slane %v8695, 1
      %v8802 = vrot.slane %v8696, 1
      %v8803 = vsel %vm496, %v8801, %v8802
      %v8804 = vrot.slane %v8697, 1
      %v8805 = vsel %vm496, %v8802, %v8804
      %v8806 = vrot.slane %v8698, 1
      %v8807 = vrot.slane %v8699, 1
      %v8808 = vsel %vm496, %v8806, %v8807
      %v8809 = vrot.slane %v8700, 1
      %v8810 = vsel %vm496, %v8807, %v8809
      %v8811 = vrot.slane %v8701, 1
      %v8812 = vrot.slane %v8702, 1
      %v8813 = vsel %vm496, %v8811, %v8812
      %v8814 = vrot.slane %v8703, 1
      %v8815 = vsel %vm496, %v8812, %v8814
      %v8816 = vrot.slane %v8704, 1
      %v8817 = vrot.slane %v8705, 1
      %v8818 = vsel %vm496, %v8816, %v8817
      %v8819 = vrot.slane %v8706, 1
      %v8820 = vsel %vm496, %v8817, %v8819
      %v8821 = vrot.slane %v8707, 1
      %v8822 = vrot.slane %v8708, 1
      %v8823 = vsel %vm496, %v8821, %v8822
      %v8824 = vrot.slane %v8709, 1
      %v8825 = vsel %vm496, %v8822, %v8824
      %v8826 = vrot.slane %v8710, 1
      %v8827 = vrot.slane %v8711, 1
      %v8828 = vsel %vm496, %v8826, %v8827
      %v8829 = vrot.slane %v8712, 1
      %v8830 = vsel %vm496, %v8827, %v8829
      %v8831 = vrot.slane %v8713, 1
      %v8832 = vrot.slane %v8714, 1
      %v8833 = vsel %vm496, %v8831, %v8832
      %v8834 = vrot.slane %v8715, 1
      %v8835 = vsel %vm496, %v8832, %v8834
      %v8836 = vrot.slane %v8716, 1
      %v8837 = vrot.slane %v8717, 1
      %v8838 = vsel %vm496, %v8836, %v8837
      %v8839 = vrot.slane %v8718, 1
      %v8840 = vsel %vm496, %v8837, %v8839
      %v8841 = vrot.slane %v8719, 1
      %v8842 = vrot.slane %v8720, 1
      %v8843 = vsel %vm496, %v8841, %v8842
      %v8844 = vrot.slane %v8721, 1
      %v8845 = vsel %vm496, %v8842, %v8844
      %v8846 = vrot.slane %v8722, 1
      %v8847 = vrot.slane %v8723, 1
      %v8848 = vsel %vm496, %v8846, %v8847
      %v8849 = vrot.slane %v8724, 1
      %v8850 = vsel %vm496, %v8847, %v8849
      %v8851 = vrot.slane %v8725, 1
      %v8852 = vrot.slane %v8726, 1
      %v8853 = vsel %vm496, %v8851, %v8852
      %v8854 = vrot.slane %v8727, 1
      %v8855 = vsel %vm496, %v8852, %v8854
      %v8856 = vrot.slane %v8728, 1
      %v8857 = vrot.slane %v8729, 1
      %v8858 = vsel %vm496, %v8856, %v8857
      %v8859 = vrot.slane %v8730, 1
      %v8860 = vsel %vm496, %v8857, %v8859
      %v8861 = vrot.slane %v8731, 1
      %v8862 = vrot.slane %v8732, 1
      %v8863 = vsel %vm496, %v8861, %v8862
      %v8864 = vrot.slane %v8733, 1
      %v8865 = vsel %vm496, %v8862, %v8864
      %v8866 = vrot.slane %v8734, 1
      %v8867 = vrot.slane %v8735, 1
      %v8868 = vsel %vm496, %v8866, %v8867
      %v8869 = vrot.slane %v8736, 1
      %v8870 = vsel %vm496, %v8867, %v8869
      %v8871 = vrot.slane %v8689, 2
      %v8872 = vrot.slane %v8690, 2
      %v8873 = vsel %vm577, %v8871, %v8872
      %v8874 = vrot.slane %v8691, 2
      %v8875 = vsel %vm577, %v8872, %v8874
      %v8876 = vrot.slane %v8692, 2
      %v8877 = vrot.slane %v8693, 2
      %v8878 = vsel %vm577, %v8876, %v8877
      %v8879 = vrot.slane %v8694, 2
      %v8880 = vsel %vm577, %v8877, %v8879
      %v8881 = vrot.slane %v8695, 2
      %v8882 = vrot.slane %v8696, 2
      %v8883 = vsel %vm577, %v8881, %v8882
      %v8884 = vrot.slane %v8697, 2
      %v8885 = vsel %vm577, %v8882, %v8884
      %v8886 = vrot.slane %v8698, 2
      %v8887 = vrot.slane %v8699, 2
      %v8888 = vsel %vm577, %v8886, %v8887
      %v8889 = vrot.slane %v8700, 2
      %v8890 = vsel %vm577, %v8887, %v8889
      %v8891 = vrot.slane %v8701, 2
      %v8892 = vrot.slane %v8702, 2
      %v8893 = vsel %vm577, %v8891, %v8892
      %v8894 = vrot.slane %v8703, 2
      %v8895 = vsel %vm577, %v8892, %v8894
      %v8896 = vrot.slane %v8704, 2
      %v8897 = vrot.slane %v8705, 2
      %v8898 = vsel %vm577, %v8896, %v8897
      %v8899 = vrot.slane %v8706, 2
      %v8900 = vsel %vm577, %v8897, %v8899
      %v8901 = vrot.slane %v8707, 2
      %v8902 = vrot.slane %v8708, 2
      %v8903 = vsel %vm577, %v8901, %v8902
      %v8904 = vrot.slane %v8709, 2
      %v8905 = vsel %vm577, %v8902, %v8904
      %v8906 = vrot.slane %v8710, 2
      %v8907 = vrot.slane %v8711, 2
      %v8908 = vsel %vm577, %v8906, %v8907
      %v8909 = vrot.slane %v8712, 2
      %v8910 = vsel %vm577, %v8907, %v8909
      %v8911 = vrot.slane %v8713, 2
      %v8912 = vrot.slane %v8714, 2
      %v8913 = vsel %vm577, %v8911, %v8912
      %v8914 = vrot.slane %v8715, 2
      %v8915 = vsel %vm577, %v8912, %v8914
      %v8916 = vrot.slane %v8716, 2
      %v8917 = vrot.slane %v8717, 2
      %v8918 = vsel %vm577, %v8916, %v8917
      %v8919 = vrot.slane %v8718, 2
      %v8920 = vsel %vm577, %v8917, %v8919
      %v8921 = vrot.slane %v8719, 2
      %v8922 = vrot.slane %v8720, 2
      %v8923 = vsel %vm577, %v8921, %v8922
      %v8924 = vrot.slane %v8721, 2
      %v8925 = vsel %vm577, %v8922, %v8924
      %v8926 = vrot.slane %v8722, 2
      %v8927 = vrot.slane %v8723, 2
      %v8928 = vsel %vm577, %v8926, %v8927
      %v8929 = vrot.slane %v8724, 2
      %v8930 = vsel %vm577, %v8927, %v8929
      %v8931 = vrot.slane %v8725, 2
      %v8932 = vrot.slane %v8726, 2
      %v8933 = vsel %vm577, %v8931, %v8932
      %v8934 = vrot.slane %v8727, 2
      %v8935 = vsel %vm577, %v8932, %v8934
      %v8936 = vrot.slane %v8728, 2
      %v8937 = vrot.slane %v8729, 2
      %v8938 = vsel %vm577, %v8936, %v8937
      %v8939 = vrot.slane %v8730, 2
      %v8940 = vsel %vm577, %v8937, %v8939
      %v8941 = vrot.slane %v8731, 2
      %v8942 = vrot.slane %v8732, 2
      %v8943 = vsel %vm577, %v8941, %v8942
      %v8944 = vrot.slane %v8733, 2
      %v8945 = vsel %vm577, %v8942, %v8944
      %v8946 = vrot.slane %v8734, 2
      %v8947 = vrot.slane %v8735, 2
      %v8948 = vsel %vm577, %v8946, %v8947
      %v8949 = vrot.slane %v8736, 2
      %v8950 = vsel %vm577, %v8947, %v8949
      %v8954 = vrot.slane %v8737, 1
      %v8955 = vrot.slane %v8738, 1
      %v8956 = vsel %vm496, %v8954, %v8955
      %v8957 = vrot.slane %v8739, 1
      %v8958 = vsel %vm496, %v8955, %v8957
      %v8959 = vrot.slane %v8737, 2
      %v8960 = vrot.slane %v8738, 2
      %v8961 = vsel %vm577, %v8959, %v8960
      %v8962 = vrot.slane %v8739, 2
      %v8963 = vsel %vm577, %v8960, %v8962
      %v8967 = vrot.slane %v8740, 1
      %v8968 = vrot.slane %v8741, 1
      %v8969 = vsel %vm496, %v8967, %v8968
      %v8970 = vrot.slane %v8742, 1
      %v8971 = vsel %vm496, %v8968, %v8970
      %v8972 = vrot.slane %v8740, 2
      %v8973 = vrot.slane %v8741, 2
      %v8974 = vsel %vm577, %v8972, %v8973
      %v8975 = vrot.slane %v8742, 2
      %v8976 = vsel %vm577, %v8973, %v8975
      %9009 = vrot.lane.b32.xlu0 %v8793, 16
      %v9010 = vpop.permute.xlu0 %9009
      %9011 = vrot.lane.b32.xlu0 %v8795, 16
      %v9012 = vpop.permute.xlu0 %9011
      %9013 = vrot.lane.b32.xlu0 %v8798, 16
      %v9014 = vpop.permute.xlu0 %9013
      %9015 = vrot.lane.b32.xlu0 %v8800, 16
      %v9016 = vpop.permute.xlu0 %9015
      %9017 = vrot.lane.b32.xlu0 %v8803, 16
      %v9018 = vpop.permute.xlu0 %9017
      %9019 = vrot.lane.b32.xlu0 %v8805, 16
      %v9020 = vpop.permute.xlu0 %9019
      %9021 = vrot.lane.b32.xlu0 %v8808, 16
      %v9022 = vpop.permute.xlu0 %9021
      %9023 = vrot.lane.b32.xlu0 %v8810, 16
      %v9024 = vpop.permute.xlu0 %9023
      %9025 = vrot.lane.b32.xlu0 %v8813, 16
      %v9026 = vpop.permute.xlu0 %9025
      %9027 = vrot.lane.b32.xlu0 %v8815, 16
      %v9028 = vpop.permute.xlu0 %9027
      %9029 = vrot.lane.b32.xlu0 %v8818, 16
      %v9030 = vpop.permute.xlu0 %9029
      %9031 = vrot.lane.b32.xlu0 %v8820, 16
      %v9032 = vpop.permute.xlu0 %9031
      %9033 = vrot.lane.b32.xlu0 %v8823, 16
      %v9034 = vpop.permute.xlu0 %9033
      %9035 = vrot.lane.b32.xlu0 %v8825, 16
      %v9036 = vpop.permute.xlu0 %9035
      %9037 = vrot.lane.b32.xlu0 %v8828, 16
      %v9038 = vpop.permute.xlu0 %9037
      %9039 = vrot.lane.b32.xlu0 %v8830, 16
      %v9040 = vpop.permute.xlu0 %9039
      %9041 = vrot.lane.b32.xlu0 %v8833, 16
      %v9042 = vpop.permute.xlu0 %9041
      %9043 = vrot.lane.b32.xlu0 %v8835, 16
      %v9044 = vpop.permute.xlu0 %9043
      %9045 = vrot.lane.b32.xlu0 %v8838, 16
      %v9046 = vpop.permute.xlu0 %9045
      %9047 = vrot.lane.b32.xlu0 %v8840, 16
      %v9048 = vpop.permute.xlu0 %9047
      %9049 = vrot.lane.b32.xlu0 %v8843, 16
      %v9050 = vpop.permute.xlu0 %9049
      %9051 = vrot.lane.b32.xlu0 %v8845, 16
      %v9052 = vpop.permute.xlu0 %9051
      %9053 = vrot.lane.b32.xlu0 %v8848, 16
      %v9054 = vpop.permute.xlu0 %9053
      %9055 = vrot.lane.b32.xlu0 %v8850, 16
      %v9056 = vpop.permute.xlu0 %9055
      %9057 = vrot.lane.b32.xlu0 %v8853, 16
      %v9058 = vpop.permute.xlu0 %9057
      %9059 = vrot.lane.b32.xlu0 %v8855, 16
      %v9060 = vpop.permute.xlu0 %9059
      %9061 = vrot.lane.b32.xlu0 %v8858, 16
      %v9062 = vpop.permute.xlu0 %9061
      %9063 = vrot.lane.b32.xlu0 %v8860, 16
      %v9064 = vpop.permute.xlu0 %9063
      %9065 = vrot.lane.b32.xlu0 %v8863, 16
      %v9066 = vpop.permute.xlu0 %9065
      %9067 = vrot.lane.b32.xlu0 %v8865, 16
      %v9068 = vpop.permute.xlu0 %9067
      %9069 = vrot.lane.b32.xlu0 %v8868, 16
      %v9070 = vpop.permute.xlu0 %9069
      %9071 = vrot.lane.b32.xlu0 %v8870, 16
      %v9072 = vpop.permute.xlu0 %9071
      %9105 = vrot.lane.b32.xlu0 %v8873, 32
      %v9106 = vpop.permute.xlu0 %9105
      %9107 = vrot.lane.b32.xlu0 %v8875, 32
      %v9108 = vpop.permute.xlu0 %9107
      %9109 = vrot.lane.b32.xlu0 %v8878, 32
      %v9110 = vpop.permute.xlu0 %9109
      %9111 = vrot.lane.b32.xlu0 %v8880, 32
      %v9112 = vpop.permute.xlu0 %9111
      %9113 = vrot.lane.b32.xlu0 %v8883, 32
      %v9114 = vpop.permute.xlu0 %9113
      %9115 = vrot.lane.b32.xlu0 %v8885, 32
      %v9116 = vpop.permute.xlu0 %9115
      %9117 = vrot.lane.b32.xlu0 %v8888, 32
      %v9118 = vpop.permute.xlu0 %9117
      %9119 = vrot.lane.b32.xlu0 %v8890, 32
      %v9120 = vpop.permute.xlu0 %9119
      %9121 = vrot.lane.b32.xlu0 %v8893, 32
      %v9122 = vpop.permute.xlu0 %9121
      %9123 = vrot.lane.b32.xlu0 %v8895, 32
      %v9124 = vpop.permute.xlu0 %9123
      %9125 = vrot.lane.b32.xlu0 %v8898, 32
      %v9126 = vpop.permute.xlu0 %9125
      %9127 = vrot.lane.b32.xlu0 %v8900, 32
      %v9128 = vpop.permute.xlu0 %9127
      %9129 = vrot.lane.b32.xlu0 %v8903, 32
      %v9130 = vpop.permute.xlu0 %9129
      %9131 = vrot.lane.b32.xlu0 %v8905, 32
      %v9132 = vpop.permute.xlu0 %9131
      %9133 = vrot.lane.b32.xlu0 %v8908, 32
      %v9134 = vpop.permute.xlu0 %9133
      %9135 = vrot.lane.b32.xlu0 %v8910, 32
      %v9136 = vpop.permute.xlu0 %9135
      %9137 = vrot.lane.b32.xlu0 %v8913, 32
      %v9138 = vpop.permute.xlu0 %9137
      %9139 = vrot.lane.b32.xlu0 %v8915, 32
      %v9140 = vpop.permute.xlu0 %9139
      %9141 = vrot.lane.b32.xlu0 %v8918, 32
      %v9142 = vpop.permute.xlu0 %9141
      %9143 = vrot.lane.b32.xlu0 %v8920, 32
      %v9144 = vpop.permute.xlu0 %9143
      %9145 = vrot.lane.b32.xlu0 %v8923, 32
      %v9146 = vpop.permute.xlu0 %9145
      %9147 = vrot.lane.b32.xlu0 %v8925, 32
      %v9148 = vpop.permute.xlu0 %9147
      %9149 = vrot.lane.b32.xlu0 %v8928, 32
      %v9150 = vpop.permute.xlu0 %9149
      %9151 = vrot.lane.b32.xlu0 %v8930, 32
      %v9152 = vpop.permute.xlu0 %9151
      %9153 = vrot.lane.b32.xlu0 %v8933, 32
      %v9154 = vpop.permute.xlu0 %9153
      %9155 = vrot.lane.b32.xlu0 %v8935, 32
      %v9156 = vpop.permute.xlu0 %9155
      %9157 = vrot.lane.b32.xlu0 %v8938, 32
      %v9158 = vpop.permute.xlu0 %9157
      %9159 = vrot.lane.b32.xlu0 %v8940, 32
      %v9160 = vpop.permute.xlu0 %9159
      %9161 = vrot.lane.b32.xlu0 %v8943, 32
      %v9162 = vpop.permute.xlu0 %9161
      %9163 = vrot.lane.b32.xlu0 %v8945, 32
      %v9164 = vpop.permute.xlu0 %9163
      %9165 = vrot.lane.b32.xlu0 %v8948, 32
      %v9166 = vpop.permute.xlu0 %9165
      %9167 = vrot.lane.b32.xlu0 %v8950, 32
      %v9168 = vpop.permute.xlu0 %9167
      %9201 = vrot.lane.b32.xlu0 %v8692, 48
      %v9202 = vpop.permute.xlu0 %9201
      %9203 = vrot.lane.b32.xlu0 %v8693, 48
      %v9204 = vpop.permute.xlu0 %9203
      %9205 = vrot.lane.b32.xlu0 %v8695, 48
      %v9206 = vpop.permute.xlu0 %9205
      %9207 = vrot.lane.b32.xlu0 %v8696, 48
      %v9208 = vpop.permute.xlu0 %9207
      %9209 = vrot.lane.b32.xlu0 %v8698, 48
      %v9210 = vpop.permute.xlu0 %9209
      %9211 = vrot.lane.b32.xlu0 %v8699, 48
      %v9212 = vpop.permute.xlu0 %9211
      %9213 = vrot.lane.b32.xlu0 %v8701, 48
      %v9214 = vpop.permute.xlu0 %9213
      %9215 = vrot.lane.b32.xlu0 %v8702, 48
      %v9216 = vpop.permute.xlu0 %9215
      %9217 = vrot.lane.b32.xlu0 %v8704, 48
      %v9218 = vpop.permute.xlu0 %9217
      %9219 = vrot.lane.b32.xlu0 %v8705, 48
      %v9220 = vpop.permute.xlu0 %9219
      %9221 = vrot.lane.b32.xlu0 %v8707, 48
      %v9222 = vpop.permute.xlu0 %9221
      %9223 = vrot.lane.b32.xlu0 %v8708, 48
      %v9224 = vpop.permute.xlu0 %9223
      %9225 = vrot.lane.b32.xlu0 %v8710, 48
      %v9226 = vpop.permute.xlu0 %9225
      %9227 = vrot.lane.b32.xlu0 %v8711, 48
      %v9228 = vpop.permute.xlu0 %9227
      %9229 = vrot.lane.b32.xlu0 %v8713, 48
      %v9230 = vpop.permute.xlu0 %9229
      %9231 = vrot.lane.b32.xlu0 %v8714, 48
      %v9232 = vpop.permute.xlu0 %9231
      %9233 = vrot.lane.b32.xlu0 %v8716, 48
      %v9234 = vpop.permute.xlu0 %9233
      %9235 = vrot.lane.b32.xlu0 %v8717, 48
      %v9236 = vpop.permute.xlu0 %9235
      %9237 = vrot.lane.b32.xlu0 %v8719, 48
      %v9238 = vpop.permute.xlu0 %9237
      %9239 = vrot.lane.b32.xlu0 %v8720, 48
      %v9240 = vpop.permute.xlu0 %9239
      %9241 = vrot.lane.b32.xlu0 %v8722, 48
      %v9242 = vpop.permute.xlu0 %9241
      %9243 = vrot.lane.b32.xlu0 %v8723, 48
      %v9244 = vpop.permute.xlu0 %9243
      %9245 = vrot.lane.b32.xlu0 %v8725, 48
      %v9246 = vpop.permute.xlu0 %9245
      %9247 = vrot.lane.b32.xlu0 %v8726, 48
      %v9248 = vpop.permute.xlu0 %9247
      %9249 = vrot.lane.b32.xlu0 %v8728, 48
      %v9250 = vpop.permute.xlu0 %9249
      %9251 = vrot.lane.b32.xlu0 %v8729, 48
      %v9252 = vpop.permute.xlu0 %9251
      %9253 = vrot.lane.b32.xlu0 %v8731, 48
      %v9254 = vpop.permute.xlu0 %9253
      %9255 = vrot.lane.b32.xlu0 %v8732, 48
      %v9256 = vpop.permute.xlu0 %9255
      %9257 = vrot.lane.b32.xlu0 %v8734, 48
      %v9258 = vpop.permute.xlu0 %9257
      %9259 = vrot.lane.b32.xlu0 %v8735, 48
      %v9260 = vpop.permute.xlu0 %9259
      %9261 = vrot.lane.b32.xlu0 %v8737, 48
      %v9262 = vpop.permute.xlu0 %9261
      %9263 = vrot.lane.b32.xlu0 %v8738, 48
      %v9264 = vpop.permute.xlu0 %9263
      %9297 = vrot.lane.b32.xlu0 %v8798, 64
      %v9298 = vpop.permute.xlu0 %9297
      %9299 = vrot.lane.b32.xlu0 %v8800, 64
      %v9300 = vpop.permute.xlu0 %9299
      %9301 = vrot.lane.b32.xlu0 %v8803, 64
      %v9302 = vpop.permute.xlu0 %9301
      %9303 = vrot.lane.b32.xlu0 %v8805, 64
      %v9304 = vpop.permute.xlu0 %9303
      %9305 = vrot.lane.b32.xlu0 %v8808, 64
      %v9306 = vpop.permute.xlu0 %9305
      %9307 = vrot.lane.b32.xlu0 %v8810, 64
      %v9308 = vpop.permute.xlu0 %9307
      %9309 = vrot.lane.b32.xlu0 %v8813, 64
      %v9310 = vpop.permute.xlu0 %9309
      %9311 = vrot.lane.b32.xlu0 %v8815, 64
      %v9312 = vpop.permute.xlu0 %9311
      %9313 = vrot.lane.b32.xlu0 %v8818, 64
      %v9314 = vpop.permute.xlu0 %9313
      %9315 = vrot.lane.b32.xlu0 %v8820, 64
      %v9316 = vpop.permute.xlu0 %9315
      %9317 = vrot.lane.b32.xlu0 %v8823, 64
      %v9318 = vpop.permute.xlu0 %9317
      %9319 = vrot.lane.b32.xlu0 %v8825, 64
      %v9320 = vpop.permute.xlu0 %9319
      %9321 = vrot.lane.b32.xlu0 %v8828, 64
      %v9322 = vpop.permute.xlu0 %9321
      %9323 = vrot.lane.b32.xlu0 %v8830, 64
      %v9324 = vpop.permute.xlu0 %9323
      %9325 = vrot.lane.b32.xlu0 %v8833, 64
      %v9326 = vpop.permute.xlu0 %9325
      %9327 = vrot.lane.b32.xlu0 %v8835, 64
      %v9328 = vpop.permute.xlu0 %9327
      %9329 = vrot.lane.b32.xlu0 %v8838, 64
      %v9330 = vpop.permute.xlu0 %9329
      %9331 = vrot.lane.b32.xlu0 %v8840, 64
      %v9332 = vpop.permute.xlu0 %9331
      %9333 = vrot.lane.b32.xlu0 %v8843, 64
      %v9334 = vpop.permute.xlu0 %9333
      %9335 = vrot.lane.b32.xlu0 %v8845, 64
      %v9336 = vpop.permute.xlu0 %9335
      %9337 = vrot.lane.b32.xlu0 %v8848, 64
      %v9338 = vpop.permute.xlu0 %9337
      %9339 = vrot.lane.b32.xlu0 %v8850, 64
      %v9340 = vpop.permute.xlu0 %9339
      %9341 = vrot.lane.b32.xlu0 %v8853, 64
      %v9342 = vpop.permute.xlu0 %9341
      %9343 = vrot.lane.b32.xlu0 %v8855, 64
      %v9344 = vpop.permute.xlu0 %9343
      %9345 = vrot.lane.b32.xlu0 %v8858, 64
      %v9346 = vpop.permute.xlu0 %9345
      %9347 = vrot.lane.b32.xlu0 %v8860, 64
      %v9348 = vpop.permute.xlu0 %9347
      %9349 = vrot.lane.b32.xlu0 %v8863, 64
      %v9350 = vpop.permute.xlu0 %9349
      %9351 = vrot.lane.b32.xlu0 %v8865, 64
      %v9352 = vpop.permute.xlu0 %9351
      %9353 = vrot.lane.b32.xlu0 %v8868, 64
      %v9354 = vpop.permute.xlu0 %9353
      %9355 = vrot.lane.b32.xlu0 %v8870, 64
      %v9356 = vpop.permute.xlu0 %9355
      %9357 = vrot.lane.b32.xlu0 %v8956, 64
      %v9358 = vpop.permute.xlu0 %9357
      %9359 = vrot.lane.b32.xlu0 %v8958, 64
      %v9360 = vpop.permute.xlu0 %9359
      %9393 = vrot.lane.b32.xlu0 %v8878, 80
      %v9394 = vpop.permute.xlu0 %9393
      %9395 = vrot.lane.b32.xlu0 %v8880, 80
      %v9396 = vpop.permute.xlu0 %9395
      %9397 = vrot.lane.b32.xlu0 %v8883, 80
      %v9398 = vpop.permute.xlu0 %9397
      %9399 = vrot.lane.b32.xlu0 %v8885, 80
      %v9400 = vpop.permute.xlu0 %9399
      %9401 = vrot.lane.b32.xlu0 %v8888, 80
      %v9402 = vpop.permute.xlu0 %9401
      %9403 = vrot.lane.b32.xlu0 %v8890, 80
      %v9404 = vpop.permute.xlu0 %9403
      %9405 = vrot.lane.b32.xlu0 %v8893, 80
      %v9406 = vpop.permute.xlu0 %9405
      %9407 = vrot.lane.b32.xlu0 %v8895, 80
      %v9408 = vpop.permute.xlu0 %9407
      %9409 = vrot.lane.b32.xlu0 %v8898, 80
      %v9410 = vpop.permute.xlu0 %9409
      %9411 = vrot.lane.b32.xlu0 %v8900, 80
      %v9412 = vpop.permute.xlu0 %9411
      %9413 = vrot.lane.b32.xlu0 %v8903, 80
      %v9414 = vpop.permute.xlu0 %9413
      %9415 = vrot.lane.b32.xlu0 %v8905, 80
      %v9416 = vpop.permute.xlu0 %9415
      %9417 = vrot.lane.b32.xlu0 %v8908, 80
      %v9418 = vpop.permute.xlu0 %9417
      %9419 = vrot.lane.b32.xlu0 %v8910, 80
      %v9420 = vpop.permute.xlu0 %9419
      %9421 = vrot.lane.b32.xlu0 %v8913, 80
      %v9422 = vpop.permute.xlu0 %9421
      %9423 = vrot.lane.b32.xlu0 %v8915, 80
      %v9424 = vpop.permute.xlu0 %9423
      %9425 = vrot.lane.b32.xlu0 %v8918, 80
      %v9426 = vpop.permute.xlu0 %9425
      %9427 = vrot.lane.b32.xlu0 %v8920, 80
      %v9428 = vpop.permute.xlu0 %9427
      %9429 = vrot.lane.b32.xlu0 %v8923, 80
      %v9430 = vpop.permute.xlu0 %9429
      %9431 = vrot.lane.b32.xlu0 %v8925, 80
      %v9432 = vpop.permute.xlu0 %9431
      %9433 = vrot.lane.b32.xlu0 %v8928, 80
      %v9434 = vpop.permute.xlu0 %9433
      %9435 = vrot.lane.b32.xlu0 %v8930, 80
      %v9436 = vpop.permute.xlu0 %9435
      %9437 = vrot.lane.b32.xlu0 %v8933, 80
      %v9438 = vpop.permute.xlu0 %9437
      %9439 = vrot.lane.b32.xlu0 %v8935, 80
      %v9440 = vpop.permute.xlu0 %9439
      %9441 = vrot.lane.b32.xlu0 %v8938, 80
      %v9442 = vpop.permute.xlu0 %9441
      %9443 = vrot.lane.b32.xlu0 %v8940, 80
      %v9444 = vpop.permute.xlu0 %9443
      %9445 = vrot.lane.b32.xlu0 %v8943, 80
      %v9446 = vpop.permute.xlu0 %9445
      %9447 = vrot.lane.b32.xlu0 %v8945, 80
      %v9448 = vpop.permute.xlu0 %9447
      %9449 = vrot.lane.b32.xlu0 %v8948, 80
      %v9450 = vpop.permute.xlu0 %9449
      %9451 = vrot.lane.b32.xlu0 %v8950, 80
      %v9452 = vpop.permute.xlu0 %9451
      %9453 = vrot.lane.b32.xlu0 %v8961, 80
      %v9454 = vpop.permute.xlu0 %9453
      %9455 = vrot.lane.b32.xlu0 %v8963, 80
      %v9456 = vpop.permute.xlu0 %9455
      %9489 = vrot.lane.b32.xlu0 %v8695, 96
      %v9490 = vpop.permute.xlu0 %9489
      %9491 = vrot.lane.b32.xlu0 %v8696, 96
      %v9492 = vpop.permute.xlu0 %9491
      %9493 = vrot.lane.b32.xlu0 %v8698, 96
      %v9494 = vpop.permute.xlu0 %9493
      %9495 = vrot.lane.b32.xlu0 %v8699, 96
      %v9496 = vpop.permute.xlu0 %9495
      %9497 = vrot.lane.b32.xlu0 %v8701, 96
      %v9498 = vpop.permute.xlu0 %9497
      %9499 = vrot.lane.b32.xlu0 %v8702, 96
      %v9500 = vpop.permute.xlu0 %9499
      %9501 = vrot.lane.b32.xlu0 %v8704, 96
      %v9502 = vpop.permute.xlu0 %9501
      %9503 = vrot.lane.b32.xlu0 %v8705, 96
      %v9504 = vpop.permute.xlu0 %9503
      %9505 = vrot.lane.b32.xlu0 %v8707, 96
      %v9506 = vpop.permute.xlu0 %9505
      %9507 = vrot.lane.b32.xlu0 %v8708, 96
      %v9508 = vpop.permute.xlu0 %9507
      %9509 = vrot.lane.b32.xlu0 %v8710, 96
      %v9510 = vpop.permute.xlu0 %9509
      %9511 = vrot.lane.b32.xlu0 %v8711, 96
      %v9512 = vpop.permute.xlu0 %9511
      %9513 = vrot.lane.b32.xlu0 %v8713, 96
      %v9514 = vpop.permute.xlu0 %9513
      %9515 = vrot.lane.b32.xlu0 %v8714, 96
      %v9516 = vpop.permute.xlu0 %9515
      %9517 = vrot.lane.b32.xlu0 %v8716, 96
      %v9518 = vpop.permute.xlu0 %9517
      %9519 = vrot.lane.b32.xlu0 %v8717, 96
      %v9520 = vpop.permute.xlu0 %9519
      %9521 = vrot.lane.b32.xlu0 %v8719, 96
      %v9522 = vpop.permute.xlu0 %9521
      %9523 = vrot.lane.b32.xlu0 %v8720, 96
      %v9524 = vpop.permute.xlu0 %9523
      %9525 = vrot.lane.b32.xlu0 %v8722, 96
      %v9526 = vpop.permute.xlu0 %9525
      %9527 = vrot.lane.b32.xlu0 %v8723, 96
      %v9528 = vpop.permute.xlu0 %9527
      %9529 = vrot.lane.b32.xlu0 %v8725, 96
      %v9530 = vpop.permute.xlu0 %9529
      %9531 = vrot.lane.b32.xlu0 %v8726, 96
      %v9532 = vpop.permute.xlu0 %9531
      %9533 = vrot.lane.b32.xlu0 %v8728, 96
      %v9534 = vpop.permute.xlu0 %9533
      %9535 = vrot.lane.b32.xlu0 %v8729, 96
      %v9536 = vpop.permute.xlu0 %9535
      %9537 = vrot.lane.b32.xlu0 %v8731, 96
      %v9538 = vpop.permute.xlu0 %9537
      %9539 = vrot.lane.b32.xlu0 %v8732, 96
      %v9540 = vpop.permute.xlu0 %9539
      %9541 = vrot.lane.b32.xlu0 %v8734, 96
      %v9542 = vpop.permute.xlu0 %9541
      %9543 = vrot.lane.b32.xlu0 %v8735, 96
      %v9544 = vpop.permute.xlu0 %9543
      %9545 = vrot.lane.b32.xlu0 %v8737, 96
      %v9546 = vpop.permute.xlu0 %9545
      %9547 = vrot.lane.b32.xlu0 %v8738, 96
      %v9548 = vpop.permute.xlu0 %9547
      %9549 = vrot.lane.b32.xlu0 %v8740, 96
      %v9550 = vpop.permute.xlu0 %9549
      %9551 = vrot.lane.b32.xlu0 %v8741, 96
      %v9552 = vpop.permute.xlu0 %9551
      %9585 = vrot.lane.b32.xlu0 %v8803, 112
      %v9586 = vpop.permute.xlu0 %9585
      %9587 = vrot.lane.b32.xlu0 %v8805, 112
      %v9588 = vpop.permute.xlu0 %9587
      %9589 = vrot.lane.b32.xlu0 %v8808, 112
      %v9590 = vpop.permute.xlu0 %9589
      %9591 = vrot.lane.b32.xlu0 %v8810, 112
      %v9592 = vpop.permute.xlu0 %9591
      %9593 = vrot.lane.b32.xlu0 %v8813, 112
      %v9594 = vpop.permute.xlu0 %9593
      %9595 = vrot.lane.b32.xlu0 %v8815, 112
      %v9596 = vpop.permute.xlu0 %9595
      %9597 = vrot.lane.b32.xlu0 %v8818, 112
      %v9598 = vpop.permute.xlu0 %9597
      %9599 = vrot.lane.b32.xlu0 %v8820, 112
      %v9600 = vpop.permute.xlu0 %9599
      %9601 = vrot.lane.b32.xlu0 %v8823, 112
      %v9602 = vpop.permute.xlu0 %9601
      %9603 = vrot.lane.b32.xlu0 %v8825, 112
      %v9604 = vpop.permute.xlu0 %9603
      %9605 = vrot.lane.b32.xlu0 %v8828, 112
      %v9606 = vpop.permute.xlu0 %9605
      %9607 = vrot.lane.b32.xlu0 %v8830, 112
      %v9608 = vpop.permute.xlu0 %9607
      %9609 = vrot.lane.b32.xlu0 %v8833, 112
      %v9610 = vpop.permute.xlu0 %9609
      %9611 = vrot.lane.b32.xlu0 %v8835, 112
      %v9612 = vpop.permute.xlu0 %9611
      %9613 = vrot.lane.b32.xlu0 %v8838, 112
      %v9614 = vpop.permute.xlu0 %9613
      %9615 = vrot.lane.b32.xlu0 %v8840, 112
      %v9616 = vpop.permute.xlu0 %9615
      %9617 = vrot.lane.b32.xlu0 %v8843, 112
      %v9618 = vpop.permute.xlu0 %9617
      %9619 = vrot.lane.b32.xlu0 %v8845, 112
      %v9620 = vpop.permute.xlu0 %9619
      %9621 = vrot.lane.b32.xlu0 %v8848, 112
      %v9622 = vpop.permute.xlu0 %9621
      %9623 = vrot.lane.b32.xlu0 %v8850, 112
      %v9624 = vpop.permute.xlu0 %9623
      %9625 = vrot.lane.b32.xlu0 %v8853, 112
      %v9626 = vpop.permute.xlu0 %9625
      %9627 = vrot.lane.b32.xlu0 %v8855, 112
      %v9628 = vpop.permute.xlu0 %9627
      %9629 = vrot.lane.b32.xlu0 %v8858, 112
      %v9630 = vpop.permute.xlu0 %9629
      %9631 = vrot.lane.b32.xlu0 %v8860, 112
      %v9632 = vpop.permute.xlu0 %9631
      %9633 = vrot.lane.b32.xlu0 %v8863, 112
      %v9634 = vpop.permute.xlu0 %9633
      %9635 = vrot.lane.b32.xlu0 %v8865, 112
      %v9636 = vpop.permute.xlu0 %9635
      %9637 = vrot.lane.b32.xlu0 %v8868, 112
      %v9638 = vpop.permute.xlu0 %9637
      %9639 = vrot.lane.b32.xlu0 %v8870, 112
      %v9640 = vpop.permute.xlu0 %9639
      %9641 = vrot.lane.b32.xlu0 %v8956, 112
      %v9642 = vpop.permute.xlu0 %9641
      %9643 = vrot.lane.b32.xlu0 %v8958, 112
      %v9644 = vpop.permute.xlu0 %9643
      %9645 = vrot.lane.b32.xlu0 %v8969, 112
      %v9646 = vpop.permute.xlu0 %9645
      %9647 = vrot.lane.b32.xlu0 %v8971, 112
      %v9648 = vpop.permute.xlu0 %9647
      %v9681 = vsel %vm253, %v8689, %v9010
      %v9682 = vsel %vm253, %v8690, %v9012
      %v9683 = vsel %vm253, %v8692, %v9014
      %v9684 = vsel %vm253, %v8693, %v9016
      %v9685 = vsel %vm253, %v8695, %v9018
      %v9686 = vsel %vm253, %v8696, %v9020
      %v9687 = vsel %vm253, %v8698, %v9022
      %v9688 = vsel %vm253, %v8699, %v9024
      %v9689 = vsel %vm253, %v8701, %v9026
      %v9690 = vsel %vm253, %v8702, %v9028
      %v9691 = vsel %vm253, %v8704, %v9030
      %v9692 = vsel %vm253, %v8705, %v9032
      %v9693 = vsel %vm253, %v8707, %v9034
      %v9694 = vsel %vm253, %v8708, %v9036
      %v9695 = vsel %vm253, %v8710, %v9038
      %v9696 = vsel %vm253, %v8711, %v9040
      %v9697 = vsel %vm253, %v8713, %v9042
      %v9698 = vsel %vm253, %v8714, %v9044
      %v9699 = vsel %vm253, %v8716, %v9046
      %v9700 = vsel %vm253, %v8717, %v9048
      %v9701 = vsel %vm253, %v8719, %v9050
      %v9702 = vsel %vm253, %v8720, %v9052
      %v9703 = vsel %vm253, %v8722, %v9054
      %v9704 = vsel %vm253, %v8723, %v9056
      %v9705 = vsel %vm253, %v8725, %v9058
      %v9706 = vsel %vm253, %v8726, %v9060
      %v9707 = vsel %vm253, %v8728, %v9062
      %v9708 = vsel %vm253, %v8729, %v9064
      %v9709 = vsel %vm253, %v8731, %v9066
      %v9710 = vsel %vm253, %v8732, %v9068
      %v9711 = vsel %vm253, %v8734, %v9070
      %v9712 = vsel %vm253, %v8735, %v9072
      %v9713 = vsel %vm1420, %v9681, %v9106
      %v9714 = vsel %vm1420, %v9682, %v9108
      %v9715 = vsel %vm1420, %v9683, %v9110
      %v9716 = vsel %vm1420, %v9684, %v9112
      %v9717 = vsel %vm1420, %v9685, %v9114
      %v9718 = vsel %vm1420, %v9686, %v9116
      %v9719 = vsel %vm1420, %v9687, %v9118
      %v9720 = vsel %vm1420, %v9688, %v9120
      %v9721 = vsel %vm1420, %v9689, %v9122
      %v9722 = vsel %vm1420, %v9690, %v9124
      %v9723 = vsel %vm1420, %v9691, %v9126
      %v9724 = vsel %vm1420, %v9692, %v9128
      %v9725 = vsel %vm1420, %v9693, %v9130
      %v9726 = vsel %vm1420, %v9694, %v9132
      %v9727 = vsel %vm1420, %v9695, %v9134
      %v9728 = vsel %vm1420, %v9696, %v9136
      %v9729 = vsel %vm1420, %v9697, %v9138
      %v9730 = vsel %vm1420, %v9698, %v9140
      %v9731 = vsel %vm1420, %v9699, %v9142
      %v9732 = vsel %vm1420, %v9700, %v9144
      %v9733 = vsel %vm1420, %v9701, %v9146
      %v9734 = vsel %vm1420, %v9702, %v9148
      %v9735 = vsel %vm1420, %v9703, %v9150
      %v9736 = vsel %vm1420, %v9704, %v9152
      %v9737 = vsel %vm1420, %v9705, %v9154
      %v9738 = vsel %vm1420, %v9706, %v9156
      %v9739 = vsel %vm1420, %v9707, %v9158
      %v9740 = vsel %vm1420, %v9708, %v9160
      %v9741 = vsel %vm1420, %v9709, %v9162
      %v9742 = vsel %vm1420, %v9710, %v9164
      %v9743 = vsel %vm1420, %v9711, %v9166
      %v9744 = vsel %vm1420, %v9712, %v9168
      %v9745 = vsel %vm1453, %v9713, %v9202
      %v9746 = vsel %vm1453, %v9714, %v9204
      %v9747 = vsel %vm1453, %v9715, %v9206
      %v9748 = vsel %vm1453, %v9716, %v9208
      %v9749 = vsel %vm1453, %v9717, %v9210
      %v9750 = vsel %vm1453, %v9718, %v9212
      %v9751 = vsel %vm1453, %v9719, %v9214
      %v9752 = vsel %vm1453, %v9720, %v9216
      %v9753 = vsel %vm1453, %v9721, %v9218
      %v9754 = vsel %vm1453, %v9722, %v9220
      %v9755 = vsel %vm1453, %v9723, %v9222
      %v9756 = vsel %vm1453, %v9724, %v9224
      %v9757 = vsel %vm1453, %v9725, %v9226
      %v9758 = vsel %vm1453, %v9726, %v9228
      %v9759 = vsel %vm1453, %v9727, %v9230
      %v9760 = vsel %vm1453, %v9728, %v9232
      %v9761 = vsel %vm1453, %v9729, %v9234
      %v9762 = vsel %vm1453, %v9730, %v9236
      %v9763 = vsel %vm1453, %v9731, %v9238
      %v9764 = vsel %vm1453, %v9732, %v9240
      %v9765 = vsel %vm1453, %v9733, %v9242
      %v9766 = vsel %vm1453, %v9734, %v9244
      %v9767 = vsel %vm1453, %v9735, %v9246
      %v9768 = vsel %vm1453, %v9736, %v9248
      %v9769 = vsel %vm1453, %v9737, %v9250
      %v9770 = vsel %vm1453, %v9738, %v9252
      %v9771 = vsel %vm1453, %v9739, %v9254
      %v9772 = vsel %vm1453, %v9740, %v9256
      %v9773 = vsel %vm1453, %v9741, %v9258
      %v9774 = vsel %vm1453, %v9742, %v9260
      %v9775 = vsel %vm1453, %v9743, %v9262
      %v9776 = vsel %vm1453, %v9744, %v9264
      %v9777 = vsel %vm1486, %v9745, %v9298
      %v9778 = vsel %vm1486, %v9746, %v9300
      %v9779 = vsel %vm1486, %v9747, %v9302
      %v9780 = vsel %vm1486, %v9748, %v9304
      %v9781 = vsel %vm1486, %v9749, %v9306
      %v9782 = vsel %vm1486, %v9750, %v9308
      %v9783 = vsel %vm1486, %v9751, %v9310
      %v9784 = vsel %vm1486, %v9752, %v9312
      %v9785 = vsel %vm1486, %v9753, %v9314
      %v9786 = vsel %vm1486, %v9754, %v9316
      %v9787 = vsel %vm1486, %v9755, %v9318
      %v9788 = vsel %vm1486, %v9756, %v9320
      %v9789 = vsel %vm1486, %v9757, %v9322
      %v9790 = vsel %vm1486, %v9758, %v9324
      %v9791 = vsel %vm1486, %v9759, %v9326
      %v9792 = vsel %vm1486, %v9760, %v9328
      %v9793 = vsel %vm1486, %v9761, %v9330
      %v9794 = vsel %vm1486, %v9762, %v9332
      %v9795 = vsel %vm1486, %v9763, %v9334
      %v9796 = vsel %vm1486, %v9764, %v9336
      %v9797 = vsel %vm1486, %v9765, %v9338
      %v9798 = vsel %vm1486, %v9766, %v9340
      %v9799 = vsel %vm1486, %v9767, %v9342
      %v9800 = vsel %vm1486, %v9768, %v9344
      %v9801 = vsel %vm1486, %v9769, %v9346
      %v9802 = vsel %vm1486, %v9770, %v9348
      %v9803 = vsel %vm1486, %v9771, %v9350
      %v9804 = vsel %vm1486, %v9772, %v9352
      %v9805 = vsel %vm1486, %v9773, %v9354
      %v9806 = vsel %vm1486, %v9774, %v9356
      %v9807 = vsel %vm1486, %v9775, %v9358
      %v9808 = vsel %vm1486, %v9776, %v9360
      %v9809 = vsel %vm1519, %v9777, %v9394
      %v9810 = vsel %vm1519, %v9778, %v9396
      %v9811 = vsel %vm1519, %v9779, %v9398
      %v9812 = vsel %vm1519, %v9780, %v9400
      %v9813 = vsel %vm1519, %v9781, %v9402
      %v9814 = vsel %vm1519, %v9782, %v9404
      %v9815 = vsel %vm1519, %v9783, %v9406
      %v9816 = vsel %vm1519, %v9784, %v9408
      %v9817 = vsel %vm1519, %v9785, %v9410
      %v9818 = vsel %vm1519, %v9786, %v9412
      %v9819 = vsel %vm1519, %v9787, %v9414
      %v9820 = vsel %vm1519, %v9788, %v9416
      %v9821 = vsel %vm1519, %v9789, %v9418
      %v9822 = vsel %vm1519, %v9790, %v9420
      %v9823 = vsel %vm1519, %v9791, %v9422
      %v9824 = vsel %vm1519, %v9792, %v9424
      %v9825 = vsel %vm1519, %v9793, %v9426
      %v9826 = vsel %vm1519, %v9794, %v9428
      %v9827 = vsel %vm1519, %v9795, %v9430
      %v9828 = vsel %vm1519, %v9796, %v9432
      %v9829 = vsel %vm1519, %v9797, %v9434
      %v9830 = vsel %vm1519, %v9798, %v9436
      %v9831 = vsel %vm1519, %v9799, %v9438
      %v9832 = vsel %vm1519, %v9800, %v9440
      %v9833 = vsel %vm1519, %v9801, %v9442
      %v9834 = vsel %vm1519, %v9802, %v9444
      %v9835 = vsel %vm1519, %v9803, %v9446
      %v9836 = vsel %vm1519, %v9804, %v9448
      %v9837 = vsel %vm1519, %v9805, %v9450
      %v9838 = vsel %vm1519, %v9806, %v9452
      %v9839 = vsel %vm1519, %v9807, %v9454
      %v9840 = vsel %vm1519, %v9808, %v9456
      %v9841 = vsel %vm1552, %v9809, %v9490
      %v9842 = vsel %vm1552, %v9810, %v9492
      %v9843 = vsel %vm1552, %v9811, %v9494
      %v9844 = vsel %vm1552, %v9812, %v9496
      %v9845 = vsel %vm1552, %v9813, %v9498
      %v9846 = vsel %vm1552, %v9814, %v9500
      %v9847 = vsel %vm1552, %v9815, %v9502
      %v9848 = vsel %vm1552, %v9816, %v9504
      %v9849 = vsel %vm1552, %v9817, %v9506
      %v9850 = vsel %vm1552, %v9818, %v9508
      %v9851 = vsel %vm1552, %v9819, %v9510
      %v9852 = vsel %vm1552, %v9820, %v9512
      %v9853 = vsel %vm1552, %v9821, %v9514
      %v9854 = vsel %vm1552, %v9822, %v9516
      %v9855 = vsel %vm1552, %v9823, %v9518
      %v9856 = vsel %vm1552, %v9824, %v9520
      %v9857 = vsel %vm1552, %v9825, %v9522
      %v9858 = vsel %vm1552, %v9826, %v9524
      %v9859 = vsel %vm1552, %v9827, %v9526
      %v9860 = vsel %vm1552, %v9828, %v9528
      %v9861 = vsel %vm1552, %v9829, %v9530
      %v9862 = vsel %vm1552, %v9830, %v9532
      %v9863 = vsel %vm1552, %v9831, %v9534
      %v9864 = vsel %vm1552, %v9832, %v9536
      %v9865 = vsel %vm1552, %v9833, %v9538
      %v9866 = vsel %vm1552, %v9834, %v9540
      %v9867 = vsel %vm1552, %v9835, %v9542
      %v9868 = vsel %vm1552, %v9836, %v9544
      %v9869 = vsel %vm1552, %v9837, %v9546
      %v9870 = vsel %vm1552, %v9838, %v9548
      %v9871 = vsel %vm1552, %v9839, %v9550
      %v9872 = vsel %vm1552, %v9840, %v9552
      %v9873 = vsel %vm1585, %v9841, %v9586
      %v9874 = vsel %vm1585, %v9842, %v9588
      %v9875 = vsel %vm1585, %v9843, %v9590
      %v9876 = vsel %vm1585, %v9844, %v9592
      %v9877 = vsel %vm1585, %v9845, %v9594
      %v9878 = vsel %vm1585, %v9846, %v9596
      %v9879 = vsel %vm1585, %v9847, %v9598
      %v9880 = vsel %vm1585, %v9848, %v9600
      %v9881 = vsel %vm1585, %v9849, %v9602
      %v9882 = vsel %vm1585, %v9850, %v9604
      %v9883 = vsel %vm1585, %v9851, %v9606
      %v9884 = vsel %vm1585, %v9852, %v9608
      %v9885 = vsel %vm1585, %v9853, %v9610
      %v9886 = vsel %vm1585, %v9854, %v9612
      %v9887 = vsel %vm1585, %v9855, %v9614
      %v9888 = vsel %vm1585, %v9856, %v9616
      %v9889 = vsel %vm1585, %v9857, %v9618
      %v9890 = vsel %vm1585, %v9858, %v9620
      %v9891 = vsel %vm1585, %v9859, %v9622
      %v9892 = vsel %vm1585, %v9860, %v9624
      %v9893 = vsel %vm1585, %v9861, %v9626
      %v9894 = vsel %vm1585, %v9862, %v9628
      %v9895 = vsel %vm1585, %v9863, %v9630
      %v9896 = vsel %vm1585, %v9864, %v9632
      %v9897 = vsel %vm1585, %v9865, %v9634
      %v9898 = vsel %vm1585, %v9866, %v9636
      %v9899 = vsel %vm1585, %v9867, %v9638
      %v9900 = vsel %vm1585, %v9868, %v9640
      %v9901 = vsel %vm1585, %v9869, %v9642
      %v9902 = vsel %vm1585, %v9870, %v9644
      %v9903 = vsel %vm1585, %v9871, %v9646
      %v9904 = vsel %vm1585, %v9872, %v9648
      %v9905 = vpack.c.bf16 %v9874, %v9873
      %v9906 = vpack.c.bf16 %v8885, %v8883
      %v9907 = vpack.c.bf16 %v9876, %v9875
      %v9908 = vpack.c.bf16 %v8890, %v8888
      %v9909 = vpack.c.bf16 %v9878, %v9877
      %v9910 = vpack.c.bf16 %v8895, %v8893
      %v9911 = vpack.c.bf16 %v9880, %v9879
      %v9912 = vpack.c.bf16 %v8900, %v8898
      %v9913 = vpack.c.bf16 %v9882, %v9881
      %v9914 = vpack.c.bf16 %v8905, %v8903
      %v9915 = vpack.c.bf16 %v9884, %v9883
      %v9916 = vpack.c.bf16 %v8910, %v8908
      %v9917 = vpack.c.bf16 %v9886, %v9885
      %v9918 = vpack.c.bf16 %v8915, %v8913
      %v9919 = vpack.c.bf16 %v9888, %v9887
      %v9920 = vpack.c.bf16 %v8920, %v8918
      %v9921 = vpack.c.bf16 %v9890, %v9889
      %v9922 = vpack.c.bf16 %v8925, %v8923
      %v9923 = vpack.c.bf16 %v9892, %v9891
      %v9924 = vpack.c.bf16 %v8930, %v8928
      %v9925 = vpack.c.bf16 %v9894, %v9893
      %v9926 = vpack.c.bf16 %v8935, %v8933
      %v9927 = vpack.c.bf16 %v9896, %v9895
      %v9928 = vpack.c.bf16 %v8940, %v8938
      %v9929 = vpack.c.bf16 %v9898, %v9897
      %v9930 = vpack.c.bf16 %v8945, %v8943
      %v9931 = vpack.c.bf16 %v9900, %v9899
      %v9932 = vpack.c.bf16 %v8950, %v8948
      %v9933 = vpack.c.bf16 %v9902, %v9901
      %v9934 = vpack.c.bf16 %v8963, %v8961
      %v9935 = vpack.c.bf16 %v9904, %v9903
      %v9936 = vpack.c.bf16 %v8976, %v8974
      %v9937 = vlaneseq
      %v9938 = vshrl.u32 %v9937, 7
      %v9939 = vsub.s32 0, %v9938
      %v9940 = vrot.slane %v8635, %v9939
      %v9959 = vunpack.c.l.b16 %v8671
      %v9960 = vunpack.c.l.b16 %v8672
      %v9961 = vunpack.c.l.b16 %v8673
      %v9962 = vunpack.c.l.b16 %v8674
      %v9963 = vunpack.c.l.b16 %v8675
      %v9964 = vunpack.c.l.b16 %v8676
      %v9965 = vunpack.c.l.b16 %v8677
      %v9966 = vunpack.c.l.b16 %v8678
      %v9967 = vunpack.c.l.b16 %v8679
      %v9968 = vunpack.c.l.b16 %v8680
      %v9969 = vunpack.c.l.b16 %v8681
      %v9970 = vunpack.c.l.b16 %v8682
      %v9971 = vunpack.c.l.b16 %v8683
      %v9972 = vunpack.c.l.b16 %v8684
      %v9973 = vunpack.c.l.b16 %v8685
      %v9974 = vunpack.c.l.b16 %v8686
      %v9975 = vunpack.c.l.b16 %v8687
      %v9976 = vunpack.c.l.b16 %v8688
      %v9977 = vpack.c.b16 %v9960, %v9959
      %v9978 = vpack.c.b16 %v9962, %v9961
      %v9979 = vpack.c.b16 %v9964, %v9963
      %v9980 = vpack.c.b16 %v9966, %v9965
      %v9981 = vpack.c.b16 %v9968, %v9967
      %v9982 = vpack.c.b16 %v9970, %v9969
      %v9983 = vpack.c.b16 %v9972, %v9971
      %v9984 = vpack.c.b16 %v9974, %v9973
      %v9985 = vpack.c.b16 %v9976, %v9975
      %v9996 = vsel %vm253, %v9906, 0
      %v9999 = vsel %vm253, %v9908, 0
      %v10002 = vsel %vm253, %v9910, 0
      %v10005 = vsel %vm253, %v9912, 0
      %v10008 = vsel %vm253, %v9914, 0
      %v10011 = vsel %vm253, %v9916, 0
      %v10014 = vsel %vm253, %v9918, 0
      %v10017 = vsel %vm253, %v9920, 0
      %v10020 = vsel %vm253, %v9922, 0
      %v10023 = vsel %vm253, %v9924, 0
      %v10026 = vsel %vm253, %v9926, 0
      %v10029 = vsel %vm253, %v9928, 0
      %v10032 = vsel %vm253, %v9930, 0
      %v10035 = vsel %vm253, %v9932, 0
      %v10038 = vsel %vm253, %v9934, 0
      %v10041 = vsel %vm253, %v9936, 0
      %10043 = vmatprep.subr.bf16.mxu0 0
      %10044 = vmatpush1.bf16.msra.mxu0 %v9984
      %10045 = vmatprep.subr.bf16.mxu0 0
      %10046 = vmatpush1.bf16.msra.mxu0 %v9983
      %10047 = vmatprep.subr.bf16.mxu0 0
      %10048 = vmatpush1.bf16.msra.mxu0 %v9982
      %10049 = vmatprep.subr.bf16.mxu0 0
      %10050 = vmatpush1.bf16.msra.mxu0 %v9981
      %10051 = vmatprep.subr.bf16.mxu0 0
      %10052 = vmatpush1.bf16.msra.mxu0 %v9980
      %10053 = vmatprep.subr.bf16.mxu0 0
      %10054 = vmatpush1.bf16.msra.mxu0 %v9979
      %10055 = vmatprep.subr.bf16.mxu0 0
      %10056 = vmatpush1.bf16.msra.mxu0 %v9978
      %10057 = vmatprep.subr.bf16.mxu0 0
      %10058 = vmatpush1.bf16.msra.mxu0 %v9977
      %10059 = vmatprep.subr.bf16.mxu0 0
      %10060 = vmatpush2.bf16.msra.mxu0 0
      %10061 = vmatprep.subr.bf16.mxu0 0
      %10062 = vmatpush2.bf16.msra.mxu0 0
      %10063 = vmatprep.subr.bf16.mxu0 0
      %10064 = vmatpush2.bf16.msra.mxu0 0
      %10065 = vmatprep.subr.bf16.mxu0 0
      %10066 = vmatpush2.bf16.msra.mxu0 0
      %10067 = vmatprep.subr.bf16.mxu0 0
      %10068 = vmatpush2.bf16.msra.mxu0 0
      %10069 = vmatprep.subr.bf16.mxu0 0
      %10070 = vmatpush2.bf16.msra.mxu0 0
      %10071 = vmatprep.subr.bf16.mxu0 0
      %10072 = vmatpush2.bf16.msra.mxu0 0
      %10073 = vmatprep.subr.bf16.mxu0 0
      %10074 = vmatpush2.bf16.msra.mxu0 %v9985
      %10075 = vmatprep.mubr.bf16.mxu0 %v9996
      %10076 = vmatmul.mubr.bf16.gmra.mxu0 %v9905
      %v10077 = vpop.f32.mrf.mxu0
      %v10078 = vadd.f32 %v9940, %v10077
      %v10079 = vpop.f32.mrf.mxu0
      %v10080 = vpop.f32.mrf.mxu0
      %v10081 = vadd.f32 %v9940, %v10080
      %v10082 = vpop.f32.mrf.mxu0
      %10083 = vmatprep.mubr.bf16.mxu0 %v9999
      %10084 = vmatmul.mubr.bf16.gmra.mxu0 %v9907
      %v10085 = vpop.f32.mrf.mxu0
      %v10086 = vadd.f32 %v9940, %v10085
      %v10087 = vpop.f32.mrf.mxu0
      %v10088 = vpop.f32.mrf.mxu0
      %v10089 = vadd.f32 %v9940, %v10088
      %v10090 = vpop.f32.mrf.mxu0
      %10091 = vmatprep.mubr.bf16.mxu0 %v10002
      %10092 = vmatmul.mubr.bf16.gmra.mxu0 %v9909
      %v10093 = vpop.f32.mrf.mxu0
      %v10094 = vadd.f32 %v9940, %v10093
      %v10095 = vpop.f32.mrf.mxu0
      %v10096 = vpop.f32.mrf.mxu0
      %v10097 = vadd.f32 %v9940, %v10096
      %v10098 = vpop.f32.mrf.mxu0
      %10099 = vmatprep.mubr.bf16.mxu0 %v10005
      %10100 = vmatmul.mubr.bf16.gmra.mxu0 %v9911
      %v10101 = vpop.f32.mrf.mxu0
      %v10102 = vadd.f32 %v9940, %v10101
      %v10103 = vpop.f32.mrf.mxu0
      %v10104 = vpop.f32.mrf.mxu0
      %v10105 = vadd.f32 %v9940, %v10104
      %v10106 = vpop.f32.mrf.mxu0
      %10107 = vmatprep.mubr.bf16.mxu0 %v10008
      %10108 = vmatmul.mubr.bf16.gmra.mxu0 %v9913
      %v10109 = vpop.f32.mrf.mxu0
      %v10110 = vadd.f32 %v9940, %v10109
      %v10111 = vpop.f32.mrf.mxu0
      %v10112 = vpop.f32.mrf.mxu0
      %v10113 = vadd.f32 %v9940, %v10112
      %v10114 = vpop.f32.mrf.mxu0
      %10115 = vmatprep.mubr.bf16.mxu0 %v10011
      %10116 = vmatmul.mubr.bf16.gmra.mxu0 %v9915
      %v10117 = vpop.f32.mrf.mxu0
      %v10118 = vadd.f32 %v9940, %v10117
      %v10119 = vpop.f32.mrf.mxu0
      %v10120 = vpop.f32.mrf.mxu0
      %v10121 = vadd.f32 %v9940, %v10120
      %v10122 = vpop.f32.mrf.mxu0
      %10123 = vmatprep.mubr.bf16.mxu0 %v10014
      %10124 = vmatmul.mubr.bf16.gmra.mxu0 %v9917
      %v10125 = vpop.f32.mrf.mxu0
      %v10126 = vadd.f32 %v9940, %v10125
      %v10127 = vpop.f32.mrf.mxu0
      %v10128 = vpop.f32.mrf.mxu0
      %v10129 = vadd.f32 %v9940, %v10128
      %v10130 = vpop.f32.mrf.mxu0
      %10131 = vmatprep.mubr.bf16.mxu0 %v10017
      %10132 = vmatmul.mubr.bf16.gmra.mxu0 %v9919
      %v10133 = vpop.f32.mrf.mxu0
      %v10134 = vadd.f32 %v9940, %v10133
      %v10135 = vpop.f32.mrf.mxu0
      %v10136 = vpop.f32.mrf.mxu0
      %v10137 = vadd.f32 %v9940, %v10136
      %v10138 = vpop.f32.mrf.mxu0
      %10139 = vmatprep.mubr.bf16.mxu0 %v10020
      %10140 = vmatmul.mubr.bf16.gmra.mxu0 %v9921
      %v10141 = vpop.f32.mrf.mxu0
      %v10142 = vadd.f32 %v9940, %v10141
      %v10143 = vpop.f32.mrf.mxu0
      %v10144 = vpop.f32.mrf.mxu0
      %v10145 = vadd.f32 %v9940, %v10144
      %v10146 = vpop.f32.mrf.mxu0
      %10147 = vmatprep.mubr.bf16.mxu0 %v10023
      %10148 = vmatmul.mubr.bf16.gmra.mxu0 %v9923
      %v10149 = vpop.f32.mrf.mxu0
      %v10150 = vadd.f32 %v9940, %v10149
      %v10151 = vpop.f32.mrf.mxu0
      %v10152 = vpop.f32.mrf.mxu0
      %v10153 = vadd.f32 %v9940, %v10152
      %v10154 = vpop.f32.mrf.mxu0
      %10155 = vmatprep.mubr.bf16.mxu0 %v10026
      %10156 = vmatmul.mubr.bf16.gmra.mxu0 %v9925
      %v10157 = vpop.f32.mrf.mxu0
      %v10158 = vadd.f32 %v9940, %v10157
      %v10159 = vpop.f32.mrf.mxu0
      %v10160 = vpop.f32.mrf.mxu0
      %v10161 = vadd.f32 %v9940, %v10160
      %v10162 = vpop.f32.mrf.mxu0
      %10163 = vmatprep.mubr.bf16.mxu0 %v10029
      %10164 = vmatmul.mubr.bf16.gmra.mxu0 %v9927
      %v10165 = vpop.f32.mrf.mxu0
      %v10166 = vadd.f32 %v9940, %v10165
      %v10167 = vpop.f32.mrf.mxu0
      %v10168 = vpop.f32.mrf.mxu0
      %v10169 = vadd.f32 %v9940, %v10168
      %v10170 = vpop.f32.mrf.mxu0
      %10171 = vmatprep.mubr.bf16.mxu0 %v10032
      %10172 = vmatmul.mubr.bf16.gmra.mxu0 %v9929
      %v10173 = vpop.f32.mrf.mxu0
      %v10174 = vadd.f32 %v9940, %v10173
      %v10175 = vpop.f32.mrf.mxu0
      %v10176 = vpop.f32.mrf.mxu0
      %v10177 = vadd.f32 %v9940, %v10176
      %v10178 = vpop.f32.mrf.mxu0
      %10179 = vmatprep.mubr.bf16.mxu0 %v10035
      %10180 = vmatmul.mubr.bf16.gmra.mxu0 %v9931
      %v10181 = vpop.f32.mrf.mxu0
      %v10182 = vadd.f32 %v9940, %v10181
      %v10183 = vpop.f32.mrf.mxu0
      %v10184 = vpop.f32.mrf.mxu0
      %v10185 = vadd.f32 %v9940, %v10184
      %v10186 = vpop.f32.mrf.mxu0
      %10187 = vmatprep.mubr.bf16.mxu0 %v10038
      %10188 = vmatmul.mubr.bf16.gmra.mxu0 %v9933
      %v10189 = vpop.f32.mrf.mxu0
      %v10190 = vadd.f32 %v9940, %v10189
      %v10191 = vpop.f32.mrf.mxu0
      %v10192 = vpop.f32.mrf.mxu0
      %v10193 = vadd.f32 %v9940, %v10192
      %v10194 = vpop.f32.mrf.mxu0
      %10195 = vmatprep.mubr.bf16.mxu0 %v10041
      %10196 = vmatmul.mubr.bf16.gmra.mxu0 %v9935
      %v10197 = vpop.f32.mrf.mxu0
      %v10198 = vadd.f32 %v9940, %v10197
      %v10199 = vpop.f32.mrf.mxu0
      %v10200 = vpop.f32.mrf.mxu0
      %v10201 = vadd.f32 %v9940, %v10200
      %v10202 = vpop.f32.mrf.mxu0
      %10203 = vdwg.mxu0
      %v10204 = vmax.f32 %v10078, 0.0
      %v10205 = vmax.f32 %v10081, 0.0
      %v10206 = vmax.f32 %v10086, 0.0
      %v10207 = vmax.f32 %v10089, 0.0
      %v10208 = vmax.f32 %v10094, 0.0
      %v10209 = vmax.f32 %v10097, 0.0
      %v10210 = vmax.f32 %v10102, 0.0
      %v10211 = vmax.f32 %v10105, 0.0
      %v10212 = vmax.f32 %v10110, 0.0
      %v10213 = vmax.f32 %v10113, 0.0
      %v10214 = vmax.f32 %v10118, 0.0
      %v10215 = vmax.f32 %v10121, 0.0
      %v10216 = vmax.f32 %v10126, 0.0
      %v10217 = vmax.f32 %v10129, 0.0
      %v10218 = vmax.f32 %v10134, 0.0
      %v10219 = vmax.f32 %v10137, 0.0
      %v10220 = vmax.f32 %v10142, 0.0
      %v10221 = vmax.f32 %v10145, 0.0
      %v10222 = vmax.f32 %v10150, 0.0
      %v10223 = vmax.f32 %v10153, 0.0
      %v10224 = vmax.f32 %v10158, 0.0
      %v10225 = vmax.f32 %v10161, 0.0
      %v10226 = vmax.f32 %v10166, 0.0
      %v10227 = vmax.f32 %v10169, 0.0
      %v10228 = vmax.f32 %v10174, 0.0
      %v10229 = vmax.f32 %v10177, 0.0
      %v10230 = vmax.f32 %v10182, 0.0
      %v10231 = vmax.f32 %v10185, 0.0
      %v10232 = vmax.f32 %v10190, 0.0
      %v10233 = vmax.f32 %v10193, 0.0
      %v10234 = vmax.f32 %v10198, 0.0
      %v10235 = vmax.f32 %v10201, 0.0
      %10236 = vst.msk [vmem:[%s343 + $0x1] sm:$0xff] %vm253, %v10204
      %10237 = vst.msk [vmem:[%s343 + $0x9] sm:$0xff] %vm253, %v10205
      %10238 = vst.msk [vmem:[%s343 + $0x19] sm:$0xff] %vm253, %v10206
      %10239 = vst.msk [vmem:[%s343 + $0x21] sm:$0xff] %vm253, %v10207
      %10240 = vst.msk [vmem:[%s343 + $0x31] sm:$0xff] %vm253, %v10208
      %10241 = vst.msk [vmem:[%s343 + $0x39] sm:$0xff] %vm253, %v10209
      %10242 = vst.msk [vmem:[%s343 + $0x49] sm:$0xff] %vm253, %v10210
      %10243 = vst.msk [vmem:[%s343 + $0x51] sm:$0xff] %vm253, %v10211
      %10244 = vst.msk [vmem:[%s343 + $0x61] sm:$0xff] %vm253, %v10212
      %10245 = vst.msk [vmem:[%s343 + $0x69] sm:$0xff] %vm253, %v10213
      %10246 = vst.msk [vmem:[%s343 + $0x79] sm:$0xff] %vm253, %v10214
      %10247 = vst.msk [vmem:[%s343 + $0x81] sm:$0xff] %vm253, %v10215
      %10248 = vst.msk [vmem:[%s343 + $0x91] sm:$0xff] %vm253, %v10216
      %10249 = vst.msk [vmem:[%s343 + $0x99] sm:$0xff] %vm253, %v10217
      %10250 = vst.msk [vmem:[%s343 + $0xa9] sm:$0xff] %vm253, %v10218
      %10251 = vst.msk [vmem:[%s343 + $0xb1] sm:$0xff] %vm253, %v10219
      %10252 = vst.msk [vmem:[%s343 + $0xc1] sm:$0xff] %vm253, %v10220
      %10253 = vst.msk [vmem:[%s343 + $0xc9] sm:$0xff] %vm253, %v10221
      %10254 = vst.msk [vmem:[%s343 + $0xd9] sm:$0xff] %vm253, %v10222
      %10255 = vst.msk [vmem:[%s343 + $0xe1] sm:$0xff] %vm253, %v10223
      %10256 = vst.msk [vmem:[%s343 + $0xf1] sm:$0xff] %vm253, %v10224
      %10257 = vst.msk [vmem:[%s343 + $0xf9] sm:$0xff] %vm253, %v10225
      %10258 = vst.msk [vmem:[%s343 + $0x109] sm:$0xff] %vm253, %v10226
      %10259 = vst.msk [vmem:[%s343 + $0x111] sm:$0xff] %vm253, %v10227
      %10260 = vst.msk [vmem:[%s343 + $0x121] sm:$0xff] %vm253, %v10228
      %10261 = vst.msk [vmem:[%s343 + $0x129] sm:$0xff] %vm253, %v10229
      %10262 = vst.msk [vmem:[%s343 + $0x139] sm:$0xff] %vm253, %v10230
      %10263 = vst.msk [vmem:[%s343 + $0x141] sm:$0xff] %vm253, %v10231
      %10264 = vst.msk [vmem:[%s343 + $0x151] sm:$0xff] %vm253, %v10232
      %10265 = vst.msk [vmem:[%s343 + $0x159] sm:$0xff] %vm253, %v10233
      %10266 = vst.msk [vmem:[%s343 + $0x169] sm:$0xff] %vm253, %v10234
      %10267 = vst.msk [vmem:[%s343 + $0x171] sm:$0xff] %vm253, %v10235
      %s10268 = scalar_lea.vmem %s1, 360
      %v10269 = vld [vmem:[%s10268] sm:$0xf]
      %v10270 = vld [vmem:[%s10268 + $0x4] sm:$0xf]
      %v10271 = vld [vmem:[%s10268 + $0x8] sm:$0xf]
      %v10272 = vld [vmem:[%s10268 + $0xc] sm:$0xf]
      %v10273 = vld [vmem:[%s10268 + $0x10] sm:$0xf]
      %v10274 = vld [vmem:[%s10268 + $0x14] sm:$0xf]
      %v10275 = vld [vmem:[%s10268 + $0x18] sm:$0xf]
      %v10276 = vld [vmem:[%s10268 + $0x1c] sm:$0xf]
      %v10277 = vld [vmem:[%s10268 + $0x20] sm:$0xf]
      %v10278 = vld [vmem:[%s10268 + $0x24] sm:$0xf]
      %v10279 = vld [vmem:[%s10268 + $0x28] sm:$0xf]
      %v10280 = vld [vmem:[%s10268 + $0x2c] sm:$0xf]
      %v10281 = vld [vmem:[%s10268 + $0x30] sm:$0xf]
      %v10282 = vld [vmem:[%s10268 + $0x34] sm:$0xf]
      %v10283 = vld [vmem:[%s10268 + $0x38] sm:$0xf]
      %v10284 = vld [vmem:[%s10268 + $0x3c] sm:$0xf]
      %v10285 = vld [vmem:[%s10268 + $0x40] sm:$0xf]
      %v10286 = vld [vmem:[%s10268 + $0x44] sm:$0xf]
      %v10287 = vld [vmem:[#allocation2] sm:$0xff]
      %v10288 = vld [vmem:[#allocation2 + $0x8] sm:$0xff]
      %v10289 = vld [vmem:[#allocation2 + $0x10] sm:$0x3]
      %v10290 = vld [vmem:[#allocation2 + $0x18] sm:$0xff]
      %v10291 = vld [vmem:[#allocation2 + $0x20] sm:$0xff]
      %v10292 = vld [vmem:[#allocation2 + $0x28] sm:$0x3]
      %v10293 = vld [vmem:[#allocation2 + $0x30] sm:$0xff]
      %v10294 = vld [vmem:[#allocation2 + $0x38] sm:$0xff]
      %v10295 = vld [vmem:[#allocation2 + $0x40] sm:$0x3]
      %v10296 = vld [vmem:[#allocation2 + $0x48] sm:$0xff]
      %v10297 = vld [vmem:[#allocation2 + $0x50] sm:$0xff]
      %v10298 = vld [vmem:[#allocation2 + $0x58] sm:$0x3]
      %v10299 = vld [vmem:[#allocation2 + $0x60] sm:$0xff]
      %v10300 = vld [vmem:[#allocation2 + $0x68] sm:$0xff]
      %v10301 = vld [vmem:[#allocation2 + $0x70] sm:$0x3]
      %v10302 = vld [vmem:[#allocation2 + $0x78] sm:$0xff]
      %v10303 = vld [vmem:[#allocation2 + $0x80] sm:$0xff]
      %v10304 = vld [vmem:[#allocation2 + $0x88] sm:$0x3]
      %v10305 = vld [vmem:[#allocation2 + $0x90] sm:$0xff]
      %v10306 = vld [vmem:[#allocation2 + $0x98] sm:$0xff]
      %v10307 = vld [vmem:[#allocation2 + $0xa0] sm:$0x3]
      %v10308 = vld [vmem:[#allocation2 + $0xa8] sm:$0xff]
      %v10309 = vld [vmem:[#allocation2 + $0xb0] sm:$0xff]
      %v10310 = vld [vmem:[#allocation2 + $0xb8] sm:$0x3]
      %v10311 = vld [vmem:[#allocation2 + $0xc0] sm:$0xff]
      %v10312 = vld [vmem:[#allocation2 + $0xc8] sm:$0xff]
      %v10313 = vld [vmem:[#allocation2 + $0xd0] sm:$0x3]
      %v10314 = vld [vmem:[#allocation2 + $0xd8] sm:$0xff]
      %v10315 = vld [vmem:[#allocation2 + $0xe0] sm:$0xff]
      %v10316 = vld [vmem:[#allocation2 + $0xe8] sm:$0x3]
      %v10317 = vld [vmem:[#allocation2 + $0xf0] sm:$0xff]
      %v10318 = vld [vmem:[#allocation2 + $0xf8] sm:$0xff]
      %v10319 = vld [vmem:[#allocation2 + $0x100] sm:$0x3]
      %v10320 = vld [vmem:[#allocation2 + $0x108] sm:$0xff]
      %v10321 = vld [vmem:[#allocation2 + $0x110] sm:$0xff]
      %v10322 = vld [vmem:[#allocation2 + $0x118] sm:$0x3]
      %v10323 = vld [vmem:[#allocation2 + $0x120] sm:$0xff]
      %v10324 = vld [vmem:[#allocation2 + $0x128] sm:$0xff]
      %v10325 = vld [vmem:[#allocation2 + $0x130] sm:$0x3]
      %v10326 = vld [vmem:[#allocation2 + $0x138] sm:$0xff]
      %v10327 = vld [vmem:[#allocation2 + $0x140] sm:$0xff]
      %v10328 = vld [vmem:[#allocation2 + $0x148] sm:$0x3]
      %v10329 = vld [vmem:[#allocation2 + $0x150] sm:$0xff]
      %v10330 = vld [vmem:[#allocation2 + $0x158] sm:$0xff]
      %v10331 = vld [vmem:[#allocation2 + $0x160] sm:$0x3]
      %v10332 = vld [vmem:[#allocation2 + $0x168] sm:$0xff]
      %v10333 = vld [vmem:[#allocation2 + $0x170] sm:$0xff]
      %v10334 = vld [vmem:[#allocation2 + $0x178] sm:$0x3]
      %v10335 = vld [vmem:[#allocation2 + $0x180] sm:$0xff]
      %v10336 = vld [vmem:[#allocation2 + $0x188] sm:$0xff]
      %v10337 = vld [vmem:[#allocation2 + $0x190] sm:$0x3]
      %v10338 = vld [vmem:[#allocation2 + $0x198] sm:$0xff]
      %v10339 = vld [vmem:[#allocation2 + $0x1a0] sm:$0xff]
      %v10340 = vld [vmem:[#allocation2 + $0x1a8] sm:$0x3]
      %v10389 = vrot.slane %v10287, 1
      %v10390 = vrot.slane %v10288, 1
      %v10391 = vsel %vm496, %v10389, %v10390
      %v10392 = vrot.slane %v10289, 1
      %v10393 = vsel %vm496, %v10390, %v10392
      %v10394 = vrot.slane %v10290, 1
      %v10395 = vrot.slane %v10291, 1
      %v10396 = vsel %vm496, %v10394, %v10395
      %v10397 = vrot.slane %v10292, 1
      %v10398 = vsel %vm496, %v10395, %v10397
      %v10399 = vrot.slane %v10293, 1
      %v10400 = vrot.slane %v10294, 1
      %v10401 = vsel %vm496, %v10399, %v10400
      %v10402 = vrot.slane %v10295, 1
      %v10403 = vsel %vm496, %v10400, %v10402
      %v10404 = vrot.slane %v10296, 1
      %v10405 = vrot.slane %v10297, 1
      %v10406 = vsel %vm496, %v10404, %v10405
      %v10407 = vrot.slane %v10298, 1
      %v10408 = vsel %vm496, %v10405, %v10407
      %v10409 = vrot.slane %v10299, 1
      %v10410 = vrot.slane %v10300, 1
      %v10411 = vsel %vm496, %v10409, %v10410
      %v10412 = vrot.slane %v10301, 1
      %v10413 = vsel %vm496, %v10410, %v10412
      %v10414 = vrot.slane %v10302, 1
      %v10415 = vrot.slane %v10303, 1
      %v10416 = vsel %vm496, %v10414, %v10415
      %v10417 = vrot.slane %v10304, 1
      %v10418 = vsel %vm496, %v10415, %v10417
      %v10419 = vrot.slane %v10305, 1
      %v10420 = vrot.slane %v10306, 1
      %v10421 = vsel %vm496, %v10419, %v10420
      %v10422 = vrot.slane %v10307, 1
      %v10423 = vsel %vm496, %v10420, %v10422
      %v10424 = vrot.slane %v10308, 1
      %v10425 = vrot.slane %v10309, 1
      %v10426 = vsel %vm496, %v10424, %v10425
      %v10427 = vrot.slane %v10310, 1
      %v10428 = vsel %vm496, %v10425, %v10427
      %v10429 = vrot.slane %v10311, 1
      %v10430 = vrot.slane %v10312, 1
      %v10431 = vsel %vm496, %v10429, %v10430
      %v10432 = vrot.slane %v10313, 1
      %v10433 = vsel %vm496, %v10430, %v10432
      %v10434 = vrot.slane %v10314, 1
      %v10435 = vrot.slane %v10315, 1
      %v10436 = vsel %vm496, %v10434, %v10435
      %v10437 = vrot.slane %v10316, 1
      %v10438 = vsel %vm496, %v10435, %v10437
      %v10439 = vrot.slane %v10317, 1
      %v10440 = vrot.slane %v10318, 1
      %v10441 = vsel %vm496, %v10439, %v10440
      %v10442 = vrot.slane %v10319, 1
      %v10443 = vsel %vm496, %v10440, %v10442
      %v10444 = vrot.slane %v10320, 1
      %v10445 = vrot.slane %v10321, 1
      %v10446 = vsel %vm496, %v10444, %v10445
      %v10447 = vrot.slane %v10322, 1
      %v10448 = vsel %vm496, %v10445, %v10447
      %v10449 = vrot.slane %v10323, 1
      %v10450 = vrot.slane %v10324, 1
      %v10451 = vsel %vm496, %v10449, %v10450
      %v10452 = vrot.slane %v10325, 1
      %v10453 = vsel %vm496, %v10450, %v10452
      %v10454 = vrot.slane %v10326, 1
      %v10455 = vrot.slane %v10327, 1
      %v10456 = vsel %vm496, %v10454, %v10455
      %v10457 = vrot.slane %v10328, 1
      %v10458 = vsel %vm496, %v10455, %v10457
      %v10459 = vrot.slane %v10329, 1
      %v10460 = vrot.slane %v10330, 1
      %v10461 = vsel %vm496, %v10459, %v10460
      %v10462 = vrot.slane %v10331, 1
      %v10463 = vsel %vm496, %v10460, %v10462
      %v10464 = vrot.slane %v10332, 1
      %v10465 = vrot.slane %v10333, 1
      %v10466 = vsel %vm496, %v10464, %v10465
      %v10467 = vrot.slane %v10334, 1
      %v10468 = vsel %vm496, %v10465, %v10467
      %v10469 = vrot.slane %v10287, 2
      %v10470 = vrot.slane %v10288, 2
      %v10471 = vsel %vm577, %v10469, %v10470
      %v10472 = vrot.slane %v10289, 2
      %v10473 = vsel %vm577, %v10470, %v10472
      %v10474 = vrot.slane %v10290, 2
      %v10475 = vrot.slane %v10291, 2
      %v10476 = vsel %vm577, %v10474, %v10475
      %v10477 = vrot.slane %v10292, 2
      %v10478 = vsel %vm577, %v10475, %v10477
      %v10479 = vrot.slane %v10293, 2
      %v10480 = vrot.slane %v10294, 2
      %v10481 = vsel %vm577, %v10479, %v10480
      %v10482 = vrot.slane %v10295, 2
      %v10483 = vsel %vm577, %v10480, %v10482
      %v10484 = vrot.slane %v10296, 2
      %v10485 = vrot.slane %v10297, 2
      %v10486 = vsel %vm577, %v10484, %v10485
      %v10487 = vrot.slane %v10298, 2
      %v10488 = vsel %vm577, %v10485, %v10487
      %v10489 = vrot.slane %v10299, 2
      %v10490 = vrot.slane %v10300, 2
      %v10491 = vsel %vm577, %v10489, %v10490
      %v10492 = vrot.slane %v10301, 2
      %v10493 = vsel %vm577, %v10490, %v10492
      %v10494 = vrot.slane %v10302, 2
      %v10495 = vrot.slane %v10303, 2
      %v10496 = vsel %vm577, %v10494, %v10495
      %v10497 = vrot.slane %v10304, 2
      %v10498 = vsel %vm577, %v10495, %v10497
      %v10499 = vrot.slane %v10305, 2
      %v10500 = vrot.slane %v10306, 2
      %v10501 = vsel %vm577, %v10499, %v10500
      %v10502 = vrot.slane %v10307, 2
      %v10503 = vsel %vm577, %v10500, %v10502
      %v10504 = vrot.slane %v10308, 2
      %v10505 = vrot.slane %v10309, 2
      %v10506 = vsel %vm577, %v10504, %v10505
      %v10507 = vrot.slane %v10310, 2
      %v10508 = vsel %vm577, %v10505, %v10507
      %v10509 = vrot.slane %v10311, 2
      %v10510 = vrot.slane %v10312, 2
      %v10511 = vsel %vm577, %v10509, %v10510
      %v10512 = vrot.slane %v10313, 2
      %v10513 = vsel %vm577, %v10510, %v10512
      %v10514 = vrot.slane %v10314, 2
      %v10515 = vrot.slane %v10315, 2
      %v10516 = vsel %vm577, %v10514, %v10515
      %v10517 = vrot.slane %v10316, 2
      %v10518 = vsel %vm577, %v10515, %v10517
      %v10519 = vrot.slane %v10317, 2
      %v10520 = vrot.slane %v10318, 2
      %v10521 = vsel %vm577, %v10519, %v10520
      %v10522 = vrot.slane %v10319, 2
      %v10523 = vsel %vm577, %v10520, %v10522
      %v10524 = vrot.slane %v10320, 2
      %v10525 = vrot.slane %v10321, 2
      %v10526 = vsel %vm577, %v10524, %v10525
      %v10527 = vrot.slane %v10322, 2
      %v10528 = vsel %vm577, %v10525, %v10527
      %v10529 = vrot.slane %v10323, 2
      %v10530 = vrot.slane %v10324, 2
      %v10531 = vsel %vm577, %v10529, %v10530
      %v10532 = vrot.slane %v10325, 2
      %v10533 = vsel %vm577, %v10530, %v10532
      %v10534 = vrot.slane %v10326, 2
      %v10535 = vrot.slane %v10327, 2
      %v10536 = vsel %vm577, %v10534, %v10535
      %v10537 = vrot.slane %v10328, 2
      %v10538 = vsel %vm577, %v10535, %v10537
      %v10539 = vrot.slane %v10329, 2
      %v10540 = vrot.slane %v10330, 2
      %v10541 = vsel %vm577, %v10539, %v10540
      %v10542 = vrot.slane %v10331, 2
      %v10543 = vsel %vm577, %v10540, %v10542
      %v10544 = vrot.slane %v10332, 2
      %v10545 = vrot.slane %v10333, 2
      %v10546 = vsel %vm577, %v10544, %v10545
      %v10547 = vrot.slane %v10334, 2
      %v10548 = vsel %vm577, %v10545, %v10547
      %v10552 = vrot.slane %v10335, 1
      %v10553 = vrot.slane %v10336, 1
      %v10554 = vsel %vm496, %v10552, %v10553
      %v10555 = vrot.slane %v10337, 1
      %v10556 = vsel %vm496, %v10553, %v10555
      %v10557 = vrot.slane %v10335, 2
      %v10558 = vrot.slane %v10336, 2
      %v10559 = vsel %vm577, %v10557, %v10558
      %v10560 = vrot.slane %v10337, 2
      %v10561 = vsel %vm577, %v10558, %v10560
      %v10565 = vrot.slane %v10338, 1
      %v10566 = vrot.slane %v10339, 1
      %v10567 = vsel %vm496, %v10565, %v10566
      %v10568 = vrot.slane %v10340, 1
      %v10569 = vsel %vm496, %v10566, %v10568
      %v10570 = vrot.slane %v10338, 2
      %v10571 = vrot.slane %v10339, 2
      %v10572 = vsel %vm577, %v10570, %v10571
      %v10573 = vrot.slane %v10340, 2
      %v10574 = vsel %vm577, %v10571, %v10573
      %10607 = vrot.lane.b32.xlu0 %v10391, 16
      %v10608 = vpop.permute.xlu0 %10607
      %10609 = vrot.lane.b32.xlu0 %v10393, 16
      %v10610 = vpop.permute.xlu0 %10609
      %10611 = vrot.lane.b32.xlu0 %v10396, 16
      %v10612 = vpop.permute.xlu0 %10611
      %10613 = vrot.lane.b32.xlu0 %v10398, 16
      %v10614 = vpop.permute.xlu0 %10613
      %10615 = vrot.lane.b32.xlu0 %v10401, 16
      %v10616 = vpop.permute.xlu0 %10615
      %10617 = vrot.lane.b32.xlu0 %v10403, 16
      %v10618 = vpop.permute.xlu0 %10617
      %10619 = vrot.lane.b32.xlu0 %v10406, 16
      %v10620 = vpop.permute.xlu0 %10619
      %10621 = vrot.lane.b32.xlu0 %v10408, 16
      %v10622 = vpop.permute.xlu0 %10621
      %10623 = vrot.lane.b32.xlu0 %v10411, 16
      %v10624 = vpop.permute.xlu0 %10623
      %10625 = vrot.lane.b32.xlu0 %v10413, 16
      %v10626 = vpop.permute.xlu0 %10625
      %10627 = vrot.lane.b32.xlu0 %v10416, 16
      %v10628 = vpop.permute.xlu0 %10627
      %10629 = vrot.lane.b32.xlu0 %v10418, 16
      %v10630 = vpop.permute.xlu0 %10629
      %10631 = vrot.lane.b32.xlu0 %v10421, 16
      %v10632 = vpop.permute.xlu0 %10631
      %10633 = vrot.lane.b32.xlu0 %v10423, 16
      %v10634 = vpop.permute.xlu0 %10633
      %10635 = vrot.lane.b32.xlu0 %v10426, 16
      %v10636 = vpop.permute.xlu0 %10635
      %10637 = vrot.lane.b32.xlu0 %v10428, 16
      %v10638 = vpop.permute.xlu0 %10637
      %10639 = vrot.lane.b32.xlu0 %v10431, 16
      %v10640 = vpop.permute.xlu0 %10639
      %10641 = vrot.lane.b32.xlu0 %v10433, 16
      %v10642 = vpop.permute.xlu0 %10641
      %10643 = vrot.lane.b32.xlu0 %v10436, 16
      %v10644 = vpop.permute.xlu0 %10643
      %10645 = vrot.lane.b32.xlu0 %v10438, 16
      %v10646 = vpop.permute.xlu0 %10645
      %10647 = vrot.lane.b32.xlu0 %v10441, 16
      %v10648 = vpop.permute.xlu0 %10647
      %10649 = vrot.lane.b32.xlu0 %v10443, 16
      %v10650 = vpop.permute.xlu0 %10649
      %10651 = vrot.lane.b32.xlu0 %v10446, 16
      %v10652 = vpop.permute.xlu0 %10651
      %10653 = vrot.lane.b32.xlu0 %v10448, 16
      %v10654 = vpop.permute.xlu0 %10653
      %10655 = vrot.lane.b32.xlu0 %v10451, 16
      %v10656 = vpop.permute.xlu0 %10655
      %10657 = vrot.lane.b32.xlu0 %v10453, 16
      %v10658 = vpop.permute.xlu0 %10657
      %10659 = vrot.lane.b32.xlu0 %v10456, 16
      %v10660 = vpop.permute.xlu0 %10659
      %10661 = vrot.lane.b32.xlu0 %v10458, 16
      %v10662 = vpop.permute.xlu0 %10661
      %10663 = vrot.lane.b32.xlu0 %v10461, 16
      %v10664 = vpop.permute.xlu0 %10663
      %10665 = vrot.lane.b32.xlu0 %v10463, 16
      %v10666 = vpop.permute.xlu0 %10665
      %10667 = vrot.lane.b32.xlu0 %v10466, 16
      %v10668 = vpop.permute.xlu0 %10667
      %10669 = vrot.lane.b32.xlu0 %v10468, 16
      %v10670 = vpop.permute.xlu0 %10669
      %10703 = vrot.lane.b32.xlu0 %v10471, 32
      %v10704 = vpop.permute.xlu0 %10703
      %10705 = vrot.lane.b32.xlu0 %v10473, 32
      %v10706 = vpop.permute.xlu0 %10705
      %10707 = vrot.lane.b32.xlu0 %v10476, 32
      %v10708 = vpop.permute.xlu0 %10707
      %10709 = vrot.lane.b32.xlu0 %v10478, 32
      %v10710 = vpop.permute.xlu0 %10709
      %10711 = vrot.lane.b32.xlu0 %v10481, 32
      %v10712 = vpop.permute.xlu0 %10711
      %10713 = vrot.lane.b32.xlu0 %v10483, 32
      %v10714 = vpop.permute.xlu0 %10713
      %10715 = vrot.lane.b32.xlu0 %v10486, 32
      %v10716 = vpop.permute.xlu0 %10715
      %10717 = vrot.lane.b32.xlu0 %v10488, 32
      %v10718 = vpop.permute.xlu0 %10717
      %10719 = vrot.lane.b32.xlu0 %v10491, 32
      %v10720 = vpop.permute.xlu0 %10719
      %10721 = vrot.lane.b32.xlu0 %v10493, 32
      %v10722 = vpop.permute.xlu0 %10721
      %10723 = vrot.lane.b32.xlu0 %v10496, 32
      %v10724 = vpop.permute.xlu0 %10723
      %10725 = vrot.lane.b32.xlu0 %v10498, 32
      %v10726 = vpop.permute.xlu0 %10725
      %10727 = vrot.lane.b32.xlu0 %v10501, 32
      %v10728 = vpop.permute.xlu0 %10727
      %10729 = vrot.lane.b32.xlu0 %v10503, 32
      %v10730 = vpop.permute.xlu0 %10729
      %10731 = vrot.lane.b32.xlu0 %v10506, 32
      %v10732 = vpop.permute.xlu0 %10731
      %10733 = vrot.lane.b32.xlu0 %v10508, 32
      %v10734 = vpop.permute.xlu0 %10733
      %10735 = vrot.lane.b32.xlu0 %v10511, 32
      %v10736 = vpop.permute.xlu0 %10735
      %10737 = vrot.lane.b32.xlu0 %v10513, 32
      %v10738 = vpop.permute.xlu0 %10737
      %10739 = vrot.lane.b32.xlu0 %v10516, 32
      %v10740 = vpop.permute.xlu0 %10739
      %10741 = vrot.lane.b32.xlu0 %v10518, 32
      %v10742 = vpop.permute.xlu0 %10741
      %10743 = vrot.lane.b32.xlu0 %v10521, 32
      %v10744 = vpop.permute.xlu0 %10743
      %10745 = vrot.lane.b32.xlu0 %v10523, 32
      %v10746 = vpop.permute.xlu0 %10745
      %10747 = vrot.lane.b32.xlu0 %v10526, 32
      %v10748 = vpop.permute.xlu0 %10747
      %10749 = vrot.lane.b32.xlu0 %v10528, 32
      %v10750 = vpop.permute.xlu0 %10749
      %10751 = vrot.lane.b32.xlu0 %v10531, 32
      %v10752 = vpop.permute.xlu0 %10751
      %10753 = vrot.lane.b32.xlu0 %v10533, 32
      %v10754 = vpop.permute.xlu0 %10753
      %10755 = vrot.lane.b32.xlu0 %v10536, 32
      %v10756 = vpop.permute.xlu0 %10755
      %10757 = vrot.lane.b32.xlu0 %v10538, 32
      %v10758 = vpop.permute.xlu0 %10757
      %10759 = vrot.lane.b32.xlu0 %v10541, 32
      %v10760 = vpop.permute.xlu0 %10759
      %10761 = vrot.lane.b32.xlu0 %v10543, 32
      %v10762 = vpop.permute.xlu0 %10761
      %10763 = vrot.lane.b32.xlu0 %v10546, 32
      %v10764 = vpop.permute.xlu0 %10763
      %10765 = vrot.lane.b32.xlu0 %v10548, 32
      %v10766 = vpop.permute.xlu0 %10765
      %10799 = vrot.lane.b32.xlu0 %v10290, 48
      %v10800 = vpop.permute.xlu0 %10799
      %10801 = vrot.lane.b32.xlu0 %v10291, 48
      %v10802 = vpop.permute.xlu0 %10801
      %10803 = vrot.lane.b32.xlu0 %v10293, 48
      %v10804 = vpop.permute.xlu0 %10803
      %10805 = vrot.lane.b32.xlu0 %v10294, 48
      %v10806 = vpop.permute.xlu0 %10805
      %10807 = vrot.lane.b32.xlu0 %v10296, 48
      %v10808 = vpop.permute.xlu0 %10807
      %10809 = vrot.lane.b32.xlu0 %v10297, 48
      %v10810 = vpop.permute.xlu0 %10809
      %10811 = vrot.lane.b32.xlu0 %v10299, 48
      %v10812 = vpop.permute.xlu0 %10811
      %10813 = vrot.lane.b32.xlu0 %v10300, 48
      %v10814 = vpop.permute.xlu0 %10813
      %10815 = vrot.lane.b32.xlu0 %v10302, 48
      %v10816 = vpop.permute.xlu0 %10815
      %10817 = vrot.lane.b32.xlu0 %v10303, 48
      %v10818 = vpop.permute.xlu0 %10817
      %10819 = vrot.lane.b32.xlu0 %v10305, 48
      %v10820 = vpop.permute.xlu0 %10819
      %10821 = vrot.lane.b32.xlu0 %v10306, 48
      %v10822 = vpop.permute.xlu0 %10821
      %10823 = vrot.lane.b32.xlu0 %v10308, 48
      %v10824 = vpop.permute.xlu0 %10823
      %10825 = vrot.lane.b32.xlu0 %v10309, 48
      %v10826 = vpop.permute.xlu0 %10825
      %10827 = vrot.lane.b32.xlu0 %v10311, 48
      %v10828 = vpop.permute.xlu0 %10827
      %10829 = vrot.lane.b32.xlu0 %v10312, 48
      %v10830 = vpop.permute.xlu0 %10829
      %10831 = vrot.lane.b32.xlu0 %v10314, 48
      %v10832 = vpop.permute.xlu0 %10831
      %10833 = vrot.lane.b32.xlu0 %v10315, 48
      %v10834 = vpop.permute.xlu0 %10833
      %10835 = vrot.lane.b32.xlu0 %v10317, 48
      %v10836 = vpop.permute.xlu0 %10835
      %10837 = vrot.lane.b32.xlu0 %v10318, 48
      %v10838 = vpop.permute.xlu0 %10837
      %10839 = vrot.lane.b32.xlu0 %v10320, 48
      %v10840 = vpop.permute.xlu0 %10839
      %10841 = vrot.lane.b32.xlu0 %v10321, 48
      %v10842 = vpop.permute.xlu0 %10841
      %10843 = vrot.lane.b32.xlu0 %v10323, 48
      %v10844 = vpop.permute.xlu0 %10843
      %10845 = vrot.lane.b32.xlu0 %v10324, 48
      %v10846 = vpop.permute.xlu0 %10845
      %10847 = vrot.lane.b32.xlu0 %v10326, 48
      %v10848 = vpop.permute.xlu0 %10847
      %10849 = vrot.lane.b32.xlu0 %v10327, 48
      %v10850 = vpop.permute.xlu0 %10849
      %10851 = vrot.lane.b32.xlu0 %v10329, 48
      %v10852 = vpop.permute.xlu0 %10851
      %10853 = vrot.lane.b32.xlu0 %v10330, 48
      %v10854 = vpop.permute.xlu0 %10853
      %10855 = vrot.lane.b32.xlu0 %v10332, 48
      %v10856 = vpop.permute.xlu0 %10855
      %10857 = vrot.lane.b32.xlu0 %v10333, 48
      %v10858 = vpop.permute.xlu0 %10857
      %10859 = vrot.lane.b32.xlu0 %v10335, 48
      %v10860 = vpop.permute.xlu0 %10859
      %10861 = vrot.lane.b32.xlu0 %v10336, 48
      %v10862 = vpop.permute.xlu0 %10861
      %10895 = vrot.lane.b32.xlu0 %v10396, 64
      %v10896 = vpop.permute.xlu0 %10895
      %10897 = vrot.lane.b32.xlu0 %v10398, 64
      %v10898 = vpop.permute.xlu0 %10897
      %10899 = vrot.lane.b32.xlu0 %v10401, 64
      %v10900 = vpop.permute.xlu0 %10899
      %10901 = vrot.lane.b32.xlu0 %v10403, 64
      %v10902 = vpop.permute.xlu0 %10901
      %10903 = vrot.lane.b32.xlu0 %v10406, 64
      %v10904 = vpop.permute.xlu0 %10903
      %10905 = vrot.lane.b32.xlu0 %v10408, 64
      %v10906 = vpop.permute.xlu0 %10905
      %10907 = vrot.lane.b32.xlu0 %v10411, 64
      %v10908 = vpop.permute.xlu0 %10907
      %10909 = vrot.lane.b32.xlu0 %v10413, 64
      %v10910 = vpop.permute.xlu0 %10909
      %10911 = vrot.lane.b32.xlu0 %v10416, 64
      %v10912 = vpop.permute.xlu0 %10911
      %10913 = vrot.lane.b32.xlu0 %v10418, 64
      %v10914 = vpop.permute.xlu0 %10913
      %10915 = vrot.lane.b32.xlu0 %v10421, 64
      %v10916 = vpop.permute.xlu0 %10915
      %10917 = vrot.lane.b32.xlu0 %v10423, 64
      %v10918 = vpop.permute.xlu0 %10917
      %10919 = vrot.lane.b32.xlu0 %v10426, 64
      %v10920 = vpop.permute.xlu0 %10919
      %10921 = vrot.lane.b32.xlu0 %v10428, 64
      %v10922 = vpop.permute.xlu0 %10921
      %10923 = vrot.lane.b32.xlu0 %v10431, 64
      %v10924 = vpop.permute.xlu0 %10923
      %10925 = vrot.lane.b32.xlu0 %v10433, 64
      %v10926 = vpop.permute.xlu0 %10925
      %10927 = vrot.lane.b32.xlu0 %v10436, 64
      %v10928 = vpop.permute.xlu0 %10927
      %10929 = vrot.lane.b32.xlu0 %v10438, 64
      %v10930 = vpop.permute.xlu0 %10929
      %10931 = vrot.lane.b32.xlu0 %v10441, 64
      %v10932 = vpop.permute.xlu0 %10931
      %10933 = vrot.lane.b32.xlu0 %v10443, 64
      %v10934 = vpop.permute.xlu0 %10933
      %10935 = vrot.lane.b32.xlu0 %v10446, 64
      %v10936 = vpop.permute.xlu0 %10935
      %10937 = vrot.lane.b32.xlu0 %v10448, 64
      %v10938 = vpop.permute.xlu0 %10937
      %10939 = vrot.lane.b32.xlu0 %v10451, 64
      %v10940 = vpop.permute.xlu0 %10939
      %10941 = vrot.lane.b32.xlu0 %v10453, 64
      %v10942 = vpop.permute.xlu0 %10941
      %10943 = vrot.lane.b32.xlu0 %v10456, 64
      %v10944 = vpop.permute.xlu0 %10943
      %10945 = vrot.lane.b32.xlu0 %v10458, 64
      %v10946 = vpop.permute.xlu0 %10945
      %10947 = vrot.lane.b32.xlu0 %v10461, 64
      %v10948 = vpop.permute.xlu0 %10947
      %10949 = vrot.lane.b32.xlu0 %v10463, 64
      %v10950 = vpop.permute.xlu0 %10949
      %10951 = vrot.lane.b32.xlu0 %v10466, 64
      %v10952 = vpop.permute.xlu0 %10951
      %10953 = vrot.lane.b32.xlu0 %v10468, 64
      %v10954 = vpop.permute.xlu0 %10953
      %10955 = vrot.lane.b32.xlu0 %v10554, 64
      %v10956 = vpop.permute.xlu0 %10955
      %10957 = vrot.lane.b32.xlu0 %v10556, 64
      %v10958 = vpop.permute.xlu0 %10957
      %10991 = vrot.lane.b32.xlu0 %v10476, 80
      %v10992 = vpop.permute.xlu0 %10991
      %10993 = vrot.lane.b32.xlu0 %v10478, 80
      %v10994 = vpop.permute.xlu0 %10993
      %10995 = vrot.lane.b32.xlu0 %v10481, 80
      %v10996 = vpop.permute.xlu0 %10995
      %10997 = vrot.lane.b32.xlu0 %v10483, 80
      %v10998 = vpop.permute.xlu0 %10997
      %10999 = vrot.lane.b32.xlu0 %v10486, 80
      %v11000 = vpop.permute.xlu0 %10999
      %11001 = vrot.lane.b32.xlu0 %v10488, 80
      %v11002 = vpop.permute.xlu0 %11001
      %11003 = vrot.lane.b32.xlu0 %v10491, 80
      %v11004 = vpop.permute.xlu0 %11003
      %11005 = vrot.lane.b32.xlu0 %v10493, 80
      %v11006 = vpop.permute.xlu0 %11005
      %11007 = vrot.lane.b32.xlu0 %v10496, 80
      %v11008 = vpop.permute.xlu0 %11007
      %11009 = vrot.lane.b32.xlu0 %v10498, 80
      %v11010 = vpop.permute.xlu0 %11009
      %11011 = vrot.lane.b32.xlu0 %v10501, 80
      %v11012 = vpop.permute.xlu0 %11011
      %11013 = vrot.lane.b32.xlu0 %v10503, 80
      %v11014 = vpop.permute.xlu0 %11013
      %11015 = vrot.lane.b32.xlu0 %v10506, 80
      %v11016 = vpop.permute.xlu0 %11015
      %11017 = vrot.lane.b32.xlu0 %v10508, 80
      %v11018 = vpop.permute.xlu0 %11017
      %11019 = vrot.lane.b32.xlu0 %v10511, 80
      %v11020 = vpop.permute.xlu0 %11019
      %11021 = vrot.lane.b32.xlu0 %v10513, 80
      %v11022 = vpop.permute.xlu0 %11021
      %11023 = vrot.lane.b32.xlu0 %v10516, 80
      %v11024 = vpop.permute.xlu0 %11023
      %11025 = vrot.lane.b32.xlu0 %v10518, 80
      %v11026 = vpop.permute.xlu0 %11025
      %11027 = vrot.lane.b32.xlu0 %v10521, 80
      %v11028 = vpop.permute.xlu0 %11027
      %11029 = vrot.lane.b32.xlu0 %v10523, 80
      %v11030 = vpop.permute.xlu0 %11029
      %11031 = vrot.lane.b32.xlu0 %v10526, 80
      %v11032 = vpop.permute.xlu0 %11031
      %11033 = vrot.lane.b32.xlu0 %v10528, 80
      %v11034 = vpop.permute.xlu0 %11033
      %11035 = vrot.lane.b32.xlu0 %v10531, 80
      %v11036 = vpop.permute.xlu0 %11035
      %11037 = vrot.lane.b32.xlu0 %v10533, 80
      %v11038 = vpop.permute.xlu0 %11037
      %11039 = vrot.lane.b32.xlu0 %v10536, 80
      %v11040 = vpop.permute.xlu0 %11039
      %11041 = vrot.lane.b32.xlu0 %v10538, 80
      %v11042 = vpop.permute.xlu0 %11041
      %11043 = vrot.lane.b32.xlu0 %v10541, 80
      %v11044 = vpop.permute.xlu0 %11043
      %11045 = vrot.lane.b32.xlu0 %v10543, 80
      %v11046 = vpop.permute.xlu0 %11045
      %11047 = vrot.lane.b32.xlu0 %v10546, 80
      %v11048 = vpop.permute.xlu0 %11047
      %11049 = vrot.lane.b32.xlu0 %v10548, 80
      %v11050 = vpop.permute.xlu0 %11049
      %11051 = vrot.lane.b32.xlu0 %v10559, 80
      %v11052 = vpop.permute.xlu0 %11051
      %11053 = vrot.lane.b32.xlu0 %v10561, 80
      %v11054 = vpop.permute.xlu0 %11053
      %11087 = vrot.lane.b32.xlu0 %v10293, 96
      %v11088 = vpop.permute.xlu0 %11087
      %11089 = vrot.lane.b32.xlu0 %v10294, 96
      %v11090 = vpop.permute.xlu0 %11089
      %11091 = vrot.lane.b32.xlu0 %v10296, 96
      %v11092 = vpop.permute.xlu0 %11091
      %11093 = vrot.lane.b32.xlu0 %v10297, 96
      %v11094 = vpop.permute.xlu0 %11093
      %11095 = vrot.lane.b32.xlu0 %v10299, 96
      %v11096 = vpop.permute.xlu0 %11095
      %11097 = vrot.lane.b32.xlu0 %v10300, 96
      %v11098 = vpop.permute.xlu0 %11097
      %11099 = vrot.lane.b32.xlu0 %v10302, 96
      %v11100 = vpop.permute.xlu0 %11099
      %11101 = vrot.lane.b32.xlu0 %v10303, 96
      %v11102 = vpop.permute.xlu0 %11101
      %11103 = vrot.lane.b32.xlu0 %v10305, 96
      %v11104 = vpop.permute.xlu0 %11103
      %11105 = vrot.lane.b32.xlu0 %v10306, 96
      %v11106 = vpop.permute.xlu0 %11105
      %11107 = vrot.lane.b32.xlu0 %v10308, 96
      %v11108 = vpop.permute.xlu0 %11107
      %11109 = vrot.lane.b32.xlu0 %v10309, 96
      %v11110 = vpop.permute.xlu0 %11109
      %11111 = vrot.lane.b32.xlu0 %v10311, 96
      %v11112 = vpop.permute.xlu0 %11111
      %11113 = vrot.lane.b32.xlu0 %v10312, 96
      %v11114 = vpop.permute.xlu0 %11113
      %11115 = vrot.lane.b32.xlu0 %v10314, 96
      %v11116 = vpop.permute.xlu0 %11115
      %11117 = vrot.lane.b32.xlu0 %v10315, 96
      %v11118 = vpop.permute.xlu0 %11117
      %11119 = vrot.lane.b32.xlu0 %v10317, 96
      %v11120 = vpop.permute.xlu0 %11119
      %11121 = vrot.lane.b32.xlu0 %v10318, 96
      %v11122 = vpop.permute.xlu0 %11121
      %11123 = vrot.lane.b32.xlu0 %v10320, 96
      %v11124 = vpop.permute.xlu0 %11123
      %11125 = vrot.lane.b32.xlu0 %v10321, 96
      %v11126 = vpop.permute.xlu0 %11125
      %11127 = vrot.lane.b32.xlu0 %v10323, 96
      %v11128 = vpop.permute.xlu0 %11127
      %11129 = vrot.lane.b32.xlu0 %v10324, 96
      %v11130 = vpop.permute.xlu0 %11129
      %11131 = vrot.lane.b32.xlu0 %v10326, 96
      %v11132 = vpop.permute.xlu0 %11131
      %11133 = vrot.lane.b32.xlu0 %v10327, 96
      %v11134 = vpop.permute.xlu0 %11133
      %11135 = vrot.lane.b32.xlu0 %v10329, 96
      %v11136 = vpop.permute.xlu0 %11135
      %11137 = vrot.lane.b32.xlu0 %v10330, 96
      %v11138 = vpop.permute.xlu0 %11137
      %11139 = vrot.lane.b32.xlu0 %v10332, 96
      %v11140 = vpop.permute.xlu0 %11139
      %11141 = vrot.lane.b32.xlu0 %v10333, 96
      %v11142 = vpop.permute.xlu0 %11141
      %11143 = vrot.lane.b32.xlu0 %v10335, 96
      %v11144 = vpop.permute.xlu0 %11143
      %11145 = vrot.lane.b32.xlu0 %v10336, 96
      %v11146 = vpop.permute.xlu0 %11145
      %11147 = vrot.lane.b32.xlu0 %v10338, 96
      %v11148 = vpop.permute.xlu0 %11147
      %11149 = vrot.lane.b32.xlu0 %v10339, 96
      %v11150 = vpop.permute.xlu0 %11149
      %11183 = vrot.lane.b32.xlu0 %v10401, 112
      %v11184 = vpop.permute.xlu0 %11183
      %11185 = vrot.lane.b32.xlu0 %v10403, 112
      %v11186 = vpop.permute.xlu0 %11185
      %11187 = vrot.lane.b32.xlu0 %v10406, 112
      %v11188 = vpop.permute.xlu0 %11187
      %11189 = vrot.lane.b32.xlu0 %v10408, 112
      %v11190 = vpop.permute.xlu0 %11189
      %11191 = vrot.lane.b32.xlu0 %v10411, 112
      %v11192 = vpop.permute.xlu0 %11191
      %11193 = vrot.lane.b32.xlu0 %v10413, 112
      %v11194 = vpop.permute.xlu0 %11193
      %11195 = vrot.lane.b32.xlu0 %v10416, 112
      %v11196 = vpop.permute.xlu0 %11195
      %11197 = vrot.lane.b32.xlu0 %v10418, 112
      %v11198 = vpop.permute.xlu0 %11197
      %11199 = vrot.lane.b32.xlu0 %v10421, 112
      %v11200 = vpop.permute.xlu0 %11199
      %11201 = vrot.lane.b32.xlu0 %v10423, 112
      %v11202 = vpop.permute.xlu0 %11201
      %11203 = vrot.lane.b32.xlu0 %v10426, 112
      %v11204 = vpop.permute.xlu0 %11203
      %11205 = vrot.lane.b32.xlu0 %v10428, 112
      %v11206 = vpop.permute.xlu0 %11205
      %11207 = vrot.lane.b32.xlu0 %v10431, 112
      %v11208 = vpop.permute.xlu0 %11207
      %11209 = vrot.lane.b32.xlu0 %v10433, 112
      %v11210 = vpop.permute.xlu0 %11209
      %11211 = vrot.lane.b32.xlu0 %v10436, 112
      %v11212 = vpop.permute.xlu0 %11211
      %11213 = vrot.lane.b32.xlu0 %v10438, 112
      %v11214 = vpop.permute.xlu0 %11213
      %11215 = vrot.lane.b32.xlu0 %v10441, 112
      %v11216 = vpop.permute.xlu0 %11215
      %11217 = vrot.lane.b32.xlu0 %v10443, 112
      %v11218 = vpop.permute.xlu0 %11217
      %11219 = vrot.lane.b32.xlu0 %v10446, 112
      %v11220 = vpop.permute.xlu0 %11219
      %11221 = vrot.lane.b32.xlu0 %v10448, 112
      %v11222 = vpop.permute.xlu0 %11221
      %11223 = vrot.lane.b32.xlu0 %v10451, 112
      %v11224 = vpop.permute.xlu0 %11223
      %11225 = vrot.lane.b32.xlu0 %v10453, 112
      %v11226 = vpop.permute.xlu0 %11225
      %11227 = vrot.lane.b32.xlu0 %v10456, 112
      %v11228 = vpop.permute.xlu0 %11227
      %11229 = vrot.lane.b32.xlu0 %v10458, 112
      %v11230 = vpop.permute.xlu0 %11229
      %11231 = vrot.lane.b32.xlu0 %v10461, 112
      %v11232 = vpop.permute.xlu0 %11231
      %11233 = vrot.lane.b32.xlu0 %v10463, 112
      %v11234 = vpop.permute.xlu0 %11233
      %11235 = vrot.lane.b32.xlu0 %v10466, 112
      %v11236 = vpop.permute.xlu0 %11235
      %11237 = vrot.lane.b32.xlu0 %v10468, 112
      %v11238 = vpop.permute.xlu0 %11237
      %11239 = vrot.lane.b32.xlu0 %v10554, 112
      %v11240 = vpop.permute.xlu0 %11239
      %11241 = vrot.lane.b32.xlu0 %v10556, 112
      %v11242 = vpop.permute.xlu0 %11241
      %11243 = vrot.lane.b32.xlu0 %v10567, 112
      %v11244 = vpop.permute.xlu0 %11243
      %11245 = vrot.lane.b32.xlu0 %v10569, 112
      %v11246 = vpop.permute.xlu0 %11245
      %v11279 = vsel %vm253, %v10287, %v10608
      %v11280 = vsel %vm253, %v10288, %v10610
      %v11281 = vsel %vm253, %v10290, %v10612
      %v11282 = vsel %vm253, %v10291, %v10614
      %v11283 = vsel %vm253, %v10293, %v10616
      %v11284 = vsel %vm253, %v10294, %v10618
      %v11285 = vsel %vm253, %v10296, %v10620
      %v11286 = vsel %vm253, %v10297, %v10622
      %v11287 = vsel %vm253, %v10299, %v10624
      %v11288 = vsel %vm253, %v10300, %v10626
      %v11289 = vsel %vm253, %v10302, %v10628
      %v11290 = vsel %vm253, %v10303, %v10630
      %v11291 = vsel %vm253, %v10305, %v10632
      %v11292 = vsel %vm253, %v10306, %v10634
      %v11293 = vsel %vm253, %v10308, %v10636
      %v11294 = vsel %vm253, %v10309, %v10638
      %v11295 = vsel %vm253, %v10311, %v10640
      %v11296 = vsel %vm253, %v10312, %v10642
      %v11297 = vsel %vm253, %v10314, %v10644
      %v11298 = vsel %vm253, %v10315, %v10646
      %v11299 = vsel %vm253, %v10317, %v10648
      %v11300 = vsel %vm253, %v10318, %v10650
      %v11301 = vsel %vm253, %v10320, %v10652
      %v11302 = vsel %vm253, %v10321, %v10654
      %v11303 = vsel %vm253, %v10323, %v10656
      %v11304 = vsel %vm253, %v10324, %v10658
      %v11305 = vsel %vm253, %v10326, %v10660
      %v11306 = vsel %vm253, %v10327, %v10662
      %v11307 = vsel %vm253, %v10329, %v10664
      %v11308 = vsel %vm253, %v10330, %v10666
      %v11309 = vsel %vm253, %v10332, %v10668
      %v11310 = vsel %vm253, %v10333, %v10670
      %v11311 = vsel %vm1420, %v11279, %v10704
      %v11312 = vsel %vm1420, %v11280, %v10706
      %v11313 = vsel %vm1420, %v11281, %v10708
      %v11314 = vsel %vm1420, %v11282, %v10710
      %v11315 = vsel %vm1420, %v11283, %v10712
      %v11316 = vsel %vm1420, %v11284, %v10714
      %v11317 = vsel %vm1420, %v11285, %v10716
      %v11318 = vsel %vm1420, %v11286, %v10718
      %v11319 = vsel %vm1420, %v11287, %v10720
      %v11320 = vsel %vm1420, %v11288, %v10722
      %v11321 = vsel %vm1420, %v11289, %v10724
      %v11322 = vsel %vm1420, %v11290, %v10726
      %v11323 = vsel %vm1420, %v11291, %v10728
      %v11324 = vsel %vm1420, %v11292, %v10730
      %v11325 = vsel %vm1420, %v11293, %v10732
      %v11326 = vsel %vm1420, %v11294, %v10734
      %v11327 = vsel %vm1420, %v11295, %v10736
      %v11328 = vsel %vm1420, %v11296, %v10738
      %v11329 = vsel %vm1420, %v11297, %v10740
      %v11330 = vsel %vm1420, %v11298, %v10742
      %v11331 = vsel %vm1420, %v11299, %v10744
      %v11332 = vsel %vm1420, %v11300, %v10746
      %v11333 = vsel %vm1420, %v11301, %v10748
      %v11334 = vsel %vm1420, %v11302, %v10750
      %v11335 = vsel %vm1420, %v11303, %v10752
      %v11336 = vsel %vm1420, %v11304, %v10754
      %v11337 = vsel %vm1420, %v11305, %v10756
      %v11338 = vsel %vm1420, %v11306, %v10758
      %v11339 = vsel %vm1420, %v11307, %v10760
      %v11340 = vsel %vm1420, %v11308, %v10762
      %v11341 = vsel %vm1420, %v11309, %v10764
      %v11342 = vsel %vm1420, %v11310, %v10766
      %v11343 = vsel %vm1453, %v11311, %v10800
      %v11344 = vsel %vm1453, %v11312, %v10802
      %v11345 = vsel %vm1453, %v11313, %v10804
      %v11346 = vsel %vm1453, %v11314, %v10806
      %v11347 = vsel %vm1453, %v11315, %v10808
      %v11348 = vsel %vm1453, %v11316, %v10810
      %v11349 = vsel %vm1453, %v11317, %v10812
      %v11350 = vsel %vm1453, %v11318, %v10814
      %v11351 = vsel %vm1453, %v11319, %v10816
      %v11352 = vsel %vm1453, %v11320, %v10818
      %v11353 = vsel %vm1453, %v11321, %v10820
      %v11354 = vsel %vm1453, %v11322, %v10822
      %v11355 = vsel %vm1453, %v11323, %v10824
      %v11356 = vsel %vm1453, %v11324, %v10826
      %v11357 = vsel %vm1453, %v11325, %v10828
      %v11358 = vsel %vm1453, %v11326, %v10830
      %v11359 = vsel %vm1453, %v11327, %v10832
      %v11360 = vsel %vm1453, %v11328, %v10834
      %v11361 = vsel %vm1453, %v11329, %v10836
      %v11362 = vsel %vm1453, %v11330, %v10838
      %v11363 = vsel %vm1453, %v11331, %v10840
      %v11364 = vsel %vm1453, %v11332, %v10842
      %v11365 = vsel %vm1453, %v11333, %v10844
      %v11366 = vsel %vm1453, %v11334, %v10846
      %v11367 = vsel %vm1453, %v11335, %v10848
      %v11368 = vsel %vm1453, %v11336, %v10850
      %v11369 = vsel %vm1453, %v11337, %v10852
      %v11370 = vsel %vm1453, %v11338, %v10854
      %v11371 = vsel %vm1453, %v11339, %v10856
      %v11372 = vsel %vm1453, %v11340, %v10858
      %v11373 = vsel %vm1453, %v11341, %v10860
      %v11374 = vsel %vm1453, %v11342, %v10862
      %v11375 = vsel %vm1486, %v11343, %v10896
      %v11376 = vsel %vm1486, %v11344, %v10898
      %v11377 = vsel %vm1486, %v11345, %v10900
      %v11378 = vsel %vm1486, %v11346, %v10902
      %v11379 = vsel %vm1486, %v11347, %v10904
      %v11380 = vsel %vm1486, %v11348, %v10906
      %v11381 = vsel %vm1486, %v11349, %v10908
      %v11382 = vsel %vm1486, %v11350, %v10910
      %v11383 = vsel %vm1486, %v11351, %v10912
      %v11384 = vsel %vm1486, %v11352, %v10914
      %v11385 = vsel %vm1486, %v11353, %v10916
      %v11386 = vsel %vm1486, %v11354, %v10918
      %v11387 = vsel %vm1486, %v11355, %v10920
      %v11388 = vsel %vm1486, %v11356, %v10922
      %v11389 = vsel %vm1486, %v11357, %v10924
      %v11390 = vsel %vm1486, %v11358, %v10926
      %v11391 = vsel %vm1486, %v11359, %v10928
      %v11392 = vsel %vm1486, %v11360, %v10930
      %v11393 = vsel %vm1486, %v11361, %v10932
      %v11394 = vsel %vm1486, %v11362, %v10934
      %v11395 = vsel %vm1486, %v11363, %v10936
      %v11396 = vsel %vm1486, %v11364, %v10938
      %v11397 = vsel %vm1486, %v11365, %v10940
      %v11398 = vsel %vm1486, %v11366, %v10942
      %v11399 = vsel %vm1486, %v11367, %v10944
      %v11400 = vsel %vm1486, %v11368, %v10946
      %v11401 = vsel %vm1486, %v11369, %v10948
      %v11402 = vsel %vm1486, %v11370, %v10950
      %v11403 = vsel %vm1486, %v11371, %v10952
      %v11404 = vsel %vm1486, %v11372, %v10954
      %v11405 = vsel %vm1486, %v11373, %v10956
      %v11406 = vsel %vm1486, %v11374, %v10958
      %v11407 = vsel %vm1519, %v11375, %v10992
      %v11408 = vsel %vm1519, %v11376, %v10994
      %v11409 = vsel %vm1519, %v11377, %v10996
      %v11410 = vsel %vm1519, %v11378, %v10998
      %v11411 = vsel %vm1519, %v11379, %v11000
      %v11412 = vsel %vm1519, %v11380, %v11002
      %v11413 = vsel %vm1519, %v11381, %v11004
      %v11414 = vsel %vm1519, %v11382, %v11006
      %v11415 = vsel %vm1519, %v11383, %v11008
      %v11416 = vsel %vm1519, %v11384, %v11010
      %v11417 = vsel %vm1519, %v11385, %v11012
      %v11418 = vsel %vm1519, %v11386, %v11014
      %v11419 = vsel %vm1519, %v11387, %v11016
      %v11420 = vsel %vm1519, %v11388, %v11018
      %v11421 = vsel %vm1519, %v11389, %v11020
      %v11422 = vsel %vm1519, %v11390, %v11022
      %v11423 = vsel %vm1519, %v11391, %v11024
      %v11424 = vsel %vm1519, %v11392, %v11026
      %v11425 = vsel %vm1519, %v11393, %v11028
      %v11426 = vsel %vm1519, %v11394, %v11030
      %v11427 = vsel %vm1519, %v11395, %v11032
      %v11428 = vsel %vm1519, %v11396, %v11034
      %v11429 = vsel %vm1519, %v11397, %v11036
      %v11430 = vsel %vm1519, %v11398, %v11038
      %v11431 = vsel %vm1519, %v11399, %v11040
      %v11432 = vsel %vm1519, %v11400, %v11042
      %v11433 = vsel %vm1519, %v11401, %v11044
      %v11434 = vsel %vm1519, %v11402, %v11046
      %v11435 = vsel %vm1519, %v11403, %v11048
      %v11436 = vsel %vm1519, %v11404, %v11050
      %v11437 = vsel %vm1519, %v11405, %v11052
      %v11438 = vsel %vm1519, %v11406, %v11054
      %v11439 = vsel %vm1552, %v11407, %v11088
      %v11440 = vsel %vm1552, %v11408, %v11090
      %v11441 = vsel %vm1552, %v11409, %v11092
      %v11442 = vsel %vm1552, %v11410, %v11094
      %v11443 = vsel %vm1552, %v11411, %v11096
      %v11444 = vsel %vm1552, %v11412, %v11098
      %v11445 = vsel %vm1552, %v11413, %v11100
      %v11446 = vsel %vm1552, %v11414, %v11102
      %v11447 = vsel %vm1552, %v11415, %v11104
      %v11448 = vsel %vm1552, %v11416, %v11106
      %v11449 = vsel %vm1552, %v11417, %v11108
      %v11450 = vsel %vm1552, %v11418, %v11110
      %v11451 = vsel %vm1552, %v11419, %v11112
      %v11452 = vsel %vm1552, %v11420, %v11114
      %v11453 = vsel %vm1552, %v11421, %v11116
      %v11454 = vsel %vm1552, %v11422, %v11118
      %v11455 = vsel %vm1552, %v11423, %v11120
      %v11456 = vsel %vm1552, %v11424, %v11122
      %v11457 = vsel %vm1552, %v11425, %v11124
      %v11458 = vsel %vm1552, %v11426, %v11126
      %v11459 = vsel %vm1552, %v11427, %v11128
      %v11460 = vsel %vm1552, %v11428, %v11130
      %v11461 = vsel %vm1552, %v11429, %v11132
      %v11462 = vsel %vm1552, %v11430, %v11134
      %v11463 = vsel %vm1552, %v11431, %v11136
      %v11464 = vsel %vm1552, %v11432, %v11138
      %v11465 = vsel %vm1552, %v11433, %v11140
      %v11466 = vsel %vm1552, %v11434, %v11142
      %v11467 = vsel %vm1552, %v11435, %v11144
      %v11468 = vsel %vm1552, %v11436, %v11146
      %v11469 = vsel %vm1552, %v11437, %v11148
      %v11470 = vsel %vm1552, %v11438, %v11150
      %v11471 = vsel %vm1585, %v11439, %v11184
      %v11472 = vsel %vm1585, %v11440, %v11186
      %v11473 = vsel %vm1585, %v11441, %v11188
      %v11474 = vsel %vm1585, %v11442, %v11190
      %v11475 = vsel %vm1585, %v11443, %v11192
      %v11476 = vsel %vm1585, %v11444, %v11194
      %v11477 = vsel %vm1585, %v11445, %v11196
      %v11478 = vsel %vm1585, %v11446, %v11198
      %v11479 = vsel %vm1585, %v11447, %v11200
      %v11480 = vsel %vm1585, %v11448, %v11202
      %v11481 = vsel %vm1585, %v11449, %v11204
      %v11482 = vsel %vm1585, %v11450, %v11206
      %v11483 = vsel %vm1585, %v11451, %v11208
      %v11484 = vsel %vm1585, %v11452, %v11210
      %v11485 = vsel %vm1585, %v11453, %v11212
      %v11486 = vsel %vm1585, %v11454, %v11214
      %v11487 = vsel %vm1585, %v11455, %v11216
      %v11488 = vsel %vm1585, %v11456, %v11218
      %v11489 = vsel %vm1585, %v11457, %v11220
      %v11490 = vsel %vm1585, %v11458, %v11222
      %v11491 = vsel %vm1585, %v11459, %v11224
      %v11492 = vsel %vm1585, %v11460, %v11226
      %v11493 = vsel %vm1585, %v11461, %v11228
      %v11494 = vsel %vm1585, %v11462, %v11230
      %v11495 = vsel %vm1585, %v11463, %v11232
      %v11496 = vsel %vm1585, %v11464, %v11234
      %v11497 = vsel %vm1585, %v11465, %v11236
      %v11498 = vsel %vm1585, %v11466, %v11238
      %v11499 = vsel %vm1585, %v11467, %v11240
      %v11500 = vsel %vm1585, %v11468, %v11242
      %v11501 = vsel %vm1585, %v11469, %v11244
      %v11502 = vsel %vm1585, %v11470, %v11246
      %v11503 = vpack.c.bf16 %v11472, %v11471
      %v11504 = vpack.c.bf16 %v10483, %v10481
      %v11505 = vpack.c.bf16 %v11474, %v11473
      %v11506 = vpack.c.bf16 %v10488, %v10486
      %v11507 = vpack.c.bf16 %v11476, %v11475
      %v11508 = vpack.c.bf16 %v10493, %v10491
      %v11509 = vpack.c.bf16 %v11478, %v11477
      %v11510 = vpack.c.bf16 %v10498, %v10496
      %v11511 = vpack.c.bf16 %v11480, %v11479
      %v11512 = vpack.c.bf16 %v10503, %v10501
      %v11513 = vpack.c.bf16 %v11482, %v11481
      %v11514 = vpack.c.bf16 %v10508, %v10506
      %v11515 = vpack.c.bf16 %v11484, %v11483
      %v11516 = vpack.c.bf16 %v10513, %v10511
      %v11517 = vpack.c.bf16 %v11486, %v11485
      %v11518 = vpack.c.bf16 %v10518, %v10516
      %v11519 = vpack.c.bf16 %v11488, %v11487
      %v11520 = vpack.c.bf16 %v10523, %v10521
      %v11521 = vpack.c.bf16 %v11490, %v11489
      %v11522 = vpack.c.bf16 %v10528, %v10526
      %v11523 = vpack.c.bf16 %v11492, %v11491
      %v11524 = vpack.c.bf16 %v10533, %v10531
      %v11525 = vpack.c.bf16 %v11494, %v11493
      %v11526 = vpack.c.bf16 %v10538, %v10536
      %v11527 = vpack.c.bf16 %v11496, %v11495
      %v11528 = vpack.c.bf16 %v10543, %v10541
      %v11529 = vpack.c.bf16 %v11498, %v11497
      %v11530 = vpack.c.bf16 %v10548, %v10546
      %v11531 = vpack.c.bf16 %v11500, %v11499
      %v11532 = vpack.c.bf16 %v10561, %v10559
      %v11533 = vpack.c.bf16 %v11502, %v11501
      %v11534 = vpack.c.bf16 %v10574, %v10572
      %v11535 = vlaneseq
      %v11536 = vshrl.u32 %v11535, 7
      %v11537 = vsub.s32 1, %v11536
      %v11538 = vrot.slane %v8635, %v11537
      %v11557 = vunpack.c.l.b16 %v10269
      %v11558 = vunpack.c.l.b16 %v10270
      %v11559 = vunpack.c.l.b16 %v10271
      %v11560 = vunpack.c.l.b16 %v10272
      %v11561 = vunpack.c.l.b16 %v10273
      %v11562 = vunpack.c.l.b16 %v10274
      %v11563 = vunpack.c.l.b16 %v10275
      %v11564 = vunpack.c.l.b16 %v10276
      %v11565 = vunpack.c.l.b16 %v10277
      %v11566 = vunpack.c.l.b16 %v10278
      %v11567 = vunpack.c.l.b16 %v10279
      %v11568 = vunpack.c.l.b16 %v10280
      %v11569 = vunpack.c.l.b16 %v10281
      %v11570 = vunpack.c.l.b16 %v10282
      %v11571 = vunpack.c.l.b16 %v10283
      %v11572 = vunpack.c.l.b16 %v10284
      %v11573 = vunpack.c.l.b16 %v10285
      %v11574 = vunpack.c.l.b16 %v10286
      %v11575 = vpack.c.b16 %v11558, %v11557
      %v11576 = vpack.c.b16 %v11560, %v11559
      %v11577 = vpack.c.b16 %v11562, %v11561
      %v11578 = vpack.c.b16 %v11564, %v11563
      %v11579 = vpack.c.b16 %v11566, %v11565
      %v11580 = vpack.c.b16 %v11568, %v11567
      %v11581 = vpack.c.b16 %v11570, %v11569
      %v11582 = vpack.c.b16 %v11572, %v11571
      %v11583 = vpack.c.b16 %v11574, %v11573
      %v11594 = vsel %vm253, %v11504, 0
      %v11597 = vsel %vm253, %v11506, 0
      %v11600 = vsel %vm253, %v11508, 0
      %v11603 = vsel %vm253, %v11510, 0
      %v11606 = vsel %vm253, %v11512, 0
      %v11609 = vsel %vm253, %v11514, 0
      %v11612 = vsel %vm253, %v11516, 0
      %v11615 = vsel %vm253, %v11518, 0
      %v11618 = vsel %vm253, %v11520, 0
      %v11621 = vsel %vm253, %v11522, 0
      %v11624 = vsel %vm253, %v11524, 0
      %v11627 = vsel %vm253, %v11526, 0
      %v11630 = vsel %vm253, %v11528, 0
      %v11633 = vsel %vm253, %v11530, 0
      %v11636 = vsel %vm253, %v11532, 0
      %v11639 = vsel %vm253, %v11534, 0
      %11641 = vmatprep.subr.bf16.mxu0 0
      %11642 = vmatpush1.bf16.msra.mxu0 %v11582
      %11643 = vmatprep.subr.bf16.mxu0 0
      %11644 = vmatpush1.bf16.msra.mxu0 %v11581
      %11645 = vmatprep.subr.bf16.mxu0 0
      %11646 = vmatpush1.bf16.msra.mxu0 %v11580
      %11647 = vmatprep.subr.bf16.mxu0 0
      %11648 = vmatpush1.bf16.msra.mxu0 %v11579
      %11649 = vmatprep.subr.bf16.mxu0 0
      %11650 = vmatpush1.bf16.msra.mxu0 %v11578
      %11651 = vmatprep.subr.bf16.mxu0 0
      %11652 = vmatpush1.bf16.msra.mxu0 %v11577
      %11653 = vmatprep.subr.bf16.mxu0 0
      %11654 = vmatpush1.bf16.msra.mxu0 %v11576
      %11655 = vmatprep.subr.bf16.mxu0 0
      %11656 = vmatpush1.bf16.msra.mxu0 %v11575
      %11657 = vmatprep.subr.bf16.mxu0 0
      %11658 = vmatpush2.bf16.msra.mxu0 0
      %11659 = vmatprep.subr.bf16.mxu0 0
      %11660 = vmatpush2.bf16.msra.mxu0 0
      %11661 = vmatprep.subr.bf16.mxu0 0
      %11662 = vmatpush2.bf16.msra.mxu0 0
      %11663 = vmatprep.subr.bf16.mxu0 0
      %11664 = vmatpush2.bf16.msra.mxu0 0
      %11665 = vmatprep.subr.bf16.mxu0 0
      %11666 = vmatpush2.bf16.msra.mxu0 0
      %11667 = vmatprep.subr.bf16.mxu0 0
      %11668 = vmatpush2.bf16.msra.mxu0 0
      %11669 = vmatprep.subr.bf16.mxu0 0
      %11670 = vmatpush2.bf16.msra.mxu0 0
      %11671 = vmatprep.subr.bf16.mxu0 0
      %11672 = vmatpush2.bf16.msra.mxu0 %v11583
      %11673 = vmatprep.mubr.bf16.mxu0 %v11594
      %11674 = vmatmul.mubr.bf16.gmra.mxu0 %v11503
      %v11675 = vpop.f32.mrf.mxu0
      %v11676 = vadd.f32 %v11538, %v11675
      %v11677 = vpop.f32.mrf.mxu0
      %v11678 = vpop.f32.mrf.mxu0
      %v11679 = vadd.f32 %v11538, %v11678
      %v11680 = vpop.f32.mrf.mxu0
      %11681 = vmatprep.mubr.bf16.mxu0 %v11597
      %11682 = vmatmul.mubr.bf16.gmra.mxu0 %v11505
      %v11683 = vpop.f32.mrf.mxu0
      %v11684 = vadd.f32 %v11538, %v11683
      %v11685 = vpop.f32.mrf.mxu0
      %v11686 = vpop.f32.mrf.mxu0
      %v11687 = vadd.f32 %v11538, %v11686
      %v11688 = vpop.f32.mrf.mxu0
      %11689 = vmatprep.mubr.bf16.mxu0 %v11600
      %11690 = vmatmul.mubr.bf16.gmra.mxu0 %v11507
      %v11691 = vpop.f32.mrf.mxu0
      %v11692 = vadd.f32 %v11538, %v11691
      %v11693 = vpop.f32.mrf.mxu0
      %v11694 = vpop.f32.mrf.mxu0
      %v11695 = vadd.f32 %v11538, %v11694
      %v11696 = vpop.f32.mrf.mxu0
      %11697 = vmatprep.mubr.bf16.mxu0 %v11603
      %11698 = vmatmul.mubr.bf16.gmra.mxu0 %v11509
      %v11699 = vpop.f32.mrf.mxu0
      %v11700 = vadd.f32 %v11538, %v11699
      %v11701 = vpop.f32.mrf.mxu0
      %v11702 = vpop.f32.mrf.mxu0
      %v11703 = vadd.f32 %v11538, %v11702
      %v11704 = vpop.f32.mrf.mxu0
      %11705 = vmatprep.mubr.bf16.mxu0 %v11606
      %11706 = vmatmul.mubr.bf16.gmra.mxu0 %v11511
      %v11707 = vpop.f32.mrf.mxu0
      %v11708 = vadd.f32 %v11538, %v11707
      %v11709 = vpop.f32.mrf.mxu0
      %v11710 = vpop.f32.mrf.mxu0
      %v11711 = vadd.f32 %v11538, %v11710
      %v11712 = vpop.f32.mrf.mxu0
      %11713 = vmatprep.mubr.bf16.mxu0 %v11609
      %11714 = vmatmul.mubr.bf16.gmra.mxu0 %v11513
      %v11715 = vpop.f32.mrf.mxu0
      %v11716 = vadd.f32 %v11538, %v11715
      %v11717 = vpop.f32.mrf.mxu0
      %v11718 = vpop.f32.mrf.mxu0
      %v11719 = vadd.f32 %v11538, %v11718
      %v11720 = vpop.f32.mrf.mxu0
      %11721 = vmatprep.mubr.bf16.mxu0 %v11612
      %11722 = vmatmul.mubr.bf16.gmra.mxu0 %v11515
      %v11723 = vpop.f32.mrf.mxu0
      %v11724 = vadd.f32 %v11538, %v11723
      %v11725 = vpop.f32.mrf.mxu0
      %v11726 = vpop.f32.mrf.mxu0
      %v11727 = vadd.f32 %v11538, %v11726
      %v11728 = vpop.f32.mrf.mxu0
      %11729 = vmatprep.mubr.bf16.mxu0 %v11615
      %11730 = vmatmul.mubr.bf16.gmra.mxu0 %v11517
      %v11731 = vpop.f32.mrf.mxu0
      %v11732 = vadd.f32 %v11538, %v11731
      %v11733 = vpop.f32.mrf.mxu0
      %v11734 = vpop.f32.mrf.mxu0
      %v11735 = vadd.f32 %v11538, %v11734
      %v11736 = vpop.f32.mrf.mxu0
      %11737 = vmatprep.mubr.bf16.mxu0 %v11618
      %11738 = vmatmul.mubr.bf16.gmra.mxu0 %v11519
      %v11739 = vpop.f32.mrf.mxu0
      %v11740 = vadd.f32 %v11538, %v11739
      %v11741 = vpop.f32.mrf.mxu0
      %v11742 = vpop.f32.mrf.mxu0
      %v11743 = vadd.f32 %v11538, %v11742
      %v11744 = vpop.f32.mrf.mxu0
      %11745 = vmatprep.mubr.bf16.mxu0 %v11621
      %11746 = vmatmul.mubr.bf16.gmra.mxu0 %v11521
      %v11747 = vpop.f32.mrf.mxu0
      %v11748 = vadd.f32 %v11538, %v11747
      %v11749 = vpop.f32.mrf.mxu0
      %v11750 = vpop.f32.mrf.mxu0
      %v11751 = vadd.f32 %v11538, %v11750
      %v11752 = vpop.f32.mrf.mxu0
      %11753 = vmatprep.mubr.bf16.mxu0 %v11624
      %11754 = vmatmul.mubr.bf16.gmra.mxu0 %v11523
      %v11755 = vpop.f32.mrf.mxu0
      %v11756 = vadd.f32 %v11538, %v11755
      %v11757 = vpop.f32.mrf.mxu0
      %v11758 = vpop.f32.mrf.mxu0
      %v11759 = vadd.f32 %v11538, %v11758
      %v11760 = vpop.f32.mrf.mxu0
      %11761 = vmatprep.mubr.bf16.mxu0 %v11627
      %11762 = vmatmul.mubr.bf16.gmra.mxu0 %v11525
      %v11763 = vpop.f32.mrf.mxu0
      %v11764 = vadd.f32 %v11538, %v11763
      %v11765 = vpop.f32.mrf.mxu0
      %v11766 = vpop.f32.mrf.mxu0
      %v11767 = vadd.f32 %v11538, %v11766
      %v11768 = vpop.f32.mrf.mxu0
      %11769 = vmatprep.mubr.bf16.mxu0 %v11630
      %11770 = vmatmul.mubr.bf16.gmra.mxu0 %v11527
      %v11771 = vpop.f32.mrf.mxu0
      %v11772 = vadd.f32 %v11538, %v11771
      %v11773 = vpop.f32.mrf.mxu0
      %v11774 = vpop.f32.mrf.mxu0
      %v11775 = vadd.f32 %v11538, %v11774
      %v11776 = vpop.f32.mrf.mxu0
      %11777 = vmatprep.mubr.bf16.mxu0 %v11633
      %11778 = vmatmul.mubr.bf16.gmra.mxu0 %v11529
      %v11779 = vpop.f32.mrf.mxu0
      %v11780 = vadd.f32 %v11538, %v11779
      %v11781 = vpop.f32.mrf.mxu0
      %v11782 = vpop.f32.mrf.mxu0
      %v11783 = vadd.f32 %v11538, %v11782
      %v11784 = vpop.f32.mrf.mxu0
      %11785 = vmatprep.mubr.bf16.mxu0 %v11636
      %11786 = vmatmul.mubr.bf16.gmra.mxu0 %v11531
      %v11787 = vpop.f32.mrf.mxu0
      %v11788 = vadd.f32 %v11538, %v11787
      %v11789 = vpop.f32.mrf.mxu0
      %v11790 = vpop.f32.mrf.mxu0
      %v11791 = vadd.f32 %v11538, %v11790
      %v11792 = vpop.f32.mrf.mxu0
      %11793 = vmatprep.mubr.bf16.mxu0 %v11639
      %11794 = vmatmul.mubr.bf16.gmra.mxu0 %v11533
      %v11795 = vpop.f32.mrf.mxu0
      %v11796 = vadd.f32 %v11538, %v11795
      %v11797 = vpop.f32.mrf.mxu0
      %v11798 = vpop.f32.mrf.mxu0
      %v11799 = vadd.f32 %v11538, %v11798
      %v11800 = vpop.f32.mrf.mxu0
      %11801 = vdwg.mxu0
      %v11802 = vpack.c.bf16 %v11679, %v11676
      %v11803 = vpack.c.bf16 %v11687, %v11684
      %v11804 = vpack.c.bf16 %v11695, %v11692
      %v11805 = vpack.c.bf16 %v11703, %v11700
      %v11806 = vpack.c.bf16 %v11711, %v11708
      %v11807 = vpack.c.bf16 %v11719, %v11716
      %v11808 = vpack.c.bf16 %v11727, %v11724
      %v11809 = vpack.c.bf16 %v11735, %v11732
      %v11810 = vpack.c.bf16 %v11743, %v11740
      %v11811 = vpack.c.bf16 %v11751, %v11748
      %v11812 = vpack.c.bf16 %v11759, %v11756
      %v11813 = vpack.c.bf16 %v11767, %v11764
      %v11814 = vpack.c.bf16 %v11775, %v11772
      %v11815 = vpack.c.bf16 %v11783, %v11780
      %v11816 = vpack.c.bf16 %v11791, %v11788
      %v11817 = vpack.c.bf16 %v11799, %v11796
      %s11818 = scalar_lea.vmem %s2, 32
      %v11819 = vld [vmem:[%s11818] sm:$0xf]
      %v11820 = vld [vmem:[%s11818 + $0x4] sm:$0xf]
      %v11821 = vlaneseq
      %v11822 = vshrl.u32 %v11821, 7
      %v11823 = vsub.s32 0, %v11822
      %v11824 = vrot.slane %v8637, %v11823
      %v11827 = vunpack.c.l.b16 %v11819
      %v11828 = vunpack.c.l.b16 %v11820
      %v11829 = vpack.c.b16 %v11828, %v11827
      %v11832 = vsel %vm253, %v11802, 0
      %v11835 = vsel %vm253, %v11803, 0
      %v11838 = vsel %vm253, %v11804, 0
      %v11841 = vsel %vm253, %v11805, 0
      %v11844 = vsel %vm253, %v11806, 0
      %v11847 = vsel %vm253, %v11807, 0
      %v11850 = vsel %vm253, %v11808, 0
      %v11853 = vsel %vm253, %v11809, 0
      %v11856 = vsel %vm253, %v11810, 0
      %v11859 = vsel %vm253, %v11811, 0
      %v11862 = vsel %vm253, %v11812, 0
      %v11865 = vsel %vm253, %v11813, 0
      %v11868 = vsel %vm253, %v11814, 0
      %v11871 = vsel %vm253, %v11815, 0
      %v11874 = vsel %vm253, %v11816, 0
      %v11877 = vsel %vm253, %v11817, 0
      %11879 = vmatprep.subr.bf16.mxu0 0
      %11880 = vmatpush1.bf16.msra.mxu0 0
      %11881 = vmatprep.subr.bf16.mxu0 0
      %11882 = vmatpush1.bf16.msra.mxu0 0
      %11883 = vmatprep.subr.bf16.mxu0 0
      %11884 = vmatpush1.bf16.msra.mxu0 0
      %11885 = vmatprep.subr.bf16.mxu0 0
      %11886 = vmatpush1.bf16.msra.mxu0 0
      %11887 = vmatprep.subr.bf16.mxu0 0
      %11888 = vmatpush1.bf16.msra.mxu0 0
      %11889 = vmatprep.subr.bf16.mxu0 0
      %11890 = vmatpush1.bf16.msra.mxu0 0
      %11891 = vmatprep.subr.bf16.mxu0 0
      %11892 = vmatpush1.bf16.msra.mxu0 0
      %11893 = vmatprep.subr.bf16.mxu0 0
      %11894 = vmatpush1.bf16.msra.mxu0 %v11829
      %11895 = vmatprep.subr.bf16.mxu0 0
      %11896 = vmatpush2.bf16.msra.mxu0 0
      %11897 = vmatprep.subr.bf16.mxu0 0
      %11898 = vmatpush2.bf16.msra.mxu0 0
      %11899 = vmatprep.subr.bf16.mxu0 0
      %11900 = vmatpush2.bf16.msra.mxu0 0
      %11901 = vmatprep.subr.bf16.mxu0 0
      %11902 = vmatpush2.bf16.msra.mxu0 0
      %11903 = vmatprep.subr.bf16.mxu0 0
      %11904 = vmatpush2.bf16.msra.mxu0 0
      %11905 = vmatprep.subr.bf16.mxu0 0
      %11906 = vmatpush2.bf16.msra.mxu0 0
      %11907 = vmatprep.subr.bf16.mxu0 0
      %11908 = vmatpush2.bf16.msra.mxu0 0
      %11909 = vmatprep.subr.bf16.mxu0 0
      %11910 = vmatpush2.bf16.msra.mxu0 0
      %11911 = vmatprep.mubr.bf16.mxu0 0
      %11912 = vmatmul.mubr.bf16.gmra.mxu0 %v11832
      %v11913 = vpop.f32.mrf.mxu0
      %v11914 = vadd.f32 %v11824, %v11913
      %v11915 = vpop.f32.mrf.mxu0
      %v11916 = vpop.f32.mrf.mxu0
      %v11917 = vadd.f32 %v11824, %v11916
      %v11918 = vpop.f32.mrf.mxu0
      %11919 = vmatprep.mubr.bf16.mxu0 0
      %11920 = vmatmul.mubr.bf16.gmra.mxu0 %v11835
      %v11921 = vpop.f32.mrf.mxu0
      %v11922 = vadd.f32 %v11824, %v11921
      %v11923 = vpop.f32.mrf.mxu0
      %v11924 = vpop.f32.mrf.mxu0
      %v11925 = vadd.f32 %v11824, %v11924
      %v11926 = vpop.f32.mrf.mxu0
      %11927 = vmatprep.mubr.bf16.mxu0 0
      %11928 = vmatmul.mubr.bf16.gmra.mxu0 %v11838
      %v11929 = vpop.f32.mrf.mxu0
      %v11930 = vadd.f32 %v11824, %v11929
      %v11931 = vpop.f32.mrf.mxu0
      %v11932 = vpop.f32.mrf.mxu0
      %v11933 = vadd.f32 %v11824, %v11932
      %v11934 = vpop.f32.mrf.mxu0
      %11935 = vmatprep.mubr.bf16.mxu0 0
      %11936 = vmatmul.mubr.bf16.gmra.mxu0 %v11841
      %v11937 = vpop.f32.mrf.mxu0
      %v11938 = vadd.f32 %v11824, %v11937
      %v11939 = vpop.f32.mrf.mxu0
      %v11940 = vpop.f32.mrf.mxu0
      %v11941 = vadd.f32 %v11824, %v11940
      %v11942 = vpop.f32.mrf.mxu0
      %11943 = vmatprep.mubr.bf16.mxu0 0
      %11944 = vmatmul.mubr.bf16.gmra.mxu0 %v11844
      %v11945 = vpop.f32.mrf.mxu0
      %v11946 = vadd.f32 %v11824, %v11945
      %v11947 = vpop.f32.mrf.mxu0
      %v11948 = vpop.f32.mrf.mxu0
      %v11949 = vadd.f32 %v11824, %v11948
      %v11950 = vpop.f32.mrf.mxu0
      %11951 = vmatprep.mubr.bf16.mxu0 0
      %11952 = vmatmul.mubr.bf16.gmra.mxu0 %v11847
      %v11953 = vpop.f32.mrf.mxu0
      %v11954 = vadd.f32 %v11824, %v11953
      %v11955 = vpop.f32.mrf.mxu0
      %v11956 = vpop.f32.mrf.mxu0
      %v11957 = vadd.f32 %v11824, %v11956
      %v11958 = vpop.f32.mrf.mxu0
      %11959 = vmatprep.mubr.bf16.mxu0 0
      %11960 = vmatmul.mubr.bf16.gmra.mxu0 %v11850
      %v11961 = vpop.f32.mrf.mxu0
      %v11962 = vadd.f32 %v11824, %v11961
      %v11963 = vpop.f32.mrf.mxu0
      %v11964 = vpop.f32.mrf.mxu0
      %v11965 = vadd.f32 %v11824, %v11964
      %v11966 = vpop.f32.mrf.mxu0
      %11967 = vmatprep.mubr.bf16.mxu0 0
      %11968 = vmatmul.mubr.bf16.gmra.mxu0 %v11853
      %v11969 = vpop.f32.mrf.mxu0
      %v11970 = vadd.f32 %v11824, %v11969
      %v11971 = vpop.f32.mrf.mxu0
      %v11972 = vpop.f32.mrf.mxu0
      %v11973 = vadd.f32 %v11824, %v11972
      %v11974 = vpop.f32.mrf.mxu0
      %11975 = vmatprep.mubr.bf16.mxu0 0
      %11976 = vmatmul.mubr.bf16.gmra.mxu0 %v11856
      %v11977 = vpop.f32.mrf.mxu0
      %v11978 = vadd.f32 %v11824, %v11977
      %v11979 = vpop.f32.mrf.mxu0
      %v11980 = vpop.f32.mrf.mxu0
      %v11981 = vadd.f32 %v11824, %v11980
      %v11982 = vpop.f32.mrf.mxu0
      %11983 = vmatprep.mubr.bf16.mxu0 0
      %11984 = vmatmul.mubr.bf16.gmra.mxu0 %v11859
      %v11985 = vpop.f32.mrf.mxu0
      %v11986 = vadd.f32 %v11824, %v11985
      %v11987 = vpop.f32.mrf.mxu0
      %v11988 = vpop.f32.mrf.mxu0
      %v11989 = vadd.f32 %v11824, %v11988
      %v11990 = vpop.f32.mrf.mxu0
      %11991 = vmatprep.mubr.bf16.mxu0 0
      %11992 = vmatmul.mubr.bf16.gmra.mxu0 %v11862
      %v11993 = vpop.f32.mrf.mxu0
      %v11994 = vadd.f32 %v11824, %v11993
      %v11995 = vpop.f32.mrf.mxu0
      %v11996 = vpop.f32.mrf.mxu0
      %v11997 = vadd.f32 %v11824, %v11996
      %v11998 = vpop.f32.mrf.mxu0
      %11999 = vmatprep.mubr.bf16.mxu0 0
      %12000 = vmatmul.mubr.bf16.gmra.mxu0 %v11865
      %v12001 = vpop.f32.mrf.mxu0
      %v12002 = vadd.f32 %v11824, %v12001
      %v12003 = vpop.f32.mrf.mxu0
      %v12004 = vpop.f32.mrf.mxu0
      %v12005 = vadd.f32 %v11824, %v12004
      %v12006 = vpop.f32.mrf.mxu0
      %12007 = vmatprep.mubr.bf16.mxu0 0
      %12008 = vmatmul.mubr.bf16.gmra.mxu0 %v11868
      %v12009 = vpop.f32.mrf.mxu0
      %v12010 = vadd.f32 %v11824, %v12009
      %v12011 = vpop.f32.mrf.mxu0
      %v12012 = vpop.f32.mrf.mxu0
      %v12013 = vadd.f32 %v11824, %v12012
      %v12014 = vpop.f32.mrf.mxu0
      %12015 = vmatprep.mubr.bf16.mxu0 0
      %12016 = vmatmul.mubr.bf16.gmra.mxu0 %v11871
      %v12017 = vpop.f32.mrf.mxu0
      %v12018 = vadd.f32 %v11824, %v12017
      %v12019 = vpop.f32.mrf.mxu0
      %v12020 = vpop.f32.mrf.mxu0
      %v12021 = vadd.f32 %v11824, %v12020
      %v12022 = vpop.f32.mrf.mxu0
      %12023 = vmatprep.mubr.bf16.mxu0 0
      %12024 = vmatmul.mubr.bf16.gmra.mxu0 %v11874
      %v12025 = vpop.f32.mrf.mxu0
      %v12026 = vadd.f32 %v11824, %v12025
      %v12027 = vpop.f32.mrf.mxu0
      %v12028 = vpop.f32.mrf.mxu0
      %v12029 = vadd.f32 %v11824, %v12028
      %v12030 = vpop.f32.mrf.mxu0
      %12031 = vmatprep.mubr.bf16.mxu0 0
      %12032 = vmatmul.mubr.bf16.gmra.mxu0 %v11877
      %v12033 = vpop.f32.mrf.mxu0
      %v12034 = vadd.f32 %v11824, %v12033
      %v12035 = vpop.f32.mrf.mxu0
      %v12036 = vpop.f32.mrf.mxu0
      %v12037 = vadd.f32 %v11824, %v12036
      %v12038 = vpop.f32.mrf.mxu0
      %12039 = vdwg.mxu0
      %v12040 = vmax.f32 %v11914, 0.0
      %v12041 = vmax.f32 %v11917, 0.0
      %v12042 = vmax.f32 %v11922, 0.0
      %v12043 = vmax.f32 %v11925, 0.0
      %v12044 = vmax.f32 %v11930, 0.0
      %v12045 = vmax.f32 %v11933, 0.0
      %v12046 = vmax.f32 %v11938, 0.0
      %v12047 = vmax.f32 %v11941, 0.0
      %v12048 = vmax.f32 %v11946, 0.0
      %v12049 = vmax.f32 %v11949, 0.0
      %v12050 = vmax.f32 %v11954, 0.0
      %v12051 = vmax.f32 %v11957, 0.0
      %v12052 = vmax.f32 %v11962, 0.0
      %v12053 = vmax.f32 %v11965, 0.0
      %v12054 = vmax.f32 %v11970, 0.0
      %v12055 = vmax.f32 %v11973, 0.0
      %v12056 = vmax.f32 %v11978, 0.0
      %v12057 = vmax.f32 %v11981, 0.0
      %v12058 = vmax.f32 %v11986, 0.0
      %v12059 = vmax.f32 %v11989, 0.0
      %v12060 = vmax.f32 %v11994, 0.0
      %v12061 = vmax.f32 %v11997, 0.0
      %v12062 = vmax.f32 %v12002, 0.0
      %v12063 = vmax.f32 %v12005, 0.0
      %v12064 = vmax.f32 %v12010, 0.0
      %v12065 = vmax.f32 %v12013, 0.0
      %v12066 = vmax.f32 %v12018, 0.0
      %v12067 = vmax.f32 %v12021, 0.0
      %v12068 = vmax.f32 %v12026, 0.0
      %v12069 = vmax.f32 %v12029, 0.0
      %v12070 = vmax.f32 %v12034, 0.0
      %v12071 = vmax.f32 %v12037, 0.0
      %v12072 = vpack.c.bf16 %v12041, %v12040
      %v12073 = vpack.c.bf16 %v12043, %v12042
      %v12074 = vpack.c.bf16 %v12045, %v12044
      %v12075 = vpack.c.bf16 %v12047, %v12046
      %v12076 = vpack.c.bf16 %v12049, %v12048
      %v12077 = vpack.c.bf16 %v12051, %v12050
      %v12078 = vpack.c.bf16 %v12053, %v12052
      %v12079 = vpack.c.bf16 %v12055, %v12054
      %v12080 = vpack.c.bf16 %v12057, %v12056
      %v12081 = vpack.c.bf16 %v12059, %v12058
      %v12082 = vpack.c.bf16 %v12061, %v12060
      %v12083 = vpack.c.bf16 %v12063, %v12062
      %v12084 = vpack.c.bf16 %v12065, %v12064
      %v12085 = vpack.c.bf16 %v12067, %v12066
      %v12086 = vpack.c.bf16 %v12069, %v12068
      %v12087 = vpack.c.bf16 %v12071, %v12070
      %s12088 = scalar_lea.vmem %s3, 8
      %v12089 = vld [vmem:[%s12088] sm:$0x3]
      %v12090 = vlaneseq
      %v12091 = vshrl.u32 %v12090, 7
      %v12092 = vsub.s32 2, %v12091
      %v12093 = vrot.slane %v8635, %v12092
      %v12095 = vsel %vm3805, %v12072, 0
      %v12098 = vsel %vm3805, %v12073, 0
      %v12101 = vsel %vm3805, %v12074, 0
      %v12104 = vsel %vm3805, %v12075, 0
      %v12107 = vsel %vm3805, %v12076, 0
      %v12110 = vsel %vm3805, %v12077, 0
      %v12113 = vsel %vm3805, %v12078, 0
      %v12116 = vsel %vm3805, %v12079, 0
      %v12119 = vsel %vm3805, %v12080, 0
      %v12122 = vsel %vm3805, %v12081, 0
      %v12125 = vsel %vm3805, %v12082, 0
      %v12128 = vsel %vm3805, %v12083, 0
      %v12131 = vsel %vm3805, %v12084, 0
      %v12134 = vsel %vm3805, %v12085, 0
      %v12137 = vsel %vm3805, %v12086, 0
      %v12140 = vsel %vm3805, %v12087, 0
      %v12143 = vsel %vm3854, %v12089, 0
      %12145 = vmatprep.subr.bf16.mxu0 0
      %12146 = vmatpush1.bf16.msra.mxu0 0
      %12147 = vmatprep.subr.bf16.mxu0 0
      %12148 = vmatpush1.bf16.msra.mxu0 0
      %12149 = vmatprep.subr.bf16.mxu0 0
      %12150 = vmatpush1.bf16.msra.mxu0 0
      %12151 = vmatprep.subr.bf16.mxu0 0
      %12152 = vmatpush1.bf16.msra.mxu0 0
      %12153 = vmatprep.subr.bf16.mxu0 0
      %12154 = vmatpush1.bf16.msra.mxu0 0
      %12155 = vmatprep.subr.bf16.mxu0 0
      %12156 = vmatpush1.bf16.msra.mxu0 0
      %12157 = vmatprep.subr.bf16.mxu0 0
      %12158 = vmatpush1.bf16.msra.mxu0 0
      %12159 = vmatprep.subr.bf16.mxu0 0
      %12160 = vmatpush1.bf16.msra.mxu0 %v12143
      %12161 = vmatprep.subr.bf16.mxu0 0
      %12162 = vmatpush2.bf16.msra.mxu0 0
      %12163 = vmatprep.subr.bf16.mxu0 0
      %12164 = vmatpush2.bf16.msra.mxu0 0
      %12165 = vmatprep.subr.bf16.mxu0 0
      %12166 = vmatpush2.bf16.msra.mxu0 0
      %12167 = vmatprep.subr.bf16.mxu0 0
      %12168 = vmatpush2.bf16.msra.mxu0 0
      %12169 = vmatprep.subr.bf16.mxu0 0
      %12170 = vmatpush2.bf16.msra.mxu0 0
      %12171 = vmatprep.subr.bf16.mxu0 0
      %12172 = vmatpush2.bf16.msra.mxu0 0
      %12173 = vmatprep.subr.bf16.mxu0 0
      %12174 = vmatpush2.bf16.msra.mxu0 0
      %12175 = vmatprep.subr.bf16.mxu0 0
      %12176 = vmatpush2.bf16.msra.mxu0 0
      %12177 = vmatprep.mubr.bf16.mxu0 0
      %12178 = vmatmul.mubr.bf16.gmra.mxu0 %v12095
      %v12179 = vpop.f32.mrf.mxu0
      %v12180 = vadd.f32 %v12093, %v12179
      %v12181 = vpop.f32.mrf.mxu0
      %v12182 = vpop.f32.mrf.mxu0
      %v12183 = vadd.f32 %v12093, %v12182
      %v12184 = vpop.f32.mrf.mxu0
      %12185 = vmatprep.mubr.bf16.mxu0 0
      %12186 = vmatmul.mubr.bf16.gmra.mxu0 %v12098
      %v12187 = vpop.f32.mrf.mxu0
      %v12188 = vadd.f32 %v12093, %v12187
      %v12189 = vpop.f32.mrf.mxu0
      %v12190 = vpop.f32.mrf.mxu0
      %v12191 = vadd.f32 %v12093, %v12190
      %v12192 = vpop.f32.mrf.mxu0
      %12193 = vmatprep.mubr.bf16.mxu0 0
      %12194 = vmatmul.mubr.bf16.gmra.mxu0 %v12101
      %v12195 = vpop.f32.mrf.mxu0
      %v12196 = vadd.f32 %v12093, %v12195
      %v12197 = vpop.f32.mrf.mxu0
      %v12198 = vpop.f32.mrf.mxu0
      %v12199 = vadd.f32 %v12093, %v12198
      %v12200 = vpop.f32.mrf.mxu0
      %12201 = vmatprep.mubr.bf16.mxu0 0
      %12202 = vmatmul.mubr.bf16.gmra.mxu0 %v12104
      %v12203 = vpop.f32.mrf.mxu0
      %v12204 = vadd.f32 %v12093, %v12203
      %v12205 = vpop.f32.mrf.mxu0
      %v12206 = vpop.f32.mrf.mxu0
      %v12207 = vadd.f32 %v12093, %v12206
      %v12208 = vpop.f32.mrf.mxu0
      %12209 = vmatprep.mubr.bf16.mxu0 0
      %12210 = vmatmul.mubr.bf16.gmra.mxu0 %v12107
      %v12211 = vpop.f32.mrf.mxu0
      %v12212 = vadd.f32 %v12093, %v12211
      %v12213 = vpop.f32.mrf.mxu0
      %v12214 = vpop.f32.mrf.mxu0
      %v12215 = vadd.f32 %v12093, %v12214
      %v12216 = vpop.f32.mrf.mxu0
      %12217 = vmatprep.mubr.bf16.mxu0 0
      %12218 = vmatmul.mubr.bf16.gmra.mxu0 %v12110
      %v12219 = vpop.f32.mrf.mxu0
      %v12220 = vadd.f32 %v12093, %v12219
      %v12221 = vpop.f32.mrf.mxu0
      %v12222 = vpop.f32.mrf.mxu0
      %v12223 = vadd.f32 %v12093, %v12222
      %v12224 = vpop.f32.mrf.mxu0
      %12225 = vmatprep.mubr.bf16.mxu0 0
      %12226 = vmatmul.mubr.bf16.gmra.mxu0 %v12113
      %v12227 = vpop.f32.mrf.mxu0
      %v12228 = vadd.f32 %v12093, %v12227
      %v12229 = vpop.f32.mrf.mxu0
      %v12230 = vpop.f32.mrf.mxu0
      %v12231 = vadd.f32 %v12093, %v12230
      %v12232 = vpop.f32.mrf.mxu0
      %12233 = vmatprep.mubr.bf16.mxu0 0
      %12234 = vmatmul.mubr.bf16.gmra.mxu0 %v12116
      %v12235 = vpop.f32.mrf.mxu0
      %v12236 = vadd.f32 %v12093, %v12235
      %v12237 = vpop.f32.mrf.mxu0
      %v12238 = vpop.f32.mrf.mxu0
      %v12239 = vadd.f32 %v12093, %v12238
      %v12240 = vpop.f32.mrf.mxu0
      %12241 = vmatprep.mubr.bf16.mxu0 0
      %12242 = vmatmul.mubr.bf16.gmra.mxu0 %v12119
      %v12243 = vpop.f32.mrf.mxu0
      %v12244 = vadd.f32 %v12093, %v12243
      %v12245 = vpop.f32.mrf.mxu0
      %v12246 = vpop.f32.mrf.mxu0
      %v12247 = vadd.f32 %v12093, %v12246
      %v12248 = vpop.f32.mrf.mxu0
      %12249 = vmatprep.mubr.bf16.mxu0 0
      %12250 = vmatmul.mubr.bf16.gmra.mxu0 %v12122
      %v12251 = vpop.f32.mrf.mxu0
      %v12252 = vadd.f32 %v12093, %v12251
      %v12253 = vpop.f32.mrf.mxu0
      %v12254 = vpop.f32.mrf.mxu0
      %v12255 = vadd.f32 %v12093, %v12254
      %v12256 = vpop.f32.mrf.mxu0
      %12257 = vmatprep.mubr.bf16.mxu0 0
      %12258 = vmatmul.mubr.bf16.gmra.mxu0 %v12125
      %v12259 = vpop.f32.mrf.mxu0
      %v12260 = vadd.f32 %v12093, %v12259
      %v12261 = vpop.f32.mrf.mxu0
      %v12262 = vpop.f32.mrf.mxu0
      %v12263 = vadd.f32 %v12093, %v12262
      %v12264 = vpop.f32.mrf.mxu0
      %12265 = vmatprep.mubr.bf16.mxu0 0
      %12266 = vmatmul.mubr.bf16.gmra.mxu0 %v12128
      %v12267 = vpop.f32.mrf.mxu0
      %v12268 = vadd.f32 %v12093, %v12267
      %v12269 = vpop.f32.mrf.mxu0
      %v12270 = vpop.f32.mrf.mxu0
      %v12271 = vadd.f32 %v12093, %v12270
      %v12272 = vpop.f32.mrf.mxu0
      %12273 = vmatprep.mubr.bf16.mxu0 0
      %12274 = vmatmul.mubr.bf16.gmra.mxu0 %v12131
      %v12275 = vpop.f32.mrf.mxu0
      %v12276 = vadd.f32 %v12093, %v12275
      %v12277 = vpop.f32.mrf.mxu0
      %v12278 = vpop.f32.mrf.mxu0
      %v12279 = vadd.f32 %v12093, %v12278
      %v12280 = vpop.f32.mrf.mxu0
      %12281 = vmatprep.mubr.bf16.mxu0 0
      %12282 = vmatmul.mubr.bf16.gmra.mxu0 %v12134
      %v12283 = vpop.f32.mrf.mxu0
      %v12284 = vadd.f32 %v12093, %v12283
      %v12285 = vpop.f32.mrf.mxu0
      %v12286 = vpop.f32.mrf.mxu0
      %v12287 = vadd.f32 %v12093, %v12286
      %v12288 = vpop.f32.mrf.mxu0
      %12289 = vmatprep.mubr.bf16.mxu0 0
      %12290 = vmatmul.mubr.bf16.gmra.mxu0 %v12137
      %v12291 = vpop.f32.mrf.mxu0
      %v12292 = vadd.f32 %v12093, %v12291
      %v12293 = vpop.f32.mrf.mxu0
      %v12294 = vpop.f32.mrf.mxu0
      %v12295 = vadd.f32 %v12093, %v12294
      %v12296 = vpop.f32.mrf.mxu0
      %12297 = vmatprep.mubr.bf16.mxu0 0
      %12298 = vmatmul.mubr.bf16.gmra.mxu0 %v12140
      %v12299 = vpop.f32.mrf.mxu0
      %v12300 = vadd.f32 %v12093, %v12299
      %v12301 = vpop.f32.mrf.mxu0
      %v12302 = vpop.f32.mrf.mxu0
      %v12303 = vadd.f32 %v12093, %v12302
      %v12304 = vpop.f32.mrf.mxu0
      %12305 = vdwg.mxu0
      %v12306 = vsel %vm253, %v11676, 0.0
      %v12307 = vsel %vm253, %v11679, 0.0
      %v12308 = vadd.f32 %v12306, %v12307
      %v12309 = vsel %vm253, %v11684, 0.0
      %v12310 = vadd.f32 %v12308, %v12309
      %v12311 = vsel %vm253, %v11687, 0.0
      %v12312 = vadd.f32 %v12310, %v12311
      %v12313 = vsel %vm253, %v11692, 0.0
      %v12314 = vadd.f32 %v12312, %v12313
      %v12315 = vsel %vm253, %v11695, 0.0
      %v12316 = vadd.f32 %v12314, %v12315
      %v12317 = vsel %vm253, %v11700, 0.0
      %v12318 = vadd.f32 %v12316, %v12317
      %v12319 = vsel %vm253, %v11703, 0.0
      %v12320 = vadd.f32 %v12318, %v12319
      %v12321 = vsel %vm253, %v11708, 0.0
      %v12322 = vadd.f32 %v12320, %v12321
      %v12323 = vsel %vm253, %v11711, 0.0
      %v12324 = vadd.f32 %v12322, %v12323
      %v12325 = vsel %vm253, %v11716, 0.0
      %v12326 = vadd.f32 %v12324, %v12325
      %v12327 = vsel %vm253, %v11719, 0.0
      %v12328 = vadd.f32 %v12326, %v12327
      %v12329 = vsel %vm253, %v11724, 0.0
      %v12330 = vadd.f32 %v12328, %v12329
      %v12331 = vsel %vm253, %v11727, 0.0
      %v12332 = vadd.f32 %v12330, %v12331
      %v12333 = vsel %vm253, %v11732, 0.0
      %v12334 = vadd.f32 %v12332, %v12333
      %v12335 = vsel %vm253, %v11735, 0.0
      %v12336 = vadd.f32 %v12334, %v12335
      %v12337 = vsel %vm253, %v11740, 0.0
      %v12338 = vadd.f32 %v12336, %v12337
      %v12339 = vsel %vm253, %v11743, 0.0
      %v12340 = vadd.f32 %v12338, %v12339
      %v12341 = vsel %vm253, %v11748, 0.0
      %v12342 = vadd.f32 %v12340, %v12341
      %v12343 = vsel %vm253, %v11751, 0.0
      %v12344 = vadd.f32 %v12342, %v12343
      %v12345 = vsel %vm253, %v11756, 0.0
      %v12346 = vadd.f32 %v12344, %v12345
      %v12347 = vsel %vm253, %v11759, 0.0
      %v12348 = vadd.f32 %v12346, %v12347
      %v12349 = vsel %vm253, %v11764, 0.0
      %v12350 = vadd.f32 %v12348, %v12349
      %v12351 = vsel %vm253, %v11767, 0.0
      %v12352 = vadd.f32 %v12350, %v12351
      %v12353 = vsel %vm253, %v11772, 0.0
      %v12354 = vadd.f32 %v12352, %v12353
      %v12355 = vsel %vm253, %v11775, 0.0
      %v12356 = vadd.f32 %v12354, %v12355
      %v12357 = vsel %vm253, %v11780, 0.0
      %v12358 = vadd.f32 %v12356, %v12357
      %v12359 = vsel %vm253, %v11783, 0.0
      %v12360 = vadd.f32 %v12358, %v12359
      %v12361 = vsel %vm253, %v11788, 0.0
      %v12362 = vadd.f32 %v12360, %v12361
      %v12363 = vsel %vm253, %v11791, 0.0
      %v12364 = vadd.f32 %v12362, %v12363
      %v12365 = vsel %vm253, %v11796, 0.0
      %v12366 = vadd.f32 %v12364, %v12365
      %v12367 = vsel %vm253, %v11799, 0.0
      %v12368 = vadd.f32 %v12366, %v12367
      %v12369 = vrot.slane %v12368, 4
      %v12370 = vadd.f32 %v12368, %v12369
      %v12371 = vrot.slane %v12370, 2
      %v12372 = vadd.f32 %v12370, %v12371
      %v12373 = vrot.slane %v12372, 1
      %v12374 = vadd.f32 %v12372, %v12373
      %v12375 = vmul.f32 %v12374, %v4088
      %v12376 = vpack.c.bf16 %v12375, %v12375
      %s12377 = scalar_lea.vmem %s2, 40
      %v12378 = vld [vmem:[%s12377] sm:$0xf]
      %v12379 = vld [vmem:[%s12377 + $0x4] sm:$0xf]
      %v12382 = vunpack.c.l.b16 %v12378
      %v12383 = vunpack.c.l.b16 %v12379
      %v12384 = vpack.c.b16 %v12383, %v12382
      %v12387 = vrot.slane %v8637, 1
      %v12390 = vsel %vm253, %v12376, 0
      %12392 = vmatprep.subr.bf16.mxu0 0
      %12393 = vmatpush1.bf16.msra.mxu0 0
      %12394 = vmatprep.subr.bf16.mxu0 0
      %12395 = vmatpush1.bf16.msra.mxu0 0
      %12396 = vmatprep.subr.bf16.mxu0 0
      %12397 = vmatpush1.bf16.msra.mxu0 0
      %12398 = vmatprep.subr.bf16.mxu0 0
      %12399 = vmatpush1.bf16.msra.mxu0 0
      %12400 = vmatprep.subr.bf16.mxu0 0
      %12401 = vmatpush1.bf16.msra.mxu0 0
      %12402 = vmatprep.subr.bf16.mxu0 0
      %12403 = vmatpush1.bf16.msra.mxu0 0
      %12404 = vmatprep.subr.bf16.mxu0 0
      %12405 = vmatpush1.bf16.msra.mxu0 0
      %12406 = vmatprep.subr.bf16.mxu0 0
      %12407 = vmatpush1.bf16.msra.mxu0 %v12384
      %12408 = vmatprep.subr.bf16.mxu0 0
      %12409 = vmatpush2.bf16.msra.mxu0 0
      %12410 = vmatprep.subr.bf16.mxu0 0
      %12411 = vmatpush2.bf16.msra.mxu0 0
      %12412 = vmatprep.subr.bf16.mxu0 0
      %12413 = vmatpush2.bf16.msra.mxu0 0
      %12414 = vmatprep.subr.bf16.mxu0 0
      %12415 = vmatpush2.bf16.msra.mxu0 0
      %12416 = vmatprep.subr.bf16.mxu0 0
      %12417 = vmatpush2.bf16.msra.mxu0 0
      %12418 = vmatprep.subr.bf16.mxu0 0
      %12419 = vmatpush2.bf16.msra.mxu0 0
      %12420 = vmatprep.subr.bf16.mxu0 0
      %12421 = vmatpush2.bf16.msra.mxu0 0
      %12422 = vmatprep.subr.bf16.mxu0 0
      %12423 = vmatpush2.bf16.msra.mxu0 0
      %12424 = vmatprep.mubr.bf16.mxu0 0
      %12425 = vmatmul.mubr.bf16.gmra.mxu0 %v12390
      %v12426 = vpop.f32.mrf.mxu0
      %v12427 = vadd.f32 %v12387, %v12426
      %v12428 = vpop.f32.mrf.mxu0
      %v12429 = vpop.f32.mrf.mxu0
      %v12430 = vpop.f32.mrf.mxu0
      %12431 = vdwg.mxu0
      %v12432 = vmax.f32 %v12427, 0.0
      %v12433 = vpack.c.bf16 %v12432, %v12432
      %s12434 = scalar_lea.vmem %s3, 10
      %v12435 = vld [vmem:[%s12434] sm:$0x3]
      %v12437 = vrot.slane %v8635, 3
      %v12440 = vsel %vm3805, %v12433, 0
      %v12443 = vsel %vm3854, %v12435, 0
      %12445 = vmatprep.subr.bf16.mxu0 0
      %12446 = vmatpush1.bf16.msra.mxu0 0
      %12447 = vmatprep.subr.bf16.mxu0 0
      %12448 = vmatpush1.bf16.msra.mxu0 0
      %12449 = vmatprep.subr.bf16.mxu0 0
      %12450 = vmatpush1.bf16.msra.mxu0 0
      %12451 = vmatprep.subr.bf16.mxu0 0
      %12452 = vmatpush1.bf16.msra.mxu0 0
      %12453 = vmatprep.subr.bf16.mxu0 0
      %12454 = vmatpush1.bf16.msra.mxu0 0
      %12455 = vmatprep.subr.bf16.mxu0 0
      %12456 = vmatpush1.bf16.msra.mxu0 0
      %12457 = vmatprep.subr.bf16.mxu0 0
      %12458 = vmatpush1.bf16.msra.mxu0 0
      %12459 = vmatprep.subr.bf16.mxu0 0
      %12460 = vmatpush1.bf16.msra.mxu0 %v12443
      %12461 = vmatprep.subr.bf16.mxu0 0
      %12462 = vmatpush2.bf16.msra.mxu0 0
      %12463 = vmatprep.subr.bf16.mxu0 0
      %12464 = vmatpush2.bf16.msra.mxu0 0
      %12465 = vmatprep.subr.bf16.mxu0 0
      %12466 = vmatpush2.bf16.msra.mxu0 0
      %12467 = vmatprep.subr.bf16.mxu0 0
      %12468 = vmatpush2.bf16.msra.mxu0 0
      %12469 = vmatprep.subr.bf16.mxu0 0
      %12470 = vmatpush2.bf16.msra.mxu0 0
      %12471 = vmatprep.subr.bf16.mxu0 0
      %12472 = vmatpush2.bf16.msra.mxu0 0
      %12473 = vmatprep.subr.bf16.mxu0 0
      %12474 = vmatpush2.bf16.msra.mxu0 0
      %12475 = vmatprep.subr.bf16.mxu0 0
      %12476 = vmatpush2.bf16.msra.mxu0 0
      %12477 = vmatprep.mubr.bf16.mxu0 0
      %12478 = vmatmul.mubr.bf16.gmra.mxu0 %v12440
      %v12479 = vpop.f32.mrf.mxu0
      %v12480 = vadd.f32 %v12437, %v12479
      %v12481 = vpop.f32.mrf.mxu0
      %v12482 = vpop.f32.mrf.mxu0
      %v12483 = vpop.f32.mrf.mxu0
      %12484 = vdwg.mxu0
      %v12485 = vlaneseq
      %v12486 = vshrl.u32 %v12485, 7
      %v12487 = vsub.s32 0, %v12486
      %v12488 = vrot.slane %v12480, %v12487
      %v12489 = vadd.f32 %v12180, %v12488
      %v12490 = vadd.f32 %v12183, %v12488
      %v12491 = vadd.f32 %v12188, %v12488
      %v12492 = vadd.f32 %v12191, %v12488
      %v12493 = vadd.f32 %v12196, %v12488
      %v12494 = vadd.f32 %v12199, %v12488
      %v12495 = vadd.f32 %v12204, %v12488
      %v12496 = vadd.f32 %v12207, %v12488
      %v12497 = vadd.f32 %v12212, %v12488
      %v12498 = vadd.f32 %v12215, %v12488
      %v12499 = vadd.f32 %v12220, %v12488
      %v12500 = vadd.f32 %v12223, %v12488
      %v12501 = vadd.f32 %v12228, %v12488
      %v12502 = vadd.f32 %v12231, %v12488
      %v12503 = vadd.f32 %v12236, %v12488
      %v12504 = vadd.f32 %v12239, %v12488
      %v12505 = vadd.f32 %v12244, %v12488
      %v12506 = vadd.f32 %v12247, %v12488
      %v12507 = vadd.f32 %v12252, %v12488
      %v12508 = vadd.f32 %v12255, %v12488
      %v12509 = vadd.f32 %v12260, %v12488
      %v12510 = vadd.f32 %v12263, %v12488
      %v12511 = vadd.f32 %v12268, %v12488
      %v12512 = vadd.f32 %v12271, %v12488
      %v12513 = vadd.f32 %v12276, %v12488
      %v12514 = vadd.f32 %v12279, %v12488
      %v12515 = vadd.f32 %v12284, %v12488
      %v12516 = vadd.f32 %v12287, %v12488
      %v12517 = vadd.f32 %v12292, %v12488
      %v12518 = vadd.f32 %v12295, %v12488
      %v12519 = vadd.f32 %v12300, %v12488
      %v12520 = vadd.f32 %v12303, %v12488
      %v12521 = vxor.u32 %v12489, 2147483648
      %v12522 = vxor.u32 %v12490, 2147483648
      %v12523 = vxor.u32 %v12491, 2147483648
      %v12524 = vxor.u32 %v12492, 2147483648
      %v12525 = vxor.u32 %v12493, 2147483648
      %v12526 = vxor.u32 %v12494, 2147483648
      %v12527 = vxor.u32 %v12495, 2147483648
      %v12528 = vxor.u32 %v12496, 2147483648
      %v12529 = vxor.u32 %v12497, 2147483648
      %v12530 = vxor.u32 %v12498, 2147483648
      %v12531 = vxor.u32 %v12499, 2147483648
      %v12532 = vxor.u32 %v12500, 2147483648
      %v12533 = vxor.u32 %v12501, 2147483648
      %v12534 = vxor.u32 %v12502, 2147483648
      %v12535 = vxor.u32 %v12503, 2147483648
      %v12536 = vxor.u32 %v12504, 2147483648
      %v12537 = vxor.u32 %v12505, 2147483648
      %v12538 = vxor.u32 %v12506, 2147483648
      %v12539 = vxor.u32 %v12507, 2147483648
      %v12540 = vxor.u32 %v12508, 2147483648
      %v12541 = vxor.u32 %v12509, 2147483648
      %v12542 = vxor.u32 %v12510, 2147483648
      %v12543 = vxor.u32 %v12511, 2147483648
      %v12544 = vxor.u32 %v12512, 2147483648
      %v12545 = vxor.u32 %v12513, 2147483648
      %v12546 = vxor.u32 %v12514, 2147483648
      %v12547 = vxor.u32 %v12515, 2147483648
      %v12548 = vxor.u32 %v12516, 2147483648
      %v12549 = vxor.u32 %v12517, 2147483648
      %v12550 = vxor.u32 %v12518, 2147483648
      %v12551 = vxor.u32 %v12519, 2147483648
      %v12552 = vxor.u32 %v12520, 2147483648
      %v12553 = vmul.f32 %v12521, 1.442695
      %v12554 = vpow.pop %v12553
      %v12555 = vmul.f32 %v12522, 1.442695
      %v12556 = vpow.pop %v12555
      %v12557 = vmul.f32 %v12523, 1.442695
      %v12558 = vpow.pop %v12557
      %v12559 = vmul.f32 %v12524, 1.442695
      %v12560 = vpow.pop %v12559
      %v12561 = vmul.f32 %v12525, 1.442695
      %v12562 = vpow.pop %v12561
      %v12563 = vmul.f32 %v12526, 1.442695
      %v12564 = vpow.pop %v12563
      %v12565 = vmul.f32 %v12527, 1.442695
      %v12566 = vpow.pop %v12565
      %v12567 = vmul.f32 %v12528, 1.442695
      %v12568 = vpow.pop %v12567
      %v12569 = vmul.f32 %v12529, 1.442695
      %v12570 = vpow.pop %v12569
      %v12571 = vmul.f32 %v12530, 1.442695
      %v12572 = vpow.pop %v12571
      %v12573 = vmul.f32 %v12531, 1.442695
      %v12574 = vpow.pop %v12573
      %v12575 = vmul.f32 %v12532, 1.442695
      %v12576 = vpow.pop %v12575
      %v12577 = vmul.f32 %v12533, 1.442695
      %v12578 = vpow.pop %v12577
      %v12579 = vmul.f32 %v12534, 1.442695
      %v12580 = vpow.pop %v12579
      %v12581 = vmul.f32 %v12535, 1.442695
      %v12582 = vpow.pop %v12581
      %v12583 = vmul.f32 %v12536, 1.442695
      %v12584 = vpow.pop %v12583
      %v12585 = vmul.f32 %v12537, 1.442695
      %v12586 = vpow.pop %v12585
      %v12587 = vmul.f32 %v12538, 1.442695
      %v12588 = vpow.pop %v12587
      %v12589 = vmul.f32 %v12539, 1.442695
      %v12590 = vpow.pop %v12589
      %v12591 = vmul.f32 %v12540, 1.442695
      %v12592 = vpow.pop %v12591
      %v12593 = vmul.f32 %v12541, 1.442695
      %v12594 = vpow.pop %v12593
      %v12595 = vmul.f32 %v12542, 1.442695
      %v12596 = vpow.pop %v12595
      %v12597 = vmul.f32 %v12543, 1.442695
      %v12598 = vpow.pop %v12597
      %v12599 = vmul.f32 %v12544, 1.442695
      %v12600 = vpow.pop %v12599
      %v12601 = vmul.f32 %v12545, 1.442695
      %v12602 = vpow.pop %v12601
      %v12603 = vmul.f32 %v12546, 1.442695
      %v12604 = vpow.pop %v12603
      %v12605 = vmul.f32 %v12547, 1.442695
      %v12606 = vpow.pop %v12605
      %v12607 = vmul.f32 %v12548, 1.442695
      %v12608 = vpow.pop %v12607
      %v12609 = vmul.f32 %v12549, 1.442695
      %v12610 = vpow.pop %v12609
      %v12611 = vmul.f32 %v12550, 1.442695
      %v12612 = vpow.pop %v12611
      %v12613 = vmul.f32 %v12551, 1.442695
      %v12614 = vpow.pop %v12613
      %v12615 = vmul.f32 %v12552, 1.442695
      %v12616 = vpow.pop %v12615
      %v12617 = vadd.f32 %v12554, 1.0
      %v12618 = vadd.f32 %v12556, 1.0
      %v12619 = vadd.f32 %v12558, 1.0
      %v12620 = vadd.f32 %v12560, 1.0
      %v12621 = vadd.f32 %v12562, 1.0
      %v12622 = vadd.f32 %v12564, 1.0
      %v12623 = vadd.f32 %v12566, 1.0
      %v12624 = vadd.f32 %v12568, 1.0
      %v12625 = vadd.f32 %v12570, 1.0
      %v12626 = vadd.f32 %v12572, 1.0
      %v12627 = vadd.f32 %v12574, 1.0
      %v12628 = vadd.f32 %v12576, 1.0
      %v12629 = vadd.f32 %v12578, 1.0
      %v12630 = vadd.f32 %v12580, 1.0
      %v12631 = vadd.f32 %v12582, 1.0
      %v12632 = vadd.f32 %v12584, 1.0
      %v12633 = vadd.f32 %v12586, 1.0
      %v12634 = vadd.f32 %v12588, 1.0
      %v12635 = vadd.f32 %v12590, 1.0
      %v12636 = vadd.f32 %v12592, 1.0
      %v12637 = vadd.f32 %v12594, 1.0
      %v12638 = vadd.f32 %v12596, 1.0
      %v12639 = vadd.f32 %v12598, 1.0
      %v12640 = vadd.f32 %v12600, 1.0
      %v12641 = vadd.f32 %v12602, 1.0
      %v12642 = vadd.f32 %v12604, 1.0
      %v12643 = vadd.f32 %v12606, 1.0
      %v12644 = vadd.f32 %v12608, 1.0
      %v12645 = vadd.f32 %v12610, 1.0
      %v12646 = vadd.f32 %v12612, 1.0
      %v12647 = vadd.f32 %v12614, 1.0
      %v12648 = vadd.f32 %v12616, 1.0
      %v12649 = vrcp.pop %v12617
      %v12650 = vmul.f32 1.0, %v12649
      %v12651 = vrcp.pop %v12618
      %v12652 = vmul.f32 1.0, %v12651
      %v12653 = vrcp.pop %v12619
      %v12654 = vmul.f32 1.0, %v12653
      %v12655 = vrcp.pop %v12620
      %v12656 = vmul.f32 1.0, %v12655
      %v12657 = vrcp.pop %v12621
      %v12658 = vmul.f32 1.0, %v12657
      %v12659 = vrcp.pop %v12622
      %v12660 = vmul.f32 1.0, %v12659
      %v12661 = vrcp.pop %v12623
      %v12662 = vmul.f32 1.0, %v12661
      %v12663 = vrcp.pop %v12624
      %v12664 = vmul.f32 1.0, %v12663
      %v12665 = vrcp.pop %v12625
      %v12666 = vmul.f32 1.0, %v12665
      %v12667 = vrcp.pop %v12626
      %v12668 = vmul.f32 1.0, %v12667
      %v12669 = vrcp.pop %v12627
      %v12670 = vmul.f32 1.0, %v12669
      %v12671 = vrcp.pop %v12628
      %v12672 = vmul.f32 1.0, %v12671
      %v12673 = vrcp.pop %v12629
      %v12674 = vmul.f32 1.0, %v12673
      %v12675 = vrcp.pop %v12630
      %v12676 = vmul.f32 1.0, %v12675
      %v12677 = vrcp.pop %v12631
      %v12678 = vmul.f32 1.0, %v12677
      %v12679 = vrcp.pop %v12632
      %v12680 = vmul.f32 1.0, %v12679
      %v12681 = vrcp.pop %v12633
      %v12682 = vmul.f32 1.0, %v12681
      %v12683 = vrcp.pop %v12634
      %v12684 = vmul.f32 1.0, %v12683
      %v12685 = vrcp.pop %v12635
      %v12686 = vmul.f32 1.0, %v12685
      %v12687 = vrcp.pop %v12636
      %v12688 = vmul.f32 1.0, %v12687
      %v12689 = vrcp.pop %v12637
      %v12690 = vmul.f32 1.0, %v12689
      %v12691 = vrcp.pop %v12638
      %v12692 = vmul.f32 1.0, %v12691
      %v12693 = vrcp.pop %v12639
      %v12694 = vmul.f32 1.0, %v12693
      %v12695 = vrcp.pop %v12640
      %v12696 = vmul.f32 1.0, %v12695
      %v12697 = vrcp.pop %v12641
      %v12698 = vmul.f32 1.0, %v12697
      %v12699 = vrcp.pop %v12642
      %v12700 = vmul.f32 1.0, %v12699
      %v12701 = vrcp.pop %v12643
      %v12702 = vmul.f32 1.0, %v12701
      %v12703 = vrcp.pop %v12644
      %v12704 = vmul.f32 1.0, %v12703
      %v12705 = vrcp.pop %v12645
      %v12706 = vmul.f32 1.0, %v12705
      %v12707 = vrcp.pop %v12646
      %v12708 = vmul.f32 1.0, %v12707
      %v12709 = vrcp.pop %v12647
      %v12710 = vmul.f32 1.0, %v12709
      %v12711 = vrcp.pop %v12648
      %v12712 = vmul.f32 1.0, %v12711
      %v12713 = vmul.f32 %v11676, %v12650
      %v12714 = vmul.f32 %v11679, %v12652
      %v12715 = vmul.f32 %v11684, %v12654
      %v12716 = vmul.f32 %v11687, %v12656
      %v12717 = vmul.f32 %v11692, %v12658
      %v12718 = vmul.f32 %v11695, %v12660
      %v12719 = vmul.f32 %v11700, %v12662
      %v12720 = vmul.f32 %v11703, %v12664
      %v12721 = vmul.f32 %v11708, %v12666
      %v12722 = vmul.f32 %v11711, %v12668
      %v12723 = vmul.f32 %v11716, %v12670
      %v12724 = vmul.f32 %v11719, %v12672
      %v12725 = vmul.f32 %v11724, %v12674
      %v12726 = vmul.f32 %v11727, %v12676
      %v12727 = vmul.f32 %v11732, %v12678
      %v12728 = vmul.f32 %v11735, %v12680
      %v12729 = vmul.f32 %v11740, %v12682
      %v12730 = vmul.f32 %v11743, %v12684
      %v12731 = vmul.f32 %v11748, %v12686
      %v12732 = vmul.f32 %v11751, %v12688
      %v12733 = vmul.f32 %v11756, %v12690
      %v12734 = vmul.f32 %v11759, %v12692
      %v12735 = vmul.f32 %v11764, %v12694
      %v12736 = vmul.f32 %v11767, %v12696
      %v12737 = vmul.f32 %v11772, %v12698
      %v12738 = vmul.f32 %v11775, %v12700
      %v12739 = vmul.f32 %v11780, %v12702
      %v12740 = vmul.f32 %v11783, %v12704
      %v12741 = vmul.f32 %v11788, %v12706
      %v12742 = vmul.f32 %v11791, %v12708
      %v12743 = vmul.f32 %v11796, %v12710
      %v12744 = vmul.f32 %v11799, %v12712
      %v12745 = vadd.f32 %v8602, %v12713
      %v12746 = vadd.f32 %v8603, %v12714
      %v12747 = vadd.f32 %v8604, %v12715
      %v12748 = vadd.f32 %v8605, %v12716
      %v12749 = vadd.f32 %v8606, %v12717
      %v12750 = vadd.f32 %v8607, %v12718
      %v12751 = vadd.f32 %v8608, %v12719
      %v12752 = vadd.f32 %v8609, %v12720
      %v12753 = vadd.f32 %v8610, %v12721
      %v12754 = vadd.f32 %v8611, %v12722
      %v12755 = vadd.f32 %v8612, %v12723
      %v12756 = vadd.f32 %v8613, %v12724
      %v12757 = vadd.f32 %v8614, %v12725
      %v12758 = vadd.f32 %v8615, %v12726
      %v12759 = vadd.f32 %v8616, %v12727
      %v12760 = vadd.f32 %v8617, %v12728
      %v12761 = vadd.f32 %v8618, %v12729
      %v12762 = vadd.f32 %v8619, %v12730
      %v12763 = vadd.f32 %v8620, %v12731
      %v12764 = vadd.f32 %v8621, %v12732
      %v12765 = vadd.f32 %v8622, %v12733
      %v12766 = vadd.f32 %v8623, %v12734
      %v12767 = vadd.f32 %v8624, %v12735
      %v12768 = vadd.f32 %v8625, %v12736
      %v12769 = vadd.f32 %v8626, %v12737
      %v12770 = vadd.f32 %v8627, %v12738
      %v12771 = vadd.f32 %v8628, %v12739
      %v12772 = vadd.f32 %v8629, %v12740
      %v12773 = vadd.f32 %v8630, %v12741
      %v12774 = vadd.f32 %v8631, %v12742
      %v12775 = vadd.f32 %v8632, %v12743
      %v12776 = vadd.f32 %v8633, %v12744
      %12777 = vst.msk [vmem:[%s251] sm:$0xff] %vm253, %v12745
      %12778 = vst.msk [vmem:[%s251 + $0x8] sm:$0xff] %vm253, %v12746
      %12779 = vst.msk [vmem:[%s251 + $0x10] sm:$0xff] %vm253, %v12747
      %12780 = vst.msk [vmem:[%s251 + $0x18] sm:$0xff] %vm253, %v12748
      %12781 = vst.msk [vmem:[%s251 + $0x20] sm:$0xff] %vm253, %v12749
      %12782 = vst.msk [vmem:[%s251 + $0x28] sm:$0xff] %vm253, %v12750
      %12783 = vst.msk [vmem:[%s251 + $0x30] sm:$0xff] %vm253, %v12751
      %12784 = vst.msk [vmem:[%s251 + $0x38] sm:$0xff] %vm253, %v12752
      %12785 = vst.msk [vmem:[%s251 + $0x40] sm:$0xff] %vm253, %v12753
      %12786 = vst.msk [vmem:[%s251 + $0x48] sm:$0xff] %vm253, %v12754
      %12787 = vst.msk [vmem:[%s251 + $0x50] sm:$0xff] %vm253, %v12755
      %12788 = vst.msk [vmem:[%s251 + $0x58] sm:$0xff] %vm253, %v12756
      %12789 = vst.msk [vmem:[%s251 + $0x60] sm:$0xff] %vm253, %v12757
      %12790 = vst.msk [vmem:[%s251 + $0x68] sm:$0xff] %vm253, %v12758
      %12791 = vst.msk [vmem:[%s251 + $0x70] sm:$0xff] %vm253, %v12759
      %12792 = vst.msk [vmem:[%s251 + $0x78] sm:$0xff] %vm253, %v12760
      %12793 = vst.msk [vmem:[%s251 + $0x80] sm:$0xff] %vm253, %v12761
      %12794 = vst.msk [vmem:[%s251 + $0x88] sm:$0xff] %vm253, %v12762
      %12795 = vst.msk [vmem:[%s251 + $0x90] sm:$0xff] %vm253, %v12763
      %12796 = vst.msk [vmem:[%s251 + $0x98] sm:$0xff] %vm253, %v12764
      %12797 = vst.msk [vmem:[%s251 + $0xa0] sm:$0xff] %vm253, %v12765
      %12798 = vst.msk [vmem:[%s251 + $0xa8] sm:$0xff] %vm253, %v12766
      %12799 = vst.msk [vmem:[%s251 + $0xb0] sm:$0xff] %vm253, %v12767
      %12800 = vst.msk [vmem:[%s251 + $0xb8] sm:$0xff] %vm253, %v12768
      %12801 = vst.msk [vmem:[%s251 + $0xc0] sm:$0xff] %vm253, %v12769
      %12802 = vst.msk [vmem:[%s251 + $0xc8] sm:$0xff] %vm253, %v12770
      %12803 = vst.msk [vmem:[%s251 + $0xd0] sm:$0xff] %vm253, %v12771
      %12804 = vst.msk [vmem:[%s251 + $0xd8] sm:$0xff] %vm253, %v12772
      %12805 = vst.msk [vmem:[%s251 + $0xe0] sm:$0xff] %vm253, %v12773
      %12806 = vst.msk [vmem:[%s251 + $0xe8] sm:$0xff] %vm253, %v12774
      %12807 = vst.msk [vmem:[%s251 + $0xf0] sm:$0xff] %vm253, %v12775
      %12808 = vst.msk [vmem:[%s251 + $0xf8] sm:$0xff] %vm253, %v12776
      %p12809 = scmp.lt.s32.totalorder %s17, 1
      %s12810 = scalar_select %p12809, %s17, 1
      %s12811 = smul.addr %s12810, 32
      %s12812 = smul.addr %s12811, 8
      %s12813 = scalar_lea.vmem %s6, %s12812
      // Predicated region
      $region45: #{tpu_custom_call.1} parent=43 // pred_check
        %p12814 = pneg %p166
      $region46: #{tpu_custom_call.1} parent=43 // pred_check_branch
        %12816 = sbr.rel (%p12814) target = $region48
      $region47: #{tpu_custom_call.1} parent=43 // pred_region
        _
      $region48: #{tpu_custom_call.1} parent=43 // pred_fallthru
        _
    $region44: #{tpu_custom_call.1} parent=5 // pred_fallthru
      _
    %p12817 = scmp.le.s32.totalorder 2, %s12
    // Predicated region
    $region49: #{tpu_custom_call.1} parent=5 // pred_check
      %p12818 = pneg %p12817
    $region50: #{tpu_custom_call.1} parent=5 // pred_check_branch
      %12820 = sbr.rel (%p12818) target = $region52
    $region51: #{tpu_custom_call.1} parent=5 // pred_region
      %s12821 = ssub.s32 %s12, 2
      // Predicated region
      $region53: #{tpu_custom_call.1} parent=51 // pred_check
        %p12822 = pneg %p172
      $region54: #{tpu_custom_call.1} parent=51 // pred_check_branch
        %12824 = sbr.rel (%p12822) target = $region56
      $region55: #{tpu_custom_call.1} parent=51 // pred_region
        %p12825 = scmp.lt.s32.totalorder %s18, 1
        %s12826 = scalar_select %p12825, %s18, 1
        %s12827 = smul.addr %s12826, 32
        %s12828 = smul.addr %s12827, 8
        %s12829 = scalar_lea.vmem %s6, %s12828
      $region56: #{tpu_custom_call.1} parent=51 // pred_fallthru
        _
    $region52: #{tpu_custom_call.1} parent=5 // pred_fallthru
      _
  $region6: #{tpu_custom_call.1} parent=0 // loop_footer
    %s16 = sadd.s32 1, %s12
  $region7: #{tpu_custom_call.1} parent=0 // loop_footer_branch
    %11 = sbr.rel target = $region3
  $region8: #{tpu_custom_call.1} parent=0 // loop_exit
    _

</llo_original>
